<compile_context>
chip_gen: v7x
topology: tpu7x:2x2x1
jax: 0.10.0
libtpu: 0.0.40
codegen_flags: <defaults>
</compile_context>

<pallas_src>
import jax
import jax.numpy as jnp
from jax.experimental import pallas as pl
from jax.experimental.pallas import tpu as pltpu

# --- model hyper-parameters (from the PyTorch module) ---
N_EMBD = 64
N_HEAD = 4
N_LAYER = 4
BLOCK_SIZE = 79
VOCAB_SIZE = 49          # len(chars)
HEAD_SIZE = N_EMBD // N_HEAD
LN_EPS = 1e-5

VOCAB_PAD = 128          # lane-dense lm_head out-dim (sliced back in glue)
VOCAB_ROWS = 64          # padded vocab rows for the one-hot embedding matmul
POS_PAD = 80             # block_size (79) padded to a sublane multiple
NEG_BIAS = -1e30         # finite mask bias (exp underflows to 0 after row-max)

# rows of the per-layer (L, 8, N_EMBD) vector slab
_R_LN1W, _R_LN1B, _R_LN2W, _R_LN2B, _R_PROJB, _R_B2 = 0, 1, 2, 3, 4, 5


def _layer_norm(z, w, b):
    # one-pass form: both cross-lane reductions can overlap on the XLU
    mean = jnp.mean(z, axis=-1, keepdims=True)
    meansq = jnp.mean(z * z, axis=-1, keepdims=True)
    var = meansq - mean * mean
    return (z - mean) * jax.lax.rsqrt(var + LN_EPS) * w + b


# ----------------------------------------------------------------------------
# Fused kernel: embedding + all 4 blocks + final LayerNorm + lm_head for a
# block of B_blk batch elements (rows flattened into the matmul M dimension).
# ----------------------------------------------------------------------------
def fused_model_kernel(idx_ref, tok_ref, pos_ref, bias_ref,
                       wqkv_ref, projw_ref, w1_ref, w2_ref,
                       vec_ref, b1_ref, fin_ref, lmw_ref, lmb_ref,
                       o_ref):
    f32, bf16 = jnp.float32, jnp.bfloat16
    B_blk, T_pad, _ = idx_ref.shape
    R = B_blk * T_pad
    C = N_EMBD
    hs = HEAD_SIZE
    # NOTE: reference scales by n_embd**-0.5 (C of the *input*), not head_size.
    scale = C ** -0.5

    # ---- token embedding gather as a one-hot MXU matmul (no HBM gather) ----
    ids = idx_ref[...].reshape(R, 1)                                     # int32
    vocab_iota = jax.lax.broadcasted_iota(jnp.int32, (R, VOCAB_ROWS), 1)
    onehot = (ids == vocab_iota).astype(f32)                             # (R, 64)
    x = jnp.dot(onehot, tok_ref[...], preferred_element_type=f32)        # (R, C)
    pos = pos_ref[...]                                                   # (T_pad, C)
    if B_blk > 1:
        pos = jnp.concatenate([pos] * B_blk, axis=0)
    x = x + pos

    bias = bias_ref[...]           # (T_pad, T_pad) causal (+pad-col) additive bias

    for l in range(N_LAYER):                       # static unroll, n_layer = 4
        vec = vec_ref[l]                           # (8, C) per-layer vector slab
        ln1_w, ln1_b = vec[_R_LN1W:_R_LN1W + 1], vec[_R_LN1B:_R_LN1B + 1]
        ln2_w, ln2_b = vec[_R_LN2W:_R_LN2W + 1], vec[_R_LN2B:_R_LN2B + 1]
        proj_b, b2 = vec[_R_PROJB:_R_PROJB + 1], vec[_R_B2:_R_B2 + 1]

        # --- self-attention branch: x + proj(multi-head attention(ln1(x))) ---
        xln = _layer_norm(x, ln1_w, ln1_b)
        qkv = jnp.dot(xln.astype(bf16), wqkv_ref[l],
                      preferred_element_type=f32)                        # (R, 3C)
        wp_l = projw_ref[l]                                              # (H, hs, C)

        attn_rows = []
        for b in range(B_blk):                     # static unroll over samples
            r0 = b * T_pad
            kT = qkv[r0:r0 + T_pad, C:2 * C].T     # (C, T_pad): 1 transpose/layer/sample
            acc = jnp.zeros((T_pad, C), f32)
            for h in range(N_HEAD):                # static unroll, n_head = 4
                c0 = h * hs
                q_h = qkv[r0:r0 + T_pad, c0:c0 + hs].astype(bf16)        # (T, hs)
                kT_h = kT[c0:c0 + hs, :].astype(bf16)                    # sublane slice
                v_h = qkv[r0:r0 + T_pad, 2 * C + c0:2 * C + c0 + hs].astype(bf16)
                s = jnp.dot(q_h, kT_h, preferred_element_type=f32) * scale + bias
                m = jnp.max(s, axis=-1, keepdims=True)
                e = jnp.exp(s - m)
                p = e * pl.reciprocal(jnp.sum(e, axis=-1, keepdims=True),
                                      approx=True)
                o_h = jnp.dot(p.astype(bf16), v_h, preferred_element_type=f32)
                # concat of head outputs folded into the output projection:
                acc = acc + jnp.dot(o_h.astype(bf16), wp_l[h],
                                    preferred_element_type=f32)
            attn_rows.append(acc)
        attn = attn_rows[0] if B_blk == 1 else jnp.concatenate(attn_rows, axis=0)
        x = x + attn + proj_b

        # --- feed-forward branch: x + ffwd(ln2(x)) ---
        xln2 = _layer_norm(x, ln2_w, ln2_b)
        h1 = jnp.dot(xln2.astype(bf16), w1_ref[l],
                     preferred_element_type=f32) + b1_ref[l]
        h1 = jnp.maximum(h1, 0.0)
        x = x + jnp.dot(h1.astype(bf16), w2_ref[l],
                        preferred_element_type=f32) + b2
        # dropout = 0.0 in the reference -> identity

    # --- final LayerNorm + lm_head (128-lane padded output) ---
    fin = fin_ref[...]
    xf = _layer_norm(x, fin[0:1], fin[1:2])
    logits = jnp.dot(xf.astype(bf16), lmw_ref[...],
                     preferred_element_type=f32) + lmb_ref[...]
    o_ref[...] = logits.reshape(B_blk, T_pad, VOCAB_PAD).astype(o_ref.dtype)


def _full_spec(shape):
    """Whole-array VMEM block, constant across the grid (DMA'd once)."""
    nd = len(shape)
    return pl.BlockSpec(shape, lambda g, _nd=nd: (0,) * _nd)


def _fused_forward(idx_pad, bias, kp, grid_g):
    """idx_pad: (B, T_pad, 1) int32 -> logits (B, T_pad, VOCAB_PAD) float32."""
    B, T_pad, _ = idx_pad.shape
    assert B % grid_g == 0
    B_blk = B // grid_g
    weights = (kp['wqkv'], kp['proj_w'], kp['w1'], kp['w2'],
               kp['vec_slab'], kp['b1'], kp['final_slab'],
               kp['lm_w'], kp['lm_b'])
    in_specs = [
        pl.BlockSpec((B_blk, T_pad, 1), lambda g: (g, 0, 0)),   # token ids
        _full_spec(kp['tok_emb'].shape),                        # (64, C) padded table
        pl.BlockSpec((T_pad, N_EMBD), lambda g: (0, 0)),        # first T_pad pos rows
        _full_spec(bias.shape),                                 # (T_pad, T_pad) bias
    ] + [_full_spec(w.shape) for w in weights]
    out_spec = pl.BlockSpec((B_blk, T_pad, VOCAB_PAD), lambda g: (g, 0, 0))
    return pl.pallas_call(
        fused_model_kernel,
        out_shape=jax.ShapeDtypeStruct((B, T_pad, VOCAB_PAD), jnp.float32),
        grid=(grid_g,),
        in_specs=in_specs,
        out_specs=out_spec,
        compiler_params=pltpu.CompilerParams(
            dimension_semantics=("parallel",)),   # feeds both TCs on v7x
    )(idx_pad, kp['tok_emb'], kp['pos_emb'], bias, *weights)


def bigram_forward(idx, params):
    """idx: (B, T) int token ids; returns logits (B, T, VOCAB_SIZE) float32."""
    B, T = idx.shape
    T_pad = ((T + 7) // 8) * 8                           # sublane-friendly T
    idx_pad = jnp.pad(idx.astype(jnp.int32), ((0, 0), (0, T_pad - T)))[:, :, None]
    # Causal additive bias built once in glue and reused by every layer/head.
    # Padded key columns (col >= T) are masked explicitly so correctness does
    # not depend on the causal test alone; padded query rows are discarded by
    # the final slice below.
    row = jax.lax.broadcasted_iota(jnp.int32, (T_pad, T_pad), 0)
    col = jax.lax.broadcasted_iota(jnp.int32, (T_pad, T_pad), 1)
    bias = jnp.where((col <= row) & (col < T), 0.0, NEG_BIAS).astype(jnp.float32)
    grid_g = 2 if B % 2 == 0 else 1                      # 2-way parallel grid (v7x)
    logits = _fused_forward(idx_pad, bias, params['kernel'], grid_g)
    return logits[:, :T, :VOCAB_SIZE]                    # drop pad rows / pad vocab


# ----------------- deterministic parameter init (natural layout) -----------------
def init_params(key):
    def normal(k, shape, std=0.02):
        return (std * jax.random.normal(k, shape)).astype(jnp.float32)

    keys = iter(jax.random.split(key, 8 + N_LAYER * 8))
    params = {
        'tok_emb': normal(next(keys), (VOCAB_SIZE, N_EMBD)),
        'pos_emb': normal(next(keys), (BLOCK_SIZE, N_EMBD)),
        'lnf_w': jnp.ones((1, N_EMBD), jnp.float32),
        'lnf_b': jnp.zeros((1, N_EMBD), jnp.float32),
        'lm_w': normal(next(keys), (N_EMBD, VOCAB_SIZE)),   # stored (in, out)
        'lm_b': jnp.zeros((1, VOCAB_SIZE), jnp.float32),
        'blocks': [],
    }
    for _ in range(N_LAYER):
        blk = {
            'ln1_w': jnp.ones((1, N_EMBD), jnp.float32),
            'ln1_b': jnp.zeros((1, N_EMBD), jnp.float32),
            'wq': normal(next(keys), (N_EMBD, N_EMBD)),      # heads concat on out dim
            'wk': normal(next(keys), (N_EMBD, N_EMBD)),
            'wv': normal(next(keys), (N_EMBD, N_EMBD)),
            'proj_w': normal(next(keys), (N_EMBD, N_EMBD)),
            'proj_b': jnp.zeros((1, N_EMBD), jnp.float32),
            'ln2_w': jnp.ones((1, N_EMBD), jnp.float32),
            'ln2_b': jnp.zeros((1, N_EMBD), jnp.float32),
            'w1': normal(next(keys), (N_EMBD, 4 * N_EMBD)),
            'b1': jnp.zeros((1, 4 * N_EMBD), jnp.float32),
            'w2': normal(next(keys), (4 * N_EMBD, N_EMBD)),
            'b2': jnp.zeros((1, N_EMBD), jnp.float32),
        }
        params['blocks'].append(blk)
    return params


def pack_params(params):
    """Repack natural params into the fused-kernel layout:
       * stack per-layer weights with a leading layer axis (bf16 for matmuls),
       * fuse Wq|Wk|Wv into one (L, C, 3C) slab,
       * per-head output-projection (L, H, hs, C),
       * pack per-layer vectors into one (L, 8, C) f32 slab,
       * pad vocab rows to 64 (embedding) and lm_head out-dim to 128."""
    blocks = params['blocks']
    C, H, hs = N_EMBD, N_HEAD, HEAD_SIZE
    bf16 = jnp.bfloat16

    tok = jnp.zeros((VOCAB_ROWS, C), jnp.float32).at[:VOCAB_SIZE].set(params['tok_emb'])
    pos = jnp.zeros((POS_PAD, C), jnp.float32).at[:BLOCK_SIZE].set(params['pos_emb'])

    wqkv = jnp.stack([jnp.concatenate([b['wq'], b['wk'], b['wv']], axis=1)
                      for b in blocks], axis=0).astype(bf16)          # (L, C, 3C)
    proj_w = jnp.stack([b['proj_w'].reshape(H, hs, C) for b in blocks],
                       axis=0).astype(bf16)                           # (L, H, hs, C)
    w1 = jnp.stack([b['w1'] for b in blocks], axis=0).astype(bf16)    # (L, C, 4C)
    w2 = jnp.stack([b['w2'] for b in blocks], axis=0).astype(bf16)    # (L, 4C, C)
    b1 = jnp.stack([b['b1'] for b in blocks], axis=0)                 # (L, 1, 4C) f32

    def row(b, name):
        return b[name].reshape(C)

    vec = jnp.stack([
        jnp.stack([row(b, 'ln1_w'), row(b, 'ln1_b'),
                   row(b, 'ln2_w'), row(b, 'ln2_b'),
                   row(b, 'proj_b'), row(b, 'b2'),
                   jnp.zeros((C,), jnp.float32), jnp.zeros((C,), jnp.float32)],
                  axis=0)
        for b in blocks], axis=0)                                     # (L, 8, C) f32

    fin = jnp.zeros((8, C), jnp.float32)
    fin = fin.at[0].set(params['lnf_w'].reshape(C)).at[1].set(params['lnf_b'].reshape(C))

    lm_w = jnp.zeros((C, VOCAB_PAD), jnp.float32)
    lm_w = lm_w.at[:, :VOCAB_SIZE].set(params['lm_w']).astype(bf16)
    lm_b = jnp.zeros((1, VOCAB_PAD), jnp.float32)
    lm_b = lm_b.at[:, :VOCAB_SIZE].set(params['lm_b'])

    return {'tok_emb': tok, 'pos_emb': pos, 'wqkv': wqkv, 'proj_w': proj_w,
            'w1': w1, 'w2': w2, 'b1': b1, 'vec_slab': vec, 'final_slab': fin,
            'lm_w': lm_w, 'lm_b': lm_b}


# ----------------- pure-JAX f32 reference (for correctness) -----------------
def reference_forward(idx, params):
    B, T = idx.shape
    x = params['tok_emb'][idx] + params['pos_emb'][:T][None]
    causal = jnp.tril(jnp.ones((T, T), bool))
    for p in params['blocks']:
        xln = _layer_norm(x, p['ln1_w'], p['ln1_b'])
        q, k, v = xln @ p['wq'], xln @ p['wk'], xln @ p['wv']
        heads = []
        for h in range(N_HEAD):
            sl = slice(h * HEAD_SIZE, (h + 1) * HEAD_SIZE)
            wei = jnp.einsum('btd,bsd->bts', q[..., sl], k[..., sl]) * (N_EMBD ** -0.5)
            wei = jnp.where(causal[None], wei, -jnp.inf)
            wei = jax.nn.softmax(wei, axis=-1)
            heads.append(jnp.einsum('bts,bsd->btd', wei, v[..., sl]))
        x = x + jnp.concatenate(heads, -1) @ p['proj_w'] + p['proj_b']
        xln2 = _layer_norm(x, p['ln2_w'], p['ln2_b'])
        x = x + jnp.maximum(xln2 @ p['w1'] + p['b1'], 0.0) @ p['w2'] + p['b2']
    xf = _layer_norm(x, params['lnf_w'], params['lnf_b'])
    return xf @ params['lm_w'] + params['lm_b']


# TODO(synk): autoregressive `generate` (multinomial sampling loop) and the
# cross-entropy `targets` branch are host-side control flow / loss code and are
# not kernelized; only forward() is implemented as a Pallas kernel.

if __name__ == "__main__":
    key = jax.random.PRNGKey(0)
    pkey, ikey = jax.random.split(key)
    params = init_params(pkey)
    params['kernel'] = pack_params(params)

    fwd = jax.jit(bigram_forward)

    B, T = 2, 8   # T <= block_size (79)
    idx = jax.random.randint(ikey, (B, T), 0, VOCAB_SIZE, dtype=jnp.int32)
    logits = jax.block_until_ready(fwd(idx, params))
    ref = reference_forward(idx, params)
    assert logits.shape == (B, T, VOCAB_SIZE), logits.shape
    # bf16 matmul operands + approx-reciprocal softmax -> relaxed tolerance
    assert jnp.allclose(logits, ref, rtol=2e-2, atol=2e-2), "mismatch vs reference"

    # exercise the T-padding path (T=7 padded to 8 inside the wrapper)
    idx2 = idx[:, :7]
    logits2 = jax.block_until_ready(fwd(idx2, params))
    ref2 = reference_forward(idx2, params)
    assert logits2.shape == (B, 7, VOCAB_SIZE), logits2.shape
    assert jnp.allclose(logits2, ref2, rtol=2e-2, atol=2e-2), "mismatch (padded T)"

    # exercise odd batch: grid=(1,), B_blk=3 rows flattened into the matmul M dim
    idx3 = jax.random.randint(jax.random.PRNGKey(1), (3, T), 0, VOCAB_SIZE,
                              dtype=jnp.int32)
    logits3 = jax.block_until_ready(fwd(idx3, params))
    ref3 = reference_forward(idx3, params)
    assert logits3.shape == (3, T, VOCAB_SIZE), logits3.shape
    assert jnp.allclose(logits3, ref3, rtol=2e-2, atol=2e-2), "mismatch (odd batch)"

    print("KERNEL_OK")
</pallas_src>

<mosaic_0001>
module attributes {stable_mosaic.version = 11 : i64} {
  func.func @fused_model_kernel(%arg0: i32, %arg1: memref<1x8x1xi32, #tpu.memory_space<vmem>>, %arg2: memref<64x64xf32, #tpu.memory_space<vmem>>, %arg3: memref<8x64xf32, #tpu.memory_space<vmem>>, %arg4: memref<8x8xf32, #tpu.memory_space<vmem>>, %arg5: memref<4x64x192xbf16, #tpu.memory_space<vmem>>, %arg6: memref<4x4x16x64xbf16, #tpu.memory_space<vmem>>, %arg7: memref<4x64x256xbf16, #tpu.memory_space<vmem>>, %arg8: memref<4x256x64xbf16, #tpu.memory_space<vmem>>, %arg9: memref<4x8x64xf32, #tpu.memory_space<vmem>>, %arg10: memref<4x1x256xf32, #tpu.memory_space<vmem>>, %arg11: memref<8x64xf32, #tpu.memory_space<vmem>>, %arg12: memref<64x128xbf16, #tpu.memory_space<vmem>>, %arg13: memref<1x128xf32, #tpu.memory_space<vmem>>, %arg14: memref<1x8x128xf32, #tpu.memory_space<vmem>>) attributes {dimension_semantics = [#tpu.dimension_semantics<parallel>], iteration_bounds = array<i64: 2>, scalar_prefetch = 0 : i64, scratch_operands = 0 : i64, tpu.core_type = #tpu.core_type<tc>, window_params = [{transform_indices = @transform_0, window_bounds = array<i64: 1, 8, 1>}, {pipeline_mode = #tpu.pipeline_mode<synchronous>, transform_indices = @transform_1, window_bounds = array<i64: 64, 64>}, {transform_indices = @transform_2, window_bounds = array<i64: 8, 64>}, {pipeline_mode = #tpu.pipeline_mode<synchronous>, transform_indices = @transform_3, window_bounds = array<i64: 8, 8>}, {pipeline_mode = #tpu.pipeline_mode<synchronous>, transform_indices = @transform_4, window_bounds = array<i64: 4, 64, 192>}, {pipeline_mode = #tpu.pipeline_mode<synchronous>, transform_indices = @transform_5, window_bounds = array<i64: 4, 4, 16, 64>}, {pipeline_mode = #tpu.pipeline_mode<synchronous>, transform_indices = @transform_6, window_bounds = array<i64: 4, 64, 256>}, {pipeline_mode = #tpu.pipeline_mode<synchronous>, transform_indices = @transform_7, window_bounds = array<i64: 4, 256, 64>}, {pipeline_mode = #tpu.pipeline_mode<synchronous>, transform_indices = @transform_8, window_bounds = array<i64: 4, 8, 64>}, {pipeline_mode = #tpu.pipeline_mode<synchronous>, transform_indices = @transform_9, window_bounds = array<i64: 4, 1, 256>}, {pipeline_mode = #tpu.pipeline_mode<synchronous>, transform_indices = @transform_10, window_bounds = array<i64: 8, 64>}, {pipeline_mode = #tpu.pipeline_mode<synchronous>, transform_indices = @transform_11, window_bounds = array<i64: 64, 128>}, {pipeline_mode = #tpu.pipeline_mode<synchronous>, transform_indices = @transform_12, window_bounds = array<i64: 1, 128>}, {transform_indices = @transform_13, window_bounds = array<i64: 1, 8, 128>}]} {
    %c0 = arith.constant 0 : index
    %c0_0 = arith.constant 0 : index
    %c0_1 = arith.constant 0 : index
    %0 = vector.load %arg1[%c0, %c0_0, %c0_1] : memref<1x8x1xi32, #tpu.memory_space<vmem>>, vector<1x8x1xi32>
    %1 = vector.shape_cast %0 : vector<1x8x1xi32> to vector<8x1xi32>
    %2 = tpu.iota {dimensions = array<i32: 1>} : vector<8x64xi32>
    %3 = vector.broadcast %1 : vector<8x1xi32> to vector<8x64xi32>
    %4 = arith.cmpi eq, %3, %2 : vector<8x64xi32>
    %5 = arith.extui %4 : vector<8x64xi1> to vector<8x64xi32>
    %6 = arith.sitofp %5 : vector<8x64xi32> to vector<8x64xf32>
    %c0_2 = arith.constant 0 : index
    %c0_3 = arith.constant 0 : index
    %7 = vector.load %arg2[%c0_2, %c0_3] : memref<64x64xf32, #tpu.memory_space<vmem>>, vector<64x64xf32>
    %cst = arith.constant dense<0.000000e+00> : vector<8x64xf32>
    %8 = tpu.matmul %6, %7, %cst {dimension_numbers = #tpu.dot_dimension_numbers<[1], [0], [0], [1], [0, 0, 1, 1], [], []>} : vector<8x64xf32>, vector<64x64xf32>, vector<8x64xf32> -> vector<8x64xf32>
    %c0_4 = arith.constant 0 : index
    %c0_5 = arith.constant 0 : index
    %9 = vector.load %arg3[%c0_4, %c0_5] : memref<8x64xf32, #tpu.memory_space<vmem>>, vector<8x64xf32>
    %10 = arith.addf %8, %9 : vector<8x64xf32>
    %c0_6 = arith.constant 0 : index
    %c0_7 = arith.constant 0 : index
    %11 = vector.load %arg4[%c0_6, %c0_7] : memref<8x8xf32, #tpu.memory_space<vmem>>, vector<8x8xf32>
    %c0_8 = arith.constant 0 : index
    %c0_9 = arith.constant 0 : index
    %c0_10 = arith.constant 0 : index
    %12 = vector.load %arg9[%c0_8, %c0_9, %c0_10] : memref<4x8x64xf32, #tpu.memory_space<vmem>>, vector<1x8x64xf32>
    %13 = vector.shape_cast %12 : vector<1x8x64xf32> to vector<8x64xf32>
    %14 = vector.extract_strided_slice %13 {offsets = [0, 0], sizes = [1, 64], strides = [1, 1]} : vector<8x64xf32> to vector<1x64xf32>
    %15 = vector.extract_strided_slice %13 {offsets = [1, 0], sizes = [1, 64], strides = [1, 1]} : vector<8x64xf32> to vector<1x64xf32>
    %16 = vector.extract_strided_slice %13 {offsets = [2, 0], sizes = [1, 64], strides = [1, 1]} : vector<8x64xf32> to vector<1x64xf32>
    %17 = vector.extract_strided_slice %13 {offsets = [3, 0], sizes = [1, 64], strides = [1, 1]} : vector<8x64xf32> to vector<1x64xf32>
    %18 = vector.extract_strided_slice %13 {offsets = [4, 0], sizes = [1, 64], strides = [1, 1]} : vector<8x64xf32> to vector<1x64xf32>
    %19 = vector.extract_strided_slice %13 {offsets = [5, 0], sizes = [1, 64], strides = [1, 1]} : vector<8x64xf32> to vector<1x64xf32>
    %cst_11 = arith.constant dense<0.000000e+00> : vector<8xf32>
    %20 = vector.multi_reduction <add>, %10, %cst_11 [1] : vector<8x64xf32> to vector<8xf32>
    %21 = vector.shape_cast %20 : vector<8xf32> to vector<8x1xf32>
    %cst_12 = arith.constant 6.400000e+01 : f32
    %22 = vector.broadcast %cst_12 : f32 to vector<8x1xf32>
    %23 = arith.divf %21, %22 : vector<8x1xf32>
    %24 = arith.mulf %10, %10 : vector<8x64xf32>
    %cst_13 = arith.constant dense<0.000000e+00> : vector<8xf32>
    %25 = vector.multi_reduction <add>, %24, %cst_13 [1] : vector<8x64xf32> to vector<8xf32>
    %26 = vector.shape_cast %25 : vector<8xf32> to vector<8x1xf32>
    %cst_14 = arith.constant 6.400000e+01 : f32
    %27 = vector.broadcast %cst_14 : f32 to vector<8x1xf32>
    %28 = arith.divf %26, %27 : vector<8x1xf32>
    %29 = arith.mulf %23, %23 : vector<8x1xf32>
    %30 = arith.subf %28, %29 : vector<8x1xf32>
    %31 = vector.broadcast %23 : vector<8x1xf32> to vector<8x64xf32>
    %32 = arith.subf %10, %31 : vector<8x64xf32>
    %cst_15 = arith.constant 9.99999974E-6 : f32
    %33 = vector.broadcast %cst_15 : f32 to vector<8x1xf32>
    %34 = arith.addf %30, %33 : vector<8x1xf32>
    %35 = math.rsqrt %34 : vector<8x1xf32>
    %36 = vector.broadcast %35 : vector<8x1xf32> to vector<8x64xf32>
    %37 = arith.mulf %32, %36 : vector<8x64xf32>
    %38 = vector.broadcast %14 : vector<1x64xf32> to vector<8x64xf32>
    %39 = arith.mulf %37, %38 : vector<8x64xf32>
    %40 = vector.broadcast %15 : vector<1x64xf32> to vector<8x64xf32>
    %41 = arith.addf %39, %40 : vector<8x64xf32>
    %42 = arith.truncf %41 : vector<8x64xf32> to vector<8x64xbf16>
    %c0_16 = arith.constant 0 : index
    %c0_17 = arith.constant 0 : index
    %c0_18 = arith.constant 0 : index
    %43 = vector.load %arg5[%c0_16, %c0_17, %c0_18] : memref<4x64x192xbf16, #tpu.memory_space<vmem>>, vector<1x64x192xbf16>
    %44 = vector.shape_cast %43 : vector<1x64x192xbf16> to vector<64x192xbf16>
    %cst_19 = arith.constant dense<0.000000e+00> : vector<8x192xf32>
    %45 = tpu.matmul %42, %44, %cst_19 {dimension_numbers = #tpu.dot_dimension_numbers<[1], [0], [0], [1], [0, 0, 1, 1], [], []>} : vector<8x64xbf16>, vector<64x192xbf16>, vector<8x192xf32> -> vector<8x192xf32>
    %c0_20 = arith.constant 0 : index
    %c0_21 = arith.constant 0 : index
    %c0_22 = arith.constant 0 : index
    %c0_23 = arith.constant 0 : index
    %46 = vector.load %arg6[%c0_20, %c0_21, %c0_22, %c0_23] : memref<4x4x16x64xbf16, #tpu.memory_space<vmem>>, vector<1x4x16x64xbf16>
    %47 = vector.shape_cast %46 : vector<1x4x16x64xbf16> to vector<4x16x64xbf16>
    %48 = vector.extract_strided_slice %45 {offsets = [0, 64], sizes = [8, 64], strides = [1, 1]} : vector<8x192xf32> to vector<8x64xf32>
    %49 = tpu.transpose %48, [1, 0] : vector<8x64xf32> -> vector<64x8xf32>
    %cst_24 = arith.constant 0.000000e+00 : f32
    %50 = vector.broadcast %cst_24 : f32 to vector<8x64xf32>
    %51 = vector.extract_strided_slice %45 {offsets = [0, 0], sizes = [8, 16], strides = [1, 1]} : vector<8x192xf32> to vector<8x16xf32>
    %52 = arith.truncf %51 : vector<8x16xf32> to vector<8x16xbf16>
    %53 = vector.extract_strided_slice %49 {offsets = [0, 0], sizes = [16, 8], strides = [1, 1]} : vector<64x8xf32> to vector<16x8xf32>
    %54 = arith.truncf %53 : vector<16x8xf32> to vector<16x8xbf16>
    %55 = vector.extract_strided_slice %45 {offsets = [0, 128], sizes = [8, 16], strides = [1, 1]} : vector<8x192xf32> to vector<8x16xf32>
    %56 = arith.truncf %55 : vector<8x16xf32> to vector<8x16xbf16>
    %cst_25 = arith.constant dense<0.000000e+00> : vector<8x8xf32>
    %57 = tpu.matmul %52, %54, %cst_25 {dimension_numbers = #tpu.dot_dimension_numbers<[1], [0], [0], [1], [0, 0, 1, 1], [], []>} : vector<8x16xbf16>, vector<16x8xbf16>, vector<8x8xf32> -> vector<8x8xf32>
    %cst_26 = arith.constant 1.250000e-01 : f32
    %58 = vector.broadcast %cst_26 : f32 to vector<8x8xf32>
    %59 = arith.mulf %57, %58 : vector<8x8xf32>
    %60 = arith.addf %59, %11 : vector<8x8xf32>
    %cst_27 = arith.constant dense<0xFF800000> : vector<8xf32>
    %61 = vector.multi_reduction <maximumf>, %60, %cst_27 [1] : vector<8x8xf32> to vector<8xf32>
    %62 = vector.shape_cast %61 : vector<8xf32> to vector<8x1xf32>
    %63 = vector.broadcast %62 : vector<8x1xf32> to vector<8x8xf32>
    %64 = arith.subf %60, %63 : vector<8x8xf32>
    %65 = math.exp %64 : vector<8x8xf32>
    %cst_28 = arith.constant dense<0.000000e+00> : vector<8xf32>
    %66 = vector.multi_reduction <add>, %65, %cst_28 [1] : vector<8x8xf32> to vector<8xf32>
    %67 = vector.shape_cast %66 : vector<8xf32> to vector<8x1xf32>
    %68 = tpu.reciprocal %67 {approx = true} : vector<8x1xf32> -> vector<8x1xf32>
    %69 = vector.broadcast %68 : vector<8x1xf32> to vector<8x8xf32>
    %70 = arith.mulf %65, %69 : vector<8x8xf32>
    %71 = arith.truncf %70 : vector<8x8xf32> to vector<8x8xbf16>
    %cst_29 = arith.constant dense<0.000000e+00> : vector<8x16xf32>
    %72 = tpu.matmul %71, %56, %cst_29 {dimension_numbers = #tpu.dot_dimension_numbers<[1], [0], [0], [1], [0, 0, 1, 1], [], []>} : vector<8x8xbf16>, vector<8x16xbf16>, vector<8x16xf32> -> vector<8x16xf32>
    %73 = arith.truncf %72 : vector<8x16xf32> to vector<8x16xbf16>
    %74 = vector.extract_strided_slice %47 {offsets = [0, 0, 0], sizes = [1, 16, 64], strides = [1, 1, 1]} : vector<4x16x64xbf16> to vector<1x16x64xbf16>
    %75 = vector.shape_cast %74 : vector<1x16x64xbf16> to vector<16x64xbf16>
    %cst_30 = arith.constant dense<0.000000e+00> : vector<8x64xf32>
    %76 = tpu.matmul %73, %75, %cst_30 {dimension_numbers = #tpu.dot_dimension_numbers<[1], [0], [0], [1], [0, 0, 1, 1], [], []>} : vector<8x16xbf16>, vector<16x64xbf16>, vector<8x64xf32> -> vector<8x64xf32>
    %77 = arith.addf %50, %76 : vector<8x64xf32>
    %78 = vector.extract_strided_slice %45 {offsets = [0, 16], sizes = [8, 16], strides = [1, 1]} : vector<8x192xf32> to vector<8x16xf32>
    %79 = arith.truncf %78 : vector<8x16xf32> to vector<8x16xbf16>
    %80 = vector.extract_strided_slice %49 {offsets = [16, 0], sizes = [16, 8], strides = [1, 1]} : vector<64x8xf32> to vector<16x8xf32>
    %81 = arith.truncf %80 : vector<16x8xf32> to vector<16x8xbf16>
    %82 = vector.extract_strided_slice %45 {offsets = [0, 144], sizes = [8, 16], strides = [1, 1]} : vector<8x192xf32> to vector<8x16xf32>
    %83 = arith.truncf %82 : vector<8x16xf32> to vector<8x16xbf16>
    %cst_31 = arith.constant dense<0.000000e+00> : vector<8x8xf32>
    %84 = tpu.matmul %79, %81, %cst_31 {dimension_numbers = #tpu.dot_dimension_numbers<[1], [0], [0], [1], [0, 0, 1, 1], [], []>} : vector<8x16xbf16>, vector<16x8xbf16>, vector<8x8xf32> -> vector<8x8xf32>
    %cst_32 = arith.constant 1.250000e-01 : f32
    %85 = vector.broadcast %cst_32 : f32 to vector<8x8xf32>
    %86 = arith.mulf %84, %85 : vector<8x8xf32>
    %87 = arith.addf %86, %11 : vector<8x8xf32>
    %cst_33 = arith.constant dense<0xFF800000> : vector<8xf32>
    %88 = vector.multi_reduction <maximumf>, %87, %cst_33 [1] : vector<8x8xf32> to vector<8xf32>
    %89 = vector.shape_cast %88 : vector<8xf32> to vector<8x1xf32>
    %90 = vector.broadcast %89 : vector<8x1xf32> to vector<8x8xf32>
    %91 = arith.subf %87, %90 : vector<8x8xf32>
    %92 = math.exp %91 : vector<8x8xf32>
    %cst_34 = arith.constant dense<0.000000e+00> : vector<8xf32>
    %93 = vector.multi_reduction <add>, %92, %cst_34 [1] : vector<8x8xf32> to vector<8xf32>
    %94 = vector.shape_cast %93 : vector<8xf32> to vector<8x1xf32>
    %95 = tpu.reciprocal %94 {approx = true} : vector<8x1xf32> -> vector<8x1xf32>
    %96 = vector.broadcast %95 : vector<8x1xf32> to vector<8x8xf32>
    %97 = arith.mulf %92, %96 : vector<8x8xf32>
    %98 = arith.truncf %97 : vector<8x8xf32> to vector<8x8xbf16>
    %cst_35 = arith.constant dense<0.000000e+00> : vector<8x16xf32>
    %99 = tpu.matmul %98, %83, %cst_35 {dimension_numbers = #tpu.dot_dimension_numbers<[1], [0], [0], [1], [0, 0, 1, 1], [], []>} : vector<8x8xbf16>, vector<8x16xbf16>, vector<8x16xf32> -> vector<8x16xf32>
    %100 = arith.truncf %99 : vector<8x16xf32> to vector<8x16xbf16>
    %101 = vector.extract_strided_slice %47 {offsets = [1, 0, 0], sizes = [1, 16, 64], strides = [1, 1, 1]} : vector<4x16x64xbf16> to vector<1x16x64xbf16>
    %102 = vector.shape_cast %101 : vector<1x16x64xbf16> to vector<16x64xbf16>
    %cst_36 = arith.constant dense<0.000000e+00> : vector<8x64xf32>
    %103 = tpu.matmul %100, %102, %cst_36 {dimension_numbers = #tpu.dot_dimension_numbers<[1], [0], [0], [1], [0, 0, 1, 1], [], []>} : vector<8x16xbf16>, vector<16x64xbf16>, vector<8x64xf32> -> vector<8x64xf32>
    %104 = arith.addf %77, %103 : vector<8x64xf32>
    %105 = vector.extract_strided_slice %45 {offsets = [0, 32], sizes = [8, 16], strides = [1, 1]} : vector<8x192xf32> to vector<8x16xf32>
    %106 = arith.truncf %105 : vector<8x16xf32> to vector<8x16xbf16>
    %107 = vector.extract_strided_slice %49 {offsets = [32, 0], sizes = [16, 8], strides = [1, 1]} : vector<64x8xf32> to vector<16x8xf32>
    %108 = arith.truncf %107 : vector<16x8xf32> to vector<16x8xbf16>
    %109 = vector.extract_strided_slice %45 {offsets = [0, 160], sizes = [8, 16], strides = [1, 1]} : vector<8x192xf32> to vector<8x16xf32>
    %110 = arith.truncf %109 : vector<8x16xf32> to vector<8x16xbf16>
    %cst_37 = arith.constant dense<0.000000e+00> : vector<8x8xf32>
    %111 = tpu.matmul %106, %108, %cst_37 {dimension_numbers = #tpu.dot_dimension_numbers<[1], [0], [0], [1], [0, 0, 1, 1], [], []>} : vector<8x16xbf16>, vector<16x8xbf16>, vector<8x8xf32> -> vector<8x8xf32>
    %cst_38 = arith.constant 1.250000e-01 : f32
    %112 = vector.broadcast %cst_38 : f32 to vector<8x8xf32>
    %113 = arith.mulf %111, %112 : vector<8x8xf32>
    %114 = arith.addf %113, %11 : vector<8x8xf32>
    %cst_39 = arith.constant dense<0xFF800000> : vector<8xf32>
    %115 = vector.multi_reduction <maximumf>, %114, %cst_39 [1] : vector<8x8xf32> to vector<8xf32>
    %116 = vector.shape_cast %115 : vector<8xf32> to vector<8x1xf32>
    %117 = vector.broadcast %116 : vector<8x1xf32> to vector<8x8xf32>
    %118 = arith.subf %114, %117 : vector<8x8xf32>
    %119 = math.exp %118 : vector<8x8xf32>
    %cst_40 = arith.constant dense<0.000000e+00> : vector<8xf32>
    %120 = vector.multi_reduction <add>, %119, %cst_40 [1] : vector<8x8xf32> to vector<8xf32>
    %121 = vector.shape_cast %120 : vector<8xf32> to vector<8x1xf32>
    %122 = tpu.reciprocal %121 {approx = true} : vector<8x1xf32> -> vector<8x1xf32>
    %123 = vector.broadcast %122 : vector<8x1xf32> to vector<8x8xf32>
    %124 = arith.mulf %119, %123 : vector<8x8xf32>
    %125 = arith.truncf %124 : vector<8x8xf32> to vector<8x8xbf16>
    %cst_41 = arith.constant dense<0.000000e+00> : vector<8x16xf32>
    %126 = tpu.matmul %125, %110, %cst_41 {dimension_numbers = #tpu.dot_dimension_numbers<[1], [0], [0], [1], [0, 0, 1, 1], [], []>} : vector<8x8xbf16>, vector<8x16xbf16>, vector<8x16xf32> -> vector<8x16xf32>
    %127 = arith.truncf %126 : vector<8x16xf32> to vector<8x16xbf16>
    %128 = vector.extract_strided_slice %47 {offsets = [2, 0, 0], sizes = [1, 16, 64], strides = [1, 1, 1]} : vector<4x16x64xbf16> to vector<1x16x64xbf16>
    %129 = vector.shape_cast %128 : vector<1x16x64xbf16> to vector<16x64xbf16>
    %cst_42 = arith.constant dense<0.000000e+00> : vector<8x64xf32>
    %130 = tpu.matmul %127, %129, %cst_42 {dimension_numbers = #tpu.dot_dimension_numbers<[1], [0], [0], [1], [0, 0, 1, 1], [], []>} : vector<8x16xbf16>, vector<16x64xbf16>, vector<8x64xf32> -> vector<8x64xf32>
    %131 = arith.addf %104, %130 : vector<8x64xf32>
    %132 = vector.extract_strided_slice %45 {offsets = [0, 48], sizes = [8, 16], strides = [1, 1]} : vector<8x192xf32> to vector<8x16xf32>
    %133 = arith.truncf %132 : vector<8x16xf32> to vector<8x16xbf16>
    %134 = vector.extract_strided_slice %49 {offsets = [48, 0], sizes = [16, 8], strides = [1, 1]} : vector<64x8xf32> to vector<16x8xf32>
    %135 = arith.truncf %134 : vector<16x8xf32> to vector<16x8xbf16>
    %136 = vector.extract_strided_slice %45 {offsets = [0, 176], sizes = [8, 16], strides = [1, 1]} : vector<8x192xf32> to vector<8x16xf32>
    %137 = arith.truncf %136 : vector<8x16xf32> to vector<8x16xbf16>
    %cst_43 = arith.constant dense<0.000000e+00> : vector<8x8xf32>
    %138 = tpu.matmul %133, %135, %cst_43 {dimension_numbers = #tpu.dot_dimension_numbers<[1], [0], [0], [1], [0, 0, 1, 1], [], []>} : vector<8x16xbf16>, vector<16x8xbf16>, vector<8x8xf32> -> vector<8x8xf32>
    %cst_44 = arith.constant 1.250000e-01 : f32
    %139 = vector.broadcast %cst_44 : f32 to vector<8x8xf32>
    %140 = arith.mulf %138, %139 : vector<8x8xf32>
    %141 = arith.addf %140, %11 : vector<8x8xf32>
    %cst_45 = arith.constant dense<0xFF800000> : vector<8xf32>
    %142 = vector.multi_reduction <maximumf>, %141, %cst_45 [1] : vector<8x8xf32> to vector<8xf32>
    %143 = vector.shape_cast %142 : vector<8xf32> to vector<8x1xf32>
    %144 = vector.broadcast %143 : vector<8x1xf32> to vector<8x8xf32>
    %145 = arith.subf %141, %144 : vector<8x8xf32>
    %146 = math.exp %145 : vector<8x8xf32>
    %cst_46 = arith.constant dense<0.000000e+00> : vector<8xf32>
    %147 = vector.multi_reduction <add>, %146, %cst_46 [1] : vector<8x8xf32> to vector<8xf32>
    %148 = vector.shape_cast %147 : vector<8xf32> to vector<8x1xf32>
    %149 = tpu.reciprocal %148 {approx = true} : vector<8x1xf32> -> vector<8x1xf32>
    %150 = vector.broadcast %149 : vector<8x1xf32> to vector<8x8xf32>
    %151 = arith.mulf %146, %150 : vector<8x8xf32>
    %152 = arith.truncf %151 : vector<8x8xf32> to vector<8x8xbf16>
    %cst_47 = arith.constant dense<0.000000e+00> : vector<8x16xf32>
    %153 = tpu.matmul %152, %137, %cst_47 {dimension_numbers = #tpu.dot_dimension_numbers<[1], [0], [0], [1], [0, 0, 1, 1], [], []>} : vector<8x8xbf16>, vector<8x16xbf16>, vector<8x16xf32> -> vector<8x16xf32>
    %154 = arith.truncf %153 : vector<8x16xf32> to vector<8x16xbf16>
    %155 = vector.extract_strided_slice %47 {offsets = [3, 0, 0], sizes = [1, 16, 64], strides = [1, 1, 1]} : vector<4x16x64xbf16> to vector<1x16x64xbf16>
    %156 = vector.shape_cast %155 : vector<1x16x64xbf16> to vector<16x64xbf16>
    %cst_48 = arith.constant dense<0.000000e+00> : vector<8x64xf32>
    %157 = tpu.matmul %154, %156, %cst_48 {dimension_numbers = #tpu.dot_dimension_numbers<[1], [0], [0], [1], [0, 0, 1, 1], [], []>} : vector<8x16xbf16>, vector<16x64xbf16>, vector<8x64xf32> -> vector<8x64xf32>
    %158 = arith.addf %131, %157 : vector<8x64xf32>
    %159 = arith.addf %10, %158 : vector<8x64xf32>
    %160 = vector.broadcast %18 : vector<1x64xf32> to vector<8x64xf32>
    %161 = arith.addf %159, %160 : vector<8x64xf32>
    %cst_49 = arith.constant dense<0.000000e+00> : vector<8xf32>
    %162 = vector.multi_reduction <add>, %161, %cst_49 [1] : vector<8x64xf32> to vector<8xf32>
    %163 = vector.shape_cast %162 : vector<8xf32> to vector<8x1xf32>
    %cst_50 = arith.constant 6.400000e+01 : f32
    %164 = vector.broadcast %cst_50 : f32 to vector<8x1xf32>
    %165 = arith.divf %163, %164 : vector<8x1xf32>
    %166 = arith.mulf %161, %161 : vector<8x64xf32>
    %cst_51 = arith.constant dense<0.000000e+00> : vector<8xf32>
    %167 = vector.multi_reduction <add>, %166, %cst_51 [1] : vector<8x64xf32> to vector<8xf32>
    %168 = vector.shape_cast %167 : vector<8xf32> to vector<8x1xf32>
    %cst_52 = arith.constant 6.400000e+01 : f32
    %169 = vector.broadcast %cst_52 : f32 to vector<8x1xf32>
    %170 = arith.divf %168, %169 : vector<8x1xf32>
    %171 = arith.mulf %165, %165 : vector<8x1xf32>
    %172 = arith.subf %170, %171 : vector<8x1xf32>
    %173 = vector.broadcast %165 : vector<8x1xf32> to vector<8x64xf32>
    %174 = arith.subf %161, %173 : vector<8x64xf32>
    %cst_53 = arith.constant 9.99999974E-6 : f32
    %175 = vector.broadcast %cst_53 : f32 to vector<8x1xf32>
    %176 = arith.addf %172, %175 : vector<8x1xf32>
    %177 = math.rsqrt %176 : vector<8x1xf32>
    %178 = vector.broadcast %177 : vector<8x1xf32> to vector<8x64xf32>
    %179 = arith.mulf %174, %178 : vector<8x64xf32>
    %180 = vector.broadcast %16 : vector<1x64xf32> to vector<8x64xf32>
    %181 = arith.mulf %179, %180 : vector<8x64xf32>
    %182 = vector.broadcast %17 : vector<1x64xf32> to vector<8x64xf32>
    %183 = arith.addf %181, %182 : vector<8x64xf32>
    %184 = arith.truncf %183 : vector<8x64xf32> to vector<8x64xbf16>
    %c0_54 = arith.constant 0 : index
    %c0_55 = arith.constant 0 : index
    %c0_56 = arith.constant 0 : index
    %185 = vector.load %arg7[%c0_54, %c0_55, %c0_56] : memref<4x64x256xbf16, #tpu.memory_space<vmem>>, vector<1x64x256xbf16>
    %186 = vector.shape_cast %185 : vector<1x64x256xbf16> to vector<64x256xbf16>
    %cst_57 = arith.constant dense<0.000000e+00> : vector<8x256xf32>
    %187 = tpu.matmul %184, %186, %cst_57 {dimension_numbers = #tpu.dot_dimension_numbers<[1], [0], [0], [1], [0, 0, 1, 1], [], []>} : vector<8x64xbf16>, vector<64x256xbf16>, vector<8x256xf32> -> vector<8x256xf32>
    %c0_58 = arith.constant 0 : index
    %c0_59 = arith.constant 0 : index
    %c0_60 = arith.constant 0 : index
    %188 = vector.load %arg10[%c0_58, %c0_59, %c0_60] : memref<4x1x256xf32, #tpu.memory_space<vmem>>, vector<1x1x256xf32>
    %189 = vector.shape_cast %188 : vector<1x1x256xf32> to vector<1x256xf32>
    %190 = vector.broadcast %189 : vector<1x256xf32> to vector<8x256xf32>
    %191 = arith.addf %187, %190 : vector<8x256xf32>
    %cst_61 = arith.constant 0.000000e+00 : f32
    %192 = vector.broadcast %cst_61 : f32 to vector<8x256xf32>
    %193 = arith.maximumf %191, %192 : vector<8x256xf32>
    %194 = arith.truncf %193 : vector<8x256xf32> to vector<8x256xbf16>
    %c0_62 = arith.constant 0 : index
    %c0_63 = arith.constant 0 : index
    %c0_64 = arith.constant 0 : index
    %195 = vector.load %arg8[%c0_62, %c0_63, %c0_64] : memref<4x256x64xbf16, #tpu.memory_space<vmem>>, vector<1x256x64xbf16>
    %196 = vector.shape_cast %195 : vector<1x256x64xbf16> to vector<256x64xbf16>
    %cst_65 = arith.constant dense<0.000000e+00> : vector<8x64xf32>
    %197 = tpu.matmul %194, %196, %cst_65 {dimension_numbers = #tpu.dot_dimension_numbers<[1], [0], [0], [1], [0, 0, 1, 1], [], []>} : vector<8x256xbf16>, vector<256x64xbf16>, vector<8x64xf32> -> vector<8x64xf32>
    %198 = arith.addf %161, %197 : vector<8x64xf32>
    %199 = vector.broadcast %19 : vector<1x64xf32> to vector<8x64xf32>
    %200 = arith.addf %198, %199 : vector<8x64xf32>
    %c1 = arith.constant 1 : index
    %c0_66 = arith.constant 0 : index
    %c0_67 = arith.constant 0 : index
    %201 = vector.load %arg9[%c1, %c0_66, %c0_67] : memref<4x8x64xf32, #tpu.memory_space<vmem>>, vector<1x8x64xf32>
    %202 = vector.shape_cast %201 : vector<1x8x64xf32> to vector<8x64xf32>
    %203 = vector.extract_strided_slice %202 {offsets = [0, 0], sizes = [1, 64], strides = [1, 1]} : vector<8x64xf32> to vector<1x64xf32>
    %204 = vector.extract_strided_slice %202 {offsets = [1, 0], sizes = [1, 64], strides = [1, 1]} : vector<8x64xf32> to vector<1x64xf32>
    %205 = vector.extract_strided_slice %202 {offsets = [2, 0], sizes = [1, 64], strides = [1, 1]} : vector<8x64xf32> to vector<1x64xf32>
    %206 = vector.extract_strided_slice %202 {offsets = [3, 0], sizes = [1, 64], strides = [1, 1]} : vector<8x64xf32> to vector<1x64xf32>
    %207 = vector.extract_strided_slice %202 {offsets = [4, 0], sizes = [1, 64], strides = [1, 1]} : vector<8x64xf32> to vector<1x64xf32>
    %208 = vector.extract_strided_slice %202 {offsets = [5, 0], sizes = [1, 64], strides = [1, 1]} : vector<8x64xf32> to vector<1x64xf32>
    %cst_68 = arith.constant dense<0.000000e+00> : vector<8xf32>
    %209 = vector.multi_reduction <add>, %200, %cst_68 [1] : vector<8x64xf32> to vector<8xf32>
    %210 = vector.shape_cast %209 : vector<8xf32> to vector<8x1xf32>
    %cst_69 = arith.constant 6.400000e+01 : f32
    %211 = vector.broadcast %cst_69 : f32 to vector<8x1xf32>
    %212 = arith.divf %210, %211 : vector<8x1xf32>
    %213 = arith.mulf %200, %200 : vector<8x64xf32>
    %cst_70 = arith.constant dense<0.000000e+00> : vector<8xf32>
    %214 = vector.multi_reduction <add>, %213, %cst_70 [1] : vector<8x64xf32> to vector<8xf32>
    %215 = vector.shape_cast %214 : vector<8xf32> to vector<8x1xf32>
    %cst_71 = arith.constant 6.400000e+01 : f32
    %216 = vector.broadcast %cst_71 : f32 to vector<8x1xf32>
    %217 = arith.divf %215, %216 : vector<8x1xf32>
    %218 = arith.mulf %212, %212 : vector<8x1xf32>
    %219 = arith.subf %217, %218 : vector<8x1xf32>
    %220 = vector.broadcast %212 : vector<8x1xf32> to vector<8x64xf32>
    %221 = arith.subf %200, %220 : vector<8x64xf32>
    %cst_72 = arith.constant 9.99999974E-6 : f32
    %222 = vector.broadcast %cst_72 : f32 to vector<8x1xf32>
    %223 = arith.addf %219, %222 : vector<8x1xf32>
    %224 = math.rsqrt %223 : vector<8x1xf32>
    %225 = vector.broadcast %224 : vector<8x1xf32> to vector<8x64xf32>
    %226 = arith.mulf %221, %225 : vector<8x64xf32>
    %227 = vector.broadcast %203 : vector<1x64xf32> to vector<8x64xf32>
    %228 = arith.mulf %226, %227 : vector<8x64xf32>
    %229 = vector.broadcast %204 : vector<1x64xf32> to vector<8x64xf32>
    %230 = arith.addf %228, %229 : vector<8x64xf32>
    %231 = arith.truncf %230 : vector<8x64xf32> to vector<8x64xbf16>
    %c1_73 = arith.constant 1 : index
    %c0_74 = arith.constant 0 : index
    %c0_75 = arith.constant 0 : index
    %232 = vector.load %arg5[%c1_73, %c0_74, %c0_75] : memref<4x64x192xbf16, #tpu.memory_space<vmem>>, vector<1x64x192xbf16>
    %233 = vector.shape_cast %232 : vector<1x64x192xbf16> to vector<64x192xbf16>
    %cst_76 = arith.constant dense<0.000000e+00> : vector<8x192xf32>
    %234 = tpu.matmul %231, %233, %cst_76 {dimension_numbers = #tpu.dot_dimension_numbers<[1], [0], [0], [1], [0, 0, 1, 1], [], []>} : vector<8x64xbf16>, vector<64x192xbf16>, vector<8x192xf32> -> vector<8x192xf32>
    %c1_77 = arith.constant 1 : index
    %c0_78 = arith.constant 0 : index
    %c0_79 = arith.constant 0 : index
    %c0_80 = arith.constant 0 : index
    %235 = vector.load %arg6[%c1_77, %c0_78, %c0_79, %c0_80] : memref<4x4x16x64xbf16, #tpu.memory_space<vmem>>, vector<1x4x16x64xbf16>
    %236 = vector.shape_cast %235 : vector<1x4x16x64xbf16> to vector<4x16x64xbf16>
    %237 = vector.extract_strided_slice %234 {offsets = [0, 64], sizes = [8, 64], strides = [1, 1]} : vector<8x192xf32> to vector<8x64xf32>
    %238 = tpu.transpose %237, [1, 0] : vector<8x64xf32> -> vector<64x8xf32>
    %cst_81 = arith.constant 0.000000e+00 : f32
    %239 = vector.broadcast %cst_81 : f32 to vector<8x64xf32>
    %240 = vector.extract_strided_slice %234 {offsets = [0, 0], sizes = [8, 16], strides = [1, 1]} : vector<8x192xf32> to vector<8x16xf32>
    %241 = arith.truncf %240 : vector<8x16xf32> to vector<8x16xbf16>
    %242 = vector.extract_strided_slice %238 {offsets = [0, 0], sizes = [16, 8], strides = [1, 1]} : vector<64x8xf32> to vector<16x8xf32>
    %243 = arith.truncf %242 : vector<16x8xf32> to vector<16x8xbf16>
    %244 = vector.extract_strided_slice %234 {offsets = [0, 128], sizes = [8, 16], strides = [1, 1]} : vector<8x192xf32> to vector<8x16xf32>
    %245 = arith.truncf %244 : vector<8x16xf32> to vector<8x16xbf16>
    %cst_82 = arith.constant dense<0.000000e+00> : vector<8x8xf32>
    %246 = tpu.matmul %241, %243, %cst_82 {dimension_numbers = #tpu.dot_dimension_numbers<[1], [0], [0], [1], [0, 0, 1, 1], [], []>} : vector<8x16xbf16>, vector<16x8xbf16>, vector<8x8xf32> -> vector<8x8xf32>
    %cst_83 = arith.constant 1.250000e-01 : f32
    %247 = vector.broadcast %cst_83 : f32 to vector<8x8xf32>
    %248 = arith.mulf %246, %247 : vector<8x8xf32>
    %249 = arith.addf %248, %11 : vector<8x8xf32>
    %cst_84 = arith.constant dense<0xFF800000> : vector<8xf32>
    %250 = vector.multi_reduction <maximumf>, %249, %cst_84 [1] : vector<8x8xf32> to vector<8xf32>
    %251 = vector.shape_cast %250 : vector<8xf32> to vector<8x1xf32>
    %252 = vector.broadcast %251 : vector<8x1xf32> to vector<8x8xf32>
    %253 = arith.subf %249, %252 : vector<8x8xf32>
    %254 = math.exp %253 : vector<8x8xf32>
    %cst_85 = arith.constant dense<0.000000e+00> : vector<8xf32>
    %255 = vector.multi_reduction <add>, %254, %cst_85 [1] : vector<8x8xf32> to vector<8xf32>
    %256 = vector.shape_cast %255 : vector<8xf32> to vector<8x1xf32>
    %257 = tpu.reciprocal %256 {approx = true} : vector<8x1xf32> -> vector<8x1xf32>
    %258 = vector.broadcast %257 : vector<8x1xf32> to vector<8x8xf32>
    %259 = arith.mulf %254, %258 : vector<8x8xf32>
    %260 = arith.truncf %259 : vector<8x8xf32> to vector<8x8xbf16>
    %cst_86 = arith.constant dense<0.000000e+00> : vector<8x16xf32>
    %261 = tpu.matmul %260, %245, %cst_86 {dimension_numbers = #tpu.dot_dimension_numbers<[1], [0], [0], [1], [0, 0, 1, 1], [], []>} : vector<8x8xbf16>, vector<8x16xbf16>, vector<8x16xf32> -> vector<8x16xf32>
    %262 = arith.truncf %261 : vector<8x16xf32> to vector<8x16xbf16>
    %263 = vector.extract_strided_slice %236 {offsets = [0, 0, 0], sizes = [1, 16, 64], strides = [1, 1, 1]} : vector<4x16x64xbf16> to vector<1x16x64xbf16>
    %264 = vector.shape_cast %263 : vector<1x16x64xbf16> to vector<16x64xbf16>
    %cst_87 = arith.constant dense<0.000000e+00> : vector<8x64xf32>
    %265 = tpu.matmul %262, %264, %cst_87 {dimension_numbers = #tpu.dot_dimension_numbers<[1], [0], [0], [1], [0, 0, 1, 1], [], []>} : vector<8x16xbf16>, vector<16x64xbf16>, vector<8x64xf32> -> vector<8x64xf32>
    %266 = arith.addf %239, %265 : vector<8x64xf32>
    %267 = vector.extract_strided_slice %234 {offsets = [0, 16], sizes = [8, 16], strides = [1, 1]} : vector<8x192xf32> to vector<8x16xf32>
    %268 = arith.truncf %267 : vector<8x16xf32> to vector<8x16xbf16>
    %269 = vector.extract_strided_slice %238 {offsets = [16, 0], sizes = [16, 8], strides = [1, 1]} : vector<64x8xf32> to vector<16x8xf32>
    %270 = arith.truncf %269 : vector<16x8xf32> to vector<16x8xbf16>
    %271 = vector.extract_strided_slice %234 {offsets = [0, 144], sizes = [8, 16], strides = [1, 1]} : vector<8x192xf32> to vector<8x16xf32>
    %272 = arith.truncf %271 : vector<8x16xf32> to vector<8x16xbf16>
    %cst_88 = arith.constant dense<0.000000e+00> : vector<8x8xf32>
    %273 = tpu.matmul %268, %270, %cst_88 {dimension_numbers = #tpu.dot_dimension_numbers<[1], [0], [0], [1], [0, 0, 1, 1], [], []>} : vector<8x16xbf16>, vector<16x8xbf16>, vector<8x8xf32> -> vector<8x8xf32>
    %cst_89 = arith.constant 1.250000e-01 : f32
    %274 = vector.broadcast %cst_89 : f32 to vector<8x8xf32>
    %275 = arith.mulf %273, %274 : vector<8x8xf32>
    %276 = arith.addf %275, %11 : vector<8x8xf32>
    %cst_90 = arith.constant dense<0xFF800000> : vector<8xf32>
    %277 = vector.multi_reduction <maximumf>, %276, %cst_90 [1] : vector<8x8xf32> to vector<8xf32>
    %278 = vector.shape_cast %277 : vector<8xf32> to vector<8x1xf32>
    %279 = vector.broadcast %278 : vector<8x1xf32> to vector<8x8xf32>
    %280 = arith.subf %276, %279 : vector<8x8xf32>
    %281 = math.exp %280 : vector<8x8xf32>
    %cst_91 = arith.constant dense<0.000000e+00> : vector<8xf32>
    %282 = vector.multi_reduction <add>, %281, %cst_91 [1] : vector<8x8xf32> to vector<8xf32>
    %283 = vector.shape_cast %282 : vector<8xf32> to vector<8x1xf32>
    %284 = tpu.reciprocal %283 {approx = true} : vector<8x1xf32> -> vector<8x1xf32>
    %285 = vector.broadcast %284 : vector<8x1xf32> to vector<8x8xf32>
    %286 = arith.mulf %281, %285 : vector<8x8xf32>
    %287 = arith.truncf %286 : vector<8x8xf32> to vector<8x8xbf16>
    %cst_92 = arith.constant dense<0.000000e+00> : vector<8x16xf32>
    %288 = tpu.matmul %287, %272, %cst_92 {dimension_numbers = #tpu.dot_dimension_numbers<[1], [0], [0], [1], [0, 0, 1, 1], [], []>} : vector<8x8xbf16>, vector<8x16xbf16>, vector<8x16xf32> -> vector<8x16xf32>
    %289 = arith.truncf %288 : vector<8x16xf32> to vector<8x16xbf16>
    %290 = vector.extract_strided_slice %236 {offsets = [1, 0, 0], sizes = [1, 16, 64], strides = [1, 1, 1]} : vector<4x16x64xbf16> to vector<1x16x64xbf16>
    %291 = vector.shape_cast %290 : vector<1x16x64xbf16> to vector<16x64xbf16>
    %cst_93 = arith.constant dense<0.000000e+00> : vector<8x64xf32>
    %292 = tpu.matmul %289, %291, %cst_93 {dimension_numbers = #tpu.dot_dimension_numbers<[1], [0], [0], [1], [0, 0, 1, 1], [], []>} : vector<8x16xbf16>, vector<16x64xbf16>, vector<8x64xf32> -> vector<8x64xf32>
    %293 = arith.addf %266, %292 : vector<8x64xf32>
    %294 = vector.extract_strided_slice %234 {offsets = [0, 32], sizes = [8, 16], strides = [1, 1]} : vector<8x192xf32> to vector<8x16xf32>
    %295 = arith.truncf %294 : vector<8x16xf32> to vector<8x16xbf16>
    %296 = vector.extract_strided_slice %238 {offsets = [32, 0], sizes = [16, 8], strides = [1, 1]} : vector<64x8xf32> to vector<16x8xf32>
    %297 = arith.truncf %296 : vector<16x8xf32> to vector<16x8xbf16>
    %298 = vector.extract_strided_slice %234 {offsets = [0, 160], sizes = [8, 16], strides = [1, 1]} : vector<8x192xf32> to vector<8x16xf32>
    %299 = arith.truncf %298 : vector<8x16xf32> to vector<8x16xbf16>
    %cst_94 = arith.constant dense<0.000000e+00> : vector<8x8xf32>
    %300 = tpu.matmul %295, %297, %cst_94 {dimension_numbers = #tpu.dot_dimension_numbers<[1], [0], [0], [1], [0, 0, 1, 1], [], []>} : vector<8x16xbf16>, vector<16x8xbf16>, vector<8x8xf32> -> vector<8x8xf32>
    %cst_95 = arith.constant 1.250000e-01 : f32
    %301 = vector.broadcast %cst_95 : f32 to vector<8x8xf32>
    %302 = arith.mulf %300, %301 : vector<8x8xf32>
    %303 = arith.addf %302, %11 : vector<8x8xf32>
    %cst_96 = arith.constant dense<0xFF800000> : vector<8xf32>
    %304 = vector.multi_reduction <maximumf>, %303, %cst_96 [1] : vector<8x8xf32> to vector<8xf32>
    %305 = vector.shape_cast %304 : vector<8xf32> to vector<8x1xf32>
    %306 = vector.broadcast %305 : vector<8x1xf32> to vector<8x8xf32>
    %307 = arith.subf %303, %306 : vector<8x8xf32>
    %308 = math.exp %307 : vector<8x8xf32>
    %cst_97 = arith.constant dense<0.000000e+00> : vector<8xf32>
    %309 = vector.multi_reduction <add>, %308, %cst_97 [1] : vector<8x8xf32> to vector<8xf32>
    %310 = vector.shape_cast %309 : vector<8xf32> to vector<8x1xf32>
    %311 = tpu.reciprocal %310 {approx = true} : vector<8x1xf32> -> vector<8x1xf32>
    %312 = vector.broadcast %311 : vector<8x1xf32> to vector<8x8xf32>
    %313 = arith.mulf %308, %312 : vector<8x8xf32>
    %314 = arith.truncf %313 : vector<8x8xf32> to vector<8x8xbf16>
    %cst_98 = arith.constant dense<0.000000e+00> : vector<8x16xf32>
    %315 = tpu.matmul %314, %299, %cst_98 {dimension_numbers = #tpu.dot_dimension_numbers<[1], [0], [0], [1], [0, 0, 1, 1], [], []>} : vector<8x8xbf16>, vector<8x16xbf16>, vector<8x16xf32> -> vector<8x16xf32>
    %316 = arith.truncf %315 : vector<8x16xf32> to vector<8x16xbf16>
    %317 = vector.extract_strided_slice %236 {offsets = [2, 0, 0], sizes = [1, 16, 64], strides = [1, 1, 1]} : vector<4x16x64xbf16> to vector<1x16x64xbf16>
    %318 = vector.shape_cast %317 : vector<1x16x64xbf16> to vector<16x64xbf16>
    %cst_99 = arith.constant dense<0.000000e+00> : vector<8x64xf32>
    %319 = tpu.matmul %316, %318, %cst_99 {dimension_numbers = #tpu.dot_dimension_numbers<[1], [0], [0], [1], [0, 0, 1, 1], [], []>} : vector<8x16xbf16>, vector<16x64xbf16>, vector<8x64xf32> -> vector<8x64xf32>
    %320 = arith.addf %293, %319 : vector<8x64xf32>
    %321 = vector.extract_strided_slice %234 {offsets = [0, 48], sizes = [8, 16], strides = [1, 1]} : vector<8x192xf32> to vector<8x16xf32>
    %322 = arith.truncf %321 : vector<8x16xf32> to vector<8x16xbf16>
    %323 = vector.extract_strided_slice %238 {offsets = [48, 0], sizes = [16, 8], strides = [1, 1]} : vector<64x8xf32> to vector<16x8xf32>
    %324 = arith.truncf %323 : vector<16x8xf32> to vector<16x8xbf16>
    %325 = vector.extract_strided_slice %234 {offsets = [0, 176], sizes = [8, 16], strides = [1, 1]} : vector<8x192xf32> to vector<8x16xf32>
    %326 = arith.truncf %325 : vector<8x16xf32> to vector<8x16xbf16>
    %cst_100 = arith.constant dense<0.000000e+00> : vector<8x8xf32>
    %327 = tpu.matmul %322, %324, %cst_100 {dimension_numbers = #tpu.dot_dimension_numbers<[1], [0], [0], [1], [0, 0, 1, 1], [], []>} : vector<8x16xbf16>, vector<16x8xbf16>, vector<8x8xf32> -> vector<8x8xf32>
    %cst_101 = arith.constant 1.250000e-01 : f32
    %328 = vector.broadcast %cst_101 : f32 to vector<8x8xf32>
    %329 = arith.mulf %327, %328 : vector<8x8xf32>
    %330 = arith.addf %329, %11 : vector<8x8xf32>
    %cst_102 = arith.constant dense<0xFF800000> : vector<8xf32>
    %331 = vector.multi_reduction <maximumf>, %330, %cst_102 [1] : vector<8x8xf32> to vector<8xf32>
    %332 = vector.shape_cast %331 : vector<8xf32> to vector<8x1xf32>
    %333 = vector.broadcast %332 : vector<8x1xf32> to vector<8x8xf32>
    %334 = arith.subf %330, %333 : vector<8x8xf32>
    %335 = math.exp %334 : vector<8x8xf32>
    %cst_103 = arith.constant dense<0.000000e+00> : vector<8xf32>
    %336 = vector.multi_reduction <add>, %335, %cst_103 [1] : vector<8x8xf32> to vector<8xf32>
    %337 = vector.shape_cast %336 : vector<8xf32> to vector<8x1xf32>
    %338 = tpu.reciprocal %337 {approx = true} : vector<8x1xf32> -> vector<8x1xf32>
    %339 = vector.broadcast %338 : vector<8x1xf32> to vector<8x8xf32>
    %340 = arith.mulf %335, %339 : vector<8x8xf32>
    %341 = arith.truncf %340 : vector<8x8xf32> to vector<8x8xbf16>
    %cst_104 = arith.constant dense<0.000000e+00> : vector<8x16xf32>
    %342 = tpu.matmul %341, %326, %cst_104 {dimension_numbers = #tpu.dot_dimension_numbers<[1], [0], [0], [1], [0, 0, 1, 1], [], []>} : vector<8x8xbf16>, vector<8x16xbf16>, vector<8x16xf32> -> vector<8x16xf32>
    %343 = arith.truncf %342 : vector<8x16xf32> to vector<8x16xbf16>
    %344 = vector.extract_strided_slice %236 {offsets = [3, 0, 0], sizes = [1, 16, 64], strides = [1, 1, 1]} : vector<4x16x64xbf16> to vector<1x16x64xbf16>
    %345 = vector.shape_cast %344 : vector<1x16x64xbf16> to vector<16x64xbf16>
    %cst_105 = arith.constant dense<0.000000e+00> : vector<8x64xf32>
    %346 = tpu.matmul %343, %345, %cst_105 {dimension_numbers = #tpu.dot_dimension_numbers<[1], [0], [0], [1], [0, 0, 1, 1], [], []>} : vector<8x16xbf16>, vector<16x64xbf16>, vector<8x64xf32> -> vector<8x64xf32>
    %347 = arith.addf %320, %346 : vector<8x64xf32>
    %348 = arith.addf %200, %347 : vector<8x64xf32>
    %349 = vector.broadcast %207 : vector<1x64xf32> to vector<8x64xf32>
    %350 = arith.addf %348, %349 : vector<8x64xf32>
    %cst_106 = arith.constant dense<0.000000e+00> : vector<8xf32>
    %351 = vector.multi_reduction <add>, %350, %cst_106 [1] : vector<8x64xf32> to vector<8xf32>
    %352 = vector.shape_cast %351 : vector<8xf32> to vector<8x1xf32>
    %cst_107 = arith.constant 6.400000e+01 : f32
    %353 = vector.broadcast %cst_107 : f32 to vector<8x1xf32>
    %354 = arith.divf %352, %353 : vector<8x1xf32>
    %355 = arith.mulf %350, %350 : vector<8x64xf32>
    %cst_108 = arith.constant dense<0.000000e+00> : vector<8xf32>
    %356 = vector.multi_reduction <add>, %355, %cst_108 [1] : vector<8x64xf32> to vector<8xf32>
    %357 = vector.shape_cast %356 : vector<8xf32> to vector<8x1xf32>
    %cst_109 = arith.constant 6.400000e+01 : f32
    %358 = vector.broadcast %cst_109 : f32 to vector<8x1xf32>
    %359 = arith.divf %357, %358 : vector<8x1xf32>
    %360 = arith.mulf %354, %354 : vector<8x1xf32>
    %361 = arith.subf %359, %360 : vector<8x1xf32>
    %362 = vector.broadcast %354 : vector<8x1xf32> to vector<8x64xf32>
    %363 = arith.subf %350, %362 : vector<8x64xf32>
    %cst_110 = arith.constant 9.99999974E-6 : f32
    %364 = vector.broadcast %cst_110 : f32 to vector<8x1xf32>
    %365 = arith.addf %361, %364 : vector<8x1xf32>
    %366 = math.rsqrt %365 : vector<8x1xf32>
    %367 = vector.broadcast %366 : vector<8x1xf32> to vector<8x64xf32>
    %368 = arith.mulf %363, %367 : vector<8x64xf32>
    %369 = vector.broadcast %205 : vector<1x64xf32> to vector<8x64xf32>
    %370 = arith.mulf %368, %369 : vector<8x64xf32>
    %371 = vector.broadcast %206 : vector<1x64xf32> to vector<8x64xf32>
    %372 = arith.addf %370, %371 : vector<8x64xf32>
    %373 = arith.truncf %372 : vector<8x64xf32> to vector<8x64xbf16>
    %c1_111 = arith.constant 1 : index
    %c0_112 = arith.constant 0 : index
    %c0_113 = arith.constant 0 : index
    %374 = vector.load %arg7[%c1_111, %c0_112, %c0_113] : memref<4x64x256xbf16, #tpu.memory_space<vmem>>, vector<1x64x256xbf16>
    %375 = vector.shape_cast %374 : vector<1x64x256xbf16> to vector<64x256xbf16>
    %cst_114 = arith.constant dense<0.000000e+00> : vector<8x256xf32>
    %376 = tpu.matmul %373, %375, %cst_114 {dimension_numbers = #tpu.dot_dimension_numbers<[1], [0], [0], [1], [0, 0, 1, 1], [], []>} : vector<8x64xbf16>, vector<64x256xbf16>, vector<8x256xf32> -> vector<8x256xf32>
    %c1_115 = arith.constant 1 : index
    %c0_116 = arith.constant 0 : index
    %c0_117 = arith.constant 0 : index
    %377 = vector.load %arg10[%c1_115, %c0_116, %c0_117] : memref<4x1x256xf32, #tpu.memory_space<vmem>>, vector<1x1x256xf32>
    %378 = vector.shape_cast %377 : vector<1x1x256xf32> to vector<1x256xf32>
    %379 = vector.broadcast %378 : vector<1x256xf32> to vector<8x256xf32>
    %380 = arith.addf %376, %379 : vector<8x256xf32>
    %cst_118 = arith.constant 0.000000e+00 : f32
    %381 = vector.broadcast %cst_118 : f32 to vector<8x256xf32>
    %382 = arith.maximumf %380, %381 : vector<8x256xf32>
    %383 = arith.truncf %382 : vector<8x256xf32> to vector<8x256xbf16>
    %c1_119 = arith.constant 1 : index
    %c0_120 = arith.constant 0 : index
    %c0_121 = arith.constant 0 : index
    %384 = vector.load %arg8[%c1_119, %c0_120, %c0_121] : memref<4x256x64xbf16, #tpu.memory_space<vmem>>, vector<1x256x64xbf16>
    %385 = vector.shape_cast %384 : vector<1x256x64xbf16> to vector<256x64xbf16>
    %cst_122 = arith.constant dense<0.000000e+00> : vector<8x64xf32>
    %386 = tpu.matmul %383, %385, %cst_122 {dimension_numbers = #tpu.dot_dimension_numbers<[1], [0], [0], [1], [0, 0, 1, 1], [], []>} : vector<8x256xbf16>, vector<256x64xbf16>, vector<8x64xf32> -> vector<8x64xf32>
    %387 = arith.addf %350, %386 : vector<8x64xf32>
    %388 = vector.broadcast %208 : vector<1x64xf32> to vector<8x64xf32>
    %389 = arith.addf %387, %388 : vector<8x64xf32>
    %c2 = arith.constant 2 : index
    %c0_123 = arith.constant 0 : index
    %c0_124 = arith.constant 0 : index
    %390 = vector.load %arg9[%c2, %c0_123, %c0_124] : memref<4x8x64xf32, #tpu.memory_space<vmem>>, vector<1x8x64xf32>
    %391 = vector.shape_cast %390 : vector<1x8x64xf32> to vector<8x64xf32>
    %392 = vector.extract_strided_slice %391 {offsets = [0, 0], sizes = [1, 64], strides = [1, 1]} : vector<8x64xf32> to vector<1x64xf32>
    %393 = vector.extract_strided_slice %391 {offsets = [1, 0], sizes = [1, 64], strides = [1, 1]} : vector<8x64xf32> to vector<1x64xf32>
    %394 = vector.extract_strided_slice %391 {offsets = [2, 0], sizes = [1, 64], strides = [1, 1]} : vector<8x64xf32> to vector<1x64xf32>
    %395 = vector.extract_strided_slice %391 {offsets = [3, 0], sizes = [1, 64], strides = [1, 1]} : vector<8x64xf32> to vector<1x64xf32>
    %396 = vector.extract_strided_slice %391 {offsets = [4, 0], sizes = [1, 64], strides = [1, 1]} : vector<8x64xf32> to vector<1x64xf32>
    %397 = vector.extract_strided_slice %391 {offsets = [5, 0], sizes = [1, 64], strides = [1, 1]} : vector<8x64xf32> to vector<1x64xf32>
    %cst_125 = arith.constant dense<0.000000e+00> : vector<8xf32>
    %398 = vector.multi_reduction <add>, %389, %cst_125 [1] : vector<8x64xf32> to vector<8xf32>
    %399 = vector.shape_cast %398 : vector<8xf32> to vector<8x1xf32>
    %cst_126 = arith.constant 6.400000e+01 : f32
    %400 = vector.broadcast %cst_126 : f32 to vector<8x1xf32>
    %401 = arith.divf %399, %400 : vector<8x1xf32>
    %402 = arith.mulf %389, %389 : vector<8x64xf32>
    %cst_127 = arith.constant dense<0.000000e+00> : vector<8xf32>
    %403 = vector.multi_reduction <add>, %402, %cst_127 [1] : vector<8x64xf32> to vector<8xf32>
    %404 = vector.shape_cast %403 : vector<8xf32> to vector<8x1xf32>
    %cst_128 = arith.constant 6.400000e+01 : f32
    %405 = vector.broadcast %cst_128 : f32 to vector<8x1xf32>
    %406 = arith.divf %404, %405 : vector<8x1xf32>
    %407 = arith.mulf %401, %401 : vector<8x1xf32>
    %408 = arith.subf %406, %407 : vector<8x1xf32>
    %409 = vector.broadcast %401 : vector<8x1xf32> to vector<8x64xf32>
    %410 = arith.subf %389, %409 : vector<8x64xf32>
    %cst_129 = arith.constant 9.99999974E-6 : f32
    %411 = vector.broadcast %cst_129 : f32 to vector<8x1xf32>
    %412 = arith.addf %408, %411 : vector<8x1xf32>
    %413 = math.rsqrt %412 : vector<8x1xf32>
    %414 = vector.broadcast %413 : vector<8x1xf32> to vector<8x64xf32>
    %415 = arith.mulf %410, %414 : vector<8x64xf32>
    %416 = vector.broadcast %392 : vector<1x64xf32> to vector<8x64xf32>
    %417 = arith.mulf %415, %416 : vector<8x64xf32>
    %418 = vector.broadcast %393 : vector<1x64xf32> to vector<8x64xf32>
    %419 = arith.addf %417, %418 : vector<8x64xf32>
    %420 = arith.truncf %419 : vector<8x64xf32> to vector<8x64xbf16>
    %c2_130 = arith.constant 2 : index
    %c0_131 = arith.constant 0 : index
    %c0_132 = arith.constant 0 : index
    %421 = vector.load %arg5[%c2_130, %c0_131, %c0_132] : memref<4x64x192xbf16, #tpu.memory_space<vmem>>, vector<1x64x192xbf16>
    %422 = vector.shape_cast %421 : vector<1x64x192xbf16> to vector<64x192xbf16>
    %cst_133 = arith.constant dense<0.000000e+00> : vector<8x192xf32>
    %423 = tpu.matmul %420, %422, %cst_133 {dimension_numbers = #tpu.dot_dimension_numbers<[1], [0], [0], [1], [0, 0, 1, 1], [], []>} : vector<8x64xbf16>, vector<64x192xbf16>, vector<8x192xf32> -> vector<8x192xf32>
    %c2_134 = arith.constant 2 : index
    %c0_135 = arith.constant 0 : index
    %c0_136 = arith.constant 0 : index
    %c0_137 = arith.constant 0 : index
    %424 = vector.load %arg6[%c2_134, %c0_135, %c0_136, %c0_137] : memref<4x4x16x64xbf16, #tpu.memory_space<vmem>>, vector<1x4x16x64xbf16>
    %425 = vector.shape_cast %424 : vector<1x4x16x64xbf16> to vector<4x16x64xbf16>
    %426 = vector.extract_strided_slice %423 {offsets = [0, 64], sizes = [8, 64], strides = [1, 1]} : vector<8x192xf32> to vector<8x64xf32>
    %427 = tpu.transpose %426, [1, 0] : vector<8x64xf32> -> vector<64x8xf32>
    %cst_138 = arith.constant 0.000000e+00 : f32
    %428 = vector.broadcast %cst_138 : f32 to vector<8x64xf32>
    %429 = vector.extract_strided_slice %423 {offsets = [0, 0], sizes = [8, 16], strides = [1, 1]} : vector<8x192xf32> to vector<8x16xf32>
    %430 = arith.truncf %429 : vector<8x16xf32> to vector<8x16xbf16>
    %431 = vector.extract_strided_slice %427 {offsets = [0, 0], sizes = [16, 8], strides = [1, 1]} : vector<64x8xf32> to vector<16x8xf32>
    %432 = arith.truncf %431 : vector<16x8xf32> to vector<16x8xbf16>
    %433 = vector.extract_strided_slice %423 {offsets = [0, 128], sizes = [8, 16], strides = [1, 1]} : vector<8x192xf32> to vector<8x16xf32>
    %434 = arith.truncf %433 : vector<8x16xf32> to vector<8x16xbf16>
    %cst_139 = arith.constant dense<0.000000e+00> : vector<8x8xf32>
    %435 = tpu.matmul %430, %432, %cst_139 {dimension_numbers = #tpu.dot_dimension_numbers<[1], [0], [0], [1], [0, 0, 1, 1], [], []>} : vector<8x16xbf16>, vector<16x8xbf16>, vector<8x8xf32> -> vector<8x8xf32>
    %cst_140 = arith.constant 1.250000e-01 : f32
    %436 = vector.broadcast %cst_140 : f32 to vector<8x8xf32>
    %437 = arith.mulf %435, %436 : vector<8x8xf32>
    %438 = arith.addf %437, %11 : vector<8x8xf32>
    %cst_141 = arith.constant dense<0xFF800000> : vector<8xf32>
    %439 = vector.multi_reduction <maximumf>, %438, %cst_141 [1] : vector<8x8xf32> to vector<8xf32>
    %440 = vector.shape_cast %439 : vector<8xf32> to vector<8x1xf32>
    %441 = vector.broadcast %440 : vector<8x1xf32> to vector<8x8xf32>
    %442 = arith.subf %438, %441 : vector<8x8xf32>
    %443 = math.exp %442 : vector<8x8xf32>
    %cst_142 = arith.constant dense<0.000000e+00> : vector<8xf32>
    %444 = vector.multi_reduction <add>, %443, %cst_142 [1] : vector<8x8xf32> to vector<8xf32>
    %445 = vector.shape_cast %444 : vector<8xf32> to vector<8x1xf32>
    %446 = tpu.reciprocal %445 {approx = true} : vector<8x1xf32> -> vector<8x1xf32>
    %447 = vector.broadcast %446 : vector<8x1xf32> to vector<8x8xf32>
    %448 = arith.mulf %443, %447 : vector<8x8xf32>
    %449 = arith.truncf %448 : vector<8x8xf32> to vector<8x8xbf16>
    %cst_143 = arith.constant dense<0.000000e+00> : vector<8x16xf32>
    %450 = tpu.matmul %449, %434, %cst_143 {dimension_numbers = #tpu.dot_dimension_numbers<[1], [0], [0], [1], [0, 0, 1, 1], [], []>} : vector<8x8xbf16>, vector<8x16xbf16>, vector<8x16xf32> -> vector<8x16xf32>
    %451 = arith.truncf %450 : vector<8x16xf32> to vector<8x16xbf16>
    %452 = vector.extract_strided_slice %425 {offsets = [0, 0, 0], sizes = [1, 16, 64], strides = [1, 1, 1]} : vector<4x16x64xbf16> to vector<1x16x64xbf16>
    %453 = vector.shape_cast %452 : vector<1x16x64xbf16> to vector<16x64xbf16>
    %cst_144 = arith.constant dense<0.000000e+00> : vector<8x64xf32>
    %454 = tpu.matmul %451, %453, %cst_144 {dimension_numbers = #tpu.dot_dimension_numbers<[1], [0], [0], [1], [0, 0, 1, 1], [], []>} : vector<8x16xbf16>, vector<16x64xbf16>, vector<8x64xf32> -> vector<8x64xf32>
    %455 = arith.addf %428, %454 : vector<8x64xf32>
    %456 = vector.extract_strided_slice %423 {offsets = [0, 16], sizes = [8, 16], strides = [1, 1]} : vector<8x192xf32> to vector<8x16xf32>
    %457 = arith.truncf %456 : vector<8x16xf32> to vector<8x16xbf16>
    %458 = vector.extract_strided_slice %427 {offsets = [16, 0], sizes = [16, 8], strides = [1, 1]} : vector<64x8xf32> to vector<16x8xf32>
    %459 = arith.truncf %458 : vector<16x8xf32> to vector<16x8xbf16>
    %460 = vector.extract_strided_slice %423 {offsets = [0, 144], sizes = [8, 16], strides = [1, 1]} : vector<8x192xf32> to vector<8x16xf32>
    %461 = arith.truncf %460 : vector<8x16xf32> to vector<8x16xbf16>
    %cst_145 = arith.constant dense<0.000000e+00> : vector<8x8xf32>
    %462 = tpu.matmul %457, %459, %cst_145 {dimension_numbers = #tpu.dot_dimension_numbers<[1], [0], [0], [1], [0, 0, 1, 1], [], []>} : vector<8x16xbf16>, vector<16x8xbf16>, vector<8x8xf32> -> vector<8x8xf32>
    %cst_146 = arith.constant 1.250000e-01 : f32
    %463 = vector.broadcast %cst_146 : f32 to vector<8x8xf32>
    %464 = arith.mulf %462, %463 : vector<8x8xf32>
    %465 = arith.addf %464, %11 : vector<8x8xf32>
    %cst_147 = arith.constant dense<0xFF800000> : vector<8xf32>
    %466 = vector.multi_reduction <maximumf>, %465, %cst_147 [1] : vector<8x8xf32> to vector<8xf32>
    %467 = vector.shape_cast %466 : vector<8xf32> to vector<8x1xf32>
    %468 = vector.broadcast %467 : vector<8x1xf32> to vector<8x8xf32>
    %469 = arith.subf %465, %468 : vector<8x8xf32>
    %470 = math.exp %469 : vector<8x8xf32>
    %cst_148 = arith.constant dense<0.000000e+00> : vector<8xf32>
    %471 = vector.multi_reduction <add>, %470, %cst_148 [1] : vector<8x8xf32> to vector<8xf32>
    %472 = vector.shape_cast %471 : vector<8xf32> to vector<8x1xf32>
    %473 = tpu.reciprocal %472 {approx = true} : vector<8x1xf32> -> vector<8x1xf32>
    %474 = vector.broadcast %473 : vector<8x1xf32> to vector<8x8xf32>
    %475 = arith.mulf %470, %474 : vector<8x8xf32>
    %476 = arith.truncf %475 : vector<8x8xf32> to vector<8x8xbf16>
    %cst_149 = arith.constant dense<0.000000e+00> : vector<8x16xf32>
    %477 = tpu.matmul %476, %461, %cst_149 {dimension_numbers = #tpu.dot_dimension_numbers<[1], [0], [0], [1], [0, 0, 1, 1], [], []>} : vector<8x8xbf16>, vector<8x16xbf16>, vector<8x16xf32> -> vector<8x16xf32>
    %478 = arith.truncf %477 : vector<8x16xf32> to vector<8x16xbf16>
    %479 = vector.extract_strided_slice %425 {offsets = [1, 0, 0], sizes = [1, 16, 64], strides = [1, 1, 1]} : vector<4x16x64xbf16> to vector<1x16x64xbf16>
    %480 = vector.shape_cast %479 : vector<1x16x64xbf16> to vector<16x64xbf16>
    %cst_150 = arith.constant dense<0.000000e+00> : vector<8x64xf32>
    %481 = tpu.matmul %478, %480, %cst_150 {dimension_numbers = #tpu.dot_dimension_numbers<[1], [0], [0], [1], [0, 0, 1, 1], [], []>} : vector<8x16xbf16>, vector<16x64xbf16>, vector<8x64xf32> -> vector<8x64xf32>
    %482 = arith.addf %455, %481 : vector<8x64xf32>
    %483 = vector.extract_strided_slice %423 {offsets = [0, 32], sizes = [8, 16], strides = [1, 1]} : vector<8x192xf32> to vector<8x16xf32>
    %484 = arith.truncf %483 : vector<8x16xf32> to vector<8x16xbf16>
    %485 = vector.extract_strided_slice %427 {offsets = [32, 0], sizes = [16, 8], strides = [1, 1]} : vector<64x8xf32> to vector<16x8xf32>
    %486 = arith.truncf %485 : vector<16x8xf32> to vector<16x8xbf16>
    %487 = vector.extract_strided_slice %423 {offsets = [0, 160], sizes = [8, 16], strides = [1, 1]} : vector<8x192xf32> to vector<8x16xf32>
    %488 = arith.truncf %487 : vector<8x16xf32> to vector<8x16xbf16>
    %cst_151 = arith.constant dense<0.000000e+00> : vector<8x8xf32>
    %489 = tpu.matmul %484, %486, %cst_151 {dimension_numbers = #tpu.dot_dimension_numbers<[1], [0], [0], [1], [0, 0, 1, 1], [], []>} : vector<8x16xbf16>, vector<16x8xbf16>, vector<8x8xf32> -> vector<8x8xf32>
    %cst_152 = arith.constant 1.250000e-01 : f32
    %490 = vector.broadcast %cst_152 : f32 to vector<8x8xf32>
    %491 = arith.mulf %489, %490 : vector<8x8xf32>
    %492 = arith.addf %491, %11 : vector<8x8xf32>
    %cst_153 = arith.constant dense<0xFF800000> : vector<8xf32>
    %493 = vector.multi_reduction <maximumf>, %492, %cst_153 [1] : vector<8x8xf32> to vector<8xf32>
    %494 = vector.shape_cast %493 : vector<8xf32> to vector<8x1xf32>
    %495 = vector.broadcast %494 : vector<8x1xf32> to vector<8x8xf32>
    %496 = arith.subf %492, %495 : vector<8x8xf32>
    %497 = math.exp %496 : vector<8x8xf32>
    %cst_154 = arith.constant dense<0.000000e+00> : vector<8xf32>
    %498 = vector.multi_reduction <add>, %497, %cst_154 [1] : vector<8x8xf32> to vector<8xf32>
    %499 = vector.shape_cast %498 : vector<8xf32> to vector<8x1xf32>
    %500 = tpu.reciprocal %499 {approx = true} : vector<8x1xf32> -> vector<8x1xf32>
    %501 = vector.broadcast %500 : vector<8x1xf32> to vector<8x8xf32>
    %502 = arith.mulf %497, %501 : vector<8x8xf32>
    %503 = arith.truncf %502 : vector<8x8xf32> to vector<8x8xbf16>
    %cst_155 = arith.constant dense<0.000000e+00> : vector<8x16xf32>
    %504 = tpu.matmul %503, %488, %cst_155 {dimension_numbers = #tpu.dot_dimension_numbers<[1], [0], [0], [1], [0, 0, 1, 1], [], []>} : vector<8x8xbf16>, vector<8x16xbf16>, vector<8x16xf32> -> vector<8x16xf32>
    %505 = arith.truncf %504 : vector<8x16xf32> to vector<8x16xbf16>
    %506 = vector.extract_strided_slice %425 {offsets = [2, 0, 0], sizes = [1, 16, 64], strides = [1, 1, 1]} : vector<4x16x64xbf16> to vector<1x16x64xbf16>
    %507 = vector.shape_cast %506 : vector<1x16x64xbf16> to vector<16x64xbf16>
    %cst_156 = arith.constant dense<0.000000e+00> : vector<8x64xf32>
    %508 = tpu.matmul %505, %507, %cst_156 {dimension_numbers = #tpu.dot_dimension_numbers<[1], [0], [0], [1], [0, 0, 1, 1], [], []>} : vector<8x16xbf16>, vector<16x64xbf16>, vector<8x64xf32> -> vector<8x64xf32>
    %509 = arith.addf %482, %508 : vector<8x64xf32>
    %510 = vector.extract_strided_slice %423 {offsets = [0, 48], sizes = [8, 16], strides = [1, 1]} : vector<8x192xf32> to vector<8x16xf32>
    %511 = arith.truncf %510 : vector<8x16xf32> to vector<8x16xbf16>
    %512 = vector.extract_strided_slice %427 {offsets = [48, 0], sizes = [16, 8], strides = [1, 1]} : vector<64x8xf32> to vector<16x8xf32>
    %513 = arith.truncf %512 : vector<16x8xf32> to vector<16x8xbf16>
    %514 = vector.extract_strided_slice %423 {offsets = [0, 176], sizes = [8, 16], strides = [1, 1]} : vector<8x192xf32> to vector<8x16xf32>
    %515 = arith.truncf %514 : vector<8x16xf32> to vector<8x16xbf16>
    %cst_157 = arith.constant dense<0.000000e+00> : vector<8x8xf32>
    %516 = tpu.matmul %511, %513, %cst_157 {dimension_numbers = #tpu.dot_dimension_numbers<[1], [0], [0], [1], [0, 0, 1, 1], [], []>} : vector<8x16xbf16>, vector<16x8xbf16>, vector<8x8xf32> -> vector<8x8xf32>
    %cst_158 = arith.constant 1.250000e-01 : f32
    %517 = vector.broadcast %cst_158 : f32 to vector<8x8xf32>
    %518 = arith.mulf %516, %517 : vector<8x8xf32>
    %519 = arith.addf %518, %11 : vector<8x8xf32>
    %cst_159 = arith.constant dense<0xFF800000> : vector<8xf32>
    %520 = vector.multi_reduction <maximumf>, %519, %cst_159 [1] : vector<8x8xf32> to vector<8xf32>
    %521 = vector.shape_cast %520 : vector<8xf32> to vector<8x1xf32>
    %522 = vector.broadcast %521 : vector<8x1xf32> to vector<8x8xf32>
    %523 = arith.subf %519, %522 : vector<8x8xf32>
    %524 = math.exp %523 : vector<8x8xf32>
    %cst_160 = arith.constant dense<0.000000e+00> : vector<8xf32>
    %525 = vector.multi_reduction <add>, %524, %cst_160 [1] : vector<8x8xf32> to vector<8xf32>
    %526 = vector.shape_cast %525 : vector<8xf32> to vector<8x1xf32>
    %527 = tpu.reciprocal %526 {approx = true} : vector<8x1xf32> -> vector<8x1xf32>
    %528 = vector.broadcast %527 : vector<8x1xf32> to vector<8x8xf32>
    %529 = arith.mulf %524, %528 : vector<8x8xf32>
    %530 = arith.truncf %529 : vector<8x8xf32> to vector<8x8xbf16>
    %cst_161 = arith.constant dense<0.000000e+00> : vector<8x16xf32>
    %531 = tpu.matmul %530, %515, %cst_161 {dimension_numbers = #tpu.dot_dimension_numbers<[1], [0], [0], [1], [0, 0, 1, 1], [], []>} : vector<8x8xbf16>, vector<8x16xbf16>, vector<8x16xf32> -> vector<8x16xf32>
    %532 = arith.truncf %531 : vector<8x16xf32> to vector<8x16xbf16>
    %533 = vector.extract_strided_slice %425 {offsets = [3, 0, 0], sizes = [1, 16, 64], strides = [1, 1, 1]} : vector<4x16x64xbf16> to vector<1x16x64xbf16>
    %534 = vector.shape_cast %533 : vector<1x16x64xbf16> to vector<16x64xbf16>
    %cst_162 = arith.constant dense<0.000000e+00> : vector<8x64xf32>
    %535 = tpu.matmul %532, %534, %cst_162 {dimension_numbers = #tpu.dot_dimension_numbers<[1], [0], [0], [1], [0, 0, 1, 1], [], []>} : vector<8x16xbf16>, vector<16x64xbf16>, vector<8x64xf32> -> vector<8x64xf32>
    %536 = arith.addf %509, %535 : vector<8x64xf32>
    %537 = arith.addf %389, %536 : vector<8x64xf32>
    %538 = vector.broadcast %396 : vector<1x64xf32> to vector<8x64xf32>
    %539 = arith.addf %537, %538 : vector<8x64xf32>
    %cst_163 = arith.constant dense<0.000000e+00> : vector<8xf32>
    %540 = vector.multi_reduction <add>, %539, %cst_163 [1] : vector<8x64xf32> to vector<8xf32>
    %541 = vector.shape_cast %540 : vector<8xf32> to vector<8x1xf32>
    %cst_164 = arith.constant 6.400000e+01 : f32
    %542 = vector.broadcast %cst_164 : f32 to vector<8x1xf32>
    %543 = arith.divf %541, %542 : vector<8x1xf32>
    %544 = arith.mulf %539, %539 : vector<8x64xf32>
    %cst_165 = arith.constant dense<0.000000e+00> : vector<8xf32>
    %545 = vector.multi_reduction <add>, %544, %cst_165 [1] : vector<8x64xf32> to vector<8xf32>
    %546 = vector.shape_cast %545 : vector<8xf32> to vector<8x1xf32>
    %cst_166 = arith.constant 6.400000e+01 : f32
    %547 = vector.broadcast %cst_166 : f32 to vector<8x1xf32>
    %548 = arith.divf %546, %547 : vector<8x1xf32>
    %549 = arith.mulf %543, %543 : vector<8x1xf32>
    %550 = arith.subf %548, %549 : vector<8x1xf32>
    %551 = vector.broadcast %543 : vector<8x1xf32> to vector<8x64xf32>
    %552 = arith.subf %539, %551 : vector<8x64xf32>
    %cst_167 = arith.constant 9.99999974E-6 : f32
    %553 = vector.broadcast %cst_167 : f32 to vector<8x1xf32>
    %554 = arith.addf %550, %553 : vector<8x1xf32>
    %555 = math.rsqrt %554 : vector<8x1xf32>
    %556 = vector.broadcast %555 : vector<8x1xf32> to vector<8x64xf32>
    %557 = arith.mulf %552, %556 : vector<8x64xf32>
    %558 = vector.broadcast %394 : vector<1x64xf32> to vector<8x64xf32>
    %559 = arith.mulf %557, %558 : vector<8x64xf32>
    %560 = vector.broadcast %395 : vector<1x64xf32> to vector<8x64xf32>
    %561 = arith.addf %559, %560 : vector<8x64xf32>
    %562 = arith.truncf %561 : vector<8x64xf32> to vector<8x64xbf16>
    %c2_168 = arith.constant 2 : index
    %c0_169 = arith.constant 0 : index
    %c0_170 = arith.constant 0 : index
    %563 = vector.load %arg7[%c2_168, %c0_169, %c0_170] : memref<4x64x256xbf16, #tpu.memory_space<vmem>>, vector<1x64x256xbf16>
    %564 = vector.shape_cast %563 : vector<1x64x256xbf16> to vector<64x256xbf16>
    %cst_171 = arith.constant dense<0.000000e+00> : vector<8x256xf32>
    %565 = tpu.matmul %562, %564, %cst_171 {dimension_numbers = #tpu.dot_dimension_numbers<[1], [0], [0], [1], [0, 0, 1, 1], [], []>} : vector<8x64xbf16>, vector<64x256xbf16>, vector<8x256xf32> -> vector<8x256xf32>
    %c2_172 = arith.constant 2 : index
    %c0_173 = arith.constant 0 : index
    %c0_174 = arith.constant 0 : index
    %566 = vector.load %arg10[%c2_172, %c0_173, %c0_174] : memref<4x1x256xf32, #tpu.memory_space<vmem>>, vector<1x1x256xf32>
    %567 = vector.shape_cast %566 : vector<1x1x256xf32> to vector<1x256xf32>
    %568 = vector.broadcast %567 : vector<1x256xf32> to vector<8x256xf32>
    %569 = arith.addf %565, %568 : vector<8x256xf32>
    %cst_175 = arith.constant 0.000000e+00 : f32
    %570 = vector.broadcast %cst_175 : f32 to vector<8x256xf32>
    %571 = arith.maximumf %569, %570 : vector<8x256xf32>
    %572 = arith.truncf %571 : vector<8x256xf32> to vector<8x256xbf16>
    %c2_176 = arith.constant 2 : index
    %c0_177 = arith.constant 0 : index
    %c0_178 = arith.constant 0 : index
    %573 = vector.load %arg8[%c2_176, %c0_177, %c0_178] : memref<4x256x64xbf16, #tpu.memory_space<vmem>>, vector<1x256x64xbf16>
    %574 = vector.shape_cast %573 : vector<1x256x64xbf16> to vector<256x64xbf16>
    %cst_179 = arith.constant dense<0.000000e+00> : vector<8x64xf32>
    %575 = tpu.matmul %572, %574, %cst_179 {dimension_numbers = #tpu.dot_dimension_numbers<[1], [0], [0], [1], [0, 0, 1, 1], [], []>} : vector<8x256xbf16>, vector<256x64xbf16>, vector<8x64xf32> -> vector<8x64xf32>
    %576 = arith.addf %539, %575 : vector<8x64xf32>
    %577 = vector.broadcast %397 : vector<1x64xf32> to vector<8x64xf32>
    %578 = arith.addf %576, %577 : vector<8x64xf32>
    %c3 = arith.constant 3 : index
    %c0_180 = arith.constant 0 : index
    %c0_181 = arith.constant 0 : index
    %579 = vector.load %arg9[%c3, %c0_180, %c0_181] : memref<4x8x64xf32, #tpu.memory_space<vmem>>, vector<1x8x64xf32>
    %580 = vector.shape_cast %579 : vector<1x8x64xf32> to vector<8x64xf32>
    %581 = vector.extract_strided_slice %580 {offsets = [0, 0], sizes = [1, 64], strides = [1, 1]} : vector<8x64xf32> to vector<1x64xf32>
    %582 = vector.extract_strided_slice %580 {offsets = [1, 0], sizes = [1, 64], strides = [1, 1]} : vector<8x64xf32> to vector<1x64xf32>
    %583 = vector.extract_strided_slice %580 {offsets = [2, 0], sizes = [1, 64], strides = [1, 1]} : vector<8x64xf32> to vector<1x64xf32>
    %584 = vector.extract_strided_slice %580 {offsets = [3, 0], sizes = [1, 64], strides = [1, 1]} : vector<8x64xf32> to vector<1x64xf32>
    %585 = vector.extract_strided_slice %580 {offsets = [4, 0], sizes = [1, 64], strides = [1, 1]} : vector<8x64xf32> to vector<1x64xf32>
    %586 = vector.extract_strided_slice %580 {offsets = [5, 0], sizes = [1, 64], strides = [1, 1]} : vector<8x64xf32> to vector<1x64xf32>
    %cst_182 = arith.constant dense<0.000000e+00> : vector<8xf32>
    %587 = vector.multi_reduction <add>, %578, %cst_182 [1] : vector<8x64xf32> to vector<8xf32>
    %588 = vector.shape_cast %587 : vector<8xf32> to vector<8x1xf32>
    %cst_183 = arith.constant 6.400000e+01 : f32
    %589 = vector.broadcast %cst_183 : f32 to vector<8x1xf32>
    %590 = arith.divf %588, %589 : vector<8x1xf32>
    %591 = arith.mulf %578, %578 : vector<8x64xf32>
    %cst_184 = arith.constant dense<0.000000e+00> : vector<8xf32>
    %592 = vector.multi_reduction <add>, %591, %cst_184 [1] : vector<8x64xf32> to vector<8xf32>
    %593 = vector.shape_cast %592 : vector<8xf32> to vector<8x1xf32>
    %cst_185 = arith.constant 6.400000e+01 : f32
    %594 = vector.broadcast %cst_185 : f32 to vector<8x1xf32>
    %595 = arith.divf %593, %594 : vector<8x1xf32>
    %596 = arith.mulf %590, %590 : vector<8x1xf32>
    %597 = arith.subf %595, %596 : vector<8x1xf32>
    %598 = vector.broadcast %590 : vector<8x1xf32> to vector<8x64xf32>
    %599 = arith.subf %578, %598 : vector<8x64xf32>
    %cst_186 = arith.constant 9.99999974E-6 : f32
    %600 = vector.broadcast %cst_186 : f32 to vector<8x1xf32>
    %601 = arith.addf %597, %600 : vector<8x1xf32>
    %602 = math.rsqrt %601 : vector<8x1xf32>
    %603 = vector.broadcast %602 : vector<8x1xf32> to vector<8x64xf32>
    %604 = arith.mulf %599, %603 : vector<8x64xf32>
    %605 = vector.broadcast %581 : vector<1x64xf32> to vector<8x64xf32>
    %606 = arith.mulf %604, %605 : vector<8x64xf32>
    %607 = vector.broadcast %582 : vector<1x64xf32> to vector<8x64xf32>
    %608 = arith.addf %606, %607 : vector<8x64xf32>
    %609 = arith.truncf %608 : vector<8x64xf32> to vector<8x64xbf16>
    %c3_187 = arith.constant 3 : index
    %c0_188 = arith.constant 0 : index
    %c0_189 = arith.constant 0 : index
    %610 = vector.load %arg5[%c3_187, %c0_188, %c0_189] : memref<4x64x192xbf16, #tpu.memory_space<vmem>>, vector<1x64x192xbf16>
    %611 = vector.shape_cast %610 : vector<1x64x192xbf16> to vector<64x192xbf16>
    %cst_190 = arith.constant dense<0.000000e+00> : vector<8x192xf32>
    %612 = tpu.matmul %609, %611, %cst_190 {dimension_numbers = #tpu.dot_dimension_numbers<[1], [0], [0], [1], [0, 0, 1, 1], [], []>} : vector<8x64xbf16>, vector<64x192xbf16>, vector<8x192xf32> -> vector<8x192xf32>
    %c3_191 = arith.constant 3 : index
    %c0_192 = arith.constant 0 : index
    %c0_193 = arith.constant 0 : index
    %c0_194 = arith.constant 0 : index
    %613 = vector.load %arg6[%c3_191, %c0_192, %c0_193, %c0_194] : memref<4x4x16x64xbf16, #tpu.memory_space<vmem>>, vector<1x4x16x64xbf16>
    %614 = vector.shape_cast %613 : vector<1x4x16x64xbf16> to vector<4x16x64xbf16>
    %615 = vector.extract_strided_slice %612 {offsets = [0, 64], sizes = [8, 64], strides = [1, 1]} : vector<8x192xf32> to vector<8x64xf32>
    %616 = tpu.transpose %615, [1, 0] : vector<8x64xf32> -> vector<64x8xf32>
    %cst_195 = arith.constant 0.000000e+00 : f32
    %617 = vector.broadcast %cst_195 : f32 to vector<8x64xf32>
    %618 = vector.extract_strided_slice %612 {offsets = [0, 0], sizes = [8, 16], strides = [1, 1]} : vector<8x192xf32> to vector<8x16xf32>
    %619 = arith.truncf %618 : vector<8x16xf32> to vector<8x16xbf16>
    %620 = vector.extract_strided_slice %616 {offsets = [0, 0], sizes = [16, 8], strides = [1, 1]} : vector<64x8xf32> to vector<16x8xf32>
    %621 = arith.truncf %620 : vector<16x8xf32> to vector<16x8xbf16>
    %622 = vector.extract_strided_slice %612 {offsets = [0, 128], sizes = [8, 16], strides = [1, 1]} : vector<8x192xf32> to vector<8x16xf32>
    %623 = arith.truncf %622 : vector<8x16xf32> to vector<8x16xbf16>
    %cst_196 = arith.constant dense<0.000000e+00> : vector<8x8xf32>
    %624 = tpu.matmul %619, %621, %cst_196 {dimension_numbers = #tpu.dot_dimension_numbers<[1], [0], [0], [1], [0, 0, 1, 1], [], []>} : vector<8x16xbf16>, vector<16x8xbf16>, vector<8x8xf32> -> vector<8x8xf32>
    %cst_197 = arith.constant 1.250000e-01 : f32
    %625 = vector.broadcast %cst_197 : f32 to vector<8x8xf32>
    %626 = arith.mulf %624, %625 : vector<8x8xf32>
    %627 = arith.addf %626, %11 : vector<8x8xf32>
    %cst_198 = arith.constant dense<0xFF800000> : vector<8xf32>
    %628 = vector.multi_reduction <maximumf>, %627, %cst_198 [1] : vector<8x8xf32> to vector<8xf32>
    %629 = vector.shape_cast %628 : vector<8xf32> to vector<8x1xf32>
    %630 = vector.broadcast %629 : vector<8x1xf32> to vector<8x8xf32>
    %631 = arith.subf %627, %630 : vector<8x8xf32>
    %632 = math.exp %631 : vector<8x8xf32>
    %cst_199 = arith.constant dense<0.000000e+00> : vector<8xf32>
    %633 = vector.multi_reduction <add>, %632, %cst_199 [1] : vector<8x8xf32> to vector<8xf32>
    %634 = vector.shape_cast %633 : vector<8xf32> to vector<8x1xf32>
    %635 = tpu.reciprocal %634 {approx = true} : vector<8x1xf32> -> vector<8x1xf32>
    %636 = vector.broadcast %635 : vector<8x1xf32> to vector<8x8xf32>
    %637 = arith.mulf %632, %636 : vector<8x8xf32>
    %638 = arith.truncf %637 : vector<8x8xf32> to vector<8x8xbf16>
    %cst_200 = arith.constant dense<0.000000e+00> : vector<8x16xf32>
    %639 = tpu.matmul %638, %623, %cst_200 {dimension_numbers = #tpu.dot_dimension_numbers<[1], [0], [0], [1], [0, 0, 1, 1], [], []>} : vector<8x8xbf16>, vector<8x16xbf16>, vector<8x16xf32> -> vector<8x16xf32>
    %640 = arith.truncf %639 : vector<8x16xf32> to vector<8x16xbf16>
    %641 = vector.extract_strided_slice %614 {offsets = [0, 0, 0], sizes = [1, 16, 64], strides = [1, 1, 1]} : vector<4x16x64xbf16> to vector<1x16x64xbf16>
    %642 = vector.shape_cast %641 : vector<1x16x64xbf16> to vector<16x64xbf16>
    %cst_201 = arith.constant dense<0.000000e+00> : vector<8x64xf32>
    %643 = tpu.matmul %640, %642, %cst_201 {dimension_numbers = #tpu.dot_dimension_numbers<[1], [0], [0], [1], [0, 0, 1, 1], [], []>} : vector<8x16xbf16>, vector<16x64xbf16>, vector<8x64xf32> -> vector<8x64xf32>
    %644 = arith.addf %617, %643 : vector<8x64xf32>
    %645 = vector.extract_strided_slice %612 {offsets = [0, 16], sizes = [8, 16], strides = [1, 1]} : vector<8x192xf32> to vector<8x16xf32>
    %646 = arith.truncf %645 : vector<8x16xf32> to vector<8x16xbf16>
    %647 = vector.extract_strided_slice %616 {offsets = [16, 0], sizes = [16, 8], strides = [1, 1]} : vector<64x8xf32> to vector<16x8xf32>
    %648 = arith.truncf %647 : vector<16x8xf32> to vector<16x8xbf16>
    %649 = vector.extract_strided_slice %612 {offsets = [0, 144], sizes = [8, 16], strides = [1, 1]} : vector<8x192xf32> to vector<8x16xf32>
    %650 = arith.truncf %649 : vector<8x16xf32> to vector<8x16xbf16>
    %cst_202 = arith.constant dense<0.000000e+00> : vector<8x8xf32>
    %651 = tpu.matmul %646, %648, %cst_202 {dimension_numbers = #tpu.dot_dimension_numbers<[1], [0], [0], [1], [0, 0, 1, 1], [], []>} : vector<8x16xbf16>, vector<16x8xbf16>, vector<8x8xf32> -> vector<8x8xf32>
    %cst_203 = arith.constant 1.250000e-01 : f32
    %652 = vector.broadcast %cst_203 : f32 to vector<8x8xf32>
    %653 = arith.mulf %651, %652 : vector<8x8xf32>
    %654 = arith.addf %653, %11 : vector<8x8xf32>
    %cst_204 = arith.constant dense<0xFF800000> : vector<8xf32>
    %655 = vector.multi_reduction <maximumf>, %654, %cst_204 [1] : vector<8x8xf32> to vector<8xf32>
    %656 = vector.shape_cast %655 : vector<8xf32> to vector<8x1xf32>
    %657 = vector.broadcast %656 : vector<8x1xf32> to vector<8x8xf32>
    %658 = arith.subf %654, %657 : vector<8x8xf32>
    %659 = math.exp %658 : vector<8x8xf32>
    %cst_205 = arith.constant dense<0.000000e+00> : vector<8xf32>
    %660 = vector.multi_reduction <add>, %659, %cst_205 [1] : vector<8x8xf32> to vector<8xf32>
    %661 = vector.shape_cast %660 : vector<8xf32> to vector<8x1xf32>
    %662 = tpu.reciprocal %661 {approx = true} : vector<8x1xf32> -> vector<8x1xf32>
    %663 = vector.broadcast %662 : vector<8x1xf32> to vector<8x8xf32>
    %664 = arith.mulf %659, %663 : vector<8x8xf32>
    %665 = arith.truncf %664 : vector<8x8xf32> to vector<8x8xbf16>
    %cst_206 = arith.constant dense<0.000000e+00> : vector<8x16xf32>
    %666 = tpu.matmul %665, %650, %cst_206 {dimension_numbers = #tpu.dot_dimension_numbers<[1], [0], [0], [1], [0, 0, 1, 1], [], []>} : vector<8x8xbf16>, vector<8x16xbf16>, vector<8x16xf32> -> vector<8x16xf32>
    %667 = arith.truncf %666 : vector<8x16xf32> to vector<8x16xbf16>
    %668 = vector.extract_strided_slice %614 {offsets = [1, 0, 0], sizes = [1, 16, 64], strides = [1, 1, 1]} : vector<4x16x64xbf16> to vector<1x16x64xbf16>
    %669 = vector.shape_cast %668 : vector<1x16x64xbf16> to vector<16x64xbf16>
    %cst_207 = arith.constant dense<0.000000e+00> : vector<8x64xf32>
    %670 = tpu.matmul %667, %669, %cst_207 {dimension_numbers = #tpu.dot_dimension_numbers<[1], [0], [0], [1], [0, 0, 1, 1], [], []>} : vector<8x16xbf16>, vector<16x64xbf16>, vector<8x64xf32> -> vector<8x64xf32>
    %671 = arith.addf %644, %670 : vector<8x64xf32>
    %672 = vector.extract_strided_slice %612 {offsets = [0, 32], sizes = [8, 16], strides = [1, 1]} : vector<8x192xf32> to vector<8x16xf32>
    %673 = arith.truncf %672 : vector<8x16xf32> to vector<8x16xbf16>
    %674 = vector.extract_strided_slice %616 {offsets = [32, 0], sizes = [16, 8], strides = [1, 1]} : vector<64x8xf32> to vector<16x8xf32>
    %675 = arith.truncf %674 : vector<16x8xf32> to vector<16x8xbf16>
    %676 = vector.extract_strided_slice %612 {offsets = [0, 160], sizes = [8, 16], strides = [1, 1]} : vector<8x192xf32> to vector<8x16xf32>
    %677 = arith.truncf %676 : vector<8x16xf32> to vector<8x16xbf16>
    %cst_208 = arith.constant dense<0.000000e+00> : vector<8x8xf32>
    %678 = tpu.matmul %673, %675, %cst_208 {dimension_numbers = #tpu.dot_dimension_numbers<[1], [0], [0], [1], [0, 0, 1, 1], [], []>} : vector<8x16xbf16>, vector<16x8xbf16>, vector<8x8xf32> -> vector<8x8xf32>
    %cst_209 = arith.constant 1.250000e-01 : f32
    %679 = vector.broadcast %cst_209 : f32 to vector<8x8xf32>
    %680 = arith.mulf %678, %679 : vector<8x8xf32>
    %681 = arith.addf %680, %11 : vector<8x8xf32>
    %cst_210 = arith.constant dense<0xFF800000> : vector<8xf32>
    %682 = vector.multi_reduction <maximumf>, %681, %cst_210 [1] : vector<8x8xf32> to vector<8xf32>
    %683 = vector.shape_cast %682 : vector<8xf32> to vector<8x1xf32>
    %684 = vector.broadcast %683 : vector<8x1xf32> to vector<8x8xf32>
    %685 = arith.subf %681, %684 : vector<8x8xf32>
    %686 = math.exp %685 : vector<8x8xf32>
    %cst_211 = arith.constant dense<0.000000e+00> : vector<8xf32>
    %687 = vector.multi_reduction <add>, %686, %cst_211 [1] : vector<8x8xf32> to vector<8xf32>
    %688 = vector.shape_cast %687 : vector<8xf32> to vector<8x1xf32>
    %689 = tpu.reciprocal %688 {approx = true} : vector<8x1xf32> -> vector<8x1xf32>
    %690 = vector.broadcast %689 : vector<8x1xf32> to vector<8x8xf32>
    %691 = arith.mulf %686, %690 : vector<8x8xf32>
    %692 = arith.truncf %691 : vector<8x8xf32> to vector<8x8xbf16>
    %cst_212 = arith.constant dense<0.000000e+00> : vector<8x16xf32>
    %693 = tpu.matmul %692, %677, %cst_212 {dimension_numbers = #tpu.dot_dimension_numbers<[1], [0], [0], [1], [0, 0, 1, 1], [], []>} : vector<8x8xbf16>, vector<8x16xbf16>, vector<8x16xf32> -> vector<8x16xf32>
    %694 = arith.truncf %693 : vector<8x16xf32> to vector<8x16xbf16>
    %695 = vector.extract_strided_slice %614 {offsets = [2, 0, 0], sizes = [1, 16, 64], strides = [1, 1, 1]} : vector<4x16x64xbf16> to vector<1x16x64xbf16>
    %696 = vector.shape_cast %695 : vector<1x16x64xbf16> to vector<16x64xbf16>
    %cst_213 = arith.constant dense<0.000000e+00> : vector<8x64xf32>
    %697 = tpu.matmul %694, %696, %cst_213 {dimension_numbers = #tpu.dot_dimension_numbers<[1], [0], [0], [1], [0, 0, 1, 1], [], []>} : vector<8x16xbf16>, vector<16x64xbf16>, vector<8x64xf32> -> vector<8x64xf32>
    %698 = arith.addf %671, %697 : vector<8x64xf32>
    %699 = vector.extract_strided_slice %612 {offsets = [0, 48], sizes = [8, 16], strides = [1, 1]} : vector<8x192xf32> to vector<8x16xf32>
    %700 = arith.truncf %699 : vector<8x16xf32> to vector<8x16xbf16>
    %701 = vector.extract_strided_slice %616 {offsets = [48, 0], sizes = [16, 8], strides = [1, 1]} : vector<64x8xf32> to vector<16x8xf32>
    %702 = arith.truncf %701 : vector<16x8xf32> to vector<16x8xbf16>
    %703 = vector.extract_strided_slice %612 {offsets = [0, 176], sizes = [8, 16], strides = [1, 1]} : vector<8x192xf32> to vector<8x16xf32>
    %704 = arith.truncf %703 : vector<8x16xf32> to vector<8x16xbf16>
    %cst_214 = arith.constant dense<0.000000e+00> : vector<8x8xf32>
    %705 = tpu.matmul %700, %702, %cst_214 {dimension_numbers = #tpu.dot_dimension_numbers<[1], [0], [0], [1], [0, 0, 1, 1], [], []>} : vector<8x16xbf16>, vector<16x8xbf16>, vector<8x8xf32> -> vector<8x8xf32>
    %cst_215 = arith.constant 1.250000e-01 : f32
    %706 = vector.broadcast %cst_215 : f32 to vector<8x8xf32>
    %707 = arith.mulf %705, %706 : vector<8x8xf32>
    %708 = arith.addf %707, %11 : vector<8x8xf32>
    %cst_216 = arith.constant dense<0xFF800000> : vector<8xf32>
    %709 = vector.multi_reduction <maximumf>, %708, %cst_216 [1] : vector<8x8xf32> to vector<8xf32>
    %710 = vector.shape_cast %709 : vector<8xf32> to vector<8x1xf32>
    %711 = vector.broadcast %710 : vector<8x1xf32> to vector<8x8xf32>
    %712 = arith.subf %708, %711 : vector<8x8xf32>
    %713 = math.exp %712 : vector<8x8xf32>
    %cst_217 = arith.constant dense<0.000000e+00> : vector<8xf32>
    %714 = vector.multi_reduction <add>, %713, %cst_217 [1] : vector<8x8xf32> to vector<8xf32>
    %715 = vector.shape_cast %714 : vector<8xf32> to vector<8x1xf32>
    %716 = tpu.reciprocal %715 {approx = true} : vector<8x1xf32> -> vector<8x1xf32>
    %717 = vector.broadcast %716 : vector<8x1xf32> to vector<8x8xf32>
    %718 = arith.mulf %713, %717 : vector<8x8xf32>
    %719 = arith.truncf %718 : vector<8x8xf32> to vector<8x8xbf16>
    %cst_218 = arith.constant dense<0.000000e+00> : vector<8x16xf32>
    %720 = tpu.matmul %719, %704, %cst_218 {dimension_numbers = #tpu.dot_dimension_numbers<[1], [0], [0], [1], [0, 0, 1, 1], [], []>} : vector<8x8xbf16>, vector<8x16xbf16>, vector<8x16xf32> -> vector<8x16xf32>
    %721 = arith.truncf %720 : vector<8x16xf32> to vector<8x16xbf16>
    %722 = vector.extract_strided_slice %614 {offsets = [3, 0, 0], sizes = [1, 16, 64], strides = [1, 1, 1]} : vector<4x16x64xbf16> to vector<1x16x64xbf16>
    %723 = vector.shape_cast %722 : vector<1x16x64xbf16> to vector<16x64xbf16>
    %cst_219 = arith.constant dense<0.000000e+00> : vector<8x64xf32>
    %724 = tpu.matmul %721, %723, %cst_219 {dimension_numbers = #tpu.dot_dimension_numbers<[1], [0], [0], [1], [0, 0, 1, 1], [], []>} : vector<8x16xbf16>, vector<16x64xbf16>, vector<8x64xf32> -> vector<8x64xf32>
    %725 = arith.addf %698, %724 : vector<8x64xf32>
    %726 = arith.addf %578, %725 : vector<8x64xf32>
    %727 = vector.broadcast %585 : vector<1x64xf32> to vector<8x64xf32>
    %728 = arith.addf %726, %727 : vector<8x64xf32>
    %cst_220 = arith.constant dense<0.000000e+00> : vector<8xf32>
    %729 = vector.multi_reduction <add>, %728, %cst_220 [1] : vector<8x64xf32> to vector<8xf32>
    %730 = vector.shape_cast %729 : vector<8xf32> to vector<8x1xf32>
    %cst_221 = arith.constant 6.400000e+01 : f32
    %731 = vector.broadcast %cst_221 : f32 to vector<8x1xf32>
    %732 = arith.divf %730, %731 : vector<8x1xf32>
    %733 = arith.mulf %728, %728 : vector<8x64xf32>
    %cst_222 = arith.constant dense<0.000000e+00> : vector<8xf32>
    %734 = vector.multi_reduction <add>, %733, %cst_222 [1] : vector<8x64xf32> to vector<8xf32>
    %735 = vector.shape_cast %734 : vector<8xf32> to vector<8x1xf32>
    %cst_223 = arith.constant 6.400000e+01 : f32
    %736 = vector.broadcast %cst_223 : f32 to vector<8x1xf32>
    %737 = arith.divf %735, %736 : vector<8x1xf32>
    %738 = arith.mulf %732, %732 : vector<8x1xf32>
    %739 = arith.subf %737, %738 : vector<8x1xf32>
    %740 = vector.broadcast %732 : vector<8x1xf32> to vector<8x64xf32>
    %741 = arith.subf %728, %740 : vector<8x64xf32>
    %cst_224 = arith.constant 9.99999974E-6 : f32
    %742 = vector.broadcast %cst_224 : f32 to vector<8x1xf32>
    %743 = arith.addf %739, %742 : vector<8x1xf32>
    %744 = math.rsqrt %743 : vector<8x1xf32>
    %745 = vector.broadcast %744 : vector<8x1xf32> to vector<8x64xf32>
    %746 = arith.mulf %741, %745 : vector<8x64xf32>
    %747 = vector.broadcast %583 : vector<1x64xf32> to vector<8x64xf32>
    %748 = arith.mulf %746, %747 : vector<8x64xf32>
    %749 = vector.broadcast %584 : vector<1x64xf32> to vector<8x64xf32>
    %750 = arith.addf %748, %749 : vector<8x64xf32>
    %751 = arith.truncf %750 : vector<8x64xf32> to vector<8x64xbf16>
    %c3_225 = arith.constant 3 : index
    %c0_226 = arith.constant 0 : index
    %c0_227 = arith.constant 0 : index
    %752 = vector.load %arg7[%c3_225, %c0_226, %c0_227] : memref<4x64x256xbf16, #tpu.memory_space<vmem>>, vector<1x64x256xbf16>
    %753 = vector.shape_cast %752 : vector<1x64x256xbf16> to vector<64x256xbf16>
    %cst_228 = arith.constant dense<0.000000e+00> : vector<8x256xf32>
    %754 = tpu.matmul %751, %753, %cst_228 {dimension_numbers = #tpu.dot_dimension_numbers<[1], [0], [0], [1], [0, 0, 1, 1], [], []>} : vector<8x64xbf16>, vector<64x256xbf16>, vector<8x256xf32> -> vector<8x256xf32>
    %c3_229 = arith.constant 3 : index
    %c0_230 = arith.constant 0 : index
    %c0_231 = arith.constant 0 : index
    %755 = vector.load %arg10[%c3_229, %c0_230, %c0_231] : memref<4x1x256xf32, #tpu.memory_space<vmem>>, vector<1x1x256xf32>
    %756 = vector.shape_cast %755 : vector<1x1x256xf32> to vector<1x256xf32>
    %757 = vector.broadcast %756 : vector<1x256xf32> to vector<8x256xf32>
    %758 = arith.addf %754, %757 : vector<8x256xf32>
    %cst_232 = arith.constant 0.000000e+00 : f32
    %759 = vector.broadcast %cst_232 : f32 to vector<8x256xf32>
    %760 = arith.maximumf %758, %759 : vector<8x256xf32>
    %761 = arith.truncf %760 : vector<8x256xf32> to vector<8x256xbf16>
    %c3_233 = arith.constant 3 : index
    %c0_234 = arith.constant 0 : index
    %c0_235 = arith.constant 0 : index
    %762 = vector.load %arg8[%c3_233, %c0_234, %c0_235] : memref<4x256x64xbf16, #tpu.memory_space<vmem>>, vector<1x256x64xbf16>
    %763 = vector.shape_cast %762 : vector<1x256x64xbf16> to vector<256x64xbf16>
    %cst_236 = arith.constant dense<0.000000e+00> : vector<8x64xf32>
    %764 = tpu.matmul %761, %763, %cst_236 {dimension_numbers = #tpu.dot_dimension_numbers<[1], [0], [0], [1], [0, 0, 1, 1], [], []>} : vector<8x256xbf16>, vector<256x64xbf16>, vector<8x64xf32> -> vector<8x64xf32>
    %765 = arith.addf %728, %764 : vector<8x64xf32>
    %766 = vector.broadcast %586 : vector<1x64xf32> to vector<8x64xf32>
    %767 = arith.addf %765, %766 : vector<8x64xf32>
    %c0_237 = arith.constant 0 : index
    %c0_238 = arith.constant 0 : index
    %768 = vector.load %arg11[%c0_237, %c0_238] : memref<8x64xf32, #tpu.memory_space<vmem>>, vector<8x64xf32>
    %769 = vector.extract_strided_slice %768 {offsets = [0, 0], sizes = [1, 64], strides = [1, 1]} : vector<8x64xf32> to vector<1x64xf32>
    %770 = vector.extract_strided_slice %768 {offsets = [1, 0], sizes = [1, 64], strides = [1, 1]} : vector<8x64xf32> to vector<1x64xf32>
    %cst_239 = arith.constant dense<0.000000e+00> : vector<8xf32>
    %771 = vector.multi_reduction <add>, %767, %cst_239 [1] : vector<8x64xf32> to vector<8xf32>
    %772 = vector.shape_cast %771 : vector<8xf32> to vector<8x1xf32>
    %cst_240 = arith.constant 6.400000e+01 : f32
    %773 = vector.broadcast %cst_240 : f32 to vector<8x1xf32>
    %774 = arith.divf %772, %773 : vector<8x1xf32>
    %775 = arith.mulf %767, %767 : vector<8x64xf32>
    %cst_241 = arith.constant dense<0.000000e+00> : vector<8xf32>
    %776 = vector.multi_reduction <add>, %775, %cst_241 [1] : vector<8x64xf32> to vector<8xf32>
    %777 = vector.shape_cast %776 : vector<8xf32> to vector<8x1xf32>
    %cst_242 = arith.constant 6.400000e+01 : f32
    %778 = vector.broadcast %cst_242 : f32 to vector<8x1xf32>
    %779 = arith.divf %777, %778 : vector<8x1xf32>
    %780 = arith.mulf %774, %774 : vector<8x1xf32>
    %781 = arith.subf %779, %780 : vector<8x1xf32>
    %782 = vector.broadcast %774 : vector<8x1xf32> to vector<8x64xf32>
    %783 = arith.subf %767, %782 : vector<8x64xf32>
    %cst_243 = arith.constant 9.99999974E-6 : f32
    %784 = vector.broadcast %cst_243 : f32 to vector<8x1xf32>
    %785 = arith.addf %781, %784 : vector<8x1xf32>
    %786 = math.rsqrt %785 : vector<8x1xf32>
    %787 = vector.broadcast %786 : vector<8x1xf32> to vector<8x64xf32>
    %788 = arith.mulf %783, %787 : vector<8x64xf32>
    %789 = vector.broadcast %769 : vector<1x64xf32> to vector<8x64xf32>
    %790 = arith.mulf %788, %789 : vector<8x64xf32>
    %791 = vector.broadcast %770 : vector<1x64xf32> to vector<8x64xf32>
    %792 = arith.addf %790, %791 : vector<8x64xf32>
    %793 = arith.truncf %792 : vector<8x64xf32> to vector<8x64xbf16>
    %c0_244 = arith.constant 0 : index
    %c0_245 = arith.constant 0 : index
    %794 = vector.load %arg12[%c0_244, %c0_245] : memref<64x128xbf16, #tpu.memory_space<vmem>>, vector<64x128xbf16>
    %cst_246 = arith.constant dense<0.000000e+00> : vector<8x128xf32>
    %795 = tpu.matmul %793, %794, %cst_246 {dimension_numbers = #tpu.dot_dimension_numbers<[1], [0], [0], [1], [0, 0, 1, 1], [], []>} : vector<8x64xbf16>, vector<64x128xbf16>, vector<8x128xf32> -> vector<8x128xf32>
    %c0_247 = arith.constant 0 : index
    %c0_248 = arith.constant 0 : index
    %796 = vector.load %arg13[%c0_247, %c0_248] : memref<1x128xf32, #tpu.memory_space<vmem>>, vector<1x128xf32>
    %797 = vector.broadcast %796 : vector<1x128xf32> to vector<8x128xf32>
    %798 = arith.addf %795, %797 : vector<8x128xf32>
    %799 = vector.shape_cast %798 : vector<8x128xf32> to vector<1x8x128xf32>
    %c0_249 = arith.constant 0 : index
    %c0_250 = arith.constant 0 : index
    %c0_251 = arith.constant 0 : index
    %800 = vector.load %arg14[%c0_249, %c0_250, %c0_251] : memref<1x8x128xf32, #tpu.memory_space<vmem>>, vector<1x8x128xf32>
    tpu.vector_store %arg14[%c0_249, %c0_250, %c0_251], %799 {strides = array<i32>} : memref<1x8x128xf32, #tpu.memory_space<vmem>>, vector<1x8x128xf32>,
    return
  }
  func.func @transform_0(%arg0: i32) -> (i32, i32, i32) {
    %c0_i32 = arith.constant 0 : i32
    %c0_i32_0 = arith.constant 0 : i32
    %c0_i32_1 = arith.constant 0 : i32
    return %arg0, %c0_i32, %c0_i32_0 : i32, i32, i32
  }
  func.func @transform_1(%arg0: i32) -> (i32, i32) {
    %c0_i32 = arith.constant 0 : i32
    %c0_i32_0 = arith.constant 0 : i32
    %c0_i32_1 = arith.constant 0 : i32
    return %c0_i32, %c0_i32_0 : i32, i32
  }
  func.func @transform_2(%arg0: i32) -> (i32, i32) {
    %c0_i32 = arith.constant 0 : i32
    %c0_i32_0 = arith.constant 0 : i32
    %c0_i32_1 = arith.constant 0 : i32
    return %c0_i32, %c0_i32_0 : i32, i32
  }
  func.func @transform_3(%arg0: i32) -> (i32, i32) {
    %c0_i32 = arith.constant 0 : i32
    %c0_i32_0 = arith.constant 0 : i32
    %c0_i32_1 = arith.constant 0 : i32
    return %c0_i32, %c0_i32_0 : i32, i32
  }
  func.func @transform_4(%arg0: i32) -> (i32, i32, i32) {
    %c0_i32 = arith.constant 0 : i32
    %c0_i32_0 = arith.constant 0 : i32
    %c0_i32_1 = arith.constant 0 : i32
    %c0_i32_2 = arith.constant 0 : i32
    return %c0_i32, %c0_i32_0, %c0_i32_1 : i32, i32, i32
  }
  func.func @transform_5(%arg0: i32) -> (i32, i32, i32, i32) {
    %c0_i32 = arith.constant 0 : i32
    %c0_i32_0 = arith.constant 0 : i32
    %c0_i32_1 = arith.constant 0 : i32
    %c0_i32_2 = arith.constant 0 : i32
    %c0_i32_3 = arith.constant 0 : i32
    return %c0_i32, %c0_i32_0, %c0_i32_1, %c0_i32_2 : i32, i32, i32, i32
  }
  func.func @transform_6(%arg0: i32) -> (i32, i32, i32) {
    %c0_i32 = arith.constant 0 : i32
    %c0_i32_0 = arith.constant 0 : i32
    %c0_i32_1 = arith.constant 0 : i32
    %c0_i32_2 = arith.constant 0 : i32
    return %c0_i32, %c0_i32_0, %c0_i32_1 : i32, i32, i32
  }
  func.func @transform_7(%arg0: i32) -> (i32, i32, i32) {
    %c0_i32 = arith.constant 0 : i32
    %c0_i32_0 = arith.constant 0 : i32
    %c0_i32_1 = arith.constant 0 : i32
    %c0_i32_2 = arith.constant 0 : i32
    return %c0_i32, %c0_i32_0, %c0_i32_1 : i32, i32, i32
  }
  func.func @transform_8(%arg0: i32) -> (i32, i32, i32) {
    %c0_i32 = arith.constant 0 : i32
    %c0_i32_0 = arith.constant 0 : i32
    %c0_i32_1 = arith.constant 0 : i32
    %c0_i32_2 = arith.constant 0 : i32
    return %c0_i32, %c0_i32_0, %c0_i32_1 : i32, i32, i32
  }
  func.func @transform_9(%arg0: i32) -> (i32, i32, i32) {
    %c0_i32 = arith.constant 0 : i32
    %c0_i32_0 = arith.constant 0 : i32
    %c0_i32_1 = arith.constant 0 : i32
    %c0_i32_2 = arith.constant 0 : i32
    return %c0_i32, %c0_i32_0, %c0_i32_1 : i32, i32, i32
  }
  func.func @transform_10(%arg0: i32) -> (i32, i32) {
    %c0_i32 = arith.constant 0 : i32
    %c0_i32_0 = arith.constant 0 : i32
    %c0_i32_1 = arith.constant 0 : i32
    return %c0_i32, %c0_i32_0 : i32, i32
  }
  func.func @transform_11(%arg0: i32) -> (i32, i32) {
    %c0_i32 = arith.constant 0 : i32
    %c0_i32_0 = arith.constant 0 : i32
    %c0_i32_1 = arith.constant 0 : i32
    return %c0_i32, %c0_i32_0 : i32, i32
  }
  func.func @transform_12(%arg0: i32) -> (i32, i32) {
    %c0_i32 = arith.constant 0 : i32
    %c0_i32_0 = arith.constant 0 : i32
    %c0_i32_1 = arith.constant 0 : i32
    return %c0_i32, %c0_i32_0 : i32, i32
  }
  func.func @transform_13(%arg0: i32) -> (i32, i32, i32) {
    %c0_i32 = arith.constant 0 : i32
    %c0_i32_0 = arith.constant 0 : i32
    %c0_i32_1 = arith.constant 0 : i32
    return %arg0, %c0_i32, %c0_i32_0 : i32, i32, i32
  }
}

</mosaic_0001>

<llo_original>
// kernel: bigram_forward.1
$region0: #{bigram_forward.1}
  #allocation0 [shape = 'u32[]', space=smem, size = 0x4, offset = 0x4, fixed_abs, tag = 'smem constant byte address 0x4 - core index']
  #allocation1 [shape = 'u32[144,128]{1,0:T(1,128)}', space=vmem, size = 0x12000, scoped, tag = 'internal scratch']
  %s0 = inlined_call_operand.vmem [shape: s32[2,8,1], index: 0, kind: input, shape index: {}]
  %s1 = inlined_call_operand.vmem [shape: f32[64,64], index: 1, kind: input, shape index: {}]
  %s2 = inlined_call_operand.vmem [shape: f32[80,64], index: 2, kind: input, shape index: {}]
  %s3 = inlined_call_operand.vmem [shape: f32[8,8], index: 3, kind: input, shape index: {}]
  %s4 = inlined_call_operand.vmem [shape: bf16[4,64,192], index: 4, kind: input, shape index: {}]
  %s5 = inlined_call_operand.vmem [shape: bf16[4,4,16,64], index: 5, kind: input, shape index: {}]
  %s6 = inlined_call_operand.vmem [shape: bf16[4,64,256], index: 6, kind: input, shape index: {}]
  %s7 = inlined_call_operand.vmem [shape: bf16[4,256,64], index: 7, kind: input, shape index: {}]
  %s8 = inlined_call_operand.vmem [shape: f32[4,8,64], index: 8, kind: input, shape index: {}]
  %s9 = inlined_call_operand.vmem [shape: f32[4,1,256], index: 9, kind: input, shape index: {}]
  %s10 = inlined_call_operand.vmem [shape: f32[8,64], index: 10, kind: input, shape index: {}]
  %s11 = inlined_call_operand.vmem [shape: bf16[64,128], index: 11, kind: input, shape index: {}]
  %s12 = inlined_call_operand.vmem [shape: f32[1,128], index: 12, kind: input, shape index: {}]
  %s13 = inlined_call_operand.hbm [shape: f32[2,8,128], index: 13, kind: output, shape index: {}]
  %s14 = sld [smem:[#allocation0]]
  $region85: #{bigram_forward.1} parent=0
    _
  %s16 = ssub.s32 1, %s14
  %s17 = scalar_select 0, %s16, %s14
  $region1: #{bigram_forward.1} parent=0
    #allocation2 [shape = 'u8[8192]{0}', space=vmem, size = 0x2000, scoped, tag = 'output window, operand 0']
    #allocation3 [shape = 's32[2]{0}', space=sflag, size = 0x8, scoped, tag = 'scoped memory for bigram_forward.1']
    %18 = vsyncpa [#allocation3], 0
    %s19 = scalar_lea.sflag [#allocation3], 1
    %20 = vsyncpa %s19, 0
    loop: start=0, step=1, limit=4
    $region2: #{bigram_forward.1} parent=1 // loop_pre_header
      _
    $region3: #{bigram_forward.1} parent=1 // loop_header
      %s22 = sphi 0, %s26
      %p23 = scmp.ge.s32.totalorder %s22, 4
      %s32 = sphi 0, %s34
      %s35 = sphi 0, %s32
      %s36 = sphi 0, %s35
      %s52 = sphi 0, %s36
      %s56 = sphi 0, %s56
      %s58 = sphi 0, %s56
      %s59 = sphi 0, %s58
      %s73 = sphi 0, %s59
      %s77 = sphi 0, %s77
      %s79 = sphi 0, %s77
      %s80 = sphi 0, %s79
      %s94 = sphi 0, %s80
      %s98 = sphi 0, %s98
      %s100 = sphi 0, %s98
      %s101 = sphi 0, %s100
      %s115 = sphi 0, %s101
      %s119 = sphi 0, %s119
      %s121 = sphi 0, %s119
      %s122 = sphi 0, %s121
      %s136 = sphi 0, %s122
      %s140 = sphi 0, %s140
      %s142 = sphi 0, %s140
      %s143 = sphi 0, %s142
      %s157 = sphi 0, %s143
      %s161 = sphi 0, %s161
      %s163 = sphi 0, %s161
      %s164 = sphi 0, %s163
      %s178 = sphi 0, %s164
      %s182 = sphi 0, %s182
      %s184 = sphi 0, %s182
      %s185 = sphi 0, %s184
      %s199 = sphi 0, %s185
      %s203 = sphi 0, %s203
      %s205 = sphi 0, %s203
      %s206 = sphi 0, %s205
      %s220 = sphi 0, %s206
      %s224 = sphi 0, %s224
      %s226 = sphi 0, %s224
      %s227 = sphi 0, %s226
      %s241 = sphi 0, %s227
      %s245 = sphi 0, %s245
      %s247 = sphi 0, %s245
      %s248 = sphi 0, %s247
      %s262 = sphi 0, %s248
      %s266 = sphi 0, %s266
      %s268 = sphi 0, %s266
      %s269 = sphi 0, %s268
      %s283 = sphi 0, %s269
      %s287 = sphi 0, %s287
      %s289 = sphi 0, %s287
      %s290 = sphi 0, %s289
      %s304 = sphi 0, %s290
      %s310 = sphi 0, %s312
      %s313 = sphi 0, %s310
      %s314 = sphi 0, %s313
      %s330 = sphi 0, %s314
    $region4: #{bigram_forward.1} parent=1 // loop_header_branch
      %25 = sbr.rel (%p23) target = $region8
    $region5: #{bigram_forward.1} parent=1 // loop_body
      %s27 = ssub.s32 %s22, 1
      %s28 = ssub.s32 %s22, 2
      %s29 = sadd.s32 %s22, 1
      %s30 = ssub.s32 %s22, %s29
      %p31 = scmp.eq.s32.totalorder %s30, 0
      %s33 = sadd.s32 %s32, 1
      %s34 = scalar_select %p31, %s32, %s33
      %p37 = pneg %p31
      %p38 = scmp.eq.s32.totalorder %s22, 1
      %p39 = por %p37, %p38
      %p40 = scmp.ne.s32.totalorder %s32, %s35
      %p41 = scmp.eq.s32.totalorder %s22, 0
      %p42 = por %p40, %p41
      %p43 = scmp.ne.s32.totalorder %s32, %s35
      %p44 = scmp.eq.s32.totalorder %s27, 1
      %p45 = por %p43, %p44
      %p46 = scmp.ne.s32.totalorder %s35, %s36
      %p47 = scmp.eq.s32.totalorder %s27, 0
      %p48 = por %p46, %p47
      %p49 = scmp.ne.s32.totalorder %s35, %s36
      %p50 = scmp.eq.s32.totalorder %s28, 1
      %p51 = por %p49, %p50
      %p53 = scmp.ne.s32.totalorder %s36, %s52
      %p54 = scmp.eq.s32.totalorder %s28, 0
      %p55 = por %p53, %p54
      %s57 = sadd.s32 %s56, 1
      %p60 = scmp.eq.s32.totalorder %s22, 1
      %p61 = scmp.ne.s32.totalorder %s56, %s58
      %p62 = scmp.eq.s32.totalorder %s22, 0
      %p63 = por %p61, %p62
      %p64 = scmp.ne.s32.totalorder %s56, %s58
      %p65 = scmp.eq.s32.totalorder %s27, 1
      %p66 = por %p64, %p65
      %p67 = scmp.ne.s32.totalorder %s58, %s59
      %p68 = scmp.eq.s32.totalorder %s27, 0
      %p69 = por %p67, %p68
      %p70 = scmp.ne.s32.totalorder %s58, %s59
      %p71 = scmp.eq.s32.totalorder %s28, 1
      %p72 = por %p70, %p71
      %p74 = scmp.ne.s32.totalorder %s59, %s73
      %p75 = scmp.eq.s32.totalorder %s28, 0
      %p76 = por %p74, %p75
      %s78 = sadd.s32 %s77, 1
      %p81 = scmp.eq.s32.totalorder %s22, 1
      %p82 = scmp.ne.s32.totalorder %s77, %s79
      %p83 = scmp.eq.s32.totalorder %s22, 0
      %p84 = por %p82, %p83
      %p85 = scmp.ne.s32.totalorder %s77, %s79
      %p86 = scmp.eq.s32.totalorder %s27, 1
      %p87 = por %p85, %p86
      %p88 = scmp.ne.s32.totalorder %s79, %s80
      %p89 = scmp.eq.s32.totalorder %s27, 0
      %p90 = por %p88, %p89
      %p91 = scmp.ne.s32.totalorder %s79, %s80
      %p92 = scmp.eq.s32.totalorder %s28, 1
      %p93 = por %p91, %p92
      %p95 = scmp.ne.s32.totalorder %s80, %s94
      %p96 = scmp.eq.s32.totalorder %s28, 0
      %p97 = por %p95, %p96
      %s99 = sadd.s32 %s98, 1
      %p102 = scmp.eq.s32.totalorder %s22, 1
      %p103 = scmp.ne.s32.totalorder %s98, %s100
      %p104 = scmp.eq.s32.totalorder %s22, 0
      %p105 = por %p103, %p104
      %p106 = scmp.ne.s32.totalorder %s98, %s100
      %p107 = scmp.eq.s32.totalorder %s27, 1
      %p108 = por %p106, %p107
      %p109 = scmp.ne.s32.totalorder %s100, %s101
      %p110 = scmp.eq.s32.totalorder %s27, 0
      %p111 = por %p109, %p110
      %p112 = scmp.ne.s32.totalorder %s100, %s101
      %p113 = scmp.eq.s32.totalorder %s28, 1
      %p114 = por %p112, %p113
      %p116 = scmp.ne.s32.totalorder %s101, %s115
      %p117 = scmp.eq.s32.totalorder %s28, 0
      %p118 = por %p116, %p117
      %s120 = sadd.s32 %s119, 1
      %p123 = scmp.eq.s32.totalorder %s22, 1
      %p124 = scmp.ne.s32.totalorder %s119, %s121
      %p125 = scmp.eq.s32.totalorder %s22, 0
      %p126 = por %p124, %p125
      %p127 = scmp.ne.s32.totalorder %s119, %s121
      %p128 = scmp.eq.s32.totalorder %s27, 1
      %p129 = por %p127, %p128
      %p130 = scmp.ne.s32.totalorder %s121, %s122
      %p131 = scmp.eq.s32.totalorder %s27, 0
      %p132 = por %p130, %p131
      %p133 = scmp.ne.s32.totalorder %s121, %s122
      %p134 = scmp.eq.s32.totalorder %s28, 1
      %p135 = por %p133, %p134
      %p137 = scmp.ne.s32.totalorder %s122, %s136
      %p138 = scmp.eq.s32.totalorder %s28, 0
      %p139 = por %p137, %p138
      %s141 = sadd.s32 %s140, 1
      %p144 = scmp.eq.s32.totalorder %s22, 1
      %p145 = scmp.ne.s32.totalorder %s140, %s142
      %p146 = scmp.eq.s32.totalorder %s22, 0
      %p147 = por %p145, %p146
      %p148 = scmp.ne.s32.totalorder %s140, %s142
      %p149 = scmp.eq.s32.totalorder %s27, 1
      %p150 = por %p148, %p149
      %p151 = scmp.ne.s32.totalorder %s142, %s143
      %p152 = scmp.eq.s32.totalorder %s27, 0
      %p153 = por %p151, %p152
      %p154 = scmp.ne.s32.totalorder %s142, %s143
      %p155 = scmp.eq.s32.totalorder %s28, 1
      %p156 = por %p154, %p155
      %p158 = scmp.ne.s32.totalorder %s143, %s157
      %p159 = scmp.eq.s32.totalorder %s28, 0
      %p160 = por %p158, %p159
      %s162 = sadd.s32 %s161, 1
      %p165 = scmp.eq.s32.totalorder %s22, 1
      %p166 = scmp.ne.s32.totalorder %s161, %s163
      %p167 = scmp.eq.s32.totalorder %s22, 0
      %p168 = por %p166, %p167
      %p169 = scmp.ne.s32.totalorder %s161, %s163
      %p170 = scmp.eq.s32.totalorder %s27, 1
      %p171 = por %p169, %p170
      %p172 = scmp.ne.s32.totalorder %s163, %s164
      %p173 = scmp.eq.s32.totalorder %s27, 0
      %p174 = por %p172, %p173
      %p175 = scmp.ne.s32.totalorder %s163, %s164
      %p176 = scmp.eq.s32.totalorder %s28, 1
      %p177 = por %p175, %p176
      %p179 = scmp.ne.s32.totalorder %s164, %s178
      %p180 = scmp.eq.s32.totalorder %s28, 0
      %p181 = por %p179, %p180
      %s183 = sadd.s32 %s182, 1
      %p186 = scmp.eq.s32.totalorder %s22, 1
      %p187 = scmp.ne.s32.totalorder %s182, %s184
      %p188 = scmp.eq.s32.totalorder %s22, 0
      %p189 = por %p187, %p188
      %p190 = scmp.ne.s32.totalorder %s182, %s184
      %p191 = scmp.eq.s32.totalorder %s27, 1
      %p192 = por %p190, %p191
      %p193 = scmp.ne.s32.totalorder %s184, %s185
      %p194 = scmp.eq.s32.totalorder %s27, 0
      %p195 = por %p193, %p194
      %p196 = scmp.ne.s32.totalorder %s184, %s185
      %p197 = scmp.eq.s32.totalorder %s28, 1
      %p198 = por %p196, %p197
      %p200 = scmp.ne.s32.totalorder %s185, %s199
      %p201 = scmp.eq.s32.totalorder %s28, 0
      %p202 = por %p200, %p201
      %s204 = sadd.s32 %s203, 1
      %p207 = scmp.eq.s32.totalorder %s22, 1
      %p208 = scmp.ne.s32.totalorder %s203, %s205
      %p209 = scmp.eq.s32.totalorder %s22, 0
      %p210 = por %p208, %p209
      %p211 = scmp.ne.s32.totalorder %s203, %s205
      %p212 = scmp.eq.s32.totalorder %s27, 1
      %p213 = por %p211, %p212
      %p214 = scmp.ne.s32.totalorder %s205, %s206
      %p215 = scmp.eq.s32.totalorder %s27, 0
      %p216 = por %p214, %p215
      %p217 = scmp.ne.s32.totalorder %s205, %s206
      %p218 = scmp.eq.s32.totalorder %s28, 1
      %p219 = por %p217, %p218
      %p221 = scmp.ne.s32.totalorder %s206, %s220
      %p222 = scmp.eq.s32.totalorder %s28, 0
      %p223 = por %p221, %p222
      %s225 = sadd.s32 %s224, 1
      %p228 = scmp.eq.s32.totalorder %s22, 1
      %p229 = scmp.ne.s32.totalorder %s224, %s226
      %p230 = scmp.eq.s32.totalorder %s22, 0
      %p231 = por %p229, %p230
      %p232 = scmp.ne.s32.totalorder %s224, %s226
      %p233 = scmp.eq.s32.totalorder %s27, 1
      %p234 = por %p232, %p233
      %p235 = scmp.ne.s32.totalorder %s226, %s227
      %p236 = scmp.eq.s32.totalorder %s27, 0
      %p237 = por %p235, %p236
      %p238 = scmp.ne.s32.totalorder %s226, %s227
      %p239 = scmp.eq.s32.totalorder %s28, 1
      %p240 = por %p238, %p239
      %p242 = scmp.ne.s32.totalorder %s227, %s241
      %p243 = scmp.eq.s32.totalorder %s28, 0
      %p244 = por %p242, %p243
      %s246 = sadd.s32 %s245, 1
      %p249 = scmp.eq.s32.totalorder %s22, 1
      %p250 = scmp.ne.s32.totalorder %s245, %s247
      %p251 = scmp.eq.s32.totalorder %s22, 0
      %p252 = por %p250, %p251
      %p253 = scmp.ne.s32.totalorder %s245, %s247
      %p254 = scmp.eq.s32.totalorder %s27, 1
      %p255 = por %p253, %p254
      %p256 = scmp.ne.s32.totalorder %s247, %s248
      %p257 = scmp.eq.s32.totalorder %s27, 0
      %p258 = por %p256, %p257
      %p259 = scmp.ne.s32.totalorder %s247, %s248
      %p260 = scmp.eq.s32.totalorder %s28, 1
      %p261 = por %p259, %p260
      %p263 = scmp.ne.s32.totalorder %s248, %s262
      %p264 = scmp.eq.s32.totalorder %s28, 0
      %p265 = por %p263, %p264
      %s267 = sadd.s32 %s266, 1
      %p270 = scmp.eq.s32.totalorder %s22, 1
      %p271 = scmp.ne.s32.totalorder %s266, %s268
      %p272 = scmp.eq.s32.totalorder %s22, 0
      %p273 = por %p271, %p272
      %p274 = scmp.ne.s32.totalorder %s266, %s268
      %p275 = scmp.eq.s32.totalorder %s27, 1
      %p276 = por %p274, %p275
      %p277 = scmp.ne.s32.totalorder %s268, %s269
      %p278 = scmp.eq.s32.totalorder %s27, 0
      %p279 = por %p277, %p278
      %p280 = scmp.ne.s32.totalorder %s268, %s269
      %p281 = scmp.eq.s32.totalorder %s28, 1
      %p282 = por %p280, %p281
      %p284 = scmp.ne.s32.totalorder %s269, %s283
      %p285 = scmp.eq.s32.totalorder %s28, 0
      %p286 = por %p284, %p285
      %s288 = sadd.s32 %s287, 1
      %p291 = scmp.eq.s32.totalorder %s22, 1
      %p292 = scmp.ne.s32.totalorder %s287, %s289
      %p293 = scmp.eq.s32.totalorder %s22, 0
      %p294 = por %p292, %p293
      %p295 = scmp.ne.s32.totalorder %s287, %s289
      %p296 = scmp.eq.s32.totalorder %s27, 1
      %p297 = por %p295, %p296
      %p298 = scmp.ne.s32.totalorder %s289, %s290
      %p299 = scmp.eq.s32.totalorder %s27, 0
      %p300 = por %p298, %p299
      %p301 = scmp.ne.s32.totalorder %s289, %s290
      %p302 = scmp.eq.s32.totalorder %s28, 1
      %p303 = por %p301, %p302
      %p305 = scmp.ne.s32.totalorder %s290, %s304
      %p306 = scmp.eq.s32.totalorder %s28, 0
      %p307 = por %p305, %p306
      %s308 = ssub.s32 %s22, %s29
      %p309 = scmp.eq.s32.totalorder %s308, 0
      %s311 = sadd.s32 %s310, 1
      %s312 = scalar_select %p309, %s310, %s311
      %p315 = pneg %p309
      %p316 = scmp.eq.s32.totalorder %s22, 1
      %p317 = por %p315, %p316
      %p318 = scmp.ne.s32.totalorder %s310, %s313
      %p319 = scmp.eq.s32.totalorder %s22, 0
      %p320 = por %p318, %p319
      %p321 = scmp.ne.s32.totalorder %s310, %s313
      %p322 = scmp.eq.s32.totalorder %s27, 1
      %p323 = por %p321, %p322
      %p324 = scmp.ne.s32.totalorder %s313, %s314
      %p325 = scmp.eq.s32.totalorder %s27, 0
      %p326 = por %p324, %p325
      %p327 = scmp.ne.s32.totalorder %s313, %s314
      %p328 = scmp.eq.s32.totalorder %s28, 1
      %p329 = por %p327, %p328
      %p331 = scmp.ne.s32.totalorder %s314, %s330
      %p332 = scmp.eq.s32.totalorder %s28, 0
      %p333 = por %p331, %p332
      %p334 = scmp.le.s32.totalorder 1, %s22
      %p335 = scmp.lt.s32.totalorder %s22, 3
      %p336 = pnand %p334, %p335
      %p337 = pneg %p336
      // Predicated region
      $region9: #{bigram_forward.1} parent=5 // pred_check
        _
      $region10: #{bigram_forward.1} parent=5 // pred_check_branch
        %339 = sbr.rel (%p336) target = $region12
      $region11: #{bigram_forward.1} parent=5 // pred_region
        %s340 = ssub.s32 %s22, 1
        // Predicated region
        $region13: #{bigram_forward.1} parent=11 // pred_check
          %p341 = pneg %p69
        $region14: #{bigram_forward.1} parent=11 // pred_check_branch
          %343 = sbr.rel (%p341) target = $region16
        $region15: #{bigram_forward.1} parent=11 // pred_region
          _
        $region16: #{bigram_forward.1} parent=11 // pred_fallthru
          _
        // Predicated region
        $region17: #{bigram_forward.1} parent=11 // pred_check
          %p344 = pneg %p90
        $region18: #{bigram_forward.1} parent=11 // pred_check_branch
          %346 = sbr.rel (%p344) target = $region20
        $region19: #{bigram_forward.1} parent=11 // pred_region
          _
        $region20: #{bigram_forward.1} parent=11 // pred_fallthru
          _
        // Predicated region
        $region21: #{bigram_forward.1} parent=11 // pred_check
          %p347 = pneg %p111
        $region22: #{bigram_forward.1} parent=11 // pred_check_branch
          %349 = sbr.rel (%p347) target = $region24
        $region23: #{bigram_forward.1} parent=11 // pred_region
          _
        $region24: #{bigram_forward.1} parent=11 // pred_fallthru
          _
        // Predicated region
        $region25: #{bigram_forward.1} parent=11 // pred_check
          %p350 = pneg %p132
        $region26: #{bigram_forward.1} parent=11 // pred_check_branch
          %352 = sbr.rel (%p350) target = $region28
        $region27: #{bigram_forward.1} parent=11 // pred_region
          _
        $region28: #{bigram_forward.1} parent=11 // pred_fallthru
          _
        // Predicated region
        $region29: #{bigram_forward.1} parent=11 // pred_check
          %p353 = pneg %p153
        $region30: #{bigram_forward.1} parent=11 // pred_check_branch
          %355 = sbr.rel (%p353) target = $region32
        $region31: #{bigram_forward.1} parent=11 // pred_region
          _
        $region32: #{bigram_forward.1} parent=11 // pred_fallthru
          _
        // Predicated region
        $region33: #{bigram_forward.1} parent=11 // pred_check
          %p356 = pneg %p174
        $region34: #{bigram_forward.1} parent=11 // pred_check_branch
          %358 = sbr.rel (%p356) target = $region36
        $region35: #{bigram_forward.1} parent=11 // pred_region
          _
        $region36: #{bigram_forward.1} parent=11 // pred_fallthru
          _
        // Predicated region
        $region37: #{bigram_forward.1} parent=11 // pred_check
          %p359 = pneg %p195
        $region38: #{bigram_forward.1} parent=11 // pred_check_branch
          %361 = sbr.rel (%p359) target = $region40
        $region39: #{bigram_forward.1} parent=11 // pred_region
          _
        $region40: #{bigram_forward.1} parent=11 // pred_fallthru
          _
        // Predicated region
        $region41: #{bigram_forward.1} parent=11 // pred_check
          %p362 = pneg %p216
        $region42: #{bigram_forward.1} parent=11 // pred_check_branch
          %364 = sbr.rel (%p362) target = $region44
        $region43: #{bigram_forward.1} parent=11 // pred_region
          _
        $region44: #{bigram_forward.1} parent=11 // pred_fallthru
          _
        // Predicated region
        $region45: #{bigram_forward.1} parent=11 // pred_check
          %p365 = pneg %p237
        $region46: #{bigram_forward.1} parent=11 // pred_check_branch
          %367 = sbr.rel (%p365) target = $region48
        $region47: #{bigram_forward.1} parent=11 // pred_region
          _
        $region48: #{bigram_forward.1} parent=11 // pred_fallthru
          _
        // Predicated region
        $region49: #{bigram_forward.1} parent=11 // pred_check
          %p368 = pneg %p258
        $region50: #{bigram_forward.1} parent=11 // pred_check_branch
          %370 = sbr.rel (%p368) target = $region52
        $region51: #{bigram_forward.1} parent=11 // pred_region
          _
        $region52: #{bigram_forward.1} parent=11 // pred_fallthru
          _
        // Predicated region
        $region53: #{bigram_forward.1} parent=11 // pred_check
          %p371 = pneg %p279
        $region54: #{bigram_forward.1} parent=11 // pred_check_branch
          %373 = sbr.rel (%p371) target = $region56
        $region55: #{bigram_forward.1} parent=11 // pred_region
          _
        $region56: #{bigram_forward.1} parent=11 // pred_fallthru
          _
        // Predicated region
        $region57: #{bigram_forward.1} parent=11 // pred_check
          %p374 = pneg %p300
        $region58: #{bigram_forward.1} parent=11 // pred_check_branch
          %376 = sbr.rel (%p374) target = $region60
        $region59: #{bigram_forward.1} parent=11 // pred_region
          _
        $region60: #{bigram_forward.1} parent=11 // pred_fallthru
          _
      $region12: #{bigram_forward.1} parent=5 // pred_fallthru
        _
      %p377 = scmp.lt.s32.totalorder %s22, 2
      // Predicated region
      $region61: #{bigram_forward.1} parent=5 // pred_check
        %p378 = pneg %p377
      $region62: #{bigram_forward.1} parent=5 // pred_check_branch
        %380 = sbr.rel (%p378) target = $region64
      $region63: #{bigram_forward.1} parent=5 // pred_region
        // Predicated region
        $region65: #{bigram_forward.1} parent=63 // pred_check
          %p381 = pneg %p42
        $region66: #{bigram_forward.1} parent=63 // pred_check_branch
          %383 = sbr.rel (%p381) target = $region68
        $region67: #{bigram_forward.1} parent=63 // pred_region
          %p384 = scmp.lt.s32.totalorder %s22, 1
          %s385 = scalar_select %p384, %s22, 1
          %s386 = smul.addr %s385, 8
          %s387 = scalar_lea.vmem %s0, %s386
        $region68: #{bigram_forward.1} parent=63 // pred_fallthru
          _
      $region64: #{bigram_forward.1} parent=5 // pred_fallthru
        _
      %p388 = scmp.le.s32.totalorder 1, %s22
      %p389 = scmp.lt.s32.totalorder %s22, 3
      %p390 = pnand %p388, %p389
      %p391 = pneg %p390
      // Predicated region
      $region69: #{bigram_forward.1} parent=5 // pred_check
        _
      $region70: #{bigram_forward.1} parent=5 // pred_check_branch
        %393 = sbr.rel (%p390) target = $region72
      $region71: #{bigram_forward.1} parent=5 // pred_region
        %s394 = ssub.s32 %s22, 1
        %p395 = scmp.lt.s32.totalorder %s27, 1
        %s396 = scalar_select %p395, %s27, 1
        %s397 = smul.addr %s396, 8
        %s398 = scalar_lea.vmem %s0, %s397
        %p399 = pneg %p48
        %p400 = pneg %p45
        %p401 = pneg %p69
        %p402 = pneg %p66
        %p403 = pneg %p90
        %p404 = pneg %p87
        %p405 = pneg %p111
        %p406 = pneg %p108
        %p407 = pneg %p132
        %p408 = pneg %p129
        %p409 = pneg %p153
        %p410 = pneg %p150
        %p411 = pneg %p174
        %p412 = pneg %p171
        %p413 = pneg %p195
        %p414 = pneg %p192
        %p415 = pneg %p216
        %p416 = pneg %p213
        %p417 = pneg %p237
        %p418 = pneg %p234
        %p419 = pneg %p258
        %p420 = pneg %p255
        %p421 = pneg %p279
        %p422 = pneg %p276
        %p423 = pneg %p300
        %p424 = pneg %p297
        %p425 = pneg %p326
        %p426 = pneg %p323
        %s427 = sand.u32 %s313, 1
        %s428 = scalar_lea.sflag [#allocation3], %s427
        %s429 = sand.u32 %s313, 1
        %s430 = smul.addr %s429, 8
        %s431 = scalar_lea.vmem [#allocation2], %s430
        %p432 = scmp.lt.s32.totalorder %s27, 1
        %s433 = scalar_select %p432, %s27, 1
        %s434 = smul.addr %s433, 8
        %s435 = scalar_lea.vmem %s0, %s434
        %v437 = vld [vmem:[%s435] sm:$0xff]
        %v438 = vlaneseq
        %v439 = vand.u32 %v438, 127
        %440 = vset.pattern.permute.xlu0 0
        %441 = vperm.xlu0 %440, %v437
        %v442 = vpop.permute.xlu0 %441
        %vm443 = vcmp.eq.s32.totalorder %v442, %v439
        %v444 = vsel %vm443, 1, 0
        %v445 = vcvt.s32.f32 %v444
        %v446 = vld [vmem:[%s1] sm:$0xff]
        %v447 = vld [vmem:[%s1 + $0x8] sm:$0xff]
        %v448 = vld [vmem:[%s1 + $0x10] sm:$0xff]
        %v449 = vld [vmem:[%s1 + $0x18] sm:$0xff]
        %v450 = vld [vmem:[%s1 + $0x20] sm:$0xff]
        %v451 = vld [vmem:[%s1 + $0x28] sm:$0xff]
        %v452 = vld [vmem:[%s1 + $0x30] sm:$0xff]
        %v453 = vld [vmem:[%s1 + $0x38] sm:$0xff]
        %v454 = vld [vmem:[%s2] sm:$0xff]
        %vm455 = vcmask 523264
        %v457 = vsel %vm455, %v445, 0
        %459 = vmatprep.subr.mxu0 0.0
        %460 = vmatpush1.msra.mxu0 %v446
        %461 = vmatprep.subr.mxu0 0.0
        %462 = vmatpush1.msra.mxu0 %v447
        %463 = vmatprep.subr.mxu0 0.0
        %464 = vmatpush1.msra.mxu0 %v448
        %465 = vmatprep.subr.mxu0 0.0
        %466 = vmatpush1.msra.mxu0 %v449
        %467 = vmatprep.subr.mxu0 0.0
        %468 = vmatpush1.msra.mxu0 %v450
        %469 = vmatprep.subr.mxu0 0.0
        %470 = vmatpush1.msra.mxu0 %v451
        %471 = vmatprep.subr.mxu0 0.0
        %472 = vmatpush1.msra.mxu0 %v452
        %473 = vmatprep.subr.mxu0 0.0
        %474 = vmatpush1.msra.mxu0 %v453
        %475 = vmatprep.subr.mxu0 0.0
        %476 = vmatpush1.msra.mxu0 0.0
        %477 = vmatprep.subr.mxu0 0.0
        %478 = vmatpush1.msra.mxu0 0.0
        %479 = vmatprep.subr.mxu0 0.0
        %480 = vmatpush1.msra.mxu0 0.0
        %481 = vmatprep.subr.mxu0 0.0
        %482 = vmatpush1.msra.mxu0 0.0
        %483 = vmatprep.subr.mxu0 0.0
        %484 = vmatpush1.msra.mxu0 0.0
        %485 = vmatprep.subr.mxu0 0.0
        %486 = vmatpush1.msra.mxu0 0.0
        %487 = vmatprep.subr.mxu0 0.0
        %488 = vmatpush1.msra.mxu0 0.0
        %489 = vmatprep.subr.mxu0 0.0
        %490 = vmatpush1.msra.mxu0 0.0
        %491 = vmatprep.subr.mxu0 0.0
        %492 = vmatpush1.msra.mxu0 0.0
        %493 = vmatprep.subr.mxu0 0.0
        %494 = vmatpush1.msra.mxu0 0.0
        %495 = vmatprep.subr.mxu0 0.0
        %496 = vmatpush1.msra.mxu0 0.0
        %497 = vmatprep.subr.mxu0 0.0
        %498 = vmatpush1.msra.mxu0 0.0
        %499 = vmatprep.subr.mxu0 0.0
        %500 = vmatpush1.msra.mxu0 0.0
        %501 = vmatprep.subr.mxu0 0.0
        %502 = vmatpush1.msra.mxu0 0.0
        %503 = vmatprep.subr.mxu0 0.0
        %504 = vmatpush1.msra.mxu0 0.0
        %505 = vmatprep.subr.mxu0 0.0
        %506 = vmatpush1.msra.mxu0 0.0
        %507 = vmatprep.subr.mxu0 0.0
        %508 = vmatpush1.msra.mxu0 0.0
        %509 = vmatprep.subr.mxu0 0.0
        %510 = vmatpush1.msra.mxu0 0.0
        %511 = vmatprep.subr.mxu0 0.0
        %512 = vmatpush1.msra.mxu0 0.0
        %513 = vmatprep.subr.mxu0 0.0
        %514 = vmatpush1.msra.mxu0 0.0
        %515 = vmatprep.subr.mxu0 0.0
        %516 = vmatpush1.msra.mxu0 0.0
        %517 = vmatprep.subr.mxu0 0.0
        %518 = vmatpush1.msra.mxu0 0.0
        %519 = vmatprep.subr.mxu0 0.0
        %520 = vmatpush1.msra.mxu0 0.0
        %521 = vmatprep.subr.mxu0 0.0
        %522 = vmatpush1.msra.mxu0 0.0
        %523 = vmatprep.mubr.f32.mxu0 0.0
        %524 = vmatmul.mubr.f32.gmra.mrb[0].mxu0 %v457
        %v525 = vpop.f32.mrb[0].mxu0
        %v526 = vadd.f32 %v454, %v525
        %v527 = vpop.f32.mrb[0].mxu0
        %528 = vdwg.mxu0
        %v529 = vld [vmem:[%s3] sm:$0xff]
        %v530 = vld [vmem:[%s8] sm:$0xff]
        %v531 = vsel %vm455, %v526, 0.0
        %532 = vadd.xlane.f32.xlu0 %v531
        %v533 = vpop.xlane.xlu0 %532
        %v534 = vrcp.pop 64.0
        %v535 = vmul.f32 %v533, %v534
        %v536 = vmul.f32 %v526, %v526
        %v537 = vsel %vm455, %v536, 0.0
        %538 = vadd.xlane.f32.xlu0 %v537
        %v539 = vpop.xlane.xlu0 %538
        %v540 = vmul.f32 %v539, %v534
        %v541 = vmul.f32 %v535, %v535
        %v542 = vsub.f32 %v540, %v541
        %v543 = vsub.f32 %v526, %v535
        %v544 = vadd.f32 %v542, 1e-05
        %v545 = vrsqrt.pop %v544
        %v546 = vmul.f32 %v543, %v545
        %v547 = vlaneseq
        %v548 = vshrl.u32 %v547, 7
        %v549 = vsub.s32 0, %v548
        %v550 = vrot.slane %v530, %v549
        %v551 = vmul.f32 %v546, %v550
        %v552 = vlaneseq
        %v553 = vshrl.u32 %v552, 7
        %v554 = vsub.s32 1, %v553
        %v555 = vrot.slane %v530, %v554
        %v556 = vadd.f32 %v551, %v555
        %v557 = vpack.c.bf16 %v556, %v556
        %v558 = vld [vmem:[%s4] sm:$0xff]
        %v559 = vld [vmem:[%s4 + $0x8] sm:$0xff]
        %v560 = vld [vmem:[%s4 + $0x10] sm:$0xff]
        %v561 = vld [vmem:[%s4 + $0x18] sm:$0xff]
        %v562 = vld [vmem:[%s4 + $0x20] sm:$0xff]
        %v563 = vld [vmem:[%s4 + $0x28] sm:$0xff]
        %v564 = vld [vmem:[%s4 + $0x30] sm:$0xff]
        %v565 = vld [vmem:[%s4 + $0x38] sm:$0xff]
        %v574 = vunpack.c.l.b16 %v558
        %v575 = vunpack.c.h.b16 %v558
        %v576 = vunpack.c.l.b16 %v559
        %v577 = vunpack.c.h.b16 %v559
        %v578 = vunpack.c.l.b16 %v560
        %v579 = vunpack.c.h.b16 %v560
        %v580 = vunpack.c.l.b16 %v561
        %v581 = vunpack.c.h.b16 %v561
        %v582 = vunpack.c.l.b16 %v562
        %v583 = vunpack.c.h.b16 %v562
        %v584 = vunpack.c.l.b16 %v563
        %v585 = vunpack.c.h.b16 %v563
        %v586 = vunpack.c.l.b16 %v564
        %v587 = vunpack.c.h.b16 %v564
        %v588 = vunpack.c.l.b16 %v565
        %v589 = vunpack.c.h.b16 %v565
        %v590 = vpack.c.b16 %v576, %v574
        %v591 = vpack.c.b16 %v577, %v575
        %v592 = vpack.c.b16 %v580, %v578
        %v593 = vpack.c.b16 %v581, %v579
        %v594 = vpack.c.b16 %v584, %v582
        %v595 = vpack.c.b16 %v585, %v583
        %v596 = vpack.c.b16 %v588, %v586
        %v597 = vpack.c.b16 %v589, %v587
        %v607 = vsel %vm455, %v557, 0
        %609 = vmatprep.subr.bf16.mxu0 %v591
        %610 = vmatpush1.bf16.msra.mxu0 %v590
        %611 = vmatprep.subr.bf16.mxu0 %v593
        %612 = vmatpush1.bf16.msra.mxu0 %v592
        %613 = vmatprep.subr.bf16.mxu0 %v595
        %614 = vmatpush1.bf16.msra.mxu0 %v594
        %615 = vmatprep.subr.bf16.mxu0 %v597
        %616 = vmatpush1.bf16.msra.mxu0 %v596
        %617 = vmatprep.subr.bf16.mxu0 0
        %618 = vmatpush1.bf16.msra.mxu0 0
        %619 = vmatprep.subr.bf16.mxu0 0
        %620 = vmatpush1.bf16.msra.mxu0 0
        %621 = vmatprep.subr.bf16.mxu0 0
        %622 = vmatpush1.bf16.msra.mxu0 0
        %623 = vmatprep.subr.bf16.mxu0 0
        %624 = vmatpush1.bf16.msra.mxu0 0
        %625 = vmatprep.subr.bf16.mxu0 0
        %626 = vmatpush1.bf16.msra.mxu0 0
        %627 = vmatprep.subr.bf16.mxu0 0
        %628 = vmatpush1.bf16.msra.mxu0 0
        %629 = vmatprep.subr.bf16.mxu0 0
        %630 = vmatpush1.bf16.msra.mxu0 0
        %631 = vmatprep.subr.bf16.mxu0 0
        %632 = vmatpush1.bf16.msra.mxu0 0
        %633 = vmatprep.subr.bf16.mxu0 0
        %634 = vmatpush1.bf16.msra.mxu0 0
        %635 = vmatprep.subr.bf16.mxu0 0
        %636 = vmatpush1.bf16.msra.mxu0 0
        %637 = vmatprep.subr.bf16.mxu0 0
        %638 = vmatpush1.bf16.msra.mxu0 0
        %639 = vmatprep.subr.bf16.mxu0 0
        %640 = vmatpush1.bf16.msra.mxu0 0
        %641 = vmatprep.mubr.bf16.mxu0 0
        %642 = vmatmul.mubr.bf16.gmra.mrb[0].mxu0 %v607
        %v643 = vpop.f32.mrb[0].mxu0
        %v644 = vadd.f32 0.0, %v643
        %v645 = vpop.f32.mrb[0].mxu0
        %v646 = vadd.f32 0.0, %v645
        %v647 = vpop.f32.mrb[0].mxu0
        %v648 = vpop.f32.mrb[0].mxu0
        %649 = vdwg.mxu0
        %v650 = vld [vmem:[%s5] sm:$0xf]
        %v651 = vld [vmem:[%s5 + $0x4] sm:$0xf]
        %v652 = vld [vmem:[%s5 + $0x8] sm:$0xf]
        %v653 = vld [vmem:[%s5 + $0xc] sm:$0xf]
        %v654 = vld [vmem:[%s5 + $0x10] sm:$0xf]
        %v655 = vld [vmem:[%s5 + $0x14] sm:$0xf]
        %v656 = vld [vmem:[%s5 + $0x18] sm:$0xf]
        %v657 = vld [vmem:[%s5 + $0x1c] sm:$0xf]
        %659 = vrot.lane.b32.xlu0 %v644, 64
        %v660 = vpop.permute.xlu0 %659
        %662 = vxpose.xlu0.b32.start [1/16] %v660, 128
        %663 = vxpose.xlu0.b32.cont [2/16] 0.0, 128
        %664 = vxpose.xlu0.b32.cont [3/16] 0.0, 128
        %665 = vxpose.xlu0.b32.cont [4/16] 0.0, 128
        %666 = vxpose.xlu0.b32.cont [5/16] 0.0, 128
        %667 = vxpose.xlu0.b32.cont [6/16] 0.0, 128
        %668 = vxpose.xlu0.b32.cont [7/16] 0.0, 128
        %669 = vxpose.xlu0.b32.cont [8/16] 0.0, 128
        %670 = vxpose.xlu0.b32.cont [9/16] 0.0, 128
        %671 = vxpose.xlu0.b32.cont [10/16] 0.0, 128
        %672 = vxpose.xlu0.b32.cont [11/16] 0.0, 128
        %673 = vxpose.xlu0.b32.cont [12/16] 0.0, 128
        %674 = vxpose.xlu0.b32.cont [13/16] 0.0, 128
        %675 = vxpose.xlu0.b32.cont [14/16] 0.0, 128
        %676 = vxpose.xlu0.b32.cont [15/16] 0.0, 128
        %677 = vxpose.xlu0.b32.end [16/16] 0.0, 128
        %v678 = vpop.trf.xlu0
        %v679 = vpop.trf.xlu0
        %v680 = vpop.trf.xlu0
        %v681 = vpop.trf.xlu0
        %v682 = vpop.trf.xlu0
        %v683 = vpop.trf.xlu0
        %v684 = vpop.trf.xlu0
        %v685 = vpop.trf.xlu0
        %v686 = vpop.trf.xlu0
        %v687 = vpop.trf.xlu0
        %v688 = vpop.trf.xlu0
        %v689 = vpop.trf.xlu0
        %v690 = vpop.trf.xlu0
        %v691 = vpop.trf.xlu0
        %v692 = vpop.trf.xlu0
        %v693 = vpop.trf.xlu0
        %v694 = vpack.c.bf16 %v644, %v644
        %v695 = vpack.c.bf16 %v679, %v678
        %v696 = vpack.c.bf16 %v646, %v646
        %vm697 = vcmask 130048
        %v699 = vsel %vm697, %v694, 0
        %701 = vmatprep.subr.bf16.mxu0 0
        %702 = vmatpush1.bf16.msra.mxu0 %v695
        %703 = vmatprep.subr.bf16.mxu0 0
        %704 = vmatpush1.bf16.msra.mxu0 0
        %705 = vmatprep.subr.bf16.mxu0 0
        %706 = vmatpush1.bf16.msra.mxu0 0
        %707 = vmatprep.subr.bf16.mxu0 0
        %708 = vmatpush1.bf16.msra.mxu0 0
        %709 = vmatprep.subr.bf16.mxu0 0
        %710 = vmatpush1.bf16.msra.mxu0 0
        %711 = vmatprep.subr.bf16.mxu0 0
        %712 = vmatpush1.bf16.msra.mxu0 0
        %713 = vmatprep.subr.bf16.mxu0 0
        %714 = vmatpush1.bf16.msra.mxu0 0
        %715 = vmatprep.subr.bf16.mxu0 0
        %716 = vmatpush1.bf16.msra.mxu0 0
        %717 = vmatprep.subr.bf16.mxu0 0
        %718 = vmatpush1.bf16.msra.mxu0 0
        %719 = vmatprep.subr.bf16.mxu0 0
        %720 = vmatpush1.bf16.msra.mxu0 0
        %721 = vmatprep.subr.bf16.mxu0 0
        %722 = vmatpush1.bf16.msra.mxu0 0
        %723 = vmatprep.subr.bf16.mxu0 0
        %724 = vmatpush1.bf16.msra.mxu0 0
        %725 = vmatprep.subr.bf16.mxu0 0
        %726 = vmatpush1.bf16.msra.mxu0 0
        %727 = vmatprep.subr.bf16.mxu0 0
        %728 = vmatpush1.bf16.msra.mxu0 0
        %729 = vmatprep.subr.bf16.mxu0 0
        %730 = vmatpush1.bf16.msra.mxu0 0
        %731 = vmatprep.subr.bf16.mxu0 0
        %732 = vmatpush1.bf16.msra.mxu0 0
        %733 = vmatprep.mubr.bf16.mxu0 0
        %734 = vmatmul.mubr.bf16.gmra.mrb[0].mxu0 %v699
        %v735 = vpop.f32.mrb[0].mxu0
        %v736 = vadd.f32 0.0, %v735
        %v737 = vpop.f32.mrb[0].mxu0
        %v738 = vpop.f32.mrb[0].mxu0
        %v739 = vpop.f32.mrb[0].mxu0
        %740 = vdwg.mxu0
        %v741 = vmul.f32 %v736, 0.125
        %v742 = vadd.f32 %v741, %v529
        %vm743 = vcmask 64512
        %v744 = vsel %vm743, %v742, -inf
        %745 = vmax.xlane.f32.xlu0 %v744
        %v746 = vpop.xlane.xlu0 %745
        %v747 = vsub.f32 %v742, %v746
        %v748 = vmul.f32 %v747, 1.442695
        %v749 = vpow.pop %v748
        %v750 = vsel %vm743, %v749, 0.0
        %751 = vadd.xlane.f32.xlu0 %v750
        %v752 = vpop.xlane.xlu0 %751
        %v753 = vrcp.pop %v752
        %v754 = vmul.f32 %v749, %v753
        %v755 = vpack.c.bf16 %v754, %v754
        %v757 = vsel %vm743, %v755, 0
        %vm759 = vcmask 1043456
        %v761 = vsel %vm759, %v696, 0
        %763 = vmatprep.subr.bf16.mxu0 0
        %764 = vmatpush1.bf16.msra.mxu0 %v761
        %765 = vmatprep.subr.bf16.mxu0 0
        %766 = vmatpush1.bf16.msra.mxu0 0
        %767 = vmatprep.subr.bf16.mxu0 0
        %768 = vmatpush1.bf16.msra.mxu0 0
        %769 = vmatprep.subr.bf16.mxu0 0
        %770 = vmatpush1.bf16.msra.mxu0 0
        %771 = vmatprep.subr.bf16.mxu0 0
        %772 = vmatpush1.bf16.msra.mxu0 0
        %773 = vmatprep.subr.bf16.mxu0 0
        %774 = vmatpush1.bf16.msra.mxu0 0
        %775 = vmatprep.subr.bf16.mxu0 0
        %776 = vmatpush1.bf16.msra.mxu0 0
        %777 = vmatprep.subr.bf16.mxu0 0
        %778 = vmatpush1.bf16.msra.mxu0 0
        %779 = vmatprep.subr.bf16.mxu0 0
        %780 = vmatpush1.bf16.msra.mxu0 0
        %781 = vmatprep.subr.bf16.mxu0 0
        %782 = vmatpush1.bf16.msra.mxu0 0
        %783 = vmatprep.subr.bf16.mxu0 0
        %784 = vmatpush1.bf16.msra.mxu0 0
        %785 = vmatprep.subr.bf16.mxu0 0
        %786 = vmatpush1.bf16.msra.mxu0 0
        %787 = vmatprep.subr.bf16.mxu0 0
        %788 = vmatpush1.bf16.msra.mxu0 0
        %789 = vmatprep.subr.bf16.mxu0 0
        %790 = vmatpush1.bf16.msra.mxu0 0
        %791 = vmatprep.subr.bf16.mxu0 0
        %792 = vmatpush1.bf16.msra.mxu0 0
        %793 = vmatprep.subr.bf16.mxu0 0
        %794 = vmatpush1.bf16.msra.mxu0 0
        %795 = vmatprep.mubr.bf16.mxu0 0
        %796 = vmatmul.mubr.bf16.gmra.mrb[0].mxu0 %v757
        %v797 = vpop.f32.mrb[0].mxu0
        %v798 = vadd.f32 0.0, %v797
        %v799 = vpop.f32.mrb[0].mxu0
        %v800 = vpop.f32.mrb[0].mxu0
        %v801 = vpop.f32.mrb[0].mxu0
        %802 = vdwg.mxu0
        %v803 = vpack.c.bf16 %v798, %v798
        %v804 = vpack.c.bf16 %v681, %v680
        %806 = vrot.lane.b32.xlu0 %v694, 112
        %v807 = vpop.permute.xlu0 %806
        %v809 = vsel %vm697, %v807, 0
        %811 = vmatprep.subr.bf16.mxu0 0
        %812 = vmatpush1.bf16.msra.mxu0 %v804
        %813 = vmatprep.subr.bf16.mxu0 0
        %814 = vmatpush1.bf16.msra.mxu0 0
        %815 = vmatprep.subr.bf16.mxu0 0
        %816 = vmatpush1.bf16.msra.mxu0 0
        %817 = vmatprep.subr.bf16.mxu0 0
        %818 = vmatpush1.bf16.msra.mxu0 0
        %819 = vmatprep.subr.bf16.mxu0 0
        %820 = vmatpush1.bf16.msra.mxu0 0
        %821 = vmatprep.subr.bf16.mxu0 0
        %822 = vmatpush1.bf16.msra.mxu0 0
        %823 = vmatprep.subr.bf16.mxu0 0
        %824 = vmatpush1.bf16.msra.mxu0 0
        %825 = vmatprep.subr.bf16.mxu0 0
        %826 = vmatpush1.bf16.msra.mxu0 0
        %827 = vmatprep.subr.bf16.mxu0 0
        %828 = vmatpush1.bf16.msra.mxu0 0
        %829 = vmatprep.subr.bf16.mxu0 0
        %830 = vmatpush1.bf16.msra.mxu0 0
        %831 = vmatprep.subr.bf16.mxu0 0
        %832 = vmatpush1.bf16.msra.mxu0 0
        %833 = vmatprep.subr.bf16.mxu0 0
        %834 = vmatpush1.bf16.msra.mxu0 0
        %835 = vmatprep.subr.bf16.mxu0 0
        %836 = vmatpush1.bf16.msra.mxu0 0
        %837 = vmatprep.subr.bf16.mxu0 0
        %838 = vmatpush1.bf16.msra.mxu0 0
        %839 = vmatprep.subr.bf16.mxu0 0
        %840 = vmatpush1.bf16.msra.mxu0 0
        %841 = vmatprep.subr.bf16.mxu0 0
        %842 = vmatpush1.bf16.msra.mxu0 0
        %843 = vmatprep.mubr.bf16.mxu0 0
        %844 = vmatmul.mubr.bf16.gmra.mrb[0].mxu0 %v809
        %v845 = vpop.f32.mrb[0].mxu0
        %v846 = vadd.f32 0.0, %v845
        %v847 = vpop.f32.mrb[0].mxu0
        %v848 = vpop.f32.mrb[0].mxu0
        %v849 = vpop.f32.mrb[0].mxu0
        %850 = vdwg.mxu0
        %v851 = vmul.f32 %v846, 0.125
        %v852 = vadd.f32 %v851, %v529
        %v853 = vsel %vm743, %v852, -inf
        %854 = vmax.xlane.f32.xlu0 %v853
        %v855 = vpop.xlane.xlu0 %854
        %v856 = vsub.f32 %v852, %v855
        %v857 = vmul.f32 %v856, 1.442695
        %v858 = vpow.pop %v857
        %v859 = vsel %vm743, %v858, 0.0
        %860 = vadd.xlane.f32.xlu0 %v859
        %v861 = vpop.xlane.xlu0 %860
        %v862 = vrcp.pop %v861
        %v863 = vmul.f32 %v858, %v862
        %v864 = vpack.c.bf16 %v863, %v863
        %866 = vrot.lane.b32.xlu0 %v696, 112
        %v867 = vpop.permute.xlu0 %866
        %v869 = vsel %vm743, %v864, 0
        %v872 = vsel %vm759, %v867, 0
        %874 = vmatprep.subr.bf16.mxu0 0
        %875 = vmatpush1.bf16.msra.mxu0 %v872
        %876 = vmatprep.subr.bf16.mxu0 0
        %877 = vmatpush1.bf16.msra.mxu0 0
        %878 = vmatprep.subr.bf16.mxu0 0
        %879 = vmatpush1.bf16.msra.mxu0 0
        %880 = vmatprep.subr.bf16.mxu0 0
        %881 = vmatpush1.bf16.msra.mxu0 0
        %882 = vmatprep.subr.bf16.mxu0 0
        %883 = vmatpush1.bf16.msra.mxu0 0
        %884 = vmatprep.subr.bf16.mxu0 0
        %885 = vmatpush1.bf16.msra.mxu0 0
        %886 = vmatprep.subr.bf16.mxu0 0
        %887 = vmatpush1.bf16.msra.mxu0 0
        %888 = vmatprep.subr.bf16.mxu0 0
        %889 = vmatpush1.bf16.msra.mxu0 0
        %890 = vmatprep.subr.bf16.mxu0 0
        %891 = vmatpush1.bf16.msra.mxu0 0
        %892 = vmatprep.subr.bf16.mxu0 0
        %893 = vmatpush1.bf16.msra.mxu0 0
        %894 = vmatprep.subr.bf16.mxu0 0
        %895 = vmatpush1.bf16.msra.mxu0 0
        %896 = vmatprep.subr.bf16.mxu0 0
        %897 = vmatpush1.bf16.msra.mxu0 0
        %898 = vmatprep.subr.bf16.mxu0 0
        %899 = vmatpush1.bf16.msra.mxu0 0
        %900 = vmatprep.subr.bf16.mxu0 0
        %901 = vmatpush1.bf16.msra.mxu0 0
        %902 = vmatprep.subr.bf16.mxu0 0
        %903 = vmatpush1.bf16.msra.mxu0 0
        %904 = vmatprep.subr.bf16.mxu0 0
        %905 = vmatpush1.bf16.msra.mxu0 0
        %906 = vmatprep.mubr.bf16.mxu0 0
        %907 = vmatmul.mubr.bf16.gmra.mrb[0].mxu0 %v869
        %v908 = vpop.f32.mrb[0].mxu0
        %v909 = vadd.f32 0.0, %v908
        %v910 = vpop.f32.mrb[0].mxu0
        %v911 = vpop.f32.mrb[0].mxu0
        %v912 = vpop.f32.mrb[0].mxu0
        %913 = vdwg.mxu0
        %v914 = vpack.c.bf16 %v909, %v909
        %v917 = vunpack.c.l.b16 %v652
        %v918 = vunpack.c.l.b16 %v653
        %v919 = vpack.c.b16 %v918, %v917
        %v922 = vsel %vm697, %v914, 0
        %924 = vmatprep.subr.bf16.mxu0 0
        %925 = vmatpush1.bf16.msra.mxu0 %v919
        %926 = vmatprep.subr.bf16.mxu0 0
        %927 = vmatpush1.bf16.msra.mxu0 0
        %928 = vmatprep.subr.bf16.mxu0 0
        %929 = vmatpush1.bf16.msra.mxu0 0
        %930 = vmatprep.subr.bf16.mxu0 0
        %931 = vmatpush1.bf16.msra.mxu0 0
        %932 = vmatprep.subr.bf16.mxu0 0
        %933 = vmatpush1.bf16.msra.mxu0 0
        %934 = vmatprep.subr.bf16.mxu0 0
        %935 = vmatpush1.bf16.msra.mxu0 0
        %936 = vmatprep.subr.bf16.mxu0 0
        %937 = vmatpush1.bf16.msra.mxu0 0
        %938 = vmatprep.subr.bf16.mxu0 0
        %939 = vmatpush1.bf16.msra.mxu0 0
        %940 = vmatprep.subr.bf16.mxu0 0
        %941 = vmatpush1.bf16.msra.mxu0 0
        %942 = vmatprep.subr.bf16.mxu0 0
        %943 = vmatpush1.bf16.msra.mxu0 0
        %944 = vmatprep.subr.bf16.mxu0 0
        %945 = vmatpush1.bf16.msra.mxu0 0
        %946 = vmatprep.subr.bf16.mxu0 0
        %947 = vmatpush1.bf16.msra.mxu0 0
        %948 = vmatprep.subr.bf16.mxu0 0
        %949 = vmatpush1.bf16.msra.mxu0 0
        %950 = vmatprep.subr.bf16.mxu0 0
        %951 = vmatpush1.bf16.msra.mxu0 0
        %952 = vmatprep.subr.bf16.mxu0 0
        %953 = vmatpush1.bf16.msra.mxu0 0
        %954 = vmatprep.subr.bf16.mxu0 0
        %955 = vmatpush1.bf16.msra.mxu0 0
        %956 = vmatprep.mubr.bf16.mxu0 0
        %957 = vmatmul.mubr.bf16.gmra.mrb[0].mxu0 %v922
        %v958 = vpop.f32.mrb[0].mxu0
        %v959 = vadd.f32 0.0, %v958
        %v960 = vpop.f32.mrb[0].mxu0
        %v961 = vpop.f32.mrb[0].mxu0
        %v962 = vpop.f32.mrb[0].mxu0
        %963 = vdwg.mxu0
        %v966 = vunpack.c.l.b16 %v650
        %v967 = vunpack.c.l.b16 %v651
        %v968 = vpack.c.b16 %v967, %v966
        %v971 = vsel %vm697, %v803, 0
        %973 = vmatprep.subr.bf16.mxu0 0
        %974 = vmatpush1.bf16.msra.mxu0 %v968
        %975 = vmatprep.subr.bf16.mxu0 0
        %976 = vmatpush1.bf16.msra.mxu0 0
        %977 = vmatprep.subr.bf16.mxu0 0
        %978 = vmatpush1.bf16.msra.mxu0 0
        %979 = vmatprep.subr.bf16.mxu0 0
        %980 = vmatpush1.bf16.msra.mxu0 0
        %981 = vmatprep.subr.bf16.mxu0 0
        %982 = vmatpush1.bf16.msra.mxu0 0
        %983 = vmatprep.subr.bf16.mxu0 0
        %984 = vmatpush1.bf16.msra.mxu0 0
        %985 = vmatprep.subr.bf16.mxu0 0
        %986 = vmatpush1.bf16.msra.mxu0 0
        %987 = vmatprep.subr.bf16.mxu0 0
        %988 = vmatpush1.bf16.msra.mxu0 0
        %989 = vmatprep.subr.bf16.mxu0 0
        %990 = vmatpush1.bf16.msra.mxu0 0
        %991 = vmatprep.subr.bf16.mxu0 0
        %992 = vmatpush1.bf16.msra.mxu0 0
        %993 = vmatprep.subr.bf16.mxu0 0
        %994 = vmatpush1.bf16.msra.mxu0 0
        %995 = vmatprep.subr.bf16.mxu0 0
        %996 = vmatpush1.bf16.msra.mxu0 0
        %997 = vmatprep.subr.bf16.mxu0 0
        %998 = vmatpush1.bf16.msra.mxu0 0
        %999 = vmatprep.subr.bf16.mxu0 0
        %1000 = vmatpush1.bf16.msra.mxu0 0
        %1001 = vmatprep.subr.bf16.mxu0 0
        %1002 = vmatpush1.bf16.msra.mxu0 0
        %1003 = vmatprep.subr.bf16.mxu0 0
        %1004 = vmatpush1.bf16.msra.mxu0 0
        %1005 = vmatprep.mubr.bf16.mxu0 0
        %1006 = vmatmul.mubr.bf16.gmra.mrb[0].mxu0 %v971
        %v1007 = vpop.f32.mrb[0].mxu0
        %v1008 = vadd.f32 %v959, %v1007
        %v1009 = vpop.f32.mrb[0].mxu0
        %v1010 = vpop.f32.mrb[0].mxu0
        %v1011 = vpop.f32.mrb[0].mxu0
        %1012 = vdwg.mxu0
        %v1013 = vpack.c.bf16 %v683, %v682
        %1014 = vrot.lane.b32.xlu0 %v694, 96
        %v1015 = vpop.permute.xlu0 %1014
        %v1017 = vsel %vm697, %v1015, 0
        %1019 = vmatprep.subr.bf16.mxu0 0
        %1020 = vmatpush1.bf16.msra.mxu0 %v1013
        %1021 = vmatprep.subr.bf16.mxu0 0
        %1022 = vmatpush1.bf16.msra.mxu0 0
        %1023 = vmatprep.subr.bf16.mxu0 0
        %1024 = vmatpush1.bf16.msra.mxu0 0
        %1025 = vmatprep.subr.bf16.mxu0 0
        %1026 = vmatpush1.bf16.msra.mxu0 0
        %1027 = vmatprep.subr.bf16.mxu0 0
        %1028 = vmatpush1.bf16.msra.mxu0 0
        %1029 = vmatprep.subr.bf16.mxu0 0
        %1030 = vmatpush1.bf16.msra.mxu0 0
        %1031 = vmatprep.subr.bf16.mxu0 0
        %1032 = vmatpush1.bf16.msra.mxu0 0
        %1033 = vmatprep.subr.bf16.mxu0 0
        %1034 = vmatpush1.bf16.msra.mxu0 0
        %1035 = vmatprep.subr.bf16.mxu0 0
        %1036 = vmatpush1.bf16.msra.mxu0 0
        %1037 = vmatprep.subr.bf16.mxu0 0
        %1038 = vmatpush1.bf16.msra.mxu0 0
        %1039 = vmatprep.subr.bf16.mxu0 0
        %1040 = vmatpush1.bf16.msra.mxu0 0
        %1041 = vmatprep.subr.bf16.mxu0 0
        %1042 = vmatpush1.bf16.msra.mxu0 0
        %1043 = vmatprep.subr.bf16.mxu0 0
        %1044 = vmatpush1.bf16.msra.mxu0 0
        %1045 = vmatprep.subr.bf16.mxu0 0
        %1046 = vmatpush1.bf16.msra.mxu0 0
        %1047 = vmatprep.subr.bf16.mxu0 0
        %1048 = vmatpush1.bf16.msra.mxu0 0
        %1049 = vmatprep.subr.bf16.mxu0 0
        %1050 = vmatpush1.bf16.msra.mxu0 0
        %1051 = vmatprep.mubr.bf16.mxu0 0
        %1052 = vmatmul.mubr.bf16.gmra.mrb[0].mxu0 %v1017
        %v1053 = vpop.f32.mrb[0].mxu0
        %v1054 = vadd.f32 0.0, %v1053
        %v1055 = vpop.f32.mrb[0].mxu0
        %v1056 = vpop.f32.mrb[0].mxu0
        %v1057 = vpop.f32.mrb[0].mxu0
        %1058 = vdwg.mxu0
        %v1059 = vmul.f32 %v1054, 0.125
        %v1060 = vadd.f32 %v1059, %v529
        %v1061 = vsel %vm743, %v1060, -inf
        %1062 = vmax.xlane.f32.xlu0 %v1061
        %v1063 = vpop.xlane.xlu0 %1062
        %v1064 = vsub.f32 %v1060, %v1063
        %v1065 = vmul.f32 %v1064, 1.442695
        %v1066 = vpow.pop %v1065
        %v1067 = vsel %vm743, %v1066, 0.0
        %1068 = vadd.xlane.f32.xlu0 %v1067
        %v1069 = vpop.xlane.xlu0 %1068
        %v1070 = vrcp.pop %v1069
        %v1071 = vmul.f32 %v1066, %v1070
        %v1072 = vpack.c.bf16 %v1071, %v1071
        %1073 = vrot.lane.b32.xlu0 %v696, 96
        %v1074 = vpop.permute.xlu0 %1073
        %v1076 = vsel %vm743, %v1072, 0
        %v1079 = vsel %vm759, %v1074, 0
        %1081 = vmatprep.subr.bf16.mxu0 0
        %1082 = vmatpush1.bf16.msra.mxu0 %v1079
        %1083 = vmatprep.subr.bf16.mxu0 0
        %1084 = vmatpush1.bf16.msra.mxu0 0
        %1085 = vmatprep.subr.bf16.mxu0 0
        %1086 = vmatpush1.bf16.msra.mxu0 0
        %1087 = vmatprep.subr.bf16.mxu0 0
        %1088 = vmatpush1.bf16.msra.mxu0 0
        %1089 = vmatprep.subr.bf16.mxu0 0
        %1090 = vmatpush1.bf16.msra.mxu0 0
        %1091 = vmatprep.subr.bf16.mxu0 0
        %1092 = vmatpush1.bf16.msra.mxu0 0
        %1093 = vmatprep.subr.bf16.mxu0 0
        %1094 = vmatpush1.bf16.msra.mxu0 0
        %1095 = vmatprep.subr.bf16.mxu0 0
        %1096 = vmatpush1.bf16.msra.mxu0 0
        %1097 = vmatprep.subr.bf16.mxu0 0
        %1098 = vmatpush1.bf16.msra.mxu0 0
        %1099 = vmatprep.subr.bf16.mxu0 0
        %1100 = vmatpush1.bf16.msra.mxu0 0
        %1101 = vmatprep.subr.bf16.mxu0 0
        %1102 = vmatpush1.bf16.msra.mxu0 0
        %1103 = vmatprep.subr.bf16.mxu0 0
        %1104 = vmatpush1.bf16.msra.mxu0 0
        %1105 = vmatprep.subr.bf16.mxu0 0
        %1106 = vmatpush1.bf16.msra.mxu0 0
        %1107 = vmatprep.subr.bf16.mxu0 0
        %1108 = vmatpush1.bf16.msra.mxu0 0
        %1109 = vmatprep.subr.bf16.mxu0 0
        %1110 = vmatpush1.bf16.msra.mxu0 0
        %1111 = vmatprep.subr.bf16.mxu0 0
        %1112 = vmatpush1.bf16.msra.mxu0 0
        %1113 = vmatprep.mubr.bf16.mxu0 0
        %1114 = vmatmul.mubr.bf16.gmra.mrb[0].mxu0 %v1076
        %v1115 = vpop.f32.mrb[0].mxu0
        %v1116 = vadd.f32 0.0, %v1115
        %v1117 = vpop.f32.mrb[0].mxu0
        %v1118 = vpop.f32.mrb[0].mxu0
        %v1119 = vpop.f32.mrb[0].mxu0
        %1120 = vdwg.mxu0
        %v1121 = vpack.c.bf16 %v1116, %v1116
        %v1124 = vunpack.c.l.b16 %v654
        %v1125 = vunpack.c.l.b16 %v655
        %v1126 = vpack.c.b16 %v1125, %v1124
        %v1129 = vsel %vm697, %v1121, 0
        %1131 = vmatprep.subr.bf16.mxu0 0
        %1132 = vmatpush1.bf16.msra.mxu0 %v1126
        %1133 = vmatprep.subr.bf16.mxu0 0
        %1134 = vmatpush1.bf16.msra.mxu0 0
        %1135 = vmatprep.subr.bf16.mxu0 0
        %1136 = vmatpush1.bf16.msra.mxu0 0
        %1137 = vmatprep.subr.bf16.mxu0 0
        %1138 = vmatpush1.bf16.msra.mxu0 0
        %1139 = vmatprep.subr.bf16.mxu0 0
        %1140 = vmatpush1.bf16.msra.mxu0 0
        %1141 = vmatprep.subr.bf16.mxu0 0
        %1142 = vmatpush1.bf16.msra.mxu0 0
        %1143 = vmatprep.subr.bf16.mxu0 0
        %1144 = vmatpush1.bf16.msra.mxu0 0
        %1145 = vmatprep.subr.bf16.mxu0 0
        %1146 = vmatpush1.bf16.msra.mxu0 0
        %1147 = vmatprep.subr.bf16.mxu0 0
        %1148 = vmatpush1.bf16.msra.mxu0 0
        %1149 = vmatprep.subr.bf16.mxu0 0
        %1150 = vmatpush1.bf16.msra.mxu0 0
        %1151 = vmatprep.subr.bf16.mxu0 0
        %1152 = vmatpush1.bf16.msra.mxu0 0
        %1153 = vmatprep.subr.bf16.mxu0 0
        %1154 = vmatpush1.bf16.msra.mxu0 0
        %1155 = vmatprep.subr.bf16.mxu0 0
        %1156 = vmatpush1.bf16.msra.mxu0 0
        %1157 = vmatprep.subr.bf16.mxu0 0
        %1158 = vmatpush1.bf16.msra.mxu0 0
        %1159 = vmatprep.subr.bf16.mxu0 0
        %1160 = vmatpush1.bf16.msra.mxu0 0
        %1161 = vmatprep.subr.bf16.mxu0 0
        %1162 = vmatpush1.bf16.msra.mxu0 0
        %1163 = vmatprep.mubr.bf16.mxu0 0
        %1164 = vmatmul.mubr.bf16.gmra.mrb[0].mxu0 %v1129
        %v1165 = vpop.f32.mrb[0].mxu0
        %v1166 = vadd.f32 0.0, %v1165
        %v1167 = vpop.f32.mrb[0].mxu0
        %v1168 = vpop.f32.mrb[0].mxu0
        %v1169 = vpop.f32.mrb[0].mxu0
        %1170 = vdwg.mxu0
        %v1171 = vadd.f32 %v1008, %v1166
        %v1172 = vpack.c.bf16 %v685, %v684
        %1173 = vrot.lane.b32.xlu0 %v694, 80
        %v1174 = vpop.permute.xlu0 %1173
        %v1176 = vsel %vm697, %v1174, 0
        %1178 = vmatprep.subr.bf16.mxu0 0
        %1179 = vmatpush1.bf16.msra.mxu0 %v1172
        %1180 = vmatprep.subr.bf16.mxu0 0
        %1181 = vmatpush1.bf16.msra.mxu0 0
        %1182 = vmatprep.subr.bf16.mxu0 0
        %1183 = vmatpush1.bf16.msra.mxu0 0
        %1184 = vmatprep.subr.bf16.mxu0 0
        %1185 = vmatpush1.bf16.msra.mxu0 0
        %1186 = vmatprep.subr.bf16.mxu0 0
        %1187 = vmatpush1.bf16.msra.mxu0 0
        %1188 = vmatprep.subr.bf16.mxu0 0
        %1189 = vmatpush1.bf16.msra.mxu0 0
        %1190 = vmatprep.subr.bf16.mxu0 0
        %1191 = vmatpush1.bf16.msra.mxu0 0
        %1192 = vmatprep.subr.bf16.mxu0 0
        %1193 = vmatpush1.bf16.msra.mxu0 0
        %1194 = vmatprep.subr.bf16.mxu0 0
        %1195 = vmatpush1.bf16.msra.mxu0 0
        %1196 = vmatprep.subr.bf16.mxu0 0
        %1197 = vmatpush1.bf16.msra.mxu0 0
        %1198 = vmatprep.subr.bf16.mxu0 0
        %1199 = vmatpush1.bf16.msra.mxu0 0
        %1200 = vmatprep.subr.bf16.mxu0 0
        %1201 = vmatpush1.bf16.msra.mxu0 0
        %1202 = vmatprep.subr.bf16.mxu0 0
        %1203 = vmatpush1.bf16.msra.mxu0 0
        %1204 = vmatprep.subr.bf16.mxu0 0
        %1205 = vmatpush1.bf16.msra.mxu0 0
        %1206 = vmatprep.subr.bf16.mxu0 0
        %1207 = vmatpush1.bf16.msra.mxu0 0
        %1208 = vmatprep.subr.bf16.mxu0 0
        %1209 = vmatpush1.bf16.msra.mxu0 0
        %1210 = vmatprep.mubr.bf16.mxu0 0
        %1211 = vmatmul.mubr.bf16.gmra.mrb[0].mxu0 %v1176
        %v1212 = vpop.f32.mrb[0].mxu0
        %v1213 = vadd.f32 0.0, %v1212
        %v1214 = vpop.f32.mrb[0].mxu0
        %v1215 = vpop.f32.mrb[0].mxu0
        %v1216 = vpop.f32.mrb[0].mxu0
        %1217 = vdwg.mxu0
        %v1218 = vmul.f32 %v1213, 0.125
        %v1219 = vadd.f32 %v1218, %v529
        %v1220 = vsel %vm743, %v1219, -inf
        %1221 = vmax.xlane.f32.xlu0 %v1220
        %v1222 = vpop.xlane.xlu0 %1221
        %v1223 = vsub.f32 %v1219, %v1222
        %v1224 = vmul.f32 %v1223, 1.442695
        %v1225 = vpow.pop %v1224
        %v1226 = vsel %vm743, %v1225, 0.0
        %1227 = vadd.xlane.f32.xlu0 %v1226
        %v1228 = vpop.xlane.xlu0 %1227
        %v1229 = vrcp.pop %v1228
        %v1230 = vmul.f32 %v1225, %v1229
        %v1231 = vpack.c.bf16 %v1230, %v1230
        %1232 = vrot.lane.b32.xlu0 %v696, 80
        %v1233 = vpop.permute.xlu0 %1232
        %v1235 = vsel %vm743, %v1231, 0
        %v1238 = vsel %vm759, %v1233, 0
        %1240 = vmatprep.subr.bf16.mxu0 0
        %1241 = vmatpush1.bf16.msra.mxu0 %v1238
        %1242 = vmatprep.subr.bf16.mxu0 0
        %1243 = vmatpush1.bf16.msra.mxu0 0
        %1244 = vmatprep.subr.bf16.mxu0 0
        %1245 = vmatpush1.bf16.msra.mxu0 0
        %1246 = vmatprep.subr.bf16.mxu0 0
        %1247 = vmatpush1.bf16.msra.mxu0 0
        %1248 = vmatprep.subr.bf16.mxu0 0
        %1249 = vmatpush1.bf16.msra.mxu0 0
        %1250 = vmatprep.subr.bf16.mxu0 0
        %1251 = vmatpush1.bf16.msra.mxu0 0
        %1252 = vmatprep.subr.bf16.mxu0 0
        %1253 = vmatpush1.bf16.msra.mxu0 0
        %1254 = vmatprep.subr.bf16.mxu0 0
        %1255 = vmatpush1.bf16.msra.mxu0 0
        %1256 = vmatprep.subr.bf16.mxu0 0
        %1257 = vmatpush1.bf16.msra.mxu0 0
        %1258 = vmatprep.subr.bf16.mxu0 0
        %1259 = vmatpush1.bf16.msra.mxu0 0
        %1260 = vmatprep.subr.bf16.mxu0 0
        %1261 = vmatpush1.bf16.msra.mxu0 0
        %1262 = vmatprep.subr.bf16.mxu0 0
        %1263 = vmatpush1.bf16.msra.mxu0 0
        %1264 = vmatprep.subr.bf16.mxu0 0
        %1265 = vmatpush1.bf16.msra.mxu0 0
        %1266 = vmatprep.subr.bf16.mxu0 0
        %1267 = vmatpush1.bf16.msra.mxu0 0
        %1268 = vmatprep.subr.bf16.mxu0 0
        %1269 = vmatpush1.bf16.msra.mxu0 0
        %1270 = vmatprep.subr.bf16.mxu0 0
        %1271 = vmatpush1.bf16.msra.mxu0 0
        %1272 = vmatprep.mubr.bf16.mxu0 0
        %1273 = vmatmul.mubr.bf16.gmra.mrb[0].mxu0 %v1235
        %v1274 = vpop.f32.mrb[0].mxu0
        %v1275 = vadd.f32 0.0, %v1274
        %v1276 = vpop.f32.mrb[0].mxu0
        %v1277 = vpop.f32.mrb[0].mxu0
        %v1278 = vpop.f32.mrb[0].mxu0
        %1279 = vdwg.mxu0
        %v1280 = vpack.c.bf16 %v1275, %v1275
        %v1283 = vunpack.c.l.b16 %v656
        %v1284 = vunpack.c.l.b16 %v657
        %v1285 = vpack.c.b16 %v1284, %v1283
        %v1288 = vsel %vm697, %v1280, 0
        %1290 = vmatprep.subr.bf16.mxu0 0
        %1291 = vmatpush1.bf16.msra.mxu0 %v1285
        %1292 = vmatprep.subr.bf16.mxu0 0
        %1293 = vmatpush1.bf16.msra.mxu0 0
        %1294 = vmatprep.subr.bf16.mxu0 0
        %1295 = vmatpush1.bf16.msra.mxu0 0
        %1296 = vmatprep.subr.bf16.mxu0 0
        %1297 = vmatpush1.bf16.msra.mxu0 0
        %1298 = vmatprep.subr.bf16.mxu0 0
        %1299 = vmatpush1.bf16.msra.mxu0 0
        %1300 = vmatprep.subr.bf16.mxu0 0
        %1301 = vmatpush1.bf16.msra.mxu0 0
        %1302 = vmatprep.subr.bf16.mxu0 0
        %1303 = vmatpush1.bf16.msra.mxu0 0
        %1304 = vmatprep.subr.bf16.mxu0 0
        %1305 = vmatpush1.bf16.msra.mxu0 0
        %1306 = vmatprep.subr.bf16.mxu0 0
        %1307 = vmatpush1.bf16.msra.mxu0 0
        %1308 = vmatprep.subr.bf16.mxu0 0
        %1309 = vmatpush1.bf16.msra.mxu0 0
        %1310 = vmatprep.subr.bf16.mxu0 0
        %1311 = vmatpush1.bf16.msra.mxu0 0
        %1312 = vmatprep.subr.bf16.mxu0 0
        %1313 = vmatpush1.bf16.msra.mxu0 0
        %1314 = vmatprep.subr.bf16.mxu0 0
        %1315 = vmatpush1.bf16.msra.mxu0 0
        %1316 = vmatprep.subr.bf16.mxu0 0
        %1317 = vmatpush1.bf16.msra.mxu0 0
        %1318 = vmatprep.subr.bf16.mxu0 0
        %1319 = vmatpush1.bf16.msra.mxu0 0
        %1320 = vmatprep.subr.bf16.mxu0 0
        %1321 = vmatpush1.bf16.msra.mxu0 0
        %1322 = vmatprep.mubr.bf16.mxu0 0
        %1323 = vmatmul.mubr.bf16.gmra.mrb[0].mxu0 %v1288
        %v1324 = vpop.f32.mrb[0].mxu0
        %v1325 = vadd.f32 0.0, %v1324
        %v1326 = vpop.f32.mrb[0].mxu0
        %v1327 = vpop.f32.mrb[0].mxu0
        %v1328 = vpop.f32.mrb[0].mxu0
        %1329 = vdwg.mxu0
        %v1330 = vadd.f32 %v1171, %v1325
        %v1331 = vadd.f32 %v526, %v1330
        %v1332 = vlaneseq
        %v1333 = vshrl.u32 %v1332, 7
        %v1334 = vsub.s32 4, %v1333
        %v1335 = vrot.slane %v530, %v1334
        %v1336 = vadd.f32 %v1331, %v1335
        %v1337 = vsel %vm455, %v1336, 0.0
        %1338 = vadd.xlane.f32.xlu0 %v1337
        %v1339 = vpop.xlane.xlu0 %1338
        %v1340 = vmul.f32 %v1339, %v534
        %v1341 = vmul.f32 %v1336, %v1336
        %v1342 = vsel %vm455, %v1341, 0.0
        %1343 = vadd.xlane.f32.xlu0 %v1342
        %v1344 = vpop.xlane.xlu0 %1343
        %v1345 = vmul.f32 %v1344, %v534
        %v1346 = vmul.f32 %v1340, %v1340
        %v1347 = vsub.f32 %v1345, %v1346
        %v1348 = vsub.f32 %v1336, %v1340
        %v1349 = vadd.f32 %v1347, 1e-05
        %v1350 = vrsqrt.pop %v1349
        %v1351 = vmul.f32 %v1348, %v1350
        %v1352 = vlaneseq
        %v1353 = vshrl.u32 %v1352, 7
        %v1354 = vsub.s32 2, %v1353
        %v1355 = vrot.slane %v530, %v1354
        %v1356 = vmul.f32 %v1351, %v1355
        %v1357 = vlaneseq
        %v1358 = vshrl.u32 %v1357, 7
        %v1359 = vsub.s32 3, %v1358
        %v1360 = vrot.slane %v530, %v1359
        %v1361 = vadd.f32 %v1356, %v1360
        %v1362 = vpack.c.bf16 %v1361, %v1361
        %v1363 = vld [vmem:[%s6] sm:$0xff]
        %v1364 = vld [vmem:[%s6 + $0x8] sm:$0xff]
        %v1365 = vld [vmem:[%s6 + $0x10] sm:$0xff]
        %v1366 = vld [vmem:[%s6 + $0x18] sm:$0xff]
        %v1367 = vld [vmem:[%s6 + $0x20] sm:$0xff]
        %v1368 = vld [vmem:[%s6 + $0x28] sm:$0xff]
        %v1369 = vld [vmem:[%s6 + $0x30] sm:$0xff]
        %v1370 = vld [vmem:[%s6 + $0x38] sm:$0xff]
        %v1371 = vld [vmem:[%s9] sm:$0x3]
        %v1373 = vlaneseq
        %v1374 = vshrl.u32 %v1373, 7
        %v1375 = vsub.s32 0, %v1374
        %v1376 = vrot.slane %v1371, %v1375
        %v1377 = vlaneseq
        %v1378 = vshrl.u32 %v1377, 7
        %v1379 = vsub.s32 1, %v1378
        %v1380 = vrot.slane %v1371, %v1379
        %v1391 = vunpack.c.l.b16 %v1363
        %v1392 = vunpack.c.h.b16 %v1363
        %v1393 = vunpack.c.l.b16 %v1364
        %v1394 = vunpack.c.h.b16 %v1364
        %v1395 = vunpack.c.l.b16 %v1365
        %v1396 = vunpack.c.h.b16 %v1365
        %v1397 = vunpack.c.l.b16 %v1366
        %v1398 = vunpack.c.h.b16 %v1366
        %v1399 = vunpack.c.l.b16 %v1367
        %v1400 = vunpack.c.h.b16 %v1367
        %v1401 = vunpack.c.l.b16 %v1368
        %v1402 = vunpack.c.h.b16 %v1368
        %v1403 = vunpack.c.l.b16 %v1369
        %v1404 = vunpack.c.h.b16 %v1369
        %v1405 = vunpack.c.l.b16 %v1370
        %v1406 = vunpack.c.h.b16 %v1370
        %v1407 = vpack.c.b16 %v1393, %v1391
        %v1408 = vpack.c.b16 %v1394, %v1392
        %v1409 = vpack.c.b16 %v1397, %v1395
        %v1410 = vpack.c.b16 %v1398, %v1396
        %v1411 = vpack.c.b16 %v1401, %v1399
        %v1412 = vpack.c.b16 %v1402, %v1400
        %v1413 = vpack.c.b16 %v1405, %v1403
        %v1414 = vpack.c.b16 %v1406, %v1404
        %v1424 = vsel %vm455, %v1362, 0
        %1426 = vmatprep.subr.bf16.mxu0 %v1408
        %1427 = vmatpush1.bf16.msra.mxu0 %v1407
        %1428 = vmatprep.subr.bf16.mxu0 %v1410
        %1429 = vmatpush1.bf16.msra.mxu0 %v1409
        %1430 = vmatprep.subr.bf16.mxu0 %v1412
        %1431 = vmatpush1.bf16.msra.mxu0 %v1411
        %1432 = vmatprep.subr.bf16.mxu0 %v1414
        %1433 = vmatpush1.bf16.msra.mxu0 %v1413
        %1434 = vmatprep.subr.bf16.mxu0 0
        %1435 = vmatpush1.bf16.msra.mxu0 0
        %1436 = vmatprep.subr.bf16.mxu0 0
        %1437 = vmatpush1.bf16.msra.mxu0 0
        %1438 = vmatprep.subr.bf16.mxu0 0
        %1439 = vmatpush1.bf16.msra.mxu0 0
        %1440 = vmatprep.subr.bf16.mxu0 0
        %1441 = vmatpush1.bf16.msra.mxu0 0
        %1442 = vmatprep.subr.bf16.mxu0 0
        %1443 = vmatpush1.bf16.msra.mxu0 0
        %1444 = vmatprep.subr.bf16.mxu0 0
        %1445 = vmatpush1.bf16.msra.mxu0 0
        %1446 = vmatprep.subr.bf16.mxu0 0
        %1447 = vmatpush1.bf16.msra.mxu0 0
        %1448 = vmatprep.subr.bf16.mxu0 0
        %1449 = vmatpush1.bf16.msra.mxu0 0
        %1450 = vmatprep.subr.bf16.mxu0 0
        %1451 = vmatpush1.bf16.msra.mxu0 0
        %1452 = vmatprep.subr.bf16.mxu0 0
        %1453 = vmatpush1.bf16.msra.mxu0 0
        %1454 = vmatprep.subr.bf16.mxu0 0
        %1455 = vmatpush1.bf16.msra.mxu0 0
        %1456 = vmatprep.subr.bf16.mxu0 0
        %1457 = vmatpush1.bf16.msra.mxu0 0
        %1458 = vmatprep.mubr.bf16.mxu0 0
        %1459 = vmatmul.mubr.bf16.gmra.mrb[0].mxu0 %v1424
        %v1460 = vpop.f32.mrb[0].mxu0
        %v1461 = vadd.f32 %v1376, %v1460
        %v1462 = vpop.f32.mrb[0].mxu0
        %v1463 = vadd.f32 %v1380, %v1462
        %v1464 = vpop.f32.mrb[0].mxu0
        %v1465 = vpop.f32.mrb[0].mxu0
        %1466 = vdwg.mxu0
        %v1467 = vmax.f32 %v1461, 0.0
        %v1468 = vmax.f32 %v1463, 0.0
        %v1469 = vpack.c.bf16 %v1467, %v1467
        %v1470 = vpack.c.bf16 %v1468, %v1468
        %v1471 = vld [vmem:[%s7] sm:$0xf]
        %v1472 = vld [vmem:[%s7 + $0x4] sm:$0xf]
        %v1473 = vld [vmem:[%s7 + $0x8] sm:$0xf]
        %v1474 = vld [vmem:[%s7 + $0xc] sm:$0xf]
        %v1475 = vld [vmem:[%s7 + $0x10] sm:$0xf]
        %v1476 = vld [vmem:[%s7 + $0x14] sm:$0xf]
        %v1477 = vld [vmem:[%s7 + $0x18] sm:$0xf]
        %v1478 = vld [vmem:[%s7 + $0x1c] sm:$0xf]
        %v1479 = vld [vmem:[%s7 + $0x20] sm:$0xf]
        %v1480 = vld [vmem:[%s7 + $0x24] sm:$0xf]
        %v1481 = vld [vmem:[%s7 + $0x28] sm:$0xf]
        %v1482 = vld [vmem:[%s7 + $0x2c] sm:$0xf]
        %v1483 = vld [vmem:[%s7 + $0x30] sm:$0xf]
        %v1484 = vld [vmem:[%s7 + $0x34] sm:$0xf]
        %v1485 = vld [vmem:[%s7 + $0x38] sm:$0xf]
        %v1486 = vld [vmem:[%s7 + $0x3c] sm:$0xf]
        %v1487 = vld [vmem:[%s7 + $0x40] sm:$0xf]
        %v1488 = vld [vmem:[%s7 + $0x44] sm:$0xf]
        %v1489 = vld [vmem:[%s7 + $0x48] sm:$0xf]
        %v1490 = vld [vmem:[%s7 + $0x4c] sm:$0xf]
        %v1491 = vld [vmem:[%s7 + $0x50] sm:$0xf]
        %v1492 = vld [vmem:[%s7 + $0x54] sm:$0xf]
        %v1493 = vld [vmem:[%s7 + $0x58] sm:$0xf]
        %v1494 = vld [vmem:[%s7 + $0x5c] sm:$0xf]
        %v1495 = vld [vmem:[%s7 + $0x60] sm:$0xf]
        %v1496 = vld [vmem:[%s7 + $0x64] sm:$0xf]
        %v1497 = vld [vmem:[%s7 + $0x68] sm:$0xf]
        %v1498 = vld [vmem:[%s7 + $0x6c] sm:$0xf]
        %v1499 = vld [vmem:[%s7 + $0x70] sm:$0xf]
        %v1500 = vld [vmem:[%s7 + $0x74] sm:$0xf]
        %v1501 = vld [vmem:[%s7 + $0x78] sm:$0xf]
        %v1502 = vld [vmem:[%s7 + $0x7c] sm:$0xf]
        %v1535 = vunpack.c.l.b16 %v1471
        %v1536 = vunpack.c.l.b16 %v1472
        %v1537 = vunpack.c.l.b16 %v1473
        %v1538 = vunpack.c.l.b16 %v1474
        %v1539 = vunpack.c.l.b16 %v1475
        %v1540 = vunpack.c.l.b16 %v1476
        %v1541 = vunpack.c.l.b16 %v1477
        %v1542 = vunpack.c.l.b16 %v1478
        %v1543 = vunpack.c.l.b16 %v1479
        %v1544 = vunpack.c.l.b16 %v1480
        %v1545 = vunpack.c.l.b16 %v1481
        %v1546 = vunpack.c.l.b16 %v1482
        %v1547 = vunpack.c.l.b16 %v1483
        %v1548 = vunpack.c.l.b16 %v1484
        %v1549 = vunpack.c.l.b16 %v1485
        %v1550 = vunpack.c.l.b16 %v1486
        %v1551 = vunpack.c.l.b16 %v1487
        %v1552 = vunpack.c.l.b16 %v1488
        %v1553 = vunpack.c.l.b16 %v1489
        %v1554 = vunpack.c.l.b16 %v1490
        %v1555 = vunpack.c.l.b16 %v1491
        %v1556 = vunpack.c.l.b16 %v1492
        %v1557 = vunpack.c.l.b16 %v1493
        %v1558 = vunpack.c.l.b16 %v1494
        %v1559 = vunpack.c.l.b16 %v1495
        %v1560 = vunpack.c.l.b16 %v1496
        %v1561 = vunpack.c.l.b16 %v1497
        %v1562 = vunpack.c.l.b16 %v1498
        %v1563 = vunpack.c.l.b16 %v1499
        %v1564 = vunpack.c.l.b16 %v1500
        %v1565 = vunpack.c.l.b16 %v1501
        %v1566 = vunpack.c.l.b16 %v1502
        %v1567 = vpack.c.b16 %v1536, %v1535
        %v1568 = vpack.c.b16 %v1538, %v1537
        %v1569 = vpack.c.b16 %v1540, %v1539
        %v1570 = vpack.c.b16 %v1542, %v1541
        %v1571 = vpack.c.b16 %v1544, %v1543
        %v1572 = vpack.c.b16 %v1546, %v1545
        %v1573 = vpack.c.b16 %v1548, %v1547
        %v1574 = vpack.c.b16 %v1550, %v1549
        %v1575 = vpack.c.b16 %v1552, %v1551
        %v1576 = vpack.c.b16 %v1554, %v1553
        %v1577 = vpack.c.b16 %v1556, %v1555
        %v1578 = vpack.c.b16 %v1558, %v1557
        %v1579 = vpack.c.b16 %v1560, %v1559
        %v1580 = vpack.c.b16 %v1562, %v1561
        %v1581 = vpack.c.b16 %v1564, %v1563
        %v1582 = vpack.c.b16 %v1566, %v1565
        %1599 = vmatprep.subr.bf16.mxu0 0
        %1600 = vmatpush1.bf16.msra.mxu0 %v1567
        %1601 = vmatprep.subr.bf16.mxu0 0
        %1602 = vmatpush1.bf16.msra.mxu0 %v1568
        %1603 = vmatprep.subr.bf16.mxu0 0
        %1604 = vmatpush1.bf16.msra.mxu0 %v1569
        %1605 = vmatprep.subr.bf16.mxu0 0
        %1606 = vmatpush1.bf16.msra.mxu0 %v1570
        %1607 = vmatprep.subr.bf16.mxu0 0
        %1608 = vmatpush1.bf16.msra.mxu0 %v1571
        %1609 = vmatprep.subr.bf16.mxu0 0
        %1610 = vmatpush1.bf16.msra.mxu0 %v1572
        %1611 = vmatprep.subr.bf16.mxu0 0
        %1612 = vmatpush1.bf16.msra.mxu0 %v1573
        %1613 = vmatprep.subr.bf16.mxu0 0
        %1614 = vmatpush1.bf16.msra.mxu0 %v1574
        %1615 = vmatprep.subr.bf16.mxu0 0
        %1616 = vmatpush1.bf16.msra.mxu0 %v1575
        %1617 = vmatprep.subr.bf16.mxu0 0
        %1618 = vmatpush1.bf16.msra.mxu0 %v1576
        %1619 = vmatprep.subr.bf16.mxu0 0
        %1620 = vmatpush1.bf16.msra.mxu0 %v1577
        %1621 = vmatprep.subr.bf16.mxu0 0
        %1622 = vmatpush1.bf16.msra.mxu0 %v1578
        %1623 = vmatprep.subr.bf16.mxu0 0
        %1624 = vmatpush1.bf16.msra.mxu0 %v1579
        %1625 = vmatprep.subr.bf16.mxu0 0
        %1626 = vmatpush1.bf16.msra.mxu0 %v1580
        %1627 = vmatprep.subr.bf16.mxu0 0
        %1628 = vmatpush1.bf16.msra.mxu0 %v1581
        %1629 = vmatprep.subr.bf16.mxu0 0
        %1630 = vmatpush1.bf16.msra.mxu0 %v1582
        %1631 = vmatprep.mubr.bf16.mxu0 %v1470
        %1632 = vmatmul.mubr.bf16.gmra.mrb[0].mxu0 %v1469
        %v1633 = vpop.f32.mrb[0].mxu0
        %v1634 = vadd.f32 0.0, %v1633
        %v1635 = vpop.f32.mrb[0].mxu0
        %v1636 = vpop.f32.mrb[0].mxu0
        %v1637 = vpop.f32.mrb[0].mxu0
        %1638 = vdwg.mxu0
        %v1639 = vadd.f32 %v1336, %v1634
        %v1640 = vlaneseq
        %v1641 = vshrl.u32 %v1640, 7
        %v1642 = vsub.s32 5, %v1641
        %v1643 = vrot.slane %v530, %v1642
        %v1644 = vadd.f32 %v1639, %v1643
        %s1645 = scalar_lea.vmem %s8, 8
        %v1646 = vld [vmem:[%s1645] sm:$0xff]
        %v1647 = vsel %vm455, %v1644, 0.0
        %1648 = vadd.xlane.f32.xlu0 %v1647
        %v1649 = vpop.xlane.xlu0 %1648
        %v1650 = vmul.f32 %v1649, %v534
        %v1651 = vmul.f32 %v1644, %v1644
        %v1652 = vsel %vm455, %v1651, 0.0
        %1653 = vadd.xlane.f32.xlu0 %v1652
        %v1654 = vpop.xlane.xlu0 %1653
        %v1655 = vmul.f32 %v1654, %v534
        %v1656 = vmul.f32 %v1650, %v1650
        %v1657 = vsub.f32 %v1655, %v1656
        %v1658 = vsub.f32 %v1644, %v1650
        %v1659 = vadd.f32 %v1657, 1e-05
        %v1660 = vrsqrt.pop %v1659
        %v1661 = vmul.f32 %v1658, %v1660
        %v1662 = vlaneseq
        %v1663 = vshrl.u32 %v1662, 7
        %v1664 = vsub.s32 0, %v1663
        %v1665 = vrot.slane %v1646, %v1664
        %v1666 = vmul.f32 %v1661, %v1665
        %v1667 = vlaneseq
        %v1668 = vshrl.u32 %v1667, 7
        %v1669 = vsub.s32 1, %v1668
        %v1670 = vrot.slane %v1646, %v1669
        %v1671 = vadd.f32 %v1666, %v1670
        %v1672 = vpack.c.bf16 %v1671, %v1671
        %s1673 = scalar_lea.vmem %s4, 64
        %v1674 = vld [vmem:[%s1673] sm:$0xff]
        %v1675 = vld [vmem:[%s1673 + $0x8] sm:$0xff]
        %v1676 = vld [vmem:[%s1673 + $0x10] sm:$0xff]
        %v1677 = vld [vmem:[%s1673 + $0x18] sm:$0xff]
        %v1678 = vld [vmem:[%s1673 + $0x20] sm:$0xff]
        %v1679 = vld [vmem:[%s1673 + $0x28] sm:$0xff]
        %v1680 = vld [vmem:[%s1673 + $0x30] sm:$0xff]
        %v1681 = vld [vmem:[%s1673 + $0x38] sm:$0xff]
        %v1690 = vunpack.c.l.b16 %v1674
        %v1691 = vunpack.c.h.b16 %v1674
        %v1692 = vunpack.c.l.b16 %v1675
        %v1693 = vunpack.c.h.b16 %v1675
        %v1694 = vunpack.c.l.b16 %v1676
        %v1695 = vunpack.c.h.b16 %v1676
        %v1696 = vunpack.c.l.b16 %v1677
        %v1697 = vunpack.c.h.b16 %v1677
        %v1698 = vunpack.c.l.b16 %v1678
        %v1699 = vunpack.c.h.b16 %v1678
        %v1700 = vunpack.c.l.b16 %v1679
        %v1701 = vunpack.c.h.b16 %v1679
        %v1702 = vunpack.c.l.b16 %v1680
        %v1703 = vunpack.c.h.b16 %v1680
        %v1704 = vunpack.c.l.b16 %v1681
        %v1705 = vunpack.c.h.b16 %v1681
        %v1706 = vpack.c.b16 %v1692, %v1690
        %v1707 = vpack.c.b16 %v1693, %v1691
        %v1708 = vpack.c.b16 %v1696, %v1694
        %v1709 = vpack.c.b16 %v1697, %v1695
        %v1710 = vpack.c.b16 %v1700, %v1698
        %v1711 = vpack.c.b16 %v1701, %v1699
        %v1712 = vpack.c.b16 %v1704, %v1702
        %v1713 = vpack.c.b16 %v1705, %v1703
        %v1723 = vsel %vm455, %v1672, 0
        %1725 = vmatprep.subr.bf16.mxu0 %v1707
        %1726 = vmatpush1.bf16.msra.mxu0 %v1706
        %1727 = vmatprep.subr.bf16.mxu0 %v1709
        %1728 = vmatpush1.bf16.msra.mxu0 %v1708
        %1729 = vmatprep.subr.bf16.mxu0 %v1711
        %1730 = vmatpush1.bf16.msra.mxu0 %v1710
        %1731 = vmatprep.subr.bf16.mxu0 %v1713
        %1732 = vmatpush1.bf16.msra.mxu0 %v1712
        %1733 = vmatprep.subr.bf16.mxu0 0
        %1734 = vmatpush1.bf16.msra.mxu0 0
        %1735 = vmatprep.subr.bf16.mxu0 0
        %1736 = vmatpush1.bf16.msra.mxu0 0
        %1737 = vmatprep.subr.bf16.mxu0 0
        %1738 = vmatpush1.bf16.msra.mxu0 0
        %1739 = vmatprep.subr.bf16.mxu0 0
        %1740 = vmatpush1.bf16.msra.mxu0 0
        %1741 = vmatprep.subr.bf16.mxu0 0
        %1742 = vmatpush1.bf16.msra.mxu0 0
        %1743 = vmatprep.subr.bf16.mxu0 0
        %1744 = vmatpush1.bf16.msra.mxu0 0
        %1745 = vmatprep.subr.bf16.mxu0 0
        %1746 = vmatpush1.bf16.msra.mxu0 0
        %1747 = vmatprep.subr.bf16.mxu0 0
        %1748 = vmatpush1.bf16.msra.mxu0 0
        %1749 = vmatprep.subr.bf16.mxu0 0
        %1750 = vmatpush1.bf16.msra.mxu0 0
        %1751 = vmatprep.subr.bf16.mxu0 0
        %1752 = vmatpush1.bf16.msra.mxu0 0
        %1753 = vmatprep.subr.bf16.mxu0 0
        %1754 = vmatpush1.bf16.msra.mxu0 0
        %1755 = vmatprep.subr.bf16.mxu0 0
        %1756 = vmatpush1.bf16.msra.mxu0 0
        %1757 = vmatprep.mubr.bf16.mxu0 0
        %1758 = vmatmul.mubr.bf16.gmra.mrb[0].mxu0 %v1723
        %v1759 = vpop.f32.mrb[0].mxu0
        %v1760 = vadd.f32 0.0, %v1759
        %v1761 = vpop.f32.mrb[0].mxu0
        %v1762 = vadd.f32 0.0, %v1761
        %v1763 = vpop.f32.mrb[0].mxu0
        %v1764 = vpop.f32.mrb[0].mxu0
        %1765 = vdwg.mxu0
        %s1766 = scalar_lea.vmem %s5, 32
        %v1767 = vld [vmem:[%s1766] sm:$0xf]
        %v1768 = vld [vmem:[%s1766 + $0x4] sm:$0xf]
        %v1769 = vld [vmem:[%s1766 + $0x8] sm:$0xf]
        %v1770 = vld [vmem:[%s1766 + $0xc] sm:$0xf]
        %v1771 = vld [vmem:[%s1766 + $0x10] sm:$0xf]
        %v1772 = vld [vmem:[%s1766 + $0x14] sm:$0xf]
        %v1773 = vld [vmem:[%s1766 + $0x18] sm:$0xf]
        %v1774 = vld [vmem:[%s1766 + $0x1c] sm:$0xf]
        %1776 = vrot.lane.b32.xlu0 %v1760, 64
        %v1777 = vpop.permute.xlu0 %1776
        %1779 = vxpose.xlu0.b32.start [1/16] %v1777, 128
        %1780 = vxpose.xlu0.b32.cont [2/16] 0.0, 128
        %1781 = vxpose.xlu0.b32.cont [3/16] 0.0, 128
        %1782 = vxpose.xlu0.b32.cont [4/16] 0.0, 128
        %1783 = vxpose.xlu0.b32.cont [5/16] 0.0, 128
        %1784 = vxpose.xlu0.b32.cont [6/16] 0.0, 128
        %1785 = vxpose.xlu0.b32.cont [7/16] 0.0, 128
        %1786 = vxpose.xlu0.b32.cont [8/16] 0.0, 128
        %1787 = vxpose.xlu0.b32.cont [9/16] 0.0, 128
        %1788 = vxpose.xlu0.b32.cont [10/16] 0.0, 128
        %1789 = vxpose.xlu0.b32.cont [11/16] 0.0, 128
        %1790 = vxpose.xlu0.b32.cont [12/16] 0.0, 128
        %1791 = vxpose.xlu0.b32.cont [13/16] 0.0, 128
        %1792 = vxpose.xlu0.b32.cont [14/16] 0.0, 128
        %1793 = vxpose.xlu0.b32.cont [15/16] 0.0, 128
        %1794 = vxpose.xlu0.b32.end [16/16] 0.0, 128
        %v1795 = vpop.trf.xlu0
        %v1796 = vpop.trf.xlu0
        %v1797 = vpop.trf.xlu0
        %v1798 = vpop.trf.xlu0
        %v1799 = vpop.trf.xlu0
        %v1800 = vpop.trf.xlu0
        %v1801 = vpop.trf.xlu0
        %v1802 = vpop.trf.xlu0
        %v1803 = vpop.trf.xlu0
        %v1804 = vpop.trf.xlu0
        %v1805 = vpop.trf.xlu0
        %v1806 = vpop.trf.xlu0
        %v1807 = vpop.trf.xlu0
        %v1808 = vpop.trf.xlu0
        %v1809 = vpop.trf.xlu0
        %v1810 = vpop.trf.xlu0
        %v1811 = vpack.c.bf16 %v1760, %v1760
        %v1812 = vpack.c.bf16 %v1796, %v1795
        %v1813 = vpack.c.bf16 %v1762, %v1762
        %v1815 = vsel %vm697, %v1811, 0
        %1817 = vmatprep.subr.bf16.mxu0 0
        %1818 = vmatpush1.bf16.msra.mxu0 %v1812
        %1819 = vmatprep.subr.bf16.mxu0 0
        %1820 = vmatpush1.bf16.msra.mxu0 0
        %1821 = vmatprep.subr.bf16.mxu0 0
        %1822 = vmatpush1.bf16.msra.mxu0 0
        %1823 = vmatprep.subr.bf16.mxu0 0
        %1824 = vmatpush1.bf16.msra.mxu0 0
        %1825 = vmatprep.subr.bf16.mxu0 0
        %1826 = vmatpush1.bf16.msra.mxu0 0
        %1827 = vmatprep.subr.bf16.mxu0 0
        %1828 = vmatpush1.bf16.msra.mxu0 0
        %1829 = vmatprep.subr.bf16.mxu0 0
        %1830 = vmatpush1.bf16.msra.mxu0 0
        %1831 = vmatprep.subr.bf16.mxu0 0
        %1832 = vmatpush1.bf16.msra.mxu0 0
        %1833 = vmatprep.subr.bf16.mxu0 0
        %1834 = vmatpush1.bf16.msra.mxu0 0
        %1835 = vmatprep.subr.bf16.mxu0 0
        %1836 = vmatpush1.bf16.msra.mxu0 0
        %1837 = vmatprep.subr.bf16.mxu0 0
        %1838 = vmatpush1.bf16.msra.mxu0 0
        %1839 = vmatprep.subr.bf16.mxu0 0
        %1840 = vmatpush1.bf16.msra.mxu0 0
        %1841 = vmatprep.subr.bf16.mxu0 0
        %1842 = vmatpush1.bf16.msra.mxu0 0
        %1843 = vmatprep.subr.bf16.mxu0 0
        %1844 = vmatpush1.bf16.msra.mxu0 0
        %1845 = vmatprep.subr.bf16.mxu0 0
        %1846 = vmatpush1.bf16.msra.mxu0 0
        %1847 = vmatprep.subr.bf16.mxu0 0
        %1848 = vmatpush1.bf16.msra.mxu0 0
        %1849 = vmatprep.mubr.bf16.mxu0 0
        %1850 = vmatmul.mubr.bf16.gmra.mrb[0].mxu0 %v1815
        %v1851 = vpop.f32.mrb[0].mxu0
        %v1852 = vadd.f32 0.0, %v1851
        %v1853 = vpop.f32.mrb[0].mxu0
        %v1854 = vpop.f32.mrb[0].mxu0
        %v1855 = vpop.f32.mrb[0].mxu0
        %1856 = vdwg.mxu0
        %v1857 = vmul.f32 %v1852, 0.125
        %v1858 = vadd.f32 %v1857, %v529
        %v1859 = vsel %vm743, %v1858, -inf
        %1860 = vmax.xlane.f32.xlu0 %v1859
        %v1861 = vpop.xlane.xlu0 %1860
        %v1862 = vsub.f32 %v1858, %v1861
        %v1863 = vmul.f32 %v1862, 1.442695
        %v1864 = vpow.pop %v1863
        %v1865 = vsel %vm743, %v1864, 0.0
        %1866 = vadd.xlane.f32.xlu0 %v1865
        %v1867 = vpop.xlane.xlu0 %1866
        %v1868 = vrcp.pop %v1867
        %v1869 = vmul.f32 %v1864, %v1868
        %v1870 = vpack.c.bf16 %v1869, %v1869
        %v1872 = vsel %vm743, %v1870, 0
        %v1875 = vsel %vm759, %v1813, 0
        %1877 = vmatprep.subr.bf16.mxu0 0
        %1878 = vmatpush1.bf16.msra.mxu0 %v1875
        %1879 = vmatprep.subr.bf16.mxu0 0
        %1880 = vmatpush1.bf16.msra.mxu0 0
        %1881 = vmatprep.subr.bf16.mxu0 0
        %1882 = vmatpush1.bf16.msra.mxu0 0
        %1883 = vmatprep.subr.bf16.mxu0 0
        %1884 = vmatpush1.bf16.msra.mxu0 0
        %1885 = vmatprep.subr.bf16.mxu0 0
        %1886 = vmatpush1.bf16.msra.mxu0 0
        %1887 = vmatprep.subr.bf16.mxu0 0
        %1888 = vmatpush1.bf16.msra.mxu0 0
        %1889 = vmatprep.subr.bf16.mxu0 0
        %1890 = vmatpush1.bf16.msra.mxu0 0
        %1891 = vmatprep.subr.bf16.mxu0 0
        %1892 = vmatpush1.bf16.msra.mxu0 0
        %1893 = vmatprep.subr.bf16.mxu0 0
        %1894 = vmatpush1.bf16.msra.mxu0 0
        %1895 = vmatprep.subr.bf16.mxu0 0
        %1896 = vmatpush1.bf16.msra.mxu0 0
        %1897 = vmatprep.subr.bf16.mxu0 0
        %1898 = vmatpush1.bf16.msra.mxu0 0
        %1899 = vmatprep.subr.bf16.mxu0 0
        %1900 = vmatpush1.bf16.msra.mxu0 0
        %1901 = vmatprep.subr.bf16.mxu0 0
        %1902 = vmatpush1.bf16.msra.mxu0 0
        %1903 = vmatprep.subr.bf16.mxu0 0
        %1904 = vmatpush1.bf16.msra.mxu0 0
        %1905 = vmatprep.subr.bf16.mxu0 0
        %1906 = vmatpush1.bf16.msra.mxu0 0
        %1907 = vmatprep.subr.bf16.mxu0 0
        %1908 = vmatpush1.bf16.msra.mxu0 0
        %1909 = vmatprep.mubr.bf16.mxu0 0
        %1910 = vmatmul.mubr.bf16.gmra.mrb[0].mxu0 %v1872
        %v1911 = vpop.f32.mrb[0].mxu0
        %v1912 = vadd.f32 0.0, %v1911
        %v1913 = vpop.f32.mrb[0].mxu0
        %v1914 = vpop.f32.mrb[0].mxu0
        %v1915 = vpop.f32.mrb[0].mxu0
        %1916 = vdwg.mxu0
        %v1917 = vpack.c.bf16 %v1912, %v1912
        %v1918 = vpack.c.bf16 %v1798, %v1797
        %1920 = vrot.lane.b32.xlu0 %v1811, 112
        %v1921 = vpop.permute.xlu0 %1920
        %v1923 = vsel %vm697, %v1921, 0
        %1925 = vmatprep.subr.bf16.mxu0 0
        %1926 = vmatpush1.bf16.msra.mxu0 %v1918
        %1927 = vmatprep.subr.bf16.mxu0 0
        %1928 = vmatpush1.bf16.msra.mxu0 0
        %1929 = vmatprep.subr.bf16.mxu0 0
        %1930 = vmatpush1.bf16.msra.mxu0 0
        %1931 = vmatprep.subr.bf16.mxu0 0
        %1932 = vmatpush1.bf16.msra.mxu0 0
        %1933 = vmatprep.subr.bf16.mxu0 0
        %1934 = vmatpush1.bf16.msra.mxu0 0
        %1935 = vmatprep.subr.bf16.mxu0 0
        %1936 = vmatpush1.bf16.msra.mxu0 0
        %1937 = vmatprep.subr.bf16.mxu0 0
        %1938 = vmatpush1.bf16.msra.mxu0 0
        %1939 = vmatprep.subr.bf16.mxu0 0
        %1940 = vmatpush1.bf16.msra.mxu0 0
        %1941 = vmatprep.subr.bf16.mxu0 0
        %1942 = vmatpush1.bf16.msra.mxu0 0
        %1943 = vmatprep.subr.bf16.mxu0 0
        %1944 = vmatpush1.bf16.msra.mxu0 0
        %1945 = vmatprep.subr.bf16.mxu0 0
        %1946 = vmatpush1.bf16.msra.mxu0 0
        %1947 = vmatprep.subr.bf16.mxu0 0
        %1948 = vmatpush1.bf16.msra.mxu0 0
        %1949 = vmatprep.subr.bf16.mxu0 0
        %1950 = vmatpush1.bf16.msra.mxu0 0
        %1951 = vmatprep.subr.bf16.mxu0 0
        %1952 = vmatpush1.bf16.msra.mxu0 0
        %1953 = vmatprep.subr.bf16.mxu0 0
        %1954 = vmatpush1.bf16.msra.mxu0 0
        %1955 = vmatprep.subr.bf16.mxu0 0
        %1956 = vmatpush1.bf16.msra.mxu0 0
        %1957 = vmatprep.mubr.bf16.mxu0 0
        %1958 = vmatmul.mubr.bf16.gmra.mrb[0].mxu0 %v1923
        %v1959 = vpop.f32.mrb[0].mxu0
        %v1960 = vadd.f32 0.0, %v1959
        %v1961 = vpop.f32.mrb[0].mxu0
        %v1962 = vpop.f32.mrb[0].mxu0
        %v1963 = vpop.f32.mrb[0].mxu0
        %1964 = vdwg.mxu0
        %v1965 = vmul.f32 %v1960, 0.125
        %v1966 = vadd.f32 %v1965, %v529
        %v1967 = vsel %vm743, %v1966, -inf
        %1968 = vmax.xlane.f32.xlu0 %v1967
        %v1969 = vpop.xlane.xlu0 %1968
        %v1970 = vsub.f32 %v1966, %v1969
        %v1971 = vmul.f32 %v1970, 1.442695
        %v1972 = vpow.pop %v1971
        %v1973 = vsel %vm743, %v1972, 0.0
        %1974 = vadd.xlane.f32.xlu0 %v1973
        %v1975 = vpop.xlane.xlu0 %1974
        %v1976 = vrcp.pop %v1975
        %v1977 = vmul.f32 %v1972, %v1976
        %v1978 = vpack.c.bf16 %v1977, %v1977
        %1980 = vrot.lane.b32.xlu0 %v1813, 112
        %v1981 = vpop.permute.xlu0 %1980
        %v1983 = vsel %vm743, %v1978, 0
        %v1986 = vsel %vm759, %v1981, 0
        %1988 = vmatprep.subr.bf16.mxu0 0
        %1989 = vmatpush1.bf16.msra.mxu0 %v1986
        %1990 = vmatprep.subr.bf16.mxu0 0
        %1991 = vmatpush1.bf16.msra.mxu0 0
        %1992 = vmatprep.subr.bf16.mxu0 0
        %1993 = vmatpush1.bf16.msra.mxu0 0
        %1994 = vmatprep.subr.bf16.mxu0 0
        %1995 = vmatpush1.bf16.msra.mxu0 0
        %1996 = vmatprep.subr.bf16.mxu0 0
        %1997 = vmatpush1.bf16.msra.mxu0 0
        %1998 = vmatprep.subr.bf16.mxu0 0
        %1999 = vmatpush1.bf16.msra.mxu0 0
        %2000 = vmatprep.subr.bf16.mxu0 0
        %2001 = vmatpush1.bf16.msra.mxu0 0
        %2002 = vmatprep.subr.bf16.mxu0 0
        %2003 = vmatpush1.bf16.msra.mxu0 0
        %2004 = vmatprep.subr.bf16.mxu0 0
        %2005 = vmatpush1.bf16.msra.mxu0 0
        %2006 = vmatprep.subr.bf16.mxu0 0
        %2007 = vmatpush1.bf16.msra.mxu0 0
        %2008 = vmatprep.subr.bf16.mxu0 0
        %2009 = vmatpush1.bf16.msra.mxu0 0
        %2010 = vmatprep.subr.bf16.mxu0 0
        %2011 = vmatpush1.bf16.msra.mxu0 0
        %2012 = vmatprep.subr.bf16.mxu0 0
        %2013 = vmatpush1.bf16.msra.mxu0 0
        %2014 = vmatprep.subr.bf16.mxu0 0
        %2015 = vmatpush1.bf16.msra.mxu0 0
        %2016 = vmatprep.subr.bf16.mxu0 0
        %2017 = vmatpush1.bf16.msra.mxu0 0
        %2018 = vmatprep.subr.bf16.mxu0 0
        %2019 = vmatpush1.bf16.msra.mxu0 0
        %2020 = vmatprep.mubr.bf16.mxu0 0
        %2021 = vmatmul.mubr.bf16.gmra.mrb[0].mxu0 %v1983
        %v2022 = vpop.f32.mrb[0].mxu0
        %v2023 = vadd.f32 0.0, %v2022
        %v2024 = vpop.f32.mrb[0].mxu0
        %v2025 = vpop.f32.mrb[0].mxu0
        %v2026 = vpop.f32.mrb[0].mxu0
        %2027 = vdwg.mxu0
        %v2028 = vpack.c.bf16 %v2023, %v2023
        %v2031 = vunpack.c.l.b16 %v1769
        %v2032 = vunpack.c.l.b16 %v1770
        %v2033 = vpack.c.b16 %v2032, %v2031
        %v2036 = vsel %vm697, %v2028, 0
        %2038 = vmatprep.subr.bf16.mxu0 0
        %2039 = vmatpush1.bf16.msra.mxu0 %v2033
        %2040 = vmatprep.subr.bf16.mxu0 0
        %2041 = vmatpush1.bf16.msra.mxu0 0
        %2042 = vmatprep.subr.bf16.mxu0 0
        %2043 = vmatpush1.bf16.msra.mxu0 0
        %2044 = vmatprep.subr.bf16.mxu0 0
        %2045 = vmatpush1.bf16.msra.mxu0 0
        %2046 = vmatprep.subr.bf16.mxu0 0
        %2047 = vmatpush1.bf16.msra.mxu0 0
        %2048 = vmatprep.subr.bf16.mxu0 0
        %2049 = vmatpush1.bf16.msra.mxu0 0
        %2050 = vmatprep.subr.bf16.mxu0 0
        %2051 = vmatpush1.bf16.msra.mxu0 0
        %2052 = vmatprep.subr.bf16.mxu0 0
        %2053 = vmatpush1.bf16.msra.mxu0 0
        %2054 = vmatprep.subr.bf16.mxu0 0
        %2055 = vmatpush1.bf16.msra.mxu0 0
        %2056 = vmatprep.subr.bf16.mxu0 0
        %2057 = vmatpush1.bf16.msra.mxu0 0
        %2058 = vmatprep.subr.bf16.mxu0 0
        %2059 = vmatpush1.bf16.msra.mxu0 0
        %2060 = vmatprep.subr.bf16.mxu0 0
        %2061 = vmatpush1.bf16.msra.mxu0 0
        %2062 = vmatprep.subr.bf16.mxu0 0
        %2063 = vmatpush1.bf16.msra.mxu0 0
        %2064 = vmatprep.subr.bf16.mxu0 0
        %2065 = vmatpush1.bf16.msra.mxu0 0
        %2066 = vmatprep.subr.bf16.mxu0 0
        %2067 = vmatpush1.bf16.msra.mxu0 0
        %2068 = vmatprep.subr.bf16.mxu0 0
        %2069 = vmatpush1.bf16.msra.mxu0 0
        %2070 = vmatprep.mubr.bf16.mxu0 0
        %2071 = vmatmul.mubr.bf16.gmra.mrb[0].mxu0 %v2036
        %v2072 = vpop.f32.mrb[0].mxu0
        %v2073 = vadd.f32 0.0, %v2072
        %v2074 = vpop.f32.mrb[0].mxu0
        %v2075 = vpop.f32.mrb[0].mxu0
        %v2076 = vpop.f32.mrb[0].mxu0
        %2077 = vdwg.mxu0
        %v2080 = vunpack.c.l.b16 %v1767
        %v2081 = vunpack.c.l.b16 %v1768
        %v2082 = vpack.c.b16 %v2081, %v2080
        %v2085 = vsel %vm697, %v1917, 0
        %2087 = vmatprep.subr.bf16.mxu0 0
        %2088 = vmatpush1.bf16.msra.mxu0 %v2082
        %2089 = vmatprep.subr.bf16.mxu0 0
        %2090 = vmatpush1.bf16.msra.mxu0 0
        %2091 = vmatprep.subr.bf16.mxu0 0
        %2092 = vmatpush1.bf16.msra.mxu0 0
        %2093 = vmatprep.subr.bf16.mxu0 0
        %2094 = vmatpush1.bf16.msra.mxu0 0
        %2095 = vmatprep.subr.bf16.mxu0 0
        %2096 = vmatpush1.bf16.msra.mxu0 0
        %2097 = vmatprep.subr.bf16.mxu0 0
        %2098 = vmatpush1.bf16.msra.mxu0 0
        %2099 = vmatprep.subr.bf16.mxu0 0
        %2100 = vmatpush1.bf16.msra.mxu0 0
        %2101 = vmatprep.subr.bf16.mxu0 0
        %2102 = vmatpush1.bf16.msra.mxu0 0
        %2103 = vmatprep.subr.bf16.mxu0 0
        %2104 = vmatpush1.bf16.msra.mxu0 0
        %2105 = vmatprep.subr.bf16.mxu0 0
        %2106 = vmatpush1.bf16.msra.mxu0 0
        %2107 = vmatprep.subr.bf16.mxu0 0
        %2108 = vmatpush1.bf16.msra.mxu0 0
        %2109 = vmatprep.subr.bf16.mxu0 0
        %2110 = vmatpush1.bf16.msra.mxu0 0
        %2111 = vmatprep.subr.bf16.mxu0 0
        %2112 = vmatpush1.bf16.msra.mxu0 0
        %2113 = vmatprep.subr.bf16.mxu0 0
        %2114 = vmatpush1.bf16.msra.mxu0 0
        %2115 = vmatprep.subr.bf16.mxu0 0
        %2116 = vmatpush1.bf16.msra.mxu0 0
        %2117 = vmatprep.subr.bf16.mxu0 0
        %2118 = vmatpush1.bf16.msra.mxu0 0
        %2119 = vmatprep.mubr.bf16.mxu0 0
        %2120 = vmatmul.mubr.bf16.gmra.mrb[0].mxu0 %v2085
        %v2121 = vpop.f32.mrb[0].mxu0
        %v2122 = vadd.f32 %v2073, %v2121
        %v2123 = vpop.f32.mrb[0].mxu0
        %v2124 = vpop.f32.mrb[0].mxu0
        %v2125 = vpop.f32.mrb[0].mxu0
        %2126 = vdwg.mxu0
        %v2127 = vpack.c.bf16 %v1800, %v1799
        %2128 = vrot.lane.b32.xlu0 %v1811, 96
        %v2129 = vpop.permute.xlu0 %2128
        %v2131 = vsel %vm697, %v2129, 0
        %2133 = vmatprep.subr.bf16.mxu0 0
        %2134 = vmatpush1.bf16.msra.mxu0 %v2127
        %2135 = vmatprep.subr.bf16.mxu0 0
        %2136 = vmatpush1.bf16.msra.mxu0 0
        %2137 = vmatprep.subr.bf16.mxu0 0
        %2138 = vmatpush1.bf16.msra.mxu0 0
        %2139 = vmatprep.subr.bf16.mxu0 0
        %2140 = vmatpush1.bf16.msra.mxu0 0
        %2141 = vmatprep.subr.bf16.mxu0 0
        %2142 = vmatpush1.bf16.msra.mxu0 0
        %2143 = vmatprep.subr.bf16.mxu0 0
        %2144 = vmatpush1.bf16.msra.mxu0 0
        %2145 = vmatprep.subr.bf16.mxu0 0
        %2146 = vmatpush1.bf16.msra.mxu0 0
        %2147 = vmatprep.subr.bf16.mxu0 0
        %2148 = vmatpush1.bf16.msra.mxu0 0
        %2149 = vmatprep.subr.bf16.mxu0 0
        %2150 = vmatpush1.bf16.msra.mxu0 0
        %2151 = vmatprep.subr.bf16.mxu0 0
        %2152 = vmatpush1.bf16.msra.mxu0 0
        %2153 = vmatprep.subr.bf16.mxu0 0
        %2154 = vmatpush1.bf16.msra.mxu0 0
        %2155 = vmatprep.subr.bf16.mxu0 0
        %2156 = vmatpush1.bf16.msra.mxu0 0
        %2157 = vmatprep.subr.bf16.mxu0 0
        %2158 = vmatpush1.bf16.msra.mxu0 0
        %2159 = vmatprep.subr.bf16.mxu0 0
        %2160 = vmatpush1.bf16.msra.mxu0 0
        %2161 = vmatprep.subr.bf16.mxu0 0
        %2162 = vmatpush1.bf16.msra.mxu0 0
        %2163 = vmatprep.subr.bf16.mxu0 0
        %2164 = vmatpush1.bf16.msra.mxu0 0
        %2165 = vmatprep.mubr.bf16.mxu0 0
        %2166 = vmatmul.mubr.bf16.gmra.mrb[0].mxu0 %v2131
        %v2167 = vpop.f32.mrb[0].mxu0
        %v2168 = vadd.f32 0.0, %v2167
        %v2169 = vpop.f32.mrb[0].mxu0
        %v2170 = vpop.f32.mrb[0].mxu0
        %v2171 = vpop.f32.mrb[0].mxu0
        %2172 = vdwg.mxu0
        %v2173 = vmul.f32 %v2168, 0.125
        %v2174 = vadd.f32 %v2173, %v529
        %v2175 = vsel %vm743, %v2174, -inf
        %2176 = vmax.xlane.f32.xlu0 %v2175
        %v2177 = vpop.xlane.xlu0 %2176
        %v2178 = vsub.f32 %v2174, %v2177
        %v2179 = vmul.f32 %v2178, 1.442695
        %v2180 = vpow.pop %v2179
        %v2181 = vsel %vm743, %v2180, 0.0
        %2182 = vadd.xlane.f32.xlu0 %v2181
        %v2183 = vpop.xlane.xlu0 %2182
        %v2184 = vrcp.pop %v2183
        %v2185 = vmul.f32 %v2180, %v2184
        %v2186 = vpack.c.bf16 %v2185, %v2185
        %2187 = vrot.lane.b32.xlu0 %v1813, 96
        %v2188 = vpop.permute.xlu0 %2187
        %v2190 = vsel %vm743, %v2186, 0
        %v2193 = vsel %vm759, %v2188, 0
        %2195 = vmatprep.subr.bf16.mxu0 0
        %2196 = vmatpush1.bf16.msra.mxu0 %v2193
        %2197 = vmatprep.subr.bf16.mxu0 0
        %2198 = vmatpush1.bf16.msra.mxu0 0
        %2199 = vmatprep.subr.bf16.mxu0 0
        %2200 = vmatpush1.bf16.msra.mxu0 0
        %2201 = vmatprep.subr.bf16.mxu0 0
        %2202 = vmatpush1.bf16.msra.mxu0 0
        %2203 = vmatprep.subr.bf16.mxu0 0
        %2204 = vmatpush1.bf16.msra.mxu0 0
        %2205 = vmatprep.subr.bf16.mxu0 0
        %2206 = vmatpush1.bf16.msra.mxu0 0
        %2207 = vmatprep.subr.bf16.mxu0 0
        %2208 = vmatpush1.bf16.msra.mxu0 0
        %2209 = vmatprep.subr.bf16.mxu0 0
        %2210 = vmatpush1.bf16.msra.mxu0 0
        %2211 = vmatprep.subr.bf16.mxu0 0
        %2212 = vmatpush1.bf16.msra.mxu0 0
        %2213 = vmatprep.subr.bf16.mxu0 0
        %2214 = vmatpush1.bf16.msra.mxu0 0
        %2215 = vmatprep.subr.bf16.mxu0 0
        %2216 = vmatpush1.bf16.msra.mxu0 0
        %2217 = vmatprep.subr.bf16.mxu0 0
        %2218 = vmatpush1.bf16.msra.mxu0 0
        %2219 = vmatprep.subr.bf16.mxu0 0
        %2220 = vmatpush1.bf16.msra.mxu0 0
        %2221 = vmatprep.subr.bf16.mxu0 0
        %2222 = vmatpush1.bf16.msra.mxu0 0
        %2223 = vmatprep.subr.bf16.mxu0 0
        %2224 = vmatpush1.bf16.msra.mxu0 0
        %2225 = vmatprep.subr.bf16.mxu0 0
        %2226 = vmatpush1.bf16.msra.mxu0 0
        %2227 = vmatprep.mubr.bf16.mxu0 0
        %2228 = vmatmul.mubr.bf16.gmra.mrb[0].mxu0 %v2190
        %v2229 = vpop.f32.mrb[0].mxu0
        %v2230 = vadd.f32 0.0, %v2229
        %v2231 = vpop.f32.mrb[0].mxu0
        %v2232 = vpop.f32.mrb[0].mxu0
        %v2233 = vpop.f32.mrb[0].mxu0
        %2234 = vdwg.mxu0
        %v2235 = vpack.c.bf16 %v2230, %v2230
        %v2238 = vunpack.c.l.b16 %v1771
        %v2239 = vunpack.c.l.b16 %v1772
        %v2240 = vpack.c.b16 %v2239, %v2238
        %v2243 = vsel %vm697, %v2235, 0
        %2245 = vmatprep.subr.bf16.mxu0 0
        %2246 = vmatpush1.bf16.msra.mxu0 %v2240
        %2247 = vmatprep.subr.bf16.mxu0 0
        %2248 = vmatpush1.bf16.msra.mxu0 0
        %2249 = vmatprep.subr.bf16.mxu0 0
        %2250 = vmatpush1.bf16.msra.mxu0 0
        %2251 = vmatprep.subr.bf16.mxu0 0
        %2252 = vmatpush1.bf16.msra.mxu0 0
        %2253 = vmatprep.subr.bf16.mxu0 0
        %2254 = vmatpush1.bf16.msra.mxu0 0
        %2255 = vmatprep.subr.bf16.mxu0 0
        %2256 = vmatpush1.bf16.msra.mxu0 0
        %2257 = vmatprep.subr.bf16.mxu0 0
        %2258 = vmatpush1.bf16.msra.mxu0 0
        %2259 = vmatprep.subr.bf16.mxu0 0
        %2260 = vmatpush1.bf16.msra.mxu0 0
        %2261 = vmatprep.subr.bf16.mxu0 0
        %2262 = vmatpush1.bf16.msra.mxu0 0
        %2263 = vmatprep.subr.bf16.mxu0 0
        %2264 = vmatpush1.bf16.msra.mxu0 0
        %2265 = vmatprep.subr.bf16.mxu0 0
        %2266 = vmatpush1.bf16.msra.mxu0 0
        %2267 = vmatprep.subr.bf16.mxu0 0
        %2268 = vmatpush1.bf16.msra.mxu0 0
        %2269 = vmatprep.subr.bf16.mxu0 0
        %2270 = vmatpush1.bf16.msra.mxu0 0
        %2271 = vmatprep.subr.bf16.mxu0 0
        %2272 = vmatpush1.bf16.msra.mxu0 0
        %2273 = vmatprep.subr.bf16.mxu0 0
        %2274 = vmatpush1.bf16.msra.mxu0 0
        %2275 = vmatprep.subr.bf16.mxu0 0
        %2276 = vmatpush1.bf16.msra.mxu0 0
        %2277 = vmatprep.mubr.bf16.mxu0 0
        %2278 = vmatmul.mubr.bf16.gmra.mrb[0].mxu0 %v2243
        %v2279 = vpop.f32.mrb[0].mxu0
        %v2280 = vadd.f32 0.0, %v2279
        %v2281 = vpop.f32.mrb[0].mxu0
        %v2282 = vpop.f32.mrb[0].mxu0
        %v2283 = vpop.f32.mrb[0].mxu0
        %2284 = vdwg.mxu0
        %v2285 = vadd.f32 %v2122, %v2280
        %v2286 = vpack.c.bf16 %v1802, %v1801
        %2287 = vrot.lane.b32.xlu0 %v1811, 80
        %v2288 = vpop.permute.xlu0 %2287
        %v2290 = vsel %vm697, %v2288, 0
        %2292 = vmatprep.subr.bf16.mxu0 0
        %2293 = vmatpush1.bf16.msra.mxu0 %v2286
        %2294 = vmatprep.subr.bf16.mxu0 0
        %2295 = vmatpush1.bf16.msra.mxu0 0
        %2296 = vmatprep.subr.bf16.mxu0 0
        %2297 = vmatpush1.bf16.msra.mxu0 0
        %2298 = vmatprep.subr.bf16.mxu0 0
        %2299 = vmatpush1.bf16.msra.mxu0 0
        %2300 = vmatprep.subr.bf16.mxu0 0
        %2301 = vmatpush1.bf16.msra.mxu0 0
        %2302 = vmatprep.subr.bf16.mxu0 0
        %2303 = vmatpush1.bf16.msra.mxu0 0
        %2304 = vmatprep.subr.bf16.mxu0 0
        %2305 = vmatpush1.bf16.msra.mxu0 0
        %2306 = vmatprep.subr.bf16.mxu0 0
        %2307 = vmatpush1.bf16.msra.mxu0 0
        %2308 = vmatprep.subr.bf16.mxu0 0
        %2309 = vmatpush1.bf16.msra.mxu0 0
        %2310 = vmatprep.subr.bf16.mxu0 0
        %2311 = vmatpush1.bf16.msra.mxu0 0
        %2312 = vmatprep.subr.bf16.mxu0 0
        %2313 = vmatpush1.bf16.msra.mxu0 0
        %2314 = vmatprep.subr.bf16.mxu0 0
        %2315 = vmatpush1.bf16.msra.mxu0 0
        %2316 = vmatprep.subr.bf16.mxu0 0
        %2317 = vmatpush1.bf16.msra.mxu0 0
        %2318 = vmatprep.subr.bf16.mxu0 0
        %2319 = vmatpush1.bf16.msra.mxu0 0
        %2320 = vmatprep.subr.bf16.mxu0 0
        %2321 = vmatpush1.bf16.msra.mxu0 0
        %2322 = vmatprep.subr.bf16.mxu0 0
        %2323 = vmatpush1.bf16.msra.mxu0 0
        %2324 = vmatprep.mubr.bf16.mxu0 0
        %2325 = vmatmul.mubr.bf16.gmra.mrb[0].mxu0 %v2290
        %v2326 = vpop.f32.mrb[0].mxu0
        %v2327 = vadd.f32 0.0, %v2326
        %v2328 = vpop.f32.mrb[0].mxu0
        %v2329 = vpop.f32.mrb[0].mxu0
        %v2330 = vpop.f32.mrb[0].mxu0
        %2331 = vdwg.mxu0
        %v2332 = vmul.f32 %v2327, 0.125
        %v2333 = vadd.f32 %v2332, %v529
        %v2334 = vsel %vm743, %v2333, -inf
        %2335 = vmax.xlane.f32.xlu0 %v2334
        %v2336 = vpop.xlane.xlu0 %2335
        %v2337 = vsub.f32 %v2333, %v2336
        %v2338 = vmul.f32 %v2337, 1.442695
        %v2339 = vpow.pop %v2338
        %v2340 = vsel %vm743, %v2339, 0.0
        %2341 = vadd.xlane.f32.xlu0 %v2340
        %v2342 = vpop.xlane.xlu0 %2341
        %v2343 = vrcp.pop %v2342
        %v2344 = vmul.f32 %v2339, %v2343
        %v2345 = vpack.c.bf16 %v2344, %v2344
        %2346 = vrot.lane.b32.xlu0 %v1813, 80
        %v2347 = vpop.permute.xlu0 %2346
        %v2349 = vsel %vm743, %v2345, 0
        %v2352 = vsel %vm759, %v2347, 0
        %2354 = vmatprep.subr.bf16.mxu0 0
        %2355 = vmatpush1.bf16.msra.mxu0 %v2352
        %2356 = vmatprep.subr.bf16.mxu0 0
        %2357 = vmatpush1.bf16.msra.mxu0 0
        %2358 = vmatprep.subr.bf16.mxu0 0
        %2359 = vmatpush1.bf16.msra.mxu0 0
        %2360 = vmatprep.subr.bf16.mxu0 0
        %2361 = vmatpush1.bf16.msra.mxu0 0
        %2362 = vmatprep.subr.bf16.mxu0 0
        %2363 = vmatpush1.bf16.msra.mxu0 0
        %2364 = vmatprep.subr.bf16.mxu0 0
        %2365 = vmatpush1.bf16.msra.mxu0 0
        %2366 = vmatprep.subr.bf16.mxu0 0
        %2367 = vmatpush1.bf16.msra.mxu0 0
        %2368 = vmatprep.subr.bf16.mxu0 0
        %2369 = vmatpush1.bf16.msra.mxu0 0
        %2370 = vmatprep.subr.bf16.mxu0 0
        %2371 = vmatpush1.bf16.msra.mxu0 0
        %2372 = vmatprep.subr.bf16.mxu0 0
        %2373 = vmatpush1.bf16.msra.mxu0 0
        %2374 = vmatprep.subr.bf16.mxu0 0
        %2375 = vmatpush1.bf16.msra.mxu0 0
        %2376 = vmatprep.subr.bf16.mxu0 0
        %2377 = vmatpush1.bf16.msra.mxu0 0
        %2378 = vmatprep.subr.bf16.mxu0 0
        %2379 = vmatpush1.bf16.msra.mxu0 0
        %2380 = vmatprep.subr.bf16.mxu0 0
        %2381 = vmatpush1.bf16.msra.mxu0 0
        %2382 = vmatprep.subr.bf16.mxu0 0
        %2383 = vmatpush1.bf16.msra.mxu0 0
        %2384 = vmatprep.subr.bf16.mxu0 0
        %2385 = vmatpush1.bf16.msra.mxu0 0
        %2386 = vmatprep.mubr.bf16.mxu0 0
        %2387 = vmatmul.mubr.bf16.gmra.mrb[0].mxu0 %v2349
        %v2388 = vpop.f32.mrb[0].mxu0
        %v2389 = vadd.f32 0.0, %v2388
        %v2390 = vpop.f32.mrb[0].mxu0
        %v2391 = vpop.f32.mrb[0].mxu0
        %v2392 = vpop.f32.mrb[0].mxu0
        %2393 = vdwg.mxu0
        %v2394 = vpack.c.bf16 %v2389, %v2389
        %v2397 = vunpack.c.l.b16 %v1773
        %v2398 = vunpack.c.l.b16 %v1774
        %v2399 = vpack.c.b16 %v2398, %v2397
        %v2402 = vsel %vm697, %v2394, 0
        %2404 = vmatprep.subr.bf16.mxu0 0
        %2405 = vmatpush1.bf16.msra.mxu0 %v2399
        %2406 = vmatprep.subr.bf16.mxu0 0
        %2407 = vmatpush1.bf16.msra.mxu0 0
        %2408 = vmatprep.subr.bf16.mxu0 0
        %2409 = vmatpush1.bf16.msra.mxu0 0
        %2410 = vmatprep.subr.bf16.mxu0 0
        %2411 = vmatpush1.bf16.msra.mxu0 0
        %2412 = vmatprep.subr.bf16.mxu0 0
        %2413 = vmatpush1.bf16.msra.mxu0 0
        %2414 = vmatprep.subr.bf16.mxu0 0
        %2415 = vmatpush1.bf16.msra.mxu0 0
        %2416 = vmatprep.subr.bf16.mxu0 0
        %2417 = vmatpush1.bf16.msra.mxu0 0
        %2418 = vmatprep.subr.bf16.mxu0 0
        %2419 = vmatpush1.bf16.msra.mxu0 0
        %2420 = vmatprep.subr.bf16.mxu0 0
        %2421 = vmatpush1.bf16.msra.mxu0 0
        %2422 = vmatprep.subr.bf16.mxu0 0
        %2423 = vmatpush1.bf16.msra.mxu0 0
        %2424 = vmatprep.subr.bf16.mxu0 0
        %2425 = vmatpush1.bf16.msra.mxu0 0
        %2426 = vmatprep.subr.bf16.mxu0 0
        %2427 = vmatpush1.bf16.msra.mxu0 0
        %2428 = vmatprep.subr.bf16.mxu0 0
        %2429 = vmatpush1.bf16.msra.mxu0 0
        %2430 = vmatprep.subr.bf16.mxu0 0
        %2431 = vmatpush1.bf16.msra.mxu0 0
        %2432 = vmatprep.subr.bf16.mxu0 0
        %2433 = vmatpush1.bf16.msra.mxu0 0
        %2434 = vmatprep.subr.bf16.mxu0 0
        %2435 = vmatpush1.bf16.msra.mxu0 0
        %2436 = vmatprep.mubr.bf16.mxu0 0
        %2437 = vmatmul.mubr.bf16.gmra.mrb[0].mxu0 %v2402
        %v2438 = vpop.f32.mrb[0].mxu0
        %v2439 = vadd.f32 0.0, %v2438
        %v2440 = vpop.f32.mrb[0].mxu0
        %v2441 = vpop.f32.mrb[0].mxu0
        %v2442 = vpop.f32.mrb[0].mxu0
        %2443 = vdwg.mxu0
        %v2444 = vadd.f32 %v2285, %v2439
        %v2445 = vadd.f32 %v1644, %v2444
        %v2446 = vlaneseq
        %v2447 = vshrl.u32 %v2446, 7
        %v2448 = vsub.s32 4, %v2447
        %v2449 = vrot.slane %v1646, %v2448
        %v2450 = vadd.f32 %v2445, %v2449
        %v2451 = vsel %vm455, %v2450, 0.0
        %2452 = vadd.xlane.f32.xlu0 %v2451
        %v2453 = vpop.xlane.xlu0 %2452
        %v2454 = vmul.f32 %v2453, %v534
        %v2455 = vmul.f32 %v2450, %v2450
        %v2456 = vsel %vm455, %v2455, 0.0
        %2457 = vadd.xlane.f32.xlu0 %v2456
        %v2458 = vpop.xlane.xlu0 %2457
        %v2459 = vmul.f32 %v2458, %v534
        %v2460 = vmul.f32 %v2454, %v2454
        %v2461 = vsub.f32 %v2459, %v2460
        %v2462 = vsub.f32 %v2450, %v2454
        %v2463 = vadd.f32 %v2461, 1e-05
        %v2464 = vrsqrt.pop %v2463
        %v2465 = vmul.f32 %v2462, %v2464
        %v2466 = vlaneseq
        %v2467 = vshrl.u32 %v2466, 7
        %v2468 = vsub.s32 2, %v2467
        %v2469 = vrot.slane %v1646, %v2468
        %v2470 = vmul.f32 %v2465, %v2469
        %v2471 = vlaneseq
        %v2472 = vshrl.u32 %v2471, 7
        %v2473 = vsub.s32 3, %v2472
        %v2474 = vrot.slane %v1646, %v2473
        %v2475 = vadd.f32 %v2470, %v2474
        %v2476 = vpack.c.bf16 %v2475, %v2475
        %s2477 = scalar_lea.vmem %s6, 64
        %v2478 = vld [vmem:[%s2477] sm:$0xff]
        %v2479 = vld [vmem:[%s2477 + $0x8] sm:$0xff]
        %v2480 = vld [vmem:[%s2477 + $0x10] sm:$0xff]
        %v2481 = vld [vmem:[%s2477 + $0x18] sm:$0xff]
        %v2482 = vld [vmem:[%s2477 + $0x20] sm:$0xff]
        %v2483 = vld [vmem:[%s2477 + $0x28] sm:$0xff]
        %v2484 = vld [vmem:[%s2477 + $0x30] sm:$0xff]
        %v2485 = vld [vmem:[%s2477 + $0x38] sm:$0xff]
        %s2486 = scalar_lea.vmem %s9, 2
        %v2487 = vld [vmem:[%s2486] sm:$0x3]
        %v2489 = vlaneseq
        %v2490 = vshrl.u32 %v2489, 7
        %v2491 = vsub.s32 0, %v2490
        %v2492 = vrot.slane %v2487, %v2491
        %v2493 = vlaneseq
        %v2494 = vshrl.u32 %v2493, 7
        %v2495 = vsub.s32 1, %v2494
        %v2496 = vrot.slane %v2487, %v2495
        %v2507 = vunpack.c.l.b16 %v2478
        %v2508 = vunpack.c.h.b16 %v2478
        %v2509 = vunpack.c.l.b16 %v2479
        %v2510 = vunpack.c.h.b16 %v2479
        %v2511 = vunpack.c.l.b16 %v2480
        %v2512 = vunpack.c.h.b16 %v2480
        %v2513 = vunpack.c.l.b16 %v2481
        %v2514 = vunpack.c.h.b16 %v2481
        %v2515 = vunpack.c.l.b16 %v2482
        %v2516 = vunpack.c.h.b16 %v2482
        %v2517 = vunpack.c.l.b16 %v2483
        %v2518 = vunpack.c.h.b16 %v2483
        %v2519 = vunpack.c.l.b16 %v2484
        %v2520 = vunpack.c.h.b16 %v2484
        %v2521 = vunpack.c.l.b16 %v2485
        %v2522 = vunpack.c.h.b16 %v2485
        %v2523 = vpack.c.b16 %v2509, %v2507
        %v2524 = vpack.c.b16 %v2510, %v2508
        %v2525 = vpack.c.b16 %v2513, %v2511
        %v2526 = vpack.c.b16 %v2514, %v2512
        %v2527 = vpack.c.b16 %v2517, %v2515
        %v2528 = vpack.c.b16 %v2518, %v2516
        %v2529 = vpack.c.b16 %v2521, %v2519
        %v2530 = vpack.c.b16 %v2522, %v2520
        %v2540 = vsel %vm455, %v2476, 0
        %2542 = vmatprep.subr.bf16.mxu0 %v2524
        %2543 = vmatpush1.bf16.msra.mxu0 %v2523
        %2544 = vmatprep.subr.bf16.mxu0 %v2526
        %2545 = vmatpush1.bf16.msra.mxu0 %v2525
        %2546 = vmatprep.subr.bf16.mxu0 %v2528
        %2547 = vmatpush1.bf16.msra.mxu0 %v2527
        %2548 = vmatprep.subr.bf16.mxu0 %v2530
        %2549 = vmatpush1.bf16.msra.mxu0 %v2529
        %2550 = vmatprep.subr.bf16.mxu0 0
        %2551 = vmatpush1.bf16.msra.mxu0 0
        %2552 = vmatprep.subr.bf16.mxu0 0
        %2553 = vmatpush1.bf16.msra.mxu0 0
        %2554 = vmatprep.subr.bf16.mxu0 0
        %2555 = vmatpush1.bf16.msra.mxu0 0
        %2556 = vmatprep.subr.bf16.mxu0 0
        %2557 = vmatpush1.bf16.msra.mxu0 0
        %2558 = vmatprep.subr.bf16.mxu0 0
        %2559 = vmatpush1.bf16.msra.mxu0 0
        %2560 = vmatprep.subr.bf16.mxu0 0
        %2561 = vmatpush1.bf16.msra.mxu0 0
        %2562 = vmatprep.subr.bf16.mxu0 0
        %2563 = vmatpush1.bf16.msra.mxu0 0
        %2564 = vmatprep.subr.bf16.mxu0 0
        %2565 = vmatpush1.bf16.msra.mxu0 0
        %2566 = vmatprep.subr.bf16.mxu0 0
        %2567 = vmatpush1.bf16.msra.mxu0 0
        %2568 = vmatprep.subr.bf16.mxu0 0
        %2569 = vmatpush1.bf16.msra.mxu0 0
        %2570 = vmatprep.subr.bf16.mxu0 0
        %2571 = vmatpush1.bf16.msra.mxu0 0
        %2572 = vmatprep.subr.bf16.mxu0 0
        %2573 = vmatpush1.bf16.msra.mxu0 0
        %2574 = vmatprep.mubr.bf16.mxu0 0
        %2575 = vmatmul.mubr.bf16.gmra.mrb[0].mxu0 %v2540
        %v2576 = vpop.f32.mrb[0].mxu0
        %v2577 = vadd.f32 %v2492, %v2576
        %v2578 = vpop.f32.mrb[0].mxu0
        %v2579 = vadd.f32 %v2496, %v2578
        %v2580 = vpop.f32.mrb[0].mxu0
        %v2581 = vpop.f32.mrb[0].mxu0
        %2582 = vdwg.mxu0
        %v2583 = vmax.f32 %v2577, 0.0
        %v2584 = vmax.f32 %v2579, 0.0
        %v2585 = vpack.c.bf16 %v2583, %v2583
        %v2586 = vpack.c.bf16 %v2584, %v2584
        %s2587 = scalar_lea.vmem %s7, 128
        %v2588 = vld [vmem:[%s2587] sm:$0xf]
        %v2589 = vld [vmem:[%s2587 + $0x4] sm:$0xf]
        %v2590 = vld [vmem:[%s2587 + $0x8] sm:$0xf]
        %v2591 = vld [vmem:[%s2587 + $0xc] sm:$0xf]
        %v2592 = vld [vmem:[%s2587 + $0x10] sm:$0xf]
        %v2593 = vld [vmem:[%s2587 + $0x14] sm:$0xf]
        %v2594 = vld [vmem:[%s2587 + $0x18] sm:$0xf]
        %v2595 = vld [vmem:[%s2587 + $0x1c] sm:$0xf]
        %v2596 = vld [vmem:[%s2587 + $0x20] sm:$0xf]
        %v2597 = vld [vmem:[%s2587 + $0x24] sm:$0xf]
        %v2598 = vld [vmem:[%s2587 + $0x28] sm:$0xf]
        %v2599 = vld [vmem:[%s2587 + $0x2c] sm:$0xf]
        %v2600 = vld [vmem:[%s2587 + $0x30] sm:$0xf]
        %v2601 = vld [vmem:[%s2587 + $0x34] sm:$0xf]
        %v2602 = vld [vmem:[%s2587 + $0x38] sm:$0xf]
        %v2603 = vld [vmem:[%s2587 + $0x3c] sm:$0xf]
        %v2604 = vld [vmem:[%s2587 + $0x40] sm:$0xf]
        %v2605 = vld [vmem:[%s2587 + $0x44] sm:$0xf]
        %v2606 = vld [vmem:[%s2587 + $0x48] sm:$0xf]
        %v2607 = vld [vmem:[%s2587 + $0x4c] sm:$0xf]
        %v2608 = vld [vmem:[%s2587 + $0x50] sm:$0xf]
        %v2609 = vld [vmem:[%s2587 + $0x54] sm:$0xf]
        %v2610 = vld [vmem:[%s2587 + $0x58] sm:$0xf]
        %v2611 = vld [vmem:[%s2587 + $0x5c] sm:$0xf]
        %v2612 = vld [vmem:[%s2587 + $0x60] sm:$0xf]
        %v2613 = vld [vmem:[%s2587 + $0x64] sm:$0xf]
        %v2614 = vld [vmem:[%s2587 + $0x68] sm:$0xf]
        %v2615 = vld [vmem:[%s2587 + $0x6c] sm:$0xf]
        %v2616 = vld [vmem:[%s2587 + $0x70] sm:$0xf]
        %v2617 = vld [vmem:[%s2587 + $0x74] sm:$0xf]
        %v2618 = vld [vmem:[%s2587 + $0x78] sm:$0xf]
        %v2619 = vld [vmem:[%s2587 + $0x7c] sm:$0xf]
        %v2652 = vunpack.c.l.b16 %v2588
        %v2653 = vunpack.c.l.b16 %v2589
        %v2654 = vunpack.c.l.b16 %v2590
        %v2655 = vunpack.c.l.b16 %v2591
        %v2656 = vunpack.c.l.b16 %v2592
        %v2657 = vunpack.c.l.b16 %v2593
        %v2658 = vunpack.c.l.b16 %v2594
        %v2659 = vunpack.c.l.b16 %v2595
        %v2660 = vunpack.c.l.b16 %v2596
        %v2661 = vunpack.c.l.b16 %v2597
        %v2662 = vunpack.c.l.b16 %v2598
        %v2663 = vunpack.c.l.b16 %v2599
        %v2664 = vunpack.c.l.b16 %v2600
        %v2665 = vunpack.c.l.b16 %v2601
        %v2666 = vunpack.c.l.b16 %v2602
        %v2667 = vunpack.c.l.b16 %v2603
        %v2668 = vunpack.c.l.b16 %v2604
        %v2669 = vunpack.c.l.b16 %v2605
        %v2670 = vunpack.c.l.b16 %v2606
        %v2671 = vunpack.c.l.b16 %v2607
        %v2672 = vunpack.c.l.b16 %v2608
        %v2673 = vunpack.c.l.b16 %v2609
        %v2674 = vunpack.c.l.b16 %v2610
        %v2675 = vunpack.c.l.b16 %v2611
        %v2676 = vunpack.c.l.b16 %v2612
        %v2677 = vunpack.c.l.b16 %v2613
        %v2678 = vunpack.c.l.b16 %v2614
        %v2679 = vunpack.c.l.b16 %v2615
        %v2680 = vunpack.c.l.b16 %v2616
        %v2681 = vunpack.c.l.b16 %v2617
        %v2682 = vunpack.c.l.b16 %v2618
        %v2683 = vunpack.c.l.b16 %v2619
        %v2684 = vpack.c.b16 %v2653, %v2652
        %v2685 = vpack.c.b16 %v2655, %v2654
        %v2686 = vpack.c.b16 %v2657, %v2656
        %v2687 = vpack.c.b16 %v2659, %v2658
        %v2688 = vpack.c.b16 %v2661, %v2660
        %v2689 = vpack.c.b16 %v2663, %v2662
        %v2690 = vpack.c.b16 %v2665, %v2664
        %v2691 = vpack.c.b16 %v2667, %v2666
        %v2692 = vpack.c.b16 %v2669, %v2668
        %v2693 = vpack.c.b16 %v2671, %v2670
        %v2694 = vpack.c.b16 %v2673, %v2672
        %v2695 = vpack.c.b16 %v2675, %v2674
        %v2696 = vpack.c.b16 %v2677, %v2676
        %v2697 = vpack.c.b16 %v2679, %v2678
        %v2698 = vpack.c.b16 %v2681, %v2680
        %v2699 = vpack.c.b16 %v2683, %v2682
        %2716 = vmatprep.subr.bf16.mxu0 0
        %2717 = vmatpush1.bf16.msra.mxu0 %v2684
        %2718 = vmatprep.subr.bf16.mxu0 0
        %2719 = vmatpush1.bf16.msra.mxu0 %v2685
        %2720 = vmatprep.subr.bf16.mxu0 0
        %2721 = vmatpush1.bf16.msra.mxu0 %v2686
        %2722 = vmatprep.subr.bf16.mxu0 0
        %2723 = vmatpush1.bf16.msra.mxu0 %v2687
        %2724 = vmatprep.subr.bf16.mxu0 0
        %2725 = vmatpush1.bf16.msra.mxu0 %v2688
        %2726 = vmatprep.subr.bf16.mxu0 0
        %2727 = vmatpush1.bf16.msra.mxu0 %v2689
        %2728 = vmatprep.subr.bf16.mxu0 0
        %2729 = vmatpush1.bf16.msra.mxu0 %v2690
        %2730 = vmatprep.subr.bf16.mxu0 0
        %2731 = vmatpush1.bf16.msra.mxu0 %v2691
        %2732 = vmatprep.subr.bf16.mxu0 0
        %2733 = vmatpush1.bf16.msra.mxu0 %v2692
        %2734 = vmatprep.subr.bf16.mxu0 0
        %2735 = vmatpush1.bf16.msra.mxu0 %v2693
        %2736 = vmatprep.subr.bf16.mxu0 0
        %2737 = vmatpush1.bf16.msra.mxu0 %v2694
        %2738 = vmatprep.subr.bf16.mxu0 0
        %2739 = vmatpush1.bf16.msra.mxu0 %v2695
        %2740 = vmatprep.subr.bf16.mxu0 0
        %2741 = vmatpush1.bf16.msra.mxu0 %v2696
        %2742 = vmatprep.subr.bf16.mxu0 0
        %2743 = vmatpush1.bf16.msra.mxu0 %v2697
        %2744 = vmatprep.subr.bf16.mxu0 0
        %2745 = vmatpush1.bf16.msra.mxu0 %v2698
        %2746 = vmatprep.subr.bf16.mxu0 0
        %2747 = vmatpush1.bf16.msra.mxu0 %v2699
        %2748 = vmatprep.mubr.bf16.mxu0 %v2586
        %2749 = vmatmul.mubr.bf16.gmra.mrb[0].mxu0 %v2585
        %v2750 = vpop.f32.mrb[0].mxu0
        %v2751 = vadd.f32 0.0, %v2750
        %v2752 = vpop.f32.mrb[0].mxu0
        %v2753 = vpop.f32.mrb[0].mxu0
        %v2754 = vpop.f32.mrb[0].mxu0
        %2755 = vdwg.mxu0
        %v2756 = vadd.f32 %v2450, %v2751
        %v2757 = vlaneseq
        %v2758 = vshrl.u32 %v2757, 7
        %v2759 = vsub.s32 5, %v2758
        %v2760 = vrot.slane %v1646, %v2759
        %v2761 = vadd.f32 %v2756, %v2760
        %s2762 = scalar_lea.vmem %s8, 16
        %v2763 = vld [vmem:[%s2762] sm:$0xff]
        %v2764 = vsel %vm455, %v2761, 0.0
        %2765 = vadd.xlane.f32.xlu0 %v2764
        %v2766 = vpop.xlane.xlu0 %2765
        %v2767 = vmul.f32 %v2766, %v534
        %v2768 = vmul.f32 %v2761, %v2761
        %v2769 = vsel %vm455, %v2768, 0.0
        %2770 = vadd.xlane.f32.xlu0 %v2769
        %v2771 = vpop.xlane.xlu0 %2770
        %v2772 = vmul.f32 %v2771, %v534
        %v2773 = vmul.f32 %v2767, %v2767
        %v2774 = vsub.f32 %v2772, %v2773
        %v2775 = vsub.f32 %v2761, %v2767
        %v2776 = vadd.f32 %v2774, 1e-05
        %v2777 = vrsqrt.pop %v2776
        %v2778 = vmul.f32 %v2775, %v2777
        %v2779 = vlaneseq
        %v2780 = vshrl.u32 %v2779, 7
        %v2781 = vsub.s32 0, %v2780
        %v2782 = vrot.slane %v2763, %v2781
        %v2783 = vmul.f32 %v2778, %v2782
        %v2784 = vlaneseq
        %v2785 = vshrl.u32 %v2784, 7
        %v2786 = vsub.s32 1, %v2785
        %v2787 = vrot.slane %v2763, %v2786
        %v2788 = vadd.f32 %v2783, %v2787
        %v2789 = vpack.c.bf16 %v2788, %v2788
        %s2790 = scalar_lea.vmem %s4, 128
        %v2791 = vld [vmem:[%s2790] sm:$0xff]
        %v2792 = vld [vmem:[%s2790 + $0x8] sm:$0xff]
        %v2793 = vld [vmem:[%s2790 + $0x10] sm:$0xff]
        %v2794 = vld [vmem:[%s2790 + $0x18] sm:$0xff]
        %v2795 = vld [vmem:[%s2790 + $0x20] sm:$0xff]
        %v2796 = vld [vmem:[%s2790 + $0x28] sm:$0xff]
        %v2797 = vld [vmem:[%s2790 + $0x30] sm:$0xff]
        %v2798 = vld [vmem:[%s2790 + $0x38] sm:$0xff]
        %v2807 = vunpack.c.l.b16 %v2791
        %v2808 = vunpack.c.h.b16 %v2791
        %v2809 = vunpack.c.l.b16 %v2792
        %v2810 = vunpack.c.h.b16 %v2792
        %v2811 = vunpack.c.l.b16 %v2793
        %v2812 = vunpack.c.h.b16 %v2793
        %v2813 = vunpack.c.l.b16 %v2794
        %v2814 = vunpack.c.h.b16 %v2794
        %v2815 = vunpack.c.l.b16 %v2795
        %v2816 = vunpack.c.h.b16 %v2795
        %v2817 = vunpack.c.l.b16 %v2796
        %v2818 = vunpack.c.h.b16 %v2796
        %v2819 = vunpack.c.l.b16 %v2797
        %v2820 = vunpack.c.h.b16 %v2797
        %v2821 = vunpack.c.l.b16 %v2798
        %v2822 = vunpack.c.h.b16 %v2798
        %v2823 = vpack.c.b16 %v2809, %v2807
        %v2824 = vpack.c.b16 %v2810, %v2808
        %v2825 = vpack.c.b16 %v2813, %v2811
        %v2826 = vpack.c.b16 %v2814, %v2812
        %v2827 = vpack.c.b16 %v2817, %v2815
        %v2828 = vpack.c.b16 %v2818, %v2816
        %v2829 = vpack.c.b16 %v2821, %v2819
        %v2830 = vpack.c.b16 %v2822, %v2820
        %v2840 = vsel %vm455, %v2789, 0
        %2842 = vmatprep.subr.bf16.mxu0 %v2824
        %2843 = vmatpush1.bf16.msra.mxu0 %v2823
        %2844 = vmatprep.subr.bf16.mxu0 %v2826
        %2845 = vmatpush1.bf16.msra.mxu0 %v2825
        %2846 = vmatprep.subr.bf16.mxu0 %v2828
        %2847 = vmatpush1.bf16.msra.mxu0 %v2827
        %2848 = vmatprep.subr.bf16.mxu0 %v2830
        %2849 = vmatpush1.bf16.msra.mxu0 %v2829
        %2850 = vmatprep.subr.bf16.mxu0 0
        %2851 = vmatpush1.bf16.msra.mxu0 0
        %2852 = vmatprep.subr.bf16.mxu0 0
        %2853 = vmatpush1.bf16.msra.mxu0 0
        %2854 = vmatprep.subr.bf16.mxu0 0
        %2855 = vmatpush1.bf16.msra.mxu0 0
        %2856 = vmatprep.subr.bf16.mxu0 0
        %2857 = vmatpush1.bf16.msra.mxu0 0
        %2858 = vmatprep.subr.bf16.mxu0 0
        %2859 = vmatpush1.bf16.msra.mxu0 0
        %2860 = vmatprep.subr.bf16.mxu0 0
        %2861 = vmatpush1.bf16.msra.mxu0 0
        %2862 = vmatprep.subr.bf16.mxu0 0
        %2863 = vmatpush1.bf16.msra.mxu0 0
        %2864 = vmatprep.subr.bf16.mxu0 0
        %2865 = vmatpush1.bf16.msra.mxu0 0
        %2866 = vmatprep.subr.bf16.mxu0 0
        %2867 = vmatpush1.bf16.msra.mxu0 0
        %2868 = vmatprep.subr.bf16.mxu0 0
        %2869 = vmatpush1.bf16.msra.mxu0 0
        %2870 = vmatprep.subr.bf16.mxu0 0
        %2871 = vmatpush1.bf16.msra.mxu0 0
        %2872 = vmatprep.subr.bf16.mxu0 0
        %2873 = vmatpush1.bf16.msra.mxu0 0
        %2874 = vmatprep.mubr.bf16.mxu0 0
        %2875 = vmatmul.mubr.bf16.gmra.mrb[0].mxu0 %v2840
        %v2876 = vpop.f32.mrb[0].mxu0
        %v2877 = vadd.f32 0.0, %v2876
        %v2878 = vpop.f32.mrb[0].mxu0
        %v2879 = vadd.f32 0.0, %v2878
        %v2880 = vpop.f32.mrb[0].mxu0
        %v2881 = vpop.f32.mrb[0].mxu0
        %2882 = vdwg.mxu0
        %s2883 = scalar_lea.vmem %s5, 64
        %v2884 = vld [vmem:[%s2883] sm:$0xf]
        %v2885 = vld [vmem:[%s2883 + $0x4] sm:$0xf]
        %v2886 = vld [vmem:[%s2883 + $0x8] sm:$0xf]
        %v2887 = vld [vmem:[%s2883 + $0xc] sm:$0xf]
        %v2888 = vld [vmem:[%s2883 + $0x10] sm:$0xf]
        %v2889 = vld [vmem:[%s2883 + $0x14] sm:$0xf]
        %v2890 = vld [vmem:[%s2883 + $0x18] sm:$0xf]
        %v2891 = vld [vmem:[%s2883 + $0x1c] sm:$0xf]
        %2893 = vrot.lane.b32.xlu0 %v2877, 64
        %v2894 = vpop.permute.xlu0 %2893
        %2896 = vxpose.xlu0.b32.start [1/16] %v2894, 128
        %2897 = vxpose.xlu0.b32.cont [2/16] 0.0, 128
        %2898 = vxpose.xlu0.b32.cont [3/16] 0.0, 128
        %2899 = vxpose.xlu0.b32.cont [4/16] 0.0, 128
        %2900 = vxpose.xlu0.b32.cont [5/16] 0.0, 128
        %2901 = vxpose.xlu0.b32.cont [6/16] 0.0, 128
        %2902 = vxpose.xlu0.b32.cont [7/16] 0.0, 128
        %2903 = vxpose.xlu0.b32.cont [8/16] 0.0, 128
        %2904 = vxpose.xlu0.b32.cont [9/16] 0.0, 128
        %2905 = vxpose.xlu0.b32.cont [10/16] 0.0, 128
        %2906 = vxpose.xlu0.b32.cont [11/16] 0.0, 128
        %2907 = vxpose.xlu0.b32.cont [12/16] 0.0, 128
        %2908 = vxpose.xlu0.b32.cont [13/16] 0.0, 128
        %2909 = vxpose.xlu0.b32.cont [14/16] 0.0, 128
        %2910 = vxpose.xlu0.b32.cont [15/16] 0.0, 128
        %2911 = vxpose.xlu0.b32.end [16/16] 0.0, 128
        %v2912 = vpop.trf.xlu0
        %v2913 = vpop.trf.xlu0
        %v2914 = vpop.trf.xlu0
        %v2915 = vpop.trf.xlu0
        %v2916 = vpop.trf.xlu0
        %v2917 = vpop.trf.xlu0
        %v2918 = vpop.trf.xlu0
        %v2919 = vpop.trf.xlu0
        %v2920 = vpop.trf.xlu0
        %v2921 = vpop.trf.xlu0
        %v2922 = vpop.trf.xlu0
        %v2923 = vpop.trf.xlu0
        %v2924 = vpop.trf.xlu0
        %v2925 = vpop.trf.xlu0
        %v2926 = vpop.trf.xlu0
        %v2927 = vpop.trf.xlu0
        %v2928 = vpack.c.bf16 %v2877, %v2877
        %v2929 = vpack.c.bf16 %v2913, %v2912
        %v2930 = vpack.c.bf16 %v2879, %v2879
        %v2932 = vsel %vm697, %v2928, 0
        %2934 = vmatprep.subr.bf16.mxu0 0
        %2935 = vmatpush1.bf16.msra.mxu0 %v2929
        %2936 = vmatprep.subr.bf16.mxu0 0
        %2937 = vmatpush1.bf16.msra.mxu0 0
        %2938 = vmatprep.subr.bf16.mxu0 0
        %2939 = vmatpush1.bf16.msra.mxu0 0
        %2940 = vmatprep.subr.bf16.mxu0 0
        %2941 = vmatpush1.bf16.msra.mxu0 0
        %2942 = vmatprep.subr.bf16.mxu0 0
        %2943 = vmatpush1.bf16.msra.mxu0 0
        %2944 = vmatprep.subr.bf16.mxu0 0
        %2945 = vmatpush1.bf16.msra.mxu0 0
        %2946 = vmatprep.subr.bf16.mxu0 0
        %2947 = vmatpush1.bf16.msra.mxu0 0
        %2948 = vmatprep.subr.bf16.mxu0 0
        %2949 = vmatpush1.bf16.msra.mxu0 0
        %2950 = vmatprep.subr.bf16.mxu0 0
        %2951 = vmatpush1.bf16.msra.mxu0 0
        %2952 = vmatprep.subr.bf16.mxu0 0
        %2953 = vmatpush1.bf16.msra.mxu0 0
        %2954 = vmatprep.subr.bf16.mxu0 0
        %2955 = vmatpush1.bf16.msra.mxu0 0
        %2956 = vmatprep.subr.bf16.mxu0 0
        %2957 = vmatpush1.bf16.msra.mxu0 0
        %2958 = vmatprep.subr.bf16.mxu0 0
        %2959 = vmatpush1.bf16.msra.mxu0 0
        %2960 = vmatprep.subr.bf16.mxu0 0
        %2961 = vmatpush1.bf16.msra.mxu0 0
        %2962 = vmatprep.subr.bf16.mxu0 0
        %2963 = vmatpush1.bf16.msra.mxu0 0
        %2964 = vmatprep.subr.bf16.mxu0 0
        %2965 = vmatpush1.bf16.msra.mxu0 0
        %2966 = vmatprep.mubr.bf16.mxu0 0
        %2967 = vmatmul.mubr.bf16.gmra.mrb[0].mxu0 %v2932
        %v2968 = vpop.f32.mrb[0].mxu0
        %v2969 = vadd.f32 0.0, %v2968
        %v2970 = vpop.f32.mrb[0].mxu0
        %v2971 = vpop.f32.mrb[0].mxu0
        %v2972 = vpop.f32.mrb[0].mxu0
        %2973 = vdwg.mxu0
        %v2974 = vmul.f32 %v2969, 0.125
        %v2975 = vadd.f32 %v2974, %v529
        %v2976 = vsel %vm743, %v2975, -inf
        %2977 = vmax.xlane.f32.xlu0 %v2976
        %v2978 = vpop.xlane.xlu0 %2977
        %v2979 = vsub.f32 %v2975, %v2978
        %v2980 = vmul.f32 %v2979, 1.442695
        %v2981 = vpow.pop %v2980
        %v2982 = vsel %vm743, %v2981, 0.0
        %2983 = vadd.xlane.f32.xlu0 %v2982
        %v2984 = vpop.xlane.xlu0 %2983
        %v2985 = vrcp.pop %v2984
        %v2986 = vmul.f32 %v2981, %v2985
        %v2987 = vpack.c.bf16 %v2986, %v2986
        %v2989 = vsel %vm743, %v2987, 0
        %v2992 = vsel %vm759, %v2930, 0
        %2994 = vmatprep.subr.bf16.mxu0 0
        %2995 = vmatpush1.bf16.msra.mxu0 %v2992
        %2996 = vmatprep.subr.bf16.mxu0 0
        %2997 = vmatpush1.bf16.msra.mxu0 0
        %2998 = vmatprep.subr.bf16.mxu0 0
        %2999 = vmatpush1.bf16.msra.mxu0 0
        %3000 = vmatprep.subr.bf16.mxu0 0
        %3001 = vmatpush1.bf16.msra.mxu0 0
        %3002 = vmatprep.subr.bf16.mxu0 0
        %3003 = vmatpush1.bf16.msra.mxu0 0
        %3004 = vmatprep.subr.bf16.mxu0 0
        %3005 = vmatpush1.bf16.msra.mxu0 0
        %3006 = vmatprep.subr.bf16.mxu0 0
        %3007 = vmatpush1.bf16.msra.mxu0 0
        %3008 = vmatprep.subr.bf16.mxu0 0
        %3009 = vmatpush1.bf16.msra.mxu0 0
        %3010 = vmatprep.subr.bf16.mxu0 0
        %3011 = vmatpush1.bf16.msra.mxu0 0
        %3012 = vmatprep.subr.bf16.mxu0 0
        %3013 = vmatpush1.bf16.msra.mxu0 0
        %3014 = vmatprep.subr.bf16.mxu0 0
        %3015 = vmatpush1.bf16.msra.mxu0 0
        %3016 = vmatprep.subr.bf16.mxu0 0
        %3017 = vmatpush1.bf16.msra.mxu0 0
        %3018 = vmatprep.subr.bf16.mxu0 0
        %3019 = vmatpush1.bf16.msra.mxu0 0
        %3020 = vmatprep.subr.bf16.mxu0 0
        %3021 = vmatpush1.bf16.msra.mxu0 0
        %3022 = vmatprep.subr.bf16.mxu0 0
        %3023 = vmatpush1.bf16.msra.mxu0 0
        %3024 = vmatprep.subr.bf16.mxu0 0
        %3025 = vmatpush1.bf16.msra.mxu0 0
        %3026 = vmatprep.mubr.bf16.mxu0 0
        %3027 = vmatmul.mubr.bf16.gmra.mrb[0].mxu0 %v2989
        %v3028 = vpop.f32.mrb[0].mxu0
        %v3029 = vadd.f32 0.0, %v3028
        %v3030 = vpop.f32.mrb[0].mxu0
        %v3031 = vpop.f32.mrb[0].mxu0
        %v3032 = vpop.f32.mrb[0].mxu0
        %3033 = vdwg.mxu0
        %v3034 = vpack.c.bf16 %v3029, %v3029
        %v3035 = vpack.c.bf16 %v2915, %v2914
        %3037 = vrot.lane.b32.xlu0 %v2928, 112
        %v3038 = vpop.permute.xlu0 %3037
        %v3040 = vsel %vm697, %v3038, 0
        %3042 = vmatprep.subr.bf16.mxu0 0
        %3043 = vmatpush1.bf16.msra.mxu0 %v3035
        %3044 = vmatprep.subr.bf16.mxu0 0
        %3045 = vmatpush1.bf16.msra.mxu0 0
        %3046 = vmatprep.subr.bf16.mxu0 0
        %3047 = vmatpush1.bf16.msra.mxu0 0
        %3048 = vmatprep.subr.bf16.mxu0 0
        %3049 = vmatpush1.bf16.msra.mxu0 0
        %3050 = vmatprep.subr.bf16.mxu0 0
        %3051 = vmatpush1.bf16.msra.mxu0 0
        %3052 = vmatprep.subr.bf16.mxu0 0
        %3053 = vmatpush1.bf16.msra.mxu0 0
        %3054 = vmatprep.subr.bf16.mxu0 0
        %3055 = vmatpush1.bf16.msra.mxu0 0
        %3056 = vmatprep.subr.bf16.mxu0 0
        %3057 = vmatpush1.bf16.msra.mxu0 0
        %3058 = vmatprep.subr.bf16.mxu0 0
        %3059 = vmatpush1.bf16.msra.mxu0 0
        %3060 = vmatprep.subr.bf16.mxu0 0
        %3061 = vmatpush1.bf16.msra.mxu0 0
        %3062 = vmatprep.subr.bf16.mxu0 0
        %3063 = vmatpush1.bf16.msra.mxu0 0
        %3064 = vmatprep.subr.bf16.mxu0 0
        %3065 = vmatpush1.bf16.msra.mxu0 0
        %3066 = vmatprep.subr.bf16.mxu0 0
        %3067 = vmatpush1.bf16.msra.mxu0 0
        %3068 = vmatprep.subr.bf16.mxu0 0
        %3069 = vmatpush1.bf16.msra.mxu0 0
        %3070 = vmatprep.subr.bf16.mxu0 0
        %3071 = vmatpush1.bf16.msra.mxu0 0
        %3072 = vmatprep.subr.bf16.mxu0 0
        %3073 = vmatpush1.bf16.msra.mxu0 0
        %3074 = vmatprep.mubr.bf16.mxu0 0
        %3075 = vmatmul.mubr.bf16.gmra.mrb[0].mxu0 %v3040
        %v3076 = vpop.f32.mrb[0].mxu0
        %v3077 = vadd.f32 0.0, %v3076
        %v3078 = vpop.f32.mrb[0].mxu0
        %v3079 = vpop.f32.mrb[0].mxu0
        %v3080 = vpop.f32.mrb[0].mxu0
        %3081 = vdwg.mxu0
        %v3082 = vmul.f32 %v3077, 0.125
        %v3083 = vadd.f32 %v3082, %v529
        %v3084 = vsel %vm743, %v3083, -inf
        %3085 = vmax.xlane.f32.xlu0 %v3084
        %v3086 = vpop.xlane.xlu0 %3085
        %v3087 = vsub.f32 %v3083, %v3086
        %v3088 = vmul.f32 %v3087, 1.442695
        %v3089 = vpow.pop %v3088
        %v3090 = vsel %vm743, %v3089, 0.0
        %3091 = vadd.xlane.f32.xlu0 %v3090
        %v3092 = vpop.xlane.xlu0 %3091
        %v3093 = vrcp.pop %v3092
        %v3094 = vmul.f32 %v3089, %v3093
        %v3095 = vpack.c.bf16 %v3094, %v3094
        %3097 = vrot.lane.b32.xlu0 %v2930, 112
        %v3098 = vpop.permute.xlu0 %3097
        %v3100 = vsel %vm743, %v3095, 0
        %v3103 = vsel %vm759, %v3098, 0
        %3105 = vmatprep.subr.bf16.mxu0 0
        %3106 = vmatpush1.bf16.msra.mxu0 %v3103
        %3107 = vmatprep.subr.bf16.mxu0 0
        %3108 = vmatpush1.bf16.msra.mxu0 0
        %3109 = vmatprep.subr.bf16.mxu0 0
        %3110 = vmatpush1.bf16.msra.mxu0 0
        %3111 = vmatprep.subr.bf16.mxu0 0
        %3112 = vmatpush1.bf16.msra.mxu0 0
        %3113 = vmatprep.subr.bf16.mxu0 0
        %3114 = vmatpush1.bf16.msra.mxu0 0
        %3115 = vmatprep.subr.bf16.mxu0 0
        %3116 = vmatpush1.bf16.msra.mxu0 0
        %3117 = vmatprep.subr.bf16.mxu0 0
        %3118 = vmatpush1.bf16.msra.mxu0 0
        %3119 = vmatprep.subr.bf16.mxu0 0
        %3120 = vmatpush1.bf16.msra.mxu0 0
        %3121 = vmatprep.subr.bf16.mxu0 0
        %3122 = vmatpush1.bf16.msra.mxu0 0
        %3123 = vmatprep.subr.bf16.mxu0 0
        %3124 = vmatpush1.bf16.msra.mxu0 0
        %3125 = vmatprep.subr.bf16.mxu0 0
        %3126 = vmatpush1.bf16.msra.mxu0 0
        %3127 = vmatprep.subr.bf16.mxu0 0
        %3128 = vmatpush1.bf16.msra.mxu0 0
        %3129 = vmatprep.subr.bf16.mxu0 0
        %3130 = vmatpush1.bf16.msra.mxu0 0
        %3131 = vmatprep.subr.bf16.mxu0 0
        %3132 = vmatpush1.bf16.msra.mxu0 0
        %3133 = vmatprep.subr.bf16.mxu0 0
        %3134 = vmatpush1.bf16.msra.mxu0 0
        %3135 = vmatprep.subr.bf16.mxu0 0
        %3136 = vmatpush1.bf16.msra.mxu0 0
        %3137 = vmatprep.mubr.bf16.mxu0 0
        %3138 = vmatmul.mubr.bf16.gmra.mrb[0].mxu0 %v3100
        %v3139 = vpop.f32.mrb[0].mxu0
        %v3140 = vadd.f32 0.0, %v3139
        %v3141 = vpop.f32.mrb[0].mxu0
        %v3142 = vpop.f32.mrb[0].mxu0
        %v3143 = vpop.f32.mrb[0].mxu0
        %3144 = vdwg.mxu0
        %v3145 = vpack.c.bf16 %v3140, %v3140
        %v3148 = vunpack.c.l.b16 %v2886
        %v3149 = vunpack.c.l.b16 %v2887
        %v3150 = vpack.c.b16 %v3149, %v3148
        %v3153 = vsel %vm697, %v3145, 0
        %3155 = vmatprep.subr.bf16.mxu0 0
        %3156 = vmatpush1.bf16.msra.mxu0 %v3150
        %3157 = vmatprep.subr.bf16.mxu0 0
        %3158 = vmatpush1.bf16.msra.mxu0 0
        %3159 = vmatprep.subr.bf16.mxu0 0
        %3160 = vmatpush1.bf16.msra.mxu0 0
        %3161 = vmatprep.subr.bf16.mxu0 0
        %3162 = vmatpush1.bf16.msra.mxu0 0
        %3163 = vmatprep.subr.bf16.mxu0 0
        %3164 = vmatpush1.bf16.msra.mxu0 0
        %3165 = vmatprep.subr.bf16.mxu0 0
        %3166 = vmatpush1.bf16.msra.mxu0 0
        %3167 = vmatprep.subr.bf16.mxu0 0
        %3168 = vmatpush1.bf16.msra.mxu0 0
        %3169 = vmatprep.subr.bf16.mxu0 0
        %3170 = vmatpush1.bf16.msra.mxu0 0
        %3171 = vmatprep.subr.bf16.mxu0 0
        %3172 = vmatpush1.bf16.msra.mxu0 0
        %3173 = vmatprep.subr.bf16.mxu0 0
        %3174 = vmatpush1.bf16.msra.mxu0 0
        %3175 = vmatprep.subr.bf16.mxu0 0
        %3176 = vmatpush1.bf16.msra.mxu0 0
        %3177 = vmatprep.subr.bf16.mxu0 0
        %3178 = vmatpush1.bf16.msra.mxu0 0
        %3179 = vmatprep.subr.bf16.mxu0 0
        %3180 = vmatpush1.bf16.msra.mxu0 0
        %3181 = vmatprep.subr.bf16.mxu0 0
        %3182 = vmatpush1.bf16.msra.mxu0 0
        %3183 = vmatprep.subr.bf16.mxu0 0
        %3184 = vmatpush1.bf16.msra.mxu0 0
        %3185 = vmatprep.subr.bf16.mxu0 0
        %3186 = vmatpush1.bf16.msra.mxu0 0
        %3187 = vmatprep.mubr.bf16.mxu0 0
        %3188 = vmatmul.mubr.bf16.gmra.mrb[0].mxu0 %v3153
        %v3189 = vpop.f32.mrb[0].mxu0
        %v3190 = vadd.f32 0.0, %v3189
        %v3191 = vpop.f32.mrb[0].mxu0
        %v3192 = vpop.f32.mrb[0].mxu0
        %v3193 = vpop.f32.mrb[0].mxu0
        %3194 = vdwg.mxu0
        %v3197 = vunpack.c.l.b16 %v2884
        %v3198 = vunpack.c.l.b16 %v2885
        %v3199 = vpack.c.b16 %v3198, %v3197
        %v3202 = vsel %vm697, %v3034, 0
        %3204 = vmatprep.subr.bf16.mxu0 0
        %3205 = vmatpush1.bf16.msra.mxu0 %v3199
        %3206 = vmatprep.subr.bf16.mxu0 0
        %3207 = vmatpush1.bf16.msra.mxu0 0
        %3208 = vmatprep.subr.bf16.mxu0 0
        %3209 = vmatpush1.bf16.msra.mxu0 0
        %3210 = vmatprep.subr.bf16.mxu0 0
        %3211 = vmatpush1.bf16.msra.mxu0 0
        %3212 = vmatprep.subr.bf16.mxu0 0
        %3213 = vmatpush1.bf16.msra.mxu0 0
        %3214 = vmatprep.subr.bf16.mxu0 0
        %3215 = vmatpush1.bf16.msra.mxu0 0
        %3216 = vmatprep.subr.bf16.mxu0 0
        %3217 = vmatpush1.bf16.msra.mxu0 0
        %3218 = vmatprep.subr.bf16.mxu0 0
        %3219 = vmatpush1.bf16.msra.mxu0 0
        %3220 = vmatprep.subr.bf16.mxu0 0
        %3221 = vmatpush1.bf16.msra.mxu0 0
        %3222 = vmatprep.subr.bf16.mxu0 0
        %3223 = vmatpush1.bf16.msra.mxu0 0
        %3224 = vmatprep.subr.bf16.mxu0 0
        %3225 = vmatpush1.bf16.msra.mxu0 0
        %3226 = vmatprep.subr.bf16.mxu0 0
        %3227 = vmatpush1.bf16.msra.mxu0 0
        %3228 = vmatprep.subr.bf16.mxu0 0
        %3229 = vmatpush1.bf16.msra.mxu0 0
        %3230 = vmatprep.subr.bf16.mxu0 0
        %3231 = vmatpush1.bf16.msra.mxu0 0
        %3232 = vmatprep.subr.bf16.mxu0 0
        %3233 = vmatpush1.bf16.msra.mxu0 0
        %3234 = vmatprep.subr.bf16.mxu0 0
        %3235 = vmatpush1.bf16.msra.mxu0 0
        %3236 = vmatprep.mubr.bf16.mxu0 0
        %3237 = vmatmul.mubr.bf16.gmra.mrb[0].mxu0 %v3202
        %v3238 = vpop.f32.mrb[0].mxu0
        %v3239 = vadd.f32 %v3190, %v3238
        %v3240 = vpop.f32.mrb[0].mxu0
        %v3241 = vpop.f32.mrb[0].mxu0
        %v3242 = vpop.f32.mrb[0].mxu0
        %3243 = vdwg.mxu0
        %v3244 = vpack.c.bf16 %v2917, %v2916
        %3245 = vrot.lane.b32.xlu0 %v2928, 96
        %v3246 = vpop.permute.xlu0 %3245
        %v3248 = vsel %vm697, %v3246, 0
        %3250 = vmatprep.subr.bf16.mxu0 0
        %3251 = vmatpush1.bf16.msra.mxu0 %v3244
        %3252 = vmatprep.subr.bf16.mxu0 0
        %3253 = vmatpush1.bf16.msra.mxu0 0
        %3254 = vmatprep.subr.bf16.mxu0 0
        %3255 = vmatpush1.bf16.msra.mxu0 0
        %3256 = vmatprep.subr.bf16.mxu0 0
        %3257 = vmatpush1.bf16.msra.mxu0 0
        %3258 = vmatprep.subr.bf16.mxu0 0
        %3259 = vmatpush1.bf16.msra.mxu0 0
        %3260 = vmatprep.subr.bf16.mxu0 0
        %3261 = vmatpush1.bf16.msra.mxu0 0
        %3262 = vmatprep.subr.bf16.mxu0 0
        %3263 = vmatpush1.bf16.msra.mxu0 0
        %3264 = vmatprep.subr.bf16.mxu0 0
        %3265 = vmatpush1.bf16.msra.mxu0 0
        %3266 = vmatprep.subr.bf16.mxu0 0
        %3267 = vmatpush1.bf16.msra.mxu0 0
        %3268 = vmatprep.subr.bf16.mxu0 0
        %3269 = vmatpush1.bf16.msra.mxu0 0
        %3270 = vmatprep.subr.bf16.mxu0 0
        %3271 = vmatpush1.bf16.msra.mxu0 0
        %3272 = vmatprep.subr.bf16.mxu0 0
        %3273 = vmatpush1.bf16.msra.mxu0 0
        %3274 = vmatprep.subr.bf16.mxu0 0
        %3275 = vmatpush1.bf16.msra.mxu0 0
        %3276 = vmatprep.subr.bf16.mxu0 0
        %3277 = vmatpush1.bf16.msra.mxu0 0
        %3278 = vmatprep.subr.bf16.mxu0 0
        %3279 = vmatpush1.bf16.msra.mxu0 0
        %3280 = vmatprep.subr.bf16.mxu0 0
        %3281 = vmatpush1.bf16.msra.mxu0 0
        %3282 = vmatprep.mubr.bf16.mxu0 0
        %3283 = vmatmul.mubr.bf16.gmra.mrb[0].mxu0 %v3248
        %v3284 = vpop.f32.mrb[0].mxu0
        %v3285 = vadd.f32 0.0, %v3284
        %v3286 = vpop.f32.mrb[0].mxu0
        %v3287 = vpop.f32.mrb[0].mxu0
        %v3288 = vpop.f32.mrb[0].mxu0
        %3289 = vdwg.mxu0
        %v3290 = vmul.f32 %v3285, 0.125
        %v3291 = vadd.f32 %v3290, %v529
        %v3292 = vsel %vm743, %v3291, -inf
        %3293 = vmax.xlane.f32.xlu0 %v3292
        %v3294 = vpop.xlane.xlu0 %3293
        %v3295 = vsub.f32 %v3291, %v3294
        %v3296 = vmul.f32 %v3295, 1.442695
        %v3297 = vpow.pop %v3296
        %v3298 = vsel %vm743, %v3297, 0.0
        %3299 = vadd.xlane.f32.xlu0 %v3298
        %v3300 = vpop.xlane.xlu0 %3299
        %v3301 = vrcp.pop %v3300
        %v3302 = vmul.f32 %v3297, %v3301
        %v3303 = vpack.c.bf16 %v3302, %v3302
        %3304 = vrot.lane.b32.xlu0 %v2930, 96
        %v3305 = vpop.permute.xlu0 %3304
        %v3307 = vsel %vm743, %v3303, 0
        %v3310 = vsel %vm759, %v3305, 0
        %3312 = vmatprep.subr.bf16.mxu0 0
        %3313 = vmatpush1.bf16.msra.mxu0 %v3310
        %3314 = vmatprep.subr.bf16.mxu0 0
        %3315 = vmatpush1.bf16.msra.mxu0 0
        %3316 = vmatprep.subr.bf16.mxu0 0
        %3317 = vmatpush1.bf16.msra.mxu0 0
        %3318 = vmatprep.subr.bf16.mxu0 0
        %3319 = vmatpush1.bf16.msra.mxu0 0
        %3320 = vmatprep.subr.bf16.mxu0 0
        %3321 = vmatpush1.bf16.msra.mxu0 0
        %3322 = vmatprep.subr.bf16.mxu0 0
        %3323 = vmatpush1.bf16.msra.mxu0 0
        %3324 = vmatprep.subr.bf16.mxu0 0
        %3325 = vmatpush1.bf16.msra.mxu0 0
        %3326 = vmatprep.subr.bf16.mxu0 0
        %3327 = vmatpush1.bf16.msra.mxu0 0
        %3328 = vmatprep.subr.bf16.mxu0 0
        %3329 = vmatpush1.bf16.msra.mxu0 0
        %3330 = vmatprep.subr.bf16.mxu0 0
        %3331 = vmatpush1.bf16.msra.mxu0 0
        %3332 = vmatprep.subr.bf16.mxu0 0
        %3333 = vmatpush1.bf16.msra.mxu0 0
        %3334 = vmatprep.subr.bf16.mxu0 0
        %3335 = vmatpush1.bf16.msra.mxu0 0
        %3336 = vmatprep.subr.bf16.mxu0 0
        %3337 = vmatpush1.bf16.msra.mxu0 0
        %3338 = vmatprep.subr.bf16.mxu0 0
        %3339 = vmatpush1.bf16.msra.mxu0 0
        %3340 = vmatprep.subr.bf16.mxu0 0
        %3341 = vmatpush1.bf16.msra.mxu0 0
        %3342 = vmatprep.subr.bf16.mxu0 0
        %3343 = vmatpush1.bf16.msra.mxu0 0
        %3344 = vmatprep.mubr.bf16.mxu0 0
        %3345 = vmatmul.mubr.bf16.gmra.mrb[0].mxu0 %v3307
        %v3346 = vpop.f32.mrb[0].mxu0
        %v3347 = vadd.f32 0.0, %v3346
        %v3348 = vpop.f32.mrb[0].mxu0
        %v3349 = vpop.f32.mrb[0].mxu0
        %v3350 = vpop.f32.mrb[0].mxu0
        %3351 = vdwg.mxu0
        %v3352 = vpack.c.bf16 %v3347, %v3347
        %v3355 = vunpack.c.l.b16 %v2888
        %v3356 = vunpack.c.l.b16 %v2889
        %v3357 = vpack.c.b16 %v3356, %v3355
        %v3360 = vsel %vm697, %v3352, 0
        %3362 = vmatprep.subr.bf16.mxu0 0
        %3363 = vmatpush1.bf16.msra.mxu0 %v3357
        %3364 = vmatprep.subr.bf16.mxu0 0
        %3365 = vmatpush1.bf16.msra.mxu0 0
        %3366 = vmatprep.subr.bf16.mxu0 0
        %3367 = vmatpush1.bf16.msra.mxu0 0
        %3368 = vmatprep.subr.bf16.mxu0 0
        %3369 = vmatpush1.bf16.msra.mxu0 0
        %3370 = vmatprep.subr.bf16.mxu0 0
        %3371 = vmatpush1.bf16.msra.mxu0 0
        %3372 = vmatprep.subr.bf16.mxu0 0
        %3373 = vmatpush1.bf16.msra.mxu0 0
        %3374 = vmatprep.subr.bf16.mxu0 0
        %3375 = vmatpush1.bf16.msra.mxu0 0
        %3376 = vmatprep.subr.bf16.mxu0 0
        %3377 = vmatpush1.bf16.msra.mxu0 0
        %3378 = vmatprep.subr.bf16.mxu0 0
        %3379 = vmatpush1.bf16.msra.mxu0 0
        %3380 = vmatprep.subr.bf16.mxu0 0
        %3381 = vmatpush1.bf16.msra.mxu0 0
        %3382 = vmatprep.subr.bf16.mxu0 0
        %3383 = vmatpush1.bf16.msra.mxu0 0
        %3384 = vmatprep.subr.bf16.mxu0 0
        %3385 = vmatpush1.bf16.msra.mxu0 0
        %3386 = vmatprep.subr.bf16.mxu0 0
        %3387 = vmatpush1.bf16.msra.mxu0 0
        %3388 = vmatprep.subr.bf16.mxu0 0
        %3389 = vmatpush1.bf16.msra.mxu0 0
        %3390 = vmatprep.subr.bf16.mxu0 0
        %3391 = vmatpush1.bf16.msra.mxu0 0
        %3392 = vmatprep.subr.bf16.mxu0 0
        %3393 = vmatpush1.bf16.msra.mxu0 0
        %3394 = vmatprep.mubr.bf16.mxu0 0
        %3395 = vmatmul.mubr.bf16.gmra.mrb[0].mxu0 %v3360
        %v3396 = vpop.f32.mrb[0].mxu0
        %v3397 = vadd.f32 0.0, %v3396
        %v3398 = vpop.f32.mrb[0].mxu0
        %v3399 = vpop.f32.mrb[0].mxu0
        %v3400 = vpop.f32.mrb[0].mxu0
        %3401 = vdwg.mxu0
        %v3402 = vadd.f32 %v3239, %v3397
        %v3403 = vpack.c.bf16 %v2919, %v2918
        %3404 = vrot.lane.b32.xlu0 %v2928, 80
        %v3405 = vpop.permute.xlu0 %3404
        %v3407 = vsel %vm697, %v3405, 0
        %3409 = vmatprep.subr.bf16.mxu0 0
        %3410 = vmatpush1.bf16.msra.mxu0 %v3403
        %3411 = vmatprep.subr.bf16.mxu0 0
        %3412 = vmatpush1.bf16.msra.mxu0 0
        %3413 = vmatprep.subr.bf16.mxu0 0
        %3414 = vmatpush1.bf16.msra.mxu0 0
        %3415 = vmatprep.subr.bf16.mxu0 0
        %3416 = vmatpush1.bf16.msra.mxu0 0
        %3417 = vmatprep.subr.bf16.mxu0 0
        %3418 = vmatpush1.bf16.msra.mxu0 0
        %3419 = vmatprep.subr.bf16.mxu0 0
        %3420 = vmatpush1.bf16.msra.mxu0 0
        %3421 = vmatprep.subr.bf16.mxu0 0
        %3422 = vmatpush1.bf16.msra.mxu0 0
        %3423 = vmatprep.subr.bf16.mxu0 0
        %3424 = vmatpush1.bf16.msra.mxu0 0
        %3425 = vmatprep.subr.bf16.mxu0 0
        %3426 = vmatpush1.bf16.msra.mxu0 0
        %3427 = vmatprep.subr.bf16.mxu0 0
        %3428 = vmatpush1.bf16.msra.mxu0 0
        %3429 = vmatprep.subr.bf16.mxu0 0
        %3430 = vmatpush1.bf16.msra.mxu0 0
        %3431 = vmatprep.subr.bf16.mxu0 0
        %3432 = vmatpush1.bf16.msra.mxu0 0
        %3433 = vmatprep.subr.bf16.mxu0 0
        %3434 = vmatpush1.bf16.msra.mxu0 0
        %3435 = vmatprep.subr.bf16.mxu0 0
        %3436 = vmatpush1.bf16.msra.mxu0 0
        %3437 = vmatprep.subr.bf16.mxu0 0
        %3438 = vmatpush1.bf16.msra.mxu0 0
        %3439 = vmatprep.subr.bf16.mxu0 0
        %3440 = vmatpush1.bf16.msra.mxu0 0
        %3441 = vmatprep.mubr.bf16.mxu0 0
        %3442 = vmatmul.mubr.bf16.gmra.mrb[0].mxu0 %v3407
        %v3443 = vpop.f32.mrb[0].mxu0
        %v3444 = vadd.f32 0.0, %v3443
        %v3445 = vpop.f32.mrb[0].mxu0
        %v3446 = vpop.f32.mrb[0].mxu0
        %v3447 = vpop.f32.mrb[0].mxu0
        %3448 = vdwg.mxu0
        %v3449 = vmul.f32 %v3444, 0.125
        %v3450 = vadd.f32 %v3449, %v529
        %v3451 = vsel %vm743, %v3450, -inf
        %3452 = vmax.xlane.f32.xlu0 %v3451
        %v3453 = vpop.xlane.xlu0 %3452
        %v3454 = vsub.f32 %v3450, %v3453
        %v3455 = vmul.f32 %v3454, 1.442695
        %v3456 = vpow.pop %v3455
        %v3457 = vsel %vm743, %v3456, 0.0
        %3458 = vadd.xlane.f32.xlu0 %v3457
        %v3459 = vpop.xlane.xlu0 %3458
        %v3460 = vrcp.pop %v3459
        %v3461 = vmul.f32 %v3456, %v3460
        %v3462 = vpack.c.bf16 %v3461, %v3461
        %3463 = vrot.lane.b32.xlu0 %v2930, 80
        %v3464 = vpop.permute.xlu0 %3463
        %v3466 = vsel %vm743, %v3462, 0
        %v3469 = vsel %vm759, %v3464, 0
        %3471 = vmatprep.subr.bf16.mxu0 0
        %3472 = vmatpush1.bf16.msra.mxu0 %v3469
        %3473 = vmatprep.subr.bf16.mxu0 0
        %3474 = vmatpush1.bf16.msra.mxu0 0
        %3475 = vmatprep.subr.bf16.mxu0 0
        %3476 = vmatpush1.bf16.msra.mxu0 0
        %3477 = vmatprep.subr.bf16.mxu0 0
        %3478 = vmatpush1.bf16.msra.mxu0 0
        %3479 = vmatprep.subr.bf16.mxu0 0
        %3480 = vmatpush1.bf16.msra.mxu0 0
        %3481 = vmatprep.subr.bf16.mxu0 0
        %3482 = vmatpush1.bf16.msra.mxu0 0
        %3483 = vmatprep.subr.bf16.mxu0 0
        %3484 = vmatpush1.bf16.msra.mxu0 0
        %3485 = vmatprep.subr.bf16.mxu0 0
        %3486 = vmatpush1.bf16.msra.mxu0 0
        %3487 = vmatprep.subr.bf16.mxu0 0
        %3488 = vmatpush1.bf16.msra.mxu0 0
        %3489 = vmatprep.subr.bf16.mxu0 0
        %3490 = vmatpush1.bf16.msra.mxu0 0
        %3491 = vmatprep.subr.bf16.mxu0 0
        %3492 = vmatpush1.bf16.msra.mxu0 0
        %3493 = vmatprep.subr.bf16.mxu0 0
        %3494 = vmatpush1.bf16.msra.mxu0 0
        %3495 = vmatprep.subr.bf16.mxu0 0
        %3496 = vmatpush1.bf16.msra.mxu0 0
        %3497 = vmatprep.subr.bf16.mxu0 0
        %3498 = vmatpush1.bf16.msra.mxu0 0
        %3499 = vmatprep.subr.bf16.mxu0 0
        %3500 = vmatpush1.bf16.msra.mxu0 0
        %3501 = vmatprep.subr.bf16.mxu0 0
        %3502 = vmatpush1.bf16.msra.mxu0 0
        %3503 = vmatprep.mubr.bf16.mxu0 0
        %3504 = vmatmul.mubr.bf16.gmra.mrb[0].mxu0 %v3466
        %v3505 = vpop.f32.mrb[0].mxu0
        %v3506 = vadd.f32 0.0, %v3505
        %v3507 = vpop.f32.mrb[0].mxu0
        %v3508 = vpop.f32.mrb[0].mxu0
        %v3509 = vpop.f32.mrb[0].mxu0
        %3510 = vdwg.mxu0
        %v3511 = vpack.c.bf16 %v3506, %v3506
        %v3514 = vunpack.c.l.b16 %v2890
        %v3515 = vunpack.c.l.b16 %v2891
        %v3516 = vpack.c.b16 %v3515, %v3514
        %v3519 = vsel %vm697, %v3511, 0
        %3521 = vmatprep.subr.bf16.mxu0 0
        %3522 = vmatpush1.bf16.msra.mxu0 %v3516
        %3523 = vmatprep.subr.bf16.mxu0 0
        %3524 = vmatpush1.bf16.msra.mxu0 0
        %3525 = vmatprep.subr.bf16.mxu0 0
        %3526 = vmatpush1.bf16.msra.mxu0 0
        %3527 = vmatprep.subr.bf16.mxu0 0
        %3528 = vmatpush1.bf16.msra.mxu0 0
        %3529 = vmatprep.subr.bf16.mxu0 0
        %3530 = vmatpush1.bf16.msra.mxu0 0
        %3531 = vmatprep.subr.bf16.mxu0 0
        %3532 = vmatpush1.bf16.msra.mxu0 0
        %3533 = vmatprep.subr.bf16.mxu0 0
        %3534 = vmatpush1.bf16.msra.mxu0 0
        %3535 = vmatprep.subr.bf16.mxu0 0
        %3536 = vmatpush1.bf16.msra.mxu0 0
        %3537 = vmatprep.subr.bf16.mxu0 0
        %3538 = vmatpush1.bf16.msra.mxu0 0
        %3539 = vmatprep.subr.bf16.mxu0 0
        %3540 = vmatpush1.bf16.msra.mxu0 0
        %3541 = vmatprep.subr.bf16.mxu0 0
        %3542 = vmatpush1.bf16.msra.mxu0 0
        %3543 = vmatprep.subr.bf16.mxu0 0
        %3544 = vmatpush1.bf16.msra.mxu0 0
        %3545 = vmatprep.subr.bf16.mxu0 0
        %3546 = vmatpush1.bf16.msra.mxu0 0
        %3547 = vmatprep.subr.bf16.mxu0 0
        %3548 = vmatpush1.bf16.msra.mxu0 0
        %3549 = vmatprep.subr.bf16.mxu0 0
        %3550 = vmatpush1.bf16.msra.mxu0 0
        %3551 = vmatprep.subr.bf16.mxu0 0
        %3552 = vmatpush1.bf16.msra.mxu0 0
        %3553 = vmatprep.mubr.bf16.mxu0 0
        %3554 = vmatmul.mubr.bf16.gmra.mrb[0].mxu0 %v3519
        %v3555 = vpop.f32.mrb[0].mxu0
        %v3556 = vadd.f32 0.0, %v3555
        %v3557 = vpop.f32.mrb[0].mxu0
        %v3558 = vpop.f32.mrb[0].mxu0
        %v3559 = vpop.f32.mrb[0].mxu0
        %3560 = vdwg.mxu0
        %v3561 = vadd.f32 %v3402, %v3556
        %v3562 = vadd.f32 %v2761, %v3561
        %v3563 = vlaneseq
        %v3564 = vshrl.u32 %v3563, 7
        %v3565 = vsub.s32 4, %v3564
        %v3566 = vrot.slane %v2763, %v3565
        %v3567 = vadd.f32 %v3562, %v3566
        %v3568 = vsel %vm455, %v3567, 0.0
        %3569 = vadd.xlane.f32.xlu0 %v3568
        %v3570 = vpop.xlane.xlu0 %3569
        %v3571 = vmul.f32 %v3570, %v534
        %v3572 = vmul.f32 %v3567, %v3567
        %v3573 = vsel %vm455, %v3572, 0.0
        %3574 = vadd.xlane.f32.xlu0 %v3573
        %v3575 = vpop.xlane.xlu0 %3574
        %v3576 = vmul.f32 %v3575, %v534
        %v3577 = vmul.f32 %v3571, %v3571
        %v3578 = vsub.f32 %v3576, %v3577
        %v3579 = vsub.f32 %v3567, %v3571
        %v3580 = vadd.f32 %v3578, 1e-05
        %v3581 = vrsqrt.pop %v3580
        %v3582 = vmul.f32 %v3579, %v3581
        %v3583 = vlaneseq
        %v3584 = vshrl.u32 %v3583, 7
        %v3585 = vsub.s32 2, %v3584
        %v3586 = vrot.slane %v2763, %v3585
        %v3587 = vmul.f32 %v3582, %v3586
        %v3588 = vlaneseq
        %v3589 = vshrl.u32 %v3588, 7
        %v3590 = vsub.s32 3, %v3589
        %v3591 = vrot.slane %v2763, %v3590
        %v3592 = vadd.f32 %v3587, %v3591
        %v3593 = vpack.c.bf16 %v3592, %v3592
        %s3594 = scalar_lea.vmem %s6, 128
        %v3595 = vld [vmem:[%s3594] sm:$0xff]
        %v3596 = vld [vmem:[%s3594 + $0x8] sm:$0xff]
        %v3597 = vld [vmem:[%s3594 + $0x10] sm:$0xff]
        %v3598 = vld [vmem:[%s3594 + $0x18] sm:$0xff]
        %v3599 = vld [vmem:[%s3594 + $0x20] sm:$0xff]
        %v3600 = vld [vmem:[%s3594 + $0x28] sm:$0xff]
        %v3601 = vld [vmem:[%s3594 + $0x30] sm:$0xff]
        %v3602 = vld [vmem:[%s3594 + $0x38] sm:$0xff]
        %s3603 = scalar_lea.vmem %s9, 4
        %v3604 = vld [vmem:[%s3603] sm:$0x3]
        %v3606 = vlaneseq
        %v3607 = vshrl.u32 %v3606, 7
        %v3608 = vsub.s32 0, %v3607
        %v3609 = vrot.slane %v3604, %v3608
        %v3610 = vlaneseq
        %v3611 = vshrl.u32 %v3610, 7
        %v3612 = vsub.s32 1, %v3611
        %v3613 = vrot.slane %v3604, %v3612
        %v3624 = vunpack.c.l.b16 %v3595
        %v3625 = vunpack.c.h.b16 %v3595
        %v3626 = vunpack.c.l.b16 %v3596
        %v3627 = vunpack.c.h.b16 %v3596
        %v3628 = vunpack.c.l.b16 %v3597
        %v3629 = vunpack.c.h.b16 %v3597
        %v3630 = vunpack.c.l.b16 %v3598
        %v3631 = vunpack.c.h.b16 %v3598
        %v3632 = vunpack.c.l.b16 %v3599
        %v3633 = vunpack.c.h.b16 %v3599
        %v3634 = vunpack.c.l.b16 %v3600
        %v3635 = vunpack.c.h.b16 %v3600
        %v3636 = vunpack.c.l.b16 %v3601
        %v3637 = vunpack.c.h.b16 %v3601
        %v3638 = vunpack.c.l.b16 %v3602
        %v3639 = vunpack.c.h.b16 %v3602
        %v3640 = vpack.c.b16 %v3626, %v3624
        %v3641 = vpack.c.b16 %v3627, %v3625
        %v3642 = vpack.c.b16 %v3630, %v3628
        %v3643 = vpack.c.b16 %v3631, %v3629
        %v3644 = vpack.c.b16 %v3634, %v3632
        %v3645 = vpack.c.b16 %v3635, %v3633
        %v3646 = vpack.c.b16 %v3638, %v3636
        %v3647 = vpack.c.b16 %v3639, %v3637
        %v3657 = vsel %vm455, %v3593, 0
        %3659 = vmatprep.subr.bf16.mxu0 %v3641
        %3660 = vmatpush1.bf16.msra.mxu0 %v3640
        %3661 = vmatprep.subr.bf16.mxu0 %v3643
        %3662 = vmatpush1.bf16.msra.mxu0 %v3642
        %3663 = vmatprep.subr.bf16.mxu0 %v3645
        %3664 = vmatpush1.bf16.msra.mxu0 %v3644
        %3665 = vmatprep.subr.bf16.mxu0 %v3647
        %3666 = vmatpush1.bf16.msra.mxu0 %v3646
        %3667 = vmatprep.subr.bf16.mxu0 0
        %3668 = vmatpush1.bf16.msra.mxu0 0
        %3669 = vmatprep.subr.bf16.mxu0 0
        %3670 = vmatpush1.bf16.msra.mxu0 0
        %3671 = vmatprep.subr.bf16.mxu0 0
        %3672 = vmatpush1.bf16.msra.mxu0 0
        %3673 = vmatprep.subr.bf16.mxu0 0
        %3674 = vmatpush1.bf16.msra.mxu0 0
        %3675 = vmatprep.subr.bf16.mxu0 0
        %3676 = vmatpush1.bf16.msra.mxu0 0
        %3677 = vmatprep.subr.bf16.mxu0 0
        %3678 = vmatpush1.bf16.msra.mxu0 0
        %3679 = vmatprep.subr.bf16.mxu0 0
        %3680 = vmatpush1.bf16.msra.mxu0 0
        %3681 = vmatprep.subr.bf16.mxu0 0
        %3682 = vmatpush1.bf16.msra.mxu0 0
        %3683 = vmatprep.subr.bf16.mxu0 0
        %3684 = vmatpush1.bf16.msra.mxu0 0
        %3685 = vmatprep.subr.bf16.mxu0 0
        %3686 = vmatpush1.bf16.msra.mxu0 0
        %3687 = vmatprep.subr.bf16.mxu0 0
        %3688 = vmatpush1.bf16.msra.mxu0 0
        %3689 = vmatprep.subr.bf16.mxu0 0
        %3690 = vmatpush1.bf16.msra.mxu0 0
        %3691 = vmatprep.mubr.bf16.mxu0 0
        %3692 = vmatmul.mubr.bf16.gmra.mrb[0].mxu0 %v3657
        %v3693 = vpop.f32.mrb[0].mxu0
        %v3694 = vadd.f32 %v3609, %v3693
        %v3695 = vpop.f32.mrb[0].mxu0
        %v3696 = vadd.f32 %v3613, %v3695
        %v3697 = vpop.f32.mrb[0].mxu0
        %v3698 = vpop.f32.mrb[0].mxu0
        %3699 = vdwg.mxu0
        %v3700 = vmax.f32 %v3694, 0.0
        %v3701 = vmax.f32 %v3696, 0.0
        %v3702 = vpack.c.bf16 %v3700, %v3700
        %v3703 = vpack.c.bf16 %v3701, %v3701
        %s3704 = scalar_lea.vmem %s7, 256
        %v3705 = vld [vmem:[%s3704] sm:$0xf]
        %v3706 = vld [vmem:[%s3704 + $0x4] sm:$0xf]
        %v3707 = vld [vmem:[%s3704 + $0x8] sm:$0xf]
        %v3708 = vld [vmem:[%s3704 + $0xc] sm:$0xf]
        %v3709 = vld [vmem:[%s3704 + $0x10] sm:$0xf]
        %v3710 = vld [vmem:[%s3704 + $0x14] sm:$0xf]
        %v3711 = vld [vmem:[%s3704 + $0x18] sm:$0xf]
        %v3712 = vld [vmem:[%s3704 + $0x1c] sm:$0xf]
        %v3713 = vld [vmem:[%s3704 + $0x20] sm:$0xf]
        %v3714 = vld [vmem:[%s3704 + $0x24] sm:$0xf]
        %v3715 = vld [vmem:[%s3704 + $0x28] sm:$0xf]
        %v3716 = vld [vmem:[%s3704 + $0x2c] sm:$0xf]
        %v3717 = vld [vmem:[%s3704 + $0x30] sm:$0xf]
        %v3718 = vld [vmem:[%s3704 + $0x34] sm:$0xf]
        %v3719 = vld [vmem:[%s3704 + $0x38] sm:$0xf]
        %v3720 = vld [vmem:[%s3704 + $0x3c] sm:$0xf]
        %v3721 = vld [vmem:[%s3704 + $0x40] sm:$0xf]
        %v3722 = vld [vmem:[%s3704 + $0x44] sm:$0xf]
        %v3723 = vld [vmem:[%s3704 + $0x48] sm:$0xf]
        %v3724 = vld [vmem:[%s3704 + $0x4c] sm:$0xf]
        %v3725 = vld [vmem:[%s3704 + $0x50] sm:$0xf]
        %v3726 = vld [vmem:[%s3704 + $0x54] sm:$0xf]
        %v3727 = vld [vmem:[%s3704 + $0x58] sm:$0xf]
        %v3728 = vld [vmem:[%s3704 + $0x5c] sm:$0xf]
        %v3729 = vld [vmem:[%s3704 + $0x60] sm:$0xf]
        %v3730 = vld [vmem:[%s3704 + $0x64] sm:$0xf]
        %v3731 = vld [vmem:[%s3704 + $0x68] sm:$0xf]
        %v3732 = vld [vmem:[%s3704 + $0x6c] sm:$0xf]
        %v3733 = vld [vmem:[%s3704 + $0x70] sm:$0xf]
        %v3734 = vld [vmem:[%s3704 + $0x74] sm:$0xf]
        %v3735 = vld [vmem:[%s3704 + $0x78] sm:$0xf]
        %v3736 = vld [vmem:[%s3704 + $0x7c] sm:$0xf]
        %v3769 = vunpack.c.l.b16 %v3705
        %v3770 = vunpack.c.l.b16 %v3706
        %v3771 = vunpack.c.l.b16 %v3707
        %v3772 = vunpack.c.l.b16 %v3708
        %v3773 = vunpack.c.l.b16 %v3709
        %v3774 = vunpack.c.l.b16 %v3710
        %v3775 = vunpack.c.l.b16 %v3711
        %v3776 = vunpack.c.l.b16 %v3712
        %v3777 = vunpack.c.l.b16 %v3713
        %v3778 = vunpack.c.l.b16 %v3714
        %v3779 = vunpack.c.l.b16 %v3715
        %v3780 = vunpack.c.l.b16 %v3716
        %v3781 = vunpack.c.l.b16 %v3717
        %v3782 = vunpack.c.l.b16 %v3718
        %v3783 = vunpack.c.l.b16 %v3719
        %v3784 = vunpack.c.l.b16 %v3720
        %v3785 = vunpack.c.l.b16 %v3721
        %v3786 = vunpack.c.l.b16 %v3722
        %v3787 = vunpack.c.l.b16 %v3723
        %v3788 = vunpack.c.l.b16 %v3724
        %v3789 = vunpack.c.l.b16 %v3725
        %v3790 = vunpack.c.l.b16 %v3726
        %v3791 = vunpack.c.l.b16 %v3727
        %v3792 = vunpack.c.l.b16 %v3728
        %v3793 = vunpack.c.l.b16 %v3729
        %v3794 = vunpack.c.l.b16 %v3730
        %v3795 = vunpack.c.l.b16 %v3731
        %v3796 = vunpack.c.l.b16 %v3732
        %v3797 = vunpack.c.l.b16 %v3733
        %v3798 = vunpack.c.l.b16 %v3734
        %v3799 = vunpack.c.l.b16 %v3735
        %v3800 = vunpack.c.l.b16 %v3736
        %v3801 = vpack.c.b16 %v3770, %v3769
        %v3802 = vpack.c.b16 %v3772, %v3771
        %v3803 = vpack.c.b16 %v3774, %v3773
        %v3804 = vpack.c.b16 %v3776, %v3775
        %v3805 = vpack.c.b16 %v3778, %v3777
        %v3806 = vpack.c.b16 %v3780, %v3779
        %v3807 = vpack.c.b16 %v3782, %v3781
        %v3808 = vpack.c.b16 %v3784, %v3783
        %v3809 = vpack.c.b16 %v3786, %v3785
        %v3810 = vpack.c.b16 %v3788, %v3787
        %v3811 = vpack.c.b16 %v3790, %v3789
        %v3812 = vpack.c.b16 %v3792, %v3791
        %v3813 = vpack.c.b16 %v3794, %v3793
        %v3814 = vpack.c.b16 %v3796, %v3795
        %v3815 = vpack.c.b16 %v3798, %v3797
        %v3816 = vpack.c.b16 %v3800, %v3799
        %3833 = vmatprep.subr.bf16.mxu0 0
        %3834 = vmatpush1.bf16.msra.mxu0 %v3801
        %3835 = vmatprep.subr.bf16.mxu0 0
        %3836 = vmatpush1.bf16.msra.mxu0 %v3802
        %3837 = vmatprep.subr.bf16.mxu0 0
        %3838 = vmatpush1.bf16.msra.mxu0 %v3803
        %3839 = vmatprep.subr.bf16.mxu0 0
        %3840 = vmatpush1.bf16.msra.mxu0 %v3804
        %3841 = vmatprep.subr.bf16.mxu0 0
        %3842 = vmatpush1.bf16.msra.mxu0 %v3805
        %3843 = vmatprep.subr.bf16.mxu0 0
        %3844 = vmatpush1.bf16.msra.mxu0 %v3806
        %3845 = vmatprep.subr.bf16.mxu0 0
        %3846 = vmatpush1.bf16.msra.mxu0 %v3807
        %3847 = vmatprep.subr.bf16.mxu0 0
        %3848 = vmatpush1.bf16.msra.mxu0 %v3808
        %3849 = vmatprep.subr.bf16.mxu0 0
        %3850 = vmatpush1.bf16.msra.mxu0 %v3809
        %3851 = vmatprep.subr.bf16.mxu0 0
        %3852 = vmatpush1.bf16.msra.mxu0 %v3810
        %3853 = vmatprep.subr.bf16.mxu0 0
        %3854 = vmatpush1.bf16.msra.mxu0 %v3811
        %3855 = vmatprep.subr.bf16.mxu0 0
        %3856 = vmatpush1.bf16.msra.mxu0 %v3812
        %3857 = vmatprep.subr.bf16.mxu0 0
        %3858 = vmatpush1.bf16.msra.mxu0 %v3813
        %3859 = vmatprep.subr.bf16.mxu0 0
        %3860 = vmatpush1.bf16.msra.mxu0 %v3814
        %3861 = vmatprep.subr.bf16.mxu0 0
        %3862 = vmatpush1.bf16.msra.mxu0 %v3815
        %3863 = vmatprep.subr.bf16.mxu0 0
        %3864 = vmatpush1.bf16.msra.mxu0 %v3816
        %3865 = vmatprep.mubr.bf16.mxu0 %v3703
        %3866 = vmatmul.mubr.bf16.gmra.mrb[0].mxu0 %v3702
        %v3867 = vpop.f32.mrb[0].mxu0
        %v3868 = vadd.f32 0.0, %v3867
        %v3869 = vpop.f32.mrb[0].mxu0
        %v3870 = vpop.f32.mrb[0].mxu0
        %v3871 = vpop.f32.mrb[0].mxu0
        %3872 = vdwg.mxu0
        %v3873 = vadd.f32 %v3567, %v3868
        %v3874 = vlaneseq
        %v3875 = vshrl.u32 %v3874, 7
        %v3876 = vsub.s32 5, %v3875
        %v3877 = vrot.slane %v2763, %v3876
        %v3878 = vadd.f32 %v3873, %v3877
        %s3879 = scalar_lea.vmem %s8, 24
        %v3880 = vld [vmem:[%s3879] sm:$0xff]
        %v3881 = vsel %vm455, %v3878, 0.0
        %3882 = vadd.xlane.f32.xlu0 %v3881
        %v3883 = vpop.xlane.xlu0 %3882
        %v3884 = vmul.f32 %v3883, %v534
        %v3885 = vmul.f32 %v3878, %v3878
        %v3886 = vsel %vm455, %v3885, 0.0
        %3887 = vadd.xlane.f32.xlu0 %v3886
        %v3888 = vpop.xlane.xlu0 %3887
        %v3889 = vmul.f32 %v3888, %v534
        %v3890 = vmul.f32 %v3884, %v3884
        %v3891 = vsub.f32 %v3889, %v3890
        %v3892 = vsub.f32 %v3878, %v3884
        %v3893 = vadd.f32 %v3891, 1e-05
        %v3894 = vrsqrt.pop %v3893
        %v3895 = vmul.f32 %v3892, %v3894
        %v3896 = vlaneseq
        %v3897 = vshrl.u32 %v3896, 7
        %v3898 = vsub.s32 0, %v3897
        %v3899 = vrot.slane %v3880, %v3898
        %v3900 = vmul.f32 %v3895, %v3899
        %v3901 = vlaneseq
        %v3902 = vshrl.u32 %v3901, 7
        %v3903 = vsub.s32 1, %v3902
        %v3904 = vrot.slane %v3880, %v3903
        %v3905 = vadd.f32 %v3900, %v3904
        %v3906 = vpack.c.bf16 %v3905, %v3905
        %s3907 = scalar_lea.vmem %s4, 192
        %v3908 = vld [vmem:[%s3907] sm:$0xff]
        %v3909 = vld [vmem:[%s3907 + $0x8] sm:$0xff]
        %v3910 = vld [vmem:[%s3907 + $0x10] sm:$0xff]
        %v3911 = vld [vmem:[%s3907 + $0x18] sm:$0xff]
        %v3912 = vld [vmem:[%s3907 + $0x20] sm:$0xff]
        %v3913 = vld [vmem:[%s3907 + $0x28] sm:$0xff]
        %v3914 = vld [vmem:[%s3907 + $0x30] sm:$0xff]
        %v3915 = vld [vmem:[%s3907 + $0x38] sm:$0xff]
        %v3924 = vunpack.c.l.b16 %v3908
        %v3925 = vunpack.c.h.b16 %v3908
        %v3926 = vunpack.c.l.b16 %v3909
        %v3927 = vunpack.c.h.b16 %v3909
        %v3928 = vunpack.c.l.b16 %v3910
        %v3929 = vunpack.c.h.b16 %v3910
        %v3930 = vunpack.c.l.b16 %v3911
        %v3931 = vunpack.c.h.b16 %v3911
        %v3932 = vunpack.c.l.b16 %v3912
        %v3933 = vunpack.c.h.b16 %v3912
        %v3934 = vunpack.c.l.b16 %v3913
        %v3935 = vunpack.c.h.b16 %v3913
        %v3936 = vunpack.c.l.b16 %v3914
        %v3937 = vunpack.c.h.b16 %v3914
        %v3938 = vunpack.c.l.b16 %v3915
        %v3939 = vunpack.c.h.b16 %v3915
        %v3940 = vpack.c.b16 %v3926, %v3924
        %v3941 = vpack.c.b16 %v3927, %v3925
        %v3942 = vpack.c.b16 %v3930, %v3928
        %v3943 = vpack.c.b16 %v3931, %v3929
        %v3944 = vpack.c.b16 %v3934, %v3932
        %v3945 = vpack.c.b16 %v3935, %v3933
        %v3946 = vpack.c.b16 %v3938, %v3936
        %v3947 = vpack.c.b16 %v3939, %v3937
        %v3957 = vsel %vm455, %v3906, 0
        %3959 = vmatprep.subr.bf16.mxu0 %v3941
        %3960 = vmatpush1.bf16.msra.mxu0 %v3940
        %3961 = vmatprep.subr.bf16.mxu0 %v3943
        %3962 = vmatpush1.bf16.msra.mxu0 %v3942
        %3963 = vmatprep.subr.bf16.mxu0 %v3945
        %3964 = vmatpush1.bf16.msra.mxu0 %v3944
        %3965 = vmatprep.subr.bf16.mxu0 %v3947
        %3966 = vmatpush1.bf16.msra.mxu0 %v3946
        %3967 = vmatprep.subr.bf16.mxu0 0
        %3968 = vmatpush1.bf16.msra.mxu0 0
        %3969 = vmatprep.subr.bf16.mxu0 0
        %3970 = vmatpush1.bf16.msra.mxu0 0
        %3971 = vmatprep.subr.bf16.mxu0 0
        %3972 = vmatpush1.bf16.msra.mxu0 0
        %3973 = vmatprep.subr.bf16.mxu0 0
        %3974 = vmatpush1.bf16.msra.mxu0 0
        %3975 = vmatprep.subr.bf16.mxu0 0
        %3976 = vmatpush1.bf16.msra.mxu0 0
        %3977 = vmatprep.subr.bf16.mxu0 0
        %3978 = vmatpush1.bf16.msra.mxu0 0
        %3979 = vmatprep.subr.bf16.mxu0 0
        %3980 = vmatpush1.bf16.msra.mxu0 0
        %3981 = vmatprep.subr.bf16.mxu0 0
        %3982 = vmatpush1.bf16.msra.mxu0 0
        %3983 = vmatprep.subr.bf16.mxu0 0
        %3984 = vmatpush1.bf16.msra.mxu0 0
        %3985 = vmatprep.subr.bf16.mxu0 0
        %3986 = vmatpush1.bf16.msra.mxu0 0
        %3987 = vmatprep.subr.bf16.mxu0 0
        %3988 = vmatpush1.bf16.msra.mxu0 0
        %3989 = vmatprep.subr.bf16.mxu0 0
        %3990 = vmatpush1.bf16.msra.mxu0 0
        %3991 = vmatprep.mubr.bf16.mxu0 0
        %3992 = vmatmul.mubr.bf16.gmra.mrb[0].mxu0 %v3957
        %v3993 = vpop.f32.mrb[0].mxu0
        %v3994 = vadd.f32 0.0, %v3993
        %v3995 = vpop.f32.mrb[0].mxu0
        %v3996 = vadd.f32 0.0, %v3995
        %v3997 = vpop.f32.mrb[0].mxu0
        %v3998 = vpop.f32.mrb[0].mxu0
        %3999 = vdwg.mxu0
        %s4000 = scalar_lea.vmem %s5, 96
        %v4001 = vld [vmem:[%s4000] sm:$0xf]
        %v4002 = vld [vmem:[%s4000 + $0x4] sm:$0xf]
        %v4003 = vld [vmem:[%s4000 + $0x8] sm:$0xf]
        %v4004 = vld [vmem:[%s4000 + $0xc] sm:$0xf]
        %v4005 = vld [vmem:[%s4000 + $0x10] sm:$0xf]
        %v4006 = vld [vmem:[%s4000 + $0x14] sm:$0xf]
        %v4007 = vld [vmem:[%s4000 + $0x18] sm:$0xf]
        %v4008 = vld [vmem:[%s4000 + $0x1c] sm:$0xf]
        %4010 = vrot.lane.b32.xlu0 %v3994, 64
        %v4011 = vpop.permute.xlu0 %4010
        %4013 = vxpose.xlu0.b32.start [1/16] %v4011, 128
        %4014 = vxpose.xlu0.b32.cont [2/16] 0.0, 128
        %4015 = vxpose.xlu0.b32.cont [3/16] 0.0, 128
        %4016 = vxpose.xlu0.b32.cont [4/16] 0.0, 128
        %4017 = vxpose.xlu0.b32.cont [5/16] 0.0, 128
        %4018 = vxpose.xlu0.b32.cont [6/16] 0.0, 128
        %4019 = vxpose.xlu0.b32.cont [7/16] 0.0, 128
        %4020 = vxpose.xlu0.b32.cont [8/16] 0.0, 128
        %4021 = vxpose.xlu0.b32.cont [9/16] 0.0, 128
        %4022 = vxpose.xlu0.b32.cont [10/16] 0.0, 128
        %4023 = vxpose.xlu0.b32.cont [11/16] 0.0, 128
        %4024 = vxpose.xlu0.b32.cont [12/16] 0.0, 128
        %4025 = vxpose.xlu0.b32.cont [13/16] 0.0, 128
        %4026 = vxpose.xlu0.b32.cont [14/16] 0.0, 128
        %4027 = vxpose.xlu0.b32.cont [15/16] 0.0, 128
        %4028 = vxpose.xlu0.b32.end [16/16] 0.0, 128
        %v4029 = vpop.trf.xlu0
        %v4030 = vpop.trf.xlu0
        %v4031 = vpop.trf.xlu0
        %v4032 = vpop.trf.xlu0
        %v4033 = vpop.trf.xlu0
        %v4034 = vpop.trf.xlu0
        %v4035 = vpop.trf.xlu0
        %v4036 = vpop.trf.xlu0
        %v4037 = vpop.trf.xlu0
        %v4038 = vpop.trf.xlu0
        %v4039 = vpop.trf.xlu0
        %v4040 = vpop.trf.xlu0
        %v4041 = vpop.trf.xlu0
        %v4042 = vpop.trf.xlu0
        %v4043 = vpop.trf.xlu0
        %v4044 = vpop.trf.xlu0
        %v4045 = vpack.c.bf16 %v3994, %v3994
        %v4046 = vpack.c.bf16 %v4030, %v4029
        %v4047 = vpack.c.bf16 %v3996, %v3996
        %v4049 = vsel %vm697, %v4045, 0
        %4051 = vmatprep.subr.bf16.mxu0 0
        %4052 = vmatpush1.bf16.msra.mxu0 %v4046
        %4053 = vmatprep.subr.bf16.mxu0 0
        %4054 = vmatpush1.bf16.msra.mxu0 0
        %4055 = vmatprep.subr.bf16.mxu0 0
        %4056 = vmatpush1.bf16.msra.mxu0 0
        %4057 = vmatprep.subr.bf16.mxu0 0
        %4058 = vmatpush1.bf16.msra.mxu0 0
        %4059 = vmatprep.subr.bf16.mxu0 0
        %4060 = vmatpush1.bf16.msra.mxu0 0
        %4061 = vmatprep.subr.bf16.mxu0 0
        %4062 = vmatpush1.bf16.msra.mxu0 0
        %4063 = vmatprep.subr.bf16.mxu0 0
        %4064 = vmatpush1.bf16.msra.mxu0 0
        %4065 = vmatprep.subr.bf16.mxu0 0
        %4066 = vmatpush1.bf16.msra.mxu0 0
        %4067 = vmatprep.subr.bf16.mxu0 0
        %4068 = vmatpush1.bf16.msra.mxu0 0
        %4069 = vmatprep.subr.bf16.mxu0 0
        %4070 = vmatpush1.bf16.msra.mxu0 0
        %4071 = vmatprep.subr.bf16.mxu0 0
        %4072 = vmatpush1.bf16.msra.mxu0 0
        %4073 = vmatprep.subr.bf16.mxu0 0
        %4074 = vmatpush1.bf16.msra.mxu0 0
        %4075 = vmatprep.subr.bf16.mxu0 0
        %4076 = vmatpush1.bf16.msra.mxu0 0
        %4077 = vmatprep.subr.bf16.mxu0 0
        %4078 = vmatpush1.bf16.msra.mxu0 0
        %4079 = vmatprep.subr.bf16.mxu0 0
        %4080 = vmatpush1.bf16.msra.mxu0 0
        %4081 = vmatprep.subr.bf16.mxu0 0
        %4082 = vmatpush1.bf16.msra.mxu0 0
        %4083 = vmatprep.mubr.bf16.mxu0 0
        %4084 = vmatmul.mubr.bf16.gmra.mrb[0].mxu0 %v4049
        %v4085 = vpop.f32.mrb[0].mxu0
        %v4086 = vadd.f32 0.0, %v4085
        %v4087 = vpop.f32.mrb[0].mxu0
        %v4088 = vpop.f32.mrb[0].mxu0
        %v4089 = vpop.f32.mrb[0].mxu0
        %4090 = vdwg.mxu0
        %v4091 = vmul.f32 %v4086, 0.125
        %v4092 = vadd.f32 %v4091, %v529
        %v4093 = vsel %vm743, %v4092, -inf
        %4094 = vmax.xlane.f32.xlu0 %v4093
        %v4095 = vpop.xlane.xlu0 %4094
        %v4096 = vsub.f32 %v4092, %v4095
        %v4097 = vmul.f32 %v4096, 1.442695
        %v4098 = vpow.pop %v4097
        %v4099 = vsel %vm743, %v4098, 0.0
        %4100 = vadd.xlane.f32.xlu0 %v4099
        %v4101 = vpop.xlane.xlu0 %4100
        %v4102 = vrcp.pop %v4101
        %v4103 = vmul.f32 %v4098, %v4102
        %v4104 = vpack.c.bf16 %v4103, %v4103
        %v4106 = vsel %vm743, %v4104, 0
        %v4109 = vsel %vm759, %v4047, 0
        %4111 = vmatprep.subr.bf16.mxu0 0
        %4112 = vmatpush1.bf16.msra.mxu0 %v4109
        %4113 = vmatprep.subr.bf16.mxu0 0
        %4114 = vmatpush1.bf16.msra.mxu0 0
        %4115 = vmatprep.subr.bf16.mxu0 0
        %4116 = vmatpush1.bf16.msra.mxu0 0
        %4117 = vmatprep.subr.bf16.mxu0 0
        %4118 = vmatpush1.bf16.msra.mxu0 0
        %4119 = vmatprep.subr.bf16.mxu0 0
        %4120 = vmatpush1.bf16.msra.mxu0 0
        %4121 = vmatprep.subr.bf16.mxu0 0
        %4122 = vmatpush1.bf16.msra.mxu0 0
        %4123 = vmatprep.subr.bf16.mxu0 0
        %4124 = vmatpush1.bf16.msra.mxu0 0
        %4125 = vmatprep.subr.bf16.mxu0 0
        %4126 = vmatpush1.bf16.msra.mxu0 0
        %4127 = vmatprep.subr.bf16.mxu0 0
        %4128 = vmatpush1.bf16.msra.mxu0 0
        %4129 = vmatprep.subr.bf16.mxu0 0
        %4130 = vmatpush1.bf16.msra.mxu0 0
        %4131 = vmatprep.subr.bf16.mxu0 0
        %4132 = vmatpush1.bf16.msra.mxu0 0
        %4133 = vmatprep.subr.bf16.mxu0 0
        %4134 = vmatpush1.bf16.msra.mxu0 0
        %4135 = vmatprep.subr.bf16.mxu0 0
        %4136 = vmatpush1.bf16.msra.mxu0 0
        %4137 = vmatprep.subr.bf16.mxu0 0
        %4138 = vmatpush1.bf16.msra.mxu0 0
        %4139 = vmatprep.subr.bf16.mxu0 0
        %4140 = vmatpush1.bf16.msra.mxu0 0
        %4141 = vmatprep.subr.bf16.mxu0 0
        %4142 = vmatpush1.bf16.msra.mxu0 0
        %4143 = vmatprep.mubr.bf16.mxu0 0
        %4144 = vmatmul.mubr.bf16.gmra.mrb[0].mxu0 %v4106
        %v4145 = vpop.f32.mrb[0].mxu0
        %v4146 = vadd.f32 0.0, %v4145
        %v4147 = vpop.f32.mrb[0].mxu0
        %v4148 = vpop.f32.mrb[0].mxu0
        %v4149 = vpop.f32.mrb[0].mxu0
        %4150 = vdwg.mxu0
        %v4151 = vpack.c.bf16 %v4146, %v4146
        %v4152 = vpack.c.bf16 %v4032, %v4031
        %4154 = vrot.lane.b32.xlu0 %v4045, 112
        %v4155 = vpop.permute.xlu0 %4154
        %v4157 = vsel %vm697, %v4155, 0
        %4159 = vmatprep.subr.bf16.mxu0 0
        %4160 = vmatpush1.bf16.msra.mxu0 %v4152
        %4161 = vmatprep.subr.bf16.mxu0 0
        %4162 = vmatpush1.bf16.msra.mxu0 0
        %4163 = vmatprep.subr.bf16.mxu0 0
        %4164 = vmatpush1.bf16.msra.mxu0 0
        %4165 = vmatprep.subr.bf16.mxu0 0
        %4166 = vmatpush1.bf16.msra.mxu0 0
        %4167 = vmatprep.subr.bf16.mxu0 0
        %4168 = vmatpush1.bf16.msra.mxu0 0
        %4169 = vmatprep.subr.bf16.mxu0 0
        %4170 = vmatpush1.bf16.msra.mxu0 0
        %4171 = vmatprep.subr.bf16.mxu0 0
        %4172 = vmatpush1.bf16.msra.mxu0 0
        %4173 = vmatprep.subr.bf16.mxu0 0
        %4174 = vmatpush1.bf16.msra.mxu0 0
        %4175 = vmatprep.subr.bf16.mxu0 0
        %4176 = vmatpush1.bf16.msra.mxu0 0
        %4177 = vmatprep.subr.bf16.mxu0 0
        %4178 = vmatpush1.bf16.msra.mxu0 0
        %4179 = vmatprep.subr.bf16.mxu0 0
        %4180 = vmatpush1.bf16.msra.mxu0 0
        %4181 = vmatprep.subr.bf16.mxu0 0
        %4182 = vmatpush1.bf16.msra.mxu0 0
        %4183 = vmatprep.subr.bf16.mxu0 0
        %4184 = vmatpush1.bf16.msra.mxu0 0
        %4185 = vmatprep.subr.bf16.mxu0 0
        %4186 = vmatpush1.bf16.msra.mxu0 0
        %4187 = vmatprep.subr.bf16.mxu0 0
        %4188 = vmatpush1.bf16.msra.mxu0 0
        %4189 = vmatprep.subr.bf16.mxu0 0
        %4190 = vmatpush1.bf16.msra.mxu0 0
        %4191 = vmatprep.mubr.bf16.mxu0 0
        %4192 = vmatmul.mubr.bf16.gmra.mrb[0].mxu0 %v4157
        %v4193 = vpop.f32.mrb[0].mxu0
        %v4194 = vadd.f32 0.0, %v4193
        %v4195 = vpop.f32.mrb[0].mxu0
        %v4196 = vpop.f32.mrb[0].mxu0
        %v4197 = vpop.f32.mrb[0].mxu0
        %4198 = vdwg.mxu0
        %v4199 = vmul.f32 %v4194, 0.125
        %v4200 = vadd.f32 %v4199, %v529
        %v4201 = vsel %vm743, %v4200, -inf
        %4202 = vmax.xlane.f32.xlu0 %v4201
        %v4203 = vpop.xlane.xlu0 %4202
        %v4204 = vsub.f32 %v4200, %v4203
        %v4205 = vmul.f32 %v4204, 1.442695
        %v4206 = vpow.pop %v4205
        %v4207 = vsel %vm743, %v4206, 0.0
        %4208 = vadd.xlane.f32.xlu0 %v4207
        %v4209 = vpop.xlane.xlu0 %4208
        %v4210 = vrcp.pop %v4209
        %v4211 = vmul.f32 %v4206, %v4210
        %v4212 = vpack.c.bf16 %v4211, %v4211
        %4214 = vrot.lane.b32.xlu0 %v4047, 112
        %v4215 = vpop.permute.xlu0 %4214
        %v4217 = vsel %vm743, %v4212, 0
        %v4220 = vsel %vm759, %v4215, 0
        %4222 = vmatprep.subr.bf16.mxu0 0
        %4223 = vmatpush1.bf16.msra.mxu0 %v4220
        %4224 = vmatprep.subr.bf16.mxu0 0
        %4225 = vmatpush1.bf16.msra.mxu0 0
        %4226 = vmatprep.subr.bf16.mxu0 0
        %4227 = vmatpush1.bf16.msra.mxu0 0
        %4228 = vmatprep.subr.bf16.mxu0 0
        %4229 = vmatpush1.bf16.msra.mxu0 0
        %4230 = vmatprep.subr.bf16.mxu0 0
        %4231 = vmatpush1.bf16.msra.mxu0 0
        %4232 = vmatprep.subr.bf16.mxu0 0
        %4233 = vmatpush1.bf16.msra.mxu0 0
        %4234 = vmatprep.subr.bf16.mxu0 0
        %4235 = vmatpush1.bf16.msra.mxu0 0
        %4236 = vmatprep.subr.bf16.mxu0 0
        %4237 = vmatpush1.bf16.msra.mxu0 0
        %4238 = vmatprep.subr.bf16.mxu0 0
        %4239 = vmatpush1.bf16.msra.mxu0 0
        %4240 = vmatprep.subr.bf16.mxu0 0
        %4241 = vmatpush1.bf16.msra.mxu0 0
        %4242 = vmatprep.subr.bf16.mxu0 0
        %4243 = vmatpush1.bf16.msra.mxu0 0
        %4244 = vmatprep.subr.bf16.mxu0 0
        %4245 = vmatpush1.bf16.msra.mxu0 0
        %4246 = vmatprep.subr.bf16.mxu0 0
        %4247 = vmatpush1.bf16.msra.mxu0 0
        %4248 = vmatprep.subr.bf16.mxu0 0
        %4249 = vmatpush1.bf16.msra.mxu0 0
        %4250 = vmatprep.subr.bf16.mxu0 0
        %4251 = vmatpush1.bf16.msra.mxu0 0
        %4252 = vmatprep.subr.bf16.mxu0 0
        %4253 = vmatpush1.bf16.msra.mxu0 0
        %4254 = vmatprep.mubr.bf16.mxu0 0
        %4255 = vmatmul.mubr.bf16.gmra.mrb[0].mxu0 %v4217
        %v4256 = vpop.f32.mrb[0].mxu0
        %v4257 = vadd.f32 0.0, %v4256
        %v4258 = vpop.f32.mrb[0].mxu0
        %v4259 = vpop.f32.mrb[0].mxu0
        %v4260 = vpop.f32.mrb[0].mxu0
        %4261 = vdwg.mxu0
        %v4262 = vpack.c.bf16 %v4257, %v4257
        %v4265 = vunpack.c.l.b16 %v4003
        %v4266 = vunpack.c.l.b16 %v4004
        %v4267 = vpack.c.b16 %v4266, %v4265
        %v4270 = vsel %vm697, %v4262, 0
        %4272 = vmatprep.subr.bf16.mxu0 0
        %4273 = vmatpush1.bf16.msra.mxu0 %v4267
        %4274 = vmatprep.subr.bf16.mxu0 0
        %4275 = vmatpush1.bf16.msra.mxu0 0
        %4276 = vmatprep.subr.bf16.mxu0 0
        %4277 = vmatpush1.bf16.msra.mxu0 0
        %4278 = vmatprep.subr.bf16.mxu0 0
        %4279 = vmatpush1.bf16.msra.mxu0 0
        %4280 = vmatprep.subr.bf16.mxu0 0
        %4281 = vmatpush1.bf16.msra.mxu0 0
        %4282 = vmatprep.subr.bf16.mxu0 0
        %4283 = vmatpush1.bf16.msra.mxu0 0
        %4284 = vmatprep.subr.bf16.mxu0 0
        %4285 = vmatpush1.bf16.msra.mxu0 0
        %4286 = vmatprep.subr.bf16.mxu0 0
        %4287 = vmatpush1.bf16.msra.mxu0 0
        %4288 = vmatprep.subr.bf16.mxu0 0
        %4289 = vmatpush1.bf16.msra.mxu0 0
        %4290 = vmatprep.subr.bf16.mxu0 0
        %4291 = vmatpush1.bf16.msra.mxu0 0
        %4292 = vmatprep.subr.bf16.mxu0 0
        %4293 = vmatpush1.bf16.msra.mxu0 0
        %4294 = vmatprep.subr.bf16.mxu0 0
        %4295 = vmatpush1.bf16.msra.mxu0 0
        %4296 = vmatprep.subr.bf16.mxu0 0
        %4297 = vmatpush1.bf16.msra.mxu0 0
        %4298 = vmatprep.subr.bf16.mxu0 0
        %4299 = vmatpush1.bf16.msra.mxu0 0
        %4300 = vmatprep.subr.bf16.mxu0 0
        %4301 = vmatpush1.bf16.msra.mxu0 0
        %4302 = vmatprep.subr.bf16.mxu0 0
        %4303 = vmatpush1.bf16.msra.mxu0 0
        %4304 = vmatprep.mubr.bf16.mxu0 0
        %4305 = vmatmul.mubr.bf16.gmra.mrb[0].mxu0 %v4270
        %v4306 = vpop.f32.mrb[0].mxu0
        %v4307 = vadd.f32 0.0, %v4306
        %v4308 = vpop.f32.mrb[0].mxu0
        %v4309 = vpop.f32.mrb[0].mxu0
        %v4310 = vpop.f32.mrb[0].mxu0
        %4311 = vdwg.mxu0
        %v4314 = vunpack.c.l.b16 %v4001
        %v4315 = vunpack.c.l.b16 %v4002
        %v4316 = vpack.c.b16 %v4315, %v4314
        %v4319 = vsel %vm697, %v4151, 0
        %4321 = vmatprep.subr.bf16.mxu0 0
        %4322 = vmatpush1.bf16.msra.mxu0 %v4316
        %4323 = vmatprep.subr.bf16.mxu0 0
        %4324 = vmatpush1.bf16.msra.mxu0 0
        %4325 = vmatprep.subr.bf16.mxu0 0
        %4326 = vmatpush1.bf16.msra.mxu0 0
        %4327 = vmatprep.subr.bf16.mxu0 0
        %4328 = vmatpush1.bf16.msra.mxu0 0
        %4329 = vmatprep.subr.bf16.mxu0 0
        %4330 = vmatpush1.bf16.msra.mxu0 0
        %4331 = vmatprep.subr.bf16.mxu0 0
        %4332 = vmatpush1.bf16.msra.mxu0 0
        %4333 = vmatprep.subr.bf16.mxu0 0
        %4334 = vmatpush1.bf16.msra.mxu0 0
        %4335 = vmatprep.subr.bf16.mxu0 0
        %4336 = vmatpush1.bf16.msra.mxu0 0
        %4337 = vmatprep.subr.bf16.mxu0 0
        %4338 = vmatpush1.bf16.msra.mxu0 0
        %4339 = vmatprep.subr.bf16.mxu0 0
        %4340 = vmatpush1.bf16.msra.mxu0 0
        %4341 = vmatprep.subr.bf16.mxu0 0
        %4342 = vmatpush1.bf16.msra.mxu0 0
        %4343 = vmatprep.subr.bf16.mxu0 0
        %4344 = vmatpush1.bf16.msra.mxu0 0
        %4345 = vmatprep.subr.bf16.mxu0 0
        %4346 = vmatpush1.bf16.msra.mxu0 0
        %4347 = vmatprep.subr.bf16.mxu0 0
        %4348 = vmatpush1.bf16.msra.mxu0 0
        %4349 = vmatprep.subr.bf16.mxu0 0
        %4350 = vmatpush1.bf16.msra.mxu0 0
        %4351 = vmatprep.subr.bf16.mxu0 0
        %4352 = vmatpush1.bf16.msra.mxu0 0
        %4353 = vmatprep.mubr.bf16.mxu0 0
        %4354 = vmatmul.mubr.bf16.gmra.mrb[0].mxu0 %v4319
        %v4355 = vpop.f32.mrb[0].mxu0
        %v4356 = vadd.f32 %v4307, %v4355
        %v4357 = vpop.f32.mrb[0].mxu0
        %v4358 = vpop.f32.mrb[0].mxu0
        %v4359 = vpop.f32.mrb[0].mxu0
        %4360 = vdwg.mxu0
        %v4361 = vpack.c.bf16 %v4034, %v4033
        %4362 = vrot.lane.b32.xlu0 %v4045, 96
        %v4363 = vpop.permute.xlu0 %4362
        %v4365 = vsel %vm697, %v4363, 0
        %4367 = vmatprep.subr.bf16.mxu0 0
        %4368 = vmatpush1.bf16.msra.mxu0 %v4361
        %4369 = vmatprep.subr.bf16.mxu0 0
        %4370 = vmatpush1.bf16.msra.mxu0 0
        %4371 = vmatprep.subr.bf16.mxu0 0
        %4372 = vmatpush1.bf16.msra.mxu0 0
        %4373 = vmatprep.subr.bf16.mxu0 0
        %4374 = vmatpush1.bf16.msra.mxu0 0
        %4375 = vmatprep.subr.bf16.mxu0 0
        %4376 = vmatpush1.bf16.msra.mxu0 0
        %4377 = vmatprep.subr.bf16.mxu0 0
        %4378 = vmatpush1.bf16.msra.mxu0 0
        %4379 = vmatprep.subr.bf16.mxu0 0
        %4380 = vmatpush1.bf16.msra.mxu0 0
        %4381 = vmatprep.subr.bf16.mxu0 0
        %4382 = vmatpush1.bf16.msra.mxu0 0
        %4383 = vmatprep.subr.bf16.mxu0 0
        %4384 = vmatpush1.bf16.msra.mxu0 0
        %4385 = vmatprep.subr.bf16.mxu0 0
        %4386 = vmatpush1.bf16.msra.mxu0 0
        %4387 = vmatprep.subr.bf16.mxu0 0
        %4388 = vmatpush1.bf16.msra.mxu0 0
        %4389 = vmatprep.subr.bf16.mxu0 0
        %4390 = vmatpush1.bf16.msra.mxu0 0
        %4391 = vmatprep.subr.bf16.mxu0 0
        %4392 = vmatpush1.bf16.msra.mxu0 0
        %4393 = vmatprep.subr.bf16.mxu0 0
        %4394 = vmatpush1.bf16.msra.mxu0 0
        %4395 = vmatprep.subr.bf16.mxu0 0
        %4396 = vmatpush1.bf16.msra.mxu0 0
        %4397 = vmatprep.subr.bf16.mxu0 0
        %4398 = vmatpush1.bf16.msra.mxu0 0
        %4399 = vmatprep.mubr.bf16.mxu0 0
        %4400 = vmatmul.mubr.bf16.gmra.mrb[0].mxu0 %v4365
        %v4401 = vpop.f32.mrb[0].mxu0
        %v4402 = vadd.f32 0.0, %v4401
        %v4403 = vpop.f32.mrb[0].mxu0
        %v4404 = vpop.f32.mrb[0].mxu0
        %v4405 = vpop.f32.mrb[0].mxu0
        %4406 = vdwg.mxu0
        %v4407 = vmul.f32 %v4402, 0.125
        %v4408 = vadd.f32 %v4407, %v529
        %v4409 = vsel %vm743, %v4408, -inf
        %4410 = vmax.xlane.f32.xlu0 %v4409
        %v4411 = vpop.xlane.xlu0 %4410
        %v4412 = vsub.f32 %v4408, %v4411
        %v4413 = vmul.f32 %v4412, 1.442695
        %v4414 = vpow.pop %v4413
        %v4415 = vsel %vm743, %v4414, 0.0
        %4416 = vadd.xlane.f32.xlu0 %v4415
        %v4417 = vpop.xlane.xlu0 %4416
        %v4418 = vrcp.pop %v4417
        %v4419 = vmul.f32 %v4414, %v4418
        %v4420 = vpack.c.bf16 %v4419, %v4419
        %4421 = vrot.lane.b32.xlu0 %v4047, 96
        %v4422 = vpop.permute.xlu0 %4421
        %v4424 = vsel %vm743, %v4420, 0
        %v4427 = vsel %vm759, %v4422, 0
        %4429 = vmatprep.subr.bf16.mxu0 0
        %4430 = vmatpush1.bf16.msra.mxu0 %v4427
        %4431 = vmatprep.subr.bf16.mxu0 0
        %4432 = vmatpush1.bf16.msra.mxu0 0
        %4433 = vmatprep.subr.bf16.mxu0 0
        %4434 = vmatpush1.bf16.msra.mxu0 0
        %4435 = vmatprep.subr.bf16.mxu0 0
        %4436 = vmatpush1.bf16.msra.mxu0 0
        %4437 = vmatprep.subr.bf16.mxu0 0
        %4438 = vmatpush1.bf16.msra.mxu0 0
        %4439 = vmatprep.subr.bf16.mxu0 0
        %4440 = vmatpush1.bf16.msra.mxu0 0
        %4441 = vmatprep.subr.bf16.mxu0 0
        %4442 = vmatpush1.bf16.msra.mxu0 0
        %4443 = vmatprep.subr.bf16.mxu0 0
        %4444 = vmatpush1.bf16.msra.mxu0 0
        %4445 = vmatprep.subr.bf16.mxu0 0
        %4446 = vmatpush1.bf16.msra.mxu0 0
        %4447 = vmatprep.subr.bf16.mxu0 0
        %4448 = vmatpush1.bf16.msra.mxu0 0
        %4449 = vmatprep.subr.bf16.mxu0 0
        %4450 = vmatpush1.bf16.msra.mxu0 0
        %4451 = vmatprep.subr.bf16.mxu0 0
        %4452 = vmatpush1.bf16.msra.mxu0 0
        %4453 = vmatprep.subr.bf16.mxu0 0
        %4454 = vmatpush1.bf16.msra.mxu0 0
        %4455 = vmatprep.subr.bf16.mxu0 0
        %4456 = vmatpush1.bf16.msra.mxu0 0
        %4457 = vmatprep.subr.bf16.mxu0 0
        %4458 = vmatpush1.bf16.msra.mxu0 0
        %4459 = vmatprep.subr.bf16.mxu0 0
        %4460 = vmatpush1.bf16.msra.mxu0 0
        %4461 = vmatprep.mubr.bf16.mxu0 0
        %4462 = vmatmul.mubr.bf16.gmra.mrb[0].mxu0 %v4424
        %v4463 = vpop.f32.mrb[0].mxu0
        %v4464 = vadd.f32 0.0, %v4463
        %v4465 = vpop.f32.mrb[0].mxu0
        %v4466 = vpop.f32.mrb[0].mxu0
        %v4467 = vpop.f32.mrb[0].mxu0
        %4468 = vdwg.mxu0
        %v4469 = vpack.c.bf16 %v4464, %v4464
        %v4472 = vunpack.c.l.b16 %v4005
        %v4473 = vunpack.c.l.b16 %v4006
        %v4474 = vpack.c.b16 %v4473, %v4472
        %v4477 = vsel %vm697, %v4469, 0
        %4479 = vmatprep.subr.bf16.mxu0 0
        %4480 = vmatpush1.bf16.msra.mxu0 %v4474
        %4481 = vmatprep.subr.bf16.mxu0 0
        %4482 = vmatpush1.bf16.msra.mxu0 0
        %4483 = vmatprep.subr.bf16.mxu0 0
        %4484 = vmatpush1.bf16.msra.mxu0 0
        %4485 = vmatprep.subr.bf16.mxu0 0
        %4486 = vmatpush1.bf16.msra.mxu0 0
        %4487 = vmatprep.subr.bf16.mxu0 0
        %4488 = vmatpush1.bf16.msra.mxu0 0
        %4489 = vmatprep.subr.bf16.mxu0 0
        %4490 = vmatpush1.bf16.msra.mxu0 0
        %4491 = vmatprep.subr.bf16.mxu0 0
        %4492 = vmatpush1.bf16.msra.mxu0 0
        %4493 = vmatprep.subr.bf16.mxu0 0
        %4494 = vmatpush1.bf16.msra.mxu0 0
        %4495 = vmatprep.subr.bf16.mxu0 0
        %4496 = vmatpush1.bf16.msra.mxu0 0
        %4497 = vmatprep.subr.bf16.mxu0 0
        %4498 = vmatpush1.bf16.msra.mxu0 0
        %4499 = vmatprep.subr.bf16.mxu0 0
        %4500 = vmatpush1.bf16.msra.mxu0 0
        %4501 = vmatprep.subr.bf16.mxu0 0
        %4502 = vmatpush1.bf16.msra.mxu0 0
        %4503 = vmatprep.subr.bf16.mxu0 0
        %4504 = vmatpush1.bf16.msra.mxu0 0
        %4505 = vmatprep.subr.bf16.mxu0 0
        %4506 = vmatpush1.bf16.msra.mxu0 0
        %4507 = vmatprep.subr.bf16.mxu0 0
        %4508 = vmatpush1.bf16.msra.mxu0 0
        %4509 = vmatprep.subr.bf16.mxu0 0
        %4510 = vmatpush1.bf16.msra.mxu0 0
        %4511 = vmatprep.mubr.bf16.mxu0 0
        %4512 = vmatmul.mubr.bf16.gmra.mrb[0].mxu0 %v4477
        %v4513 = vpop.f32.mrb[0].mxu0
        %v4514 = vadd.f32 0.0, %v4513
        %v4515 = vpop.f32.mrb[0].mxu0
        %v4516 = vpop.f32.mrb[0].mxu0
        %v4517 = vpop.f32.mrb[0].mxu0
        %4518 = vdwg.mxu0
        %v4519 = vadd.f32 %v4356, %v4514
        %v4520 = vpack.c.bf16 %v4036, %v4035
        %4521 = vrot.lane.b32.xlu0 %v4045, 80
        %v4522 = vpop.permute.xlu0 %4521
        %v4524 = vsel %vm697, %v4522, 0
        %4526 = vmatprep.subr.bf16.mxu0 0
        %4527 = vmatpush1.bf16.msra.mxu0 %v4520
        %4528 = vmatprep.subr.bf16.mxu0 0
        %4529 = vmatpush1.bf16.msra.mxu0 0
        %4530 = vmatprep.subr.bf16.mxu0 0
        %4531 = vmatpush1.bf16.msra.mxu0 0
        %4532 = vmatprep.subr.bf16.mxu0 0
        %4533 = vmatpush1.bf16.msra.mxu0 0
        %4534 = vmatprep.subr.bf16.mxu0 0
        %4535 = vmatpush1.bf16.msra.mxu0 0
        %4536 = vmatprep.subr.bf16.mxu0 0
        %4537 = vmatpush1.bf16.msra.mxu0 0
        %4538 = vmatprep.subr.bf16.mxu0 0
        %4539 = vmatpush1.bf16.msra.mxu0 0
        %4540 = vmatprep.subr.bf16.mxu0 0
        %4541 = vmatpush1.bf16.msra.mxu0 0
        %4542 = vmatprep.subr.bf16.mxu0 0
        %4543 = vmatpush1.bf16.msra.mxu0 0
        %4544 = vmatprep.subr.bf16.mxu0 0
        %4545 = vmatpush1.bf16.msra.mxu0 0
        %4546 = vmatprep.subr.bf16.mxu0 0
        %4547 = vmatpush1.bf16.msra.mxu0 0
        %4548 = vmatprep.subr.bf16.mxu0 0
        %4549 = vmatpush1.bf16.msra.mxu0 0
        %4550 = vmatprep.subr.bf16.mxu0 0
        %4551 = vmatpush1.bf16.msra.mxu0 0
        %4552 = vmatprep.subr.bf16.mxu0 0
        %4553 = vmatpush1.bf16.msra.mxu0 0
        %4554 = vmatprep.subr.bf16.mxu0 0
        %4555 = vmatpush1.bf16.msra.mxu0 0
        %4556 = vmatprep.subr.bf16.mxu0 0
        %4557 = vmatpush1.bf16.msra.mxu0 0
        %4558 = vmatprep.mubr.bf16.mxu0 0
        %4559 = vmatmul.mubr.bf16.gmra.mrb[0].mxu0 %v4524
        %v4560 = vpop.f32.mrb[0].mxu0
        %v4561 = vadd.f32 0.0, %v4560
        %v4562 = vpop.f32.mrb[0].mxu0
        %v4563 = vpop.f32.mrb[0].mxu0
        %v4564 = vpop.f32.mrb[0].mxu0
        %4565 = vdwg.mxu0
        %v4566 = vmul.f32 %v4561, 0.125
        %v4567 = vadd.f32 %v4566, %v529
        %v4568 = vsel %vm743, %v4567, -inf
        %4569 = vmax.xlane.f32.xlu0 %v4568
        %v4570 = vpop.xlane.xlu0 %4569
        %v4571 = vsub.f32 %v4567, %v4570
        %v4572 = vmul.f32 %v4571, 1.442695
        %v4573 = vpow.pop %v4572
        %v4574 = vsel %vm743, %v4573, 0.0
        %4575 = vadd.xlane.f32.xlu0 %v4574
        %v4576 = vpop.xlane.xlu0 %4575
        %v4577 = vrcp.pop %v4576
        %v4578 = vmul.f32 %v4573, %v4577
        %v4579 = vpack.c.bf16 %v4578, %v4578
        %4580 = vrot.lane.b32.xlu0 %v4047, 80
        %v4581 = vpop.permute.xlu0 %4580
        %v4583 = vsel %vm743, %v4579, 0
        %v4586 = vsel %vm759, %v4581, 0
        %4588 = vmatprep.subr.bf16.mxu0 0
        %4589 = vmatpush1.bf16.msra.mxu0 %v4586
        %4590 = vmatprep.subr.bf16.mxu0 0
        %4591 = vmatpush1.bf16.msra.mxu0 0
        %4592 = vmatprep.subr.bf16.mxu0 0
        %4593 = vmatpush1.bf16.msra.mxu0 0
        %4594 = vmatprep.subr.bf16.mxu0 0
        %4595 = vmatpush1.bf16.msra.mxu0 0
        %4596 = vmatprep.subr.bf16.mxu0 0
        %4597 = vmatpush1.bf16.msra.mxu0 0
        %4598 = vmatprep.subr.bf16.mxu0 0
        %4599 = vmatpush1.bf16.msra.mxu0 0
        %4600 = vmatprep.subr.bf16.mxu0 0
        %4601 = vmatpush1.bf16.msra.mxu0 0
        %4602 = vmatprep.subr.bf16.mxu0 0
        %4603 = vmatpush1.bf16.msra.mxu0 0
        %4604 = vmatprep.subr.bf16.mxu0 0
        %4605 = vmatpush1.bf16.msra.mxu0 0
        %4606 = vmatprep.subr.bf16.mxu0 0
        %4607 = vmatpush1.bf16.msra.mxu0 0
        %4608 = vmatprep.subr.bf16.mxu0 0
        %4609 = vmatpush1.bf16.msra.mxu0 0
        %4610 = vmatprep.subr.bf16.mxu0 0
        %4611 = vmatpush1.bf16.msra.mxu0 0
        %4612 = vmatprep.subr.bf16.mxu0 0
        %4613 = vmatpush1.bf16.msra.mxu0 0
        %4614 = vmatprep.subr.bf16.mxu0 0
        %4615 = vmatpush1.bf16.msra.mxu0 0
        %4616 = vmatprep.subr.bf16.mxu0 0
        %4617 = vmatpush1.bf16.msra.mxu0 0
        %4618 = vmatprep.subr.bf16.mxu0 0
        %4619 = vmatpush1.bf16.msra.mxu0 0
        %4620 = vmatprep.mubr.bf16.mxu0 0
        %4621 = vmatmul.mubr.bf16.gmra.mrb[0].mxu0 %v4583
        %v4622 = vpop.f32.mrb[0].mxu0
        %v4623 = vadd.f32 0.0, %v4622
        %v4624 = vpop.f32.mrb[0].mxu0
        %v4625 = vpop.f32.mrb[0].mxu0
        %v4626 = vpop.f32.mrb[0].mxu0
        %4627 = vdwg.mxu0
        %v4628 = vpack.c.bf16 %v4623, %v4623
        %v4631 = vunpack.c.l.b16 %v4007
        %v4632 = vunpack.c.l.b16 %v4008
        %v4633 = vpack.c.b16 %v4632, %v4631
        %v4636 = vsel %vm697, %v4628, 0
        %4638 = vmatprep.subr.bf16.mxu0 0
        %4639 = vmatpush1.bf16.msra.mxu0 %v4633
        %4640 = vmatprep.subr.bf16.mxu0 0
        %4641 = vmatpush1.bf16.msra.mxu0 0
        %4642 = vmatprep.subr.bf16.mxu0 0
        %4643 = vmatpush1.bf16.msra.mxu0 0
        %4644 = vmatprep.subr.bf16.mxu0 0
        %4645 = vmatpush1.bf16.msra.mxu0 0
        %4646 = vmatprep.subr.bf16.mxu0 0
        %4647 = vmatpush1.bf16.msra.mxu0 0
        %4648 = vmatprep.subr.bf16.mxu0 0
        %4649 = vmatpush1.bf16.msra.mxu0 0
        %4650 = vmatprep.subr.bf16.mxu0 0
        %4651 = vmatpush1.bf16.msra.mxu0 0
        %4652 = vmatprep.subr.bf16.mxu0 0
        %4653 = vmatpush1.bf16.msra.mxu0 0
        %4654 = vmatprep.subr.bf16.mxu0 0
        %4655 = vmatpush1.bf16.msra.mxu0 0
        %4656 = vmatprep.subr.bf16.mxu0 0
        %4657 = vmatpush1.bf16.msra.mxu0 0
        %4658 = vmatprep.subr.bf16.mxu0 0
        %4659 = vmatpush1.bf16.msra.mxu0 0
        %4660 = vmatprep.subr.bf16.mxu0 0
        %4661 = vmatpush1.bf16.msra.mxu0 0
        %4662 = vmatprep.subr.bf16.mxu0 0
        %4663 = vmatpush1.bf16.msra.mxu0 0
        %4664 = vmatprep.subr.bf16.mxu0 0
        %4665 = vmatpush1.bf16.msra.mxu0 0
        %4666 = vmatprep.subr.bf16.mxu0 0
        %4667 = vmatpush1.bf16.msra.mxu0 0
        %4668 = vmatprep.subr.bf16.mxu0 0
        %4669 = vmatpush1.bf16.msra.mxu0 0
        %4670 = vmatprep.mubr.bf16.mxu0 0
        %4671 = vmatmul.mubr.bf16.gmra.mrb[0].mxu0 %v4636
        %v4672 = vpop.f32.mrb[0].mxu0
        %v4673 = vadd.f32 0.0, %v4672
        %v4674 = vpop.f32.mrb[0].mxu0
        %v4675 = vpop.f32.mrb[0].mxu0
        %v4676 = vpop.f32.mrb[0].mxu0
        %4677 = vdwg.mxu0
        %v4678 = vadd.f32 %v4519, %v4673
        %v4679 = vadd.f32 %v3878, %v4678
        %v4680 = vlaneseq
        %v4681 = vshrl.u32 %v4680, 7
        %v4682 = vsub.s32 4, %v4681
        %v4683 = vrot.slane %v3880, %v4682
        %v4684 = vadd.f32 %v4679, %v4683
        %v4685 = vsel %vm455, %v4684, 0.0
        %4686 = vadd.xlane.f32.xlu0 %v4685
        %v4687 = vpop.xlane.xlu0 %4686
        %v4688 = vmul.f32 %v4687, %v534
        %v4689 = vmul.f32 %v4684, %v4684
        %v4690 = vsel %vm455, %v4689, 0.0
        %4691 = vadd.xlane.f32.xlu0 %v4690
        %v4692 = vpop.xlane.xlu0 %4691
        %v4693 = vmul.f32 %v4692, %v534
        %v4694 = vmul.f32 %v4688, %v4688
        %v4695 = vsub.f32 %v4693, %v4694
        %v4696 = vsub.f32 %v4684, %v4688
        %v4697 = vadd.f32 %v4695, 1e-05
        %v4698 = vrsqrt.pop %v4697
        %v4699 = vmul.f32 %v4696, %v4698
        %v4700 = vlaneseq
        %v4701 = vshrl.u32 %v4700, 7
        %v4702 = vsub.s32 2, %v4701
        %v4703 = vrot.slane %v3880, %v4702
        %v4704 = vmul.f32 %v4699, %v4703
        %v4705 = vlaneseq
        %v4706 = vshrl.u32 %v4705, 7
        %v4707 = vsub.s32 3, %v4706
        %v4708 = vrot.slane %v3880, %v4707
        %v4709 = vadd.f32 %v4704, %v4708
        %v4710 = vpack.c.bf16 %v4709, %v4709
        %s4711 = scalar_lea.vmem %s6, 192
        %v4712 = vld [vmem:[%s4711] sm:$0xff]
        %v4713 = vld [vmem:[%s4711 + $0x8] sm:$0xff]
        %v4714 = vld [vmem:[%s4711 + $0x10] sm:$0xff]
        %v4715 = vld [vmem:[%s4711 + $0x18] sm:$0xff]
        %v4716 = vld [vmem:[%s4711 + $0x20] sm:$0xff]
        %v4717 = vld [vmem:[%s4711 + $0x28] sm:$0xff]
        %v4718 = vld [vmem:[%s4711 + $0x30] sm:$0xff]
        %v4719 = vld [vmem:[%s4711 + $0x38] sm:$0xff]
        %s4720 = scalar_lea.vmem %s9, 6
        %v4721 = vld [vmem:[%s4720] sm:$0x3]
        %v4723 = vlaneseq
        %v4724 = vshrl.u32 %v4723, 7
        %v4725 = vsub.s32 0, %v4724
        %v4726 = vrot.slane %v4721, %v4725
        %v4727 = vlaneseq
        %v4728 = vshrl.u32 %v4727, 7
        %v4729 = vsub.s32 1, %v4728
        %v4730 = vrot.slane %v4721, %v4729
        %v4741 = vunpack.c.l.b16 %v4712
        %v4742 = vunpack.c.h.b16 %v4712
        %v4743 = vunpack.c.l.b16 %v4713
        %v4744 = vunpack.c.h.b16 %v4713
        %v4745 = vunpack.c.l.b16 %v4714
        %v4746 = vunpack.c.h.b16 %v4714
        %v4747 = vunpack.c.l.b16 %v4715
        %v4748 = vunpack.c.h.b16 %v4715
        %v4749 = vunpack.c.l.b16 %v4716
        %v4750 = vunpack.c.h.b16 %v4716
        %v4751 = vunpack.c.l.b16 %v4717
        %v4752 = vunpack.c.h.b16 %v4717
        %v4753 = vunpack.c.l.b16 %v4718
        %v4754 = vunpack.c.h.b16 %v4718
        %v4755 = vunpack.c.l.b16 %v4719
        %v4756 = vunpack.c.h.b16 %v4719
        %v4757 = vpack.c.b16 %v4743, %v4741
        %v4758 = vpack.c.b16 %v4744, %v4742
        %v4759 = vpack.c.b16 %v4747, %v4745
        %v4760 = vpack.c.b16 %v4748, %v4746
        %v4761 = vpack.c.b16 %v4751, %v4749
        %v4762 = vpack.c.b16 %v4752, %v4750
        %v4763 = vpack.c.b16 %v4755, %v4753
        %v4764 = vpack.c.b16 %v4756, %v4754
        %v4774 = vsel %vm455, %v4710, 0
        %4776 = vmatprep.subr.bf16.mxu0 %v4758
        %4777 = vmatpush1.bf16.msra.mxu0 %v4757
        %4778 = vmatprep.subr.bf16.mxu0 %v4760
        %4779 = vmatpush1.bf16.msra.mxu0 %v4759
        %4780 = vmatprep.subr.bf16.mxu0 %v4762
        %4781 = vmatpush1.bf16.msra.mxu0 %v4761
        %4782 = vmatprep.subr.bf16.mxu0 %v4764
        %4783 = vmatpush1.bf16.msra.mxu0 %v4763
        %4784 = vmatprep.subr.bf16.mxu0 0
        %4785 = vmatpush1.bf16.msra.mxu0 0
        %4786 = vmatprep.subr.bf16.mxu0 0
        %4787 = vmatpush1.bf16.msra.mxu0 0
        %4788 = vmatprep.subr.bf16.mxu0 0
        %4789 = vmatpush1.bf16.msra.mxu0 0
        %4790 = vmatprep.subr.bf16.mxu0 0
        %4791 = vmatpush1.bf16.msra.mxu0 0
        %4792 = vmatprep.subr.bf16.mxu0 0
        %4793 = vmatpush1.bf16.msra.mxu0 0
        %4794 = vmatprep.subr.bf16.mxu0 0
        %4795 = vmatpush1.bf16.msra.mxu0 0
        %4796 = vmatprep.subr.bf16.mxu0 0
        %4797 = vmatpush1.bf16.msra.mxu0 0
        %4798 = vmatprep.subr.bf16.mxu0 0
        %4799 = vmatpush1.bf16.msra.mxu0 0
        %4800 = vmatprep.subr.bf16.mxu0 0
        %4801 = vmatpush1.bf16.msra.mxu0 0
        %4802 = vmatprep.subr.bf16.mxu0 0
        %4803 = vmatpush1.bf16.msra.mxu0 0
        %4804 = vmatprep.subr.bf16.mxu0 0
        %4805 = vmatpush1.bf16.msra.mxu0 0
        %4806 = vmatprep.subr.bf16.mxu0 0
        %4807 = vmatpush1.bf16.msra.mxu0 0
        %4808 = vmatprep.mubr.bf16.mxu0 0
        %4809 = vmatmul.mubr.bf16.gmra.mrb[0].mxu0 %v4774
        %v4810 = vpop.f32.mrb[0].mxu0
        %v4811 = vadd.f32 %v4726, %v4810
        %v4812 = vpop.f32.mrb[0].mxu0
        %v4813 = vadd.f32 %v4730, %v4812
        %v4814 = vpop.f32.mrb[0].mxu0
        %v4815 = vpop.f32.mrb[0].mxu0
        %4816 = vdwg.mxu0
        %v4817 = vmax.f32 %v4811, 0.0
        %v4818 = vmax.f32 %v4813, 0.0
        %v4819 = vpack.c.bf16 %v4817, %v4817
        %v4820 = vpack.c.bf16 %v4818, %v4818
        %s4821 = scalar_lea.vmem %s7, 384
        %v4822 = vld [vmem:[%s4821] sm:$0xf]
        %v4823 = vld [vmem:[%s4821 + $0x4] sm:$0xf]
        %v4824 = vld [vmem:[%s4821 + $0x8] sm:$0xf]
        %v4825 = vld [vmem:[%s4821 + $0xc] sm:$0xf]
        %v4826 = vld [vmem:[%s4821 + $0x10] sm:$0xf]
        %v4827 = vld [vmem:[%s4821 + $0x14] sm:$0xf]
        %v4828 = vld [vmem:[%s4821 + $0x18] sm:$0xf]
        %v4829 = vld [vmem:[%s4821 + $0x1c] sm:$0xf]
        %v4830 = vld [vmem:[%s4821 + $0x20] sm:$0xf]
        %v4831 = vld [vmem:[%s4821 + $0x24] sm:$0xf]
        %v4832 = vld [vmem:[%s4821 + $0x28] sm:$0xf]
        %v4833 = vld [vmem:[%s4821 + $0x2c] sm:$0xf]
        %v4834 = vld [vmem:[%s4821 + $0x30] sm:$0xf]
        %v4835 = vld [vmem:[%s4821 + $0x34] sm:$0xf]
        %v4836 = vld [vmem:[%s4821 + $0x38] sm:$0xf]
        %v4837 = vld [vmem:[%s4821 + $0x3c] sm:$0xf]
        %v4838 = vld [vmem:[%s4821 + $0x40] sm:$0xf]
        %v4839 = vld [vmem:[%s4821 + $0x44] sm:$0xf]
        %v4840 = vld [vmem:[%s4821 + $0x48] sm:$0xf]
        %v4841 = vld [vmem:[%s4821 + $0x4c] sm:$0xf]
        %v4842 = vld [vmem:[%s4821 + $0x50] sm:$0xf]
        %v4843 = vld [vmem:[%s4821 + $0x54] sm:$0xf]
        %v4844 = vld [vmem:[%s4821 + $0x58] sm:$0xf]
        %v4845 = vld [vmem:[%s4821 + $0x5c] sm:$0xf]
        %v4846 = vld [vmem:[%s4821 + $0x60] sm:$0xf]
        %v4847 = vld [vmem:[%s4821 + $0x64] sm:$0xf]
        %v4848 = vld [vmem:[%s4821 + $0x68] sm:$0xf]
        %v4849 = vld [vmem:[%s4821 + $0x6c] sm:$0xf]
        %v4850 = vld [vmem:[%s4821 + $0x70] sm:$0xf]
        %v4851 = vld [vmem:[%s4821 + $0x74] sm:$0xf]
        %v4852 = vld [vmem:[%s4821 + $0x78] sm:$0xf]
        %v4853 = vld [vmem:[%s4821 + $0x7c] sm:$0xf]
        %v4886 = vunpack.c.l.b16 %v4822
        %v4887 = vunpack.c.l.b16 %v4823
        %v4888 = vunpack.c.l.b16 %v4824
        %v4889 = vunpack.c.l.b16 %v4825
        %v4890 = vunpack.c.l.b16 %v4826
        %v4891 = vunpack.c.l.b16 %v4827
        %v4892 = vunpack.c.l.b16 %v4828
        %v4893 = vunpack.c.l.b16 %v4829
        %v4894 = vunpack.c.l.b16 %v4830
        %v4895 = vunpack.c.l.b16 %v4831
        %v4896 = vunpack.c.l.b16 %v4832
        %v4897 = vunpack.c.l.b16 %v4833
        %v4898 = vunpack.c.l.b16 %v4834
        %v4899 = vunpack.c.l.b16 %v4835
        %v4900 = vunpack.c.l.b16 %v4836
        %v4901 = vunpack.c.l.b16 %v4837
        %v4902 = vunpack.c.l.b16 %v4838
        %v4903 = vunpack.c.l.b16 %v4839
        %v4904 = vunpack.c.l.b16 %v4840
        %v4905 = vunpack.c.l.b16 %v4841
        %v4906 = vunpack.c.l.b16 %v4842
        %v4907 = vunpack.c.l.b16 %v4843
        %v4908 = vunpack.c.l.b16 %v4844
        %v4909 = vunpack.c.l.b16 %v4845
        %v4910 = vunpack.c.l.b16 %v4846
        %v4911 = vunpack.c.l.b16 %v4847
        %v4912 = vunpack.c.l.b16 %v4848
        %v4913 = vunpack.c.l.b16 %v4849
        %v4914 = vunpack.c.l.b16 %v4850
        %v4915 = vunpack.c.l.b16 %v4851
        %v4916 = vunpack.c.l.b16 %v4852
        %v4917 = vunpack.c.l.b16 %v4853
        %v4918 = vpack.c.b16 %v4887, %v4886
        %v4919 = vpack.c.b16 %v4889, %v4888
        %v4920 = vpack.c.b16 %v4891, %v4890
        %v4921 = vpack.c.b16 %v4893, %v4892
        %v4922 = vpack.c.b16 %v4895, %v4894
        %v4923 = vpack.c.b16 %v4897, %v4896
        %v4924 = vpack.c.b16 %v4899, %v4898
        %v4925 = vpack.c.b16 %v4901, %v4900
        %v4926 = vpack.c.b16 %v4903, %v4902
        %v4927 = vpack.c.b16 %v4905, %v4904
        %v4928 = vpack.c.b16 %v4907, %v4906
        %v4929 = vpack.c.b16 %v4909, %v4908
        %v4930 = vpack.c.b16 %v4911, %v4910
        %v4931 = vpack.c.b16 %v4913, %v4912
        %v4932 = vpack.c.b16 %v4915, %v4914
        %v4933 = vpack.c.b16 %v4917, %v4916
        %4950 = vmatprep.subr.bf16.mxu0 0
        %4951 = vmatpush1.bf16.msra.mxu0 %v4918
        %4952 = vmatprep.subr.bf16.mxu0 0
        %4953 = vmatpush1.bf16.msra.mxu0 %v4919
        %4954 = vmatprep.subr.bf16.mxu0 0
        %4955 = vmatpush1.bf16.msra.mxu0 %v4920
        %4956 = vmatprep.subr.bf16.mxu0 0
        %4957 = vmatpush1.bf16.msra.mxu0 %v4921
        %4958 = vmatprep.subr.bf16.mxu0 0
        %4959 = vmatpush1.bf16.msra.mxu0 %v4922
        %4960 = vmatprep.subr.bf16.mxu0 0
        %4961 = vmatpush1.bf16.msra.mxu0 %v4923
        %4962 = vmatprep.subr.bf16.mxu0 0
        %4963 = vmatpush1.bf16.msra.mxu0 %v4924
        %4964 = vmatprep.subr.bf16.mxu0 0
        %4965 = vmatpush1.bf16.msra.mxu0 %v4925
        %4966 = vmatprep.subr.bf16.mxu0 0
        %4967 = vmatpush1.bf16.msra.mxu0 %v4926
        %4968 = vmatprep.subr.bf16.mxu0 0
        %4969 = vmatpush1.bf16.msra.mxu0 %v4927
        %4970 = vmatprep.subr.bf16.mxu0 0
        %4971 = vmatpush1.bf16.msra.mxu0 %v4928
        %4972 = vmatprep.subr.bf16.mxu0 0
        %4973 = vmatpush1.bf16.msra.mxu0 %v4929
        %4974 = vmatprep.subr.bf16.mxu0 0
        %4975 = vmatpush1.bf16.msra.mxu0 %v4930
        %4976 = vmatprep.subr.bf16.mxu0 0
        %4977 = vmatpush1.bf16.msra.mxu0 %v4931
        %4978 = vmatprep.subr.bf16.mxu0 0
        %4979 = vmatpush1.bf16.msra.mxu0 %v4932
        %4980 = vmatprep.subr.bf16.mxu0 0
        %4981 = vmatpush1.bf16.msra.mxu0 %v4933
        %4982 = vmatprep.mubr.bf16.mxu0 %v4820
        %4983 = vmatmul.mubr.bf16.gmra.mrb[0].mxu0 %v4819
        %v4984 = vpop.f32.mrb[0].mxu0
        %v4985 = vadd.f32 0.0, %v4984
        %v4986 = vpop.f32.mrb[0].mxu0
        %v4987 = vpop.f32.mrb[0].mxu0
        %v4988 = vpop.f32.mrb[0].mxu0
        %4989 = vdwg.mxu0
        %v4990 = vadd.f32 %v4684, %v4985
        %v4991 = vlaneseq
        %v4992 = vshrl.u32 %v4991, 7
        %v4993 = vsub.s32 5, %v4992
        %v4994 = vrot.slane %v3880, %v4993
        %v4995 = vadd.f32 %v4990, %v4994
        %v4996 = vld [vmem:[%s10] sm:$0xff]
        %v4997 = vsel %vm455, %v4995, 0.0
        %4998 = vadd.xlane.f32.xlu0 %v4997
        %v4999 = vpop.xlane.xlu0 %4998
        %v5000 = vmul.f32 %v4999, %v534
        %v5001 = vmul.f32 %v4995, %v4995
        %v5002 = vsel %vm455, %v5001, 0.0
        %5003 = vadd.xlane.f32.xlu0 %v5002
        %v5004 = vpop.xlane.xlu0 %5003
        %v5005 = vmul.f32 %v5004, %v534
        %v5006 = vmul.f32 %v5000, %v5000
        %v5007 = vsub.f32 %v5005, %v5006
        %v5008 = vsub.f32 %v4995, %v5000
        %v5009 = vadd.f32 %v5007, 1e-05
        %v5010 = vrsqrt.pop %v5009
        %v5011 = vmul.f32 %v5008, %v5010
        %v5012 = vlaneseq
        %v5013 = vshrl.u32 %v5012, 7
        %v5014 = vsub.s32 0, %v5013
        %v5015 = vrot.slane %v4996, %v5014
        %v5016 = vmul.f32 %v5011, %v5015
        %v5017 = vlaneseq
        %v5018 = vshrl.u32 %v5017, 7
        %v5019 = vsub.s32 1, %v5018
        %v5020 = vrot.slane %v4996, %v5019
        %v5021 = vadd.f32 %v5016, %v5020
        %v5022 = vpack.c.bf16 %v5021, %v5021
        %v5023 = vld [vmem:[%s11] sm:$0xf]
        %v5024 = vld [vmem:[%s11 + $0x4] sm:$0xf]
        %v5025 = vld [vmem:[%s11 + $0x8] sm:$0xf]
        %v5026 = vld [vmem:[%s11 + $0xc] sm:$0xf]
        %v5027 = vld [vmem:[%s11 + $0x10] sm:$0xf]
        %v5028 = vld [vmem:[%s11 + $0x14] sm:$0xf]
        %v5029 = vld [vmem:[%s11 + $0x18] sm:$0xf]
        %v5030 = vld [vmem:[%s11 + $0x1c] sm:$0xf]
        %v5031 = vld [vmem:[%s12] sm:$0x1]
        %v5033 = vlaneseq
        %v5034 = vshrl.u32 %v5033, 7
        %v5035 = vsub.s32 0, %v5034
        %v5036 = vrot.slane %v5031, %v5035
        %v5046 = vunpack.c.l.b16 %v5023
        %v5047 = vunpack.c.l.b16 %v5024
        %v5048 = vunpack.c.l.b16 %v5025
        %v5049 = vunpack.c.l.b16 %v5026
        %v5050 = vunpack.c.l.b16 %v5027
        %v5051 = vunpack.c.l.b16 %v5028
        %v5052 = vunpack.c.l.b16 %v5029
        %v5053 = vunpack.c.l.b16 %v5030
        %v5054 = vpack.c.b16 %v5047, %v5046
        %v5055 = vpack.c.b16 %v5049, %v5048
        %v5056 = vpack.c.b16 %v5051, %v5050
        %v5057 = vpack.c.b16 %v5053, %v5052
        %v5063 = vsel %vm455, %v5022, 0
        %5065 = vmatprep.subr.bf16.mxu0 0
        %5066 = vmatpush1.bf16.msra.mxu0 %v5054
        %5067 = vmatprep.subr.bf16.mxu0 0
        %5068 = vmatpush1.bf16.msra.mxu0 %v5055
        %5069 = vmatprep.subr.bf16.mxu0 0
        %5070 = vmatpush1.bf16.msra.mxu0 %v5056
        %5071 = vmatprep.subr.bf16.mxu0 0
        %5072 = vmatpush1.bf16.msra.mxu0 %v5057
        %5073 = vmatprep.subr.bf16.mxu0 0
        %5074 = vmatpush1.bf16.msra.mxu0 0
        %5075 = vmatprep.subr.bf16.mxu0 0
        %5076 = vmatpush1.bf16.msra.mxu0 0
        %5077 = vmatprep.subr.bf16.mxu0 0
        %5078 = vmatpush1.bf16.msra.mxu0 0
        %5079 = vmatprep.subr.bf16.mxu0 0
        %5080 = vmatpush1.bf16.msra.mxu0 0
        %5081 = vmatprep.subr.bf16.mxu0 0
        %5082 = vmatpush1.bf16.msra.mxu0 0
        %5083 = vmatprep.subr.bf16.mxu0 0
        %5084 = vmatpush1.bf16.msra.mxu0 0
        %5085 = vmatprep.subr.bf16.mxu0 0
        %5086 = vmatpush1.bf16.msra.mxu0 0
        %5087 = vmatprep.subr.bf16.mxu0 0
        %5088 = vmatpush1.bf16.msra.mxu0 0
        %5089 = vmatprep.subr.bf16.mxu0 0
        %5090 = vmatpush1.bf16.msra.mxu0 0
        %5091 = vmatprep.subr.bf16.mxu0 0
        %5092 = vmatpush1.bf16.msra.mxu0 0
        %5093 = vmatprep.subr.bf16.mxu0 0
        %5094 = vmatpush1.bf16.msra.mxu0 0
        %5095 = vmatprep.subr.bf16.mxu0 0
        %5096 = vmatpush1.bf16.msra.mxu0 0
        %5097 = vmatprep.mubr.bf16.mxu0 0
        %5098 = vmatmul.mubr.bf16.gmra.mrb[0].mxu0 %v5063
        %v5099 = vpop.f32.mrb[0].mxu0
        %v5100 = vadd.f32 %v5036, %v5099
        %v5101 = vpop.f32.mrb[0].mxu0
        %v5102 = vpop.f32.mrb[0].mxu0
        %v5103 = vpop.f32.mrb[0].mxu0
        %5104 = vdwg.mxu0
        %5105 = vst [vmem:[%s431] sm:$0xff] %v5100
        %s5106 = sand.u32 %s313, 1
        %s5107 = scalar_lea.sflag [#allocation3], %s5106
        %s5108 = sand.u32 %s313, 1
        %s5109 = smul.addr %s5108, 8
        %s5110 = scalar_lea.vmem [#allocation2], %s5109
        // Predicated region
        $region73: #{bigram_forward.1} parent=71 // pred_check
          %p5111 = pneg %p323
        $region74: #{bigram_forward.1} parent=71 // pred_check_branch
          %5113 = sbr.rel (%p5111) target = $region76
        $region75: #{bigram_forward.1} parent=71 // pred_region
          %s5115 = ssub.s32 128, 128
          %5116 = vsyncadd %s5107, %s5115
          %s5117 = smul.addr %s27, 128
          %s5118 = scalar_lea.hbm %s13, %s5117
          %s5120 = sshll.u32 %s5110, 4
          %s5121 = int_to_ptr.vmem [resolvable:$true] %s5120
          %5123 = dma.vmem_to_hbm [thread:$0]  %s5121, 128, %s5118, %s5107
        $region76: #{bigram_forward.1} parent=71 // pred_fallthru
          _
      $region72: #{bigram_forward.1} parent=5 // pred_fallthru
        _
      %p5124 = scmp.le.s32.totalorder 2, %s22
      // Predicated region
      $region77: #{bigram_forward.1} parent=5 // pred_check
        %p5125 = pneg %p5124
      $region78: #{bigram_forward.1} parent=5 // pred_check_branch
        %5127 = sbr.rel (%p5125) target = $region80
      $region79: #{bigram_forward.1} parent=5 // pred_region
        %s5128 = ssub.s32 %s22, 2
        // Predicated region
        $region81: #{bigram_forward.1} parent=79 // pred_check
          %p5129 = pneg %p329
        $region82: #{bigram_forward.1} parent=79 // pred_check_branch
          %5131 = sbr.rel (%p5129) target = $region84
        $region83: #{bigram_forward.1} parent=79 // pred_region
          %s5132 = sand.u32 %s314, 1
          %s5133 = scalar_lea.sflag [#allocation3], %s5132
          %s5134 = sand.u32 %s314, 1
          %s5135 = smul.addr %s5134, 8
          %s5136 = scalar_lea.vmem [#allocation2], %s5135
          %5137 = dma.done %s5133, 128
        $region84: #{bigram_forward.1} parent=79 // pred_fallthru
          _
      $region80: #{bigram_forward.1} parent=5 // pred_fallthru
        _
    $region6: #{bigram_forward.1} parent=1 // loop_footer
      %s26 = sadd.s32 1, %s22
    $region7: #{bigram_forward.1} parent=1 // loop_footer_branch
      %21 = sbr.rel target = $region3
    $region8: #{bigram_forward.1} parent=1 // loop_exit
      _
    %5138 = vsyncpa [#allocation3], 1
    %s5139 = scalar_lea.sflag [#allocation3], 1
    %5140 = vsyncpa %s5139, 1

</llo_original>
